<compile_context>
chip_gen: v5e
topology: v5e:2x2
jax: 0.10.0
libtpu: 0.0.40
codegen_flags: <defaults>
</compile_context>

<pallas_src>
import jax
import jax.numpy as jnp
from jax.experimental import pallas as pl
from jax.experimental.pallas import tpu as pltpu


# ----------------------------------------------------------------------------
# Generation-aware VMEM budgets
# ----------------------------------------------------------------------------
def _vmem_capacity_bytes():
    try:
        info = pltpu.get_tpu_info()
        for attr in ("vmem_capacity_bytes", "vmem_size_bytes", "vmem_bytes"):
            val = getattr(info, attr, None)
            if val:
                return int(val)
    except Exception:
        pass
    return 64 * 1024 * 1024  # conservative default: assume smallest (v7x) VMEM


def _budgets():
    """(per-buffer streamed-weight tile budget, scoped vmem_limit_bytes)."""
    cap = _vmem_capacity_bytes()
    if cap <= 96 * 1024 * 1024:                     # v7x-class: 64 MiB physical
        return 4 * 1024 * 1024, 40 * 1024 * 1024
    return 8 * 1024 * 1024, 64 * 1024 * 1024        # v5e / v6e: 128 MiB physical


def _choose_tk(K, N, wbytes, budget):
    """Largest 128-multiple K-tile that divides K and whose (tk, N) weight
    tile fits the per-buffer budget.  Never exceeds the budget; if even
    tk=128 does not fit it still returns 128 (smallest legal aligned tile)."""
    if K <= 128 or K % 128 != 0:
        return K
    max_tk = (budget // (N * wbytes)) // 128 * 128
    tk = int(min(K, max(128, max_tk)))
    while tk > 128 and K % tk != 0:
        tk -= 128
    return tk


# ----------------------------------------------------------------------------
# Fused forward kernel
#   grid = (K2 // tk,) over fc2's reduction axis.
#   Per step: x1_tile = relu(data @ w1[:, k] + b1[:, k]);  acc += x1_tile @ w2[k]
#   Last step: fc2 bias+relu, fc3, GRUCell gates, fc4/fc5/fc6 head.
# ----------------------------------------------------------------------------
def _critic_fused_kernel(data_ref, h_ref,
                         w1_ref, b1_ref, w2_ref, b2_ref, w3_ref, b3_ref,
                         wih_ref, whh_ref, bih_ref, bhh_ref,
                         w4_ref, b4_ref, w5_ref, b5_ref, w6_ref, b6_ref,
                         value_ref, grux_ref,
                         acc2_ref):
    f32 = jnp.float32
    bf16 = jnp.bfloat16
    k = pl.program_id(0)

    @pl.when(k == 0)
    def _():
        acc2_ref[...] = jnp.zeros_like(acc2_ref)

    # fc1 columns [k*tk, (k+1)*tk) computed on the fly (f32 MXU accumulation),
    # consumed immediately by the fc2 partial reduction -- never hits HBM.
    x1_tile = jnp.dot(data_ref[...].astype(bf16), w1_ref[...],
                      preferred_element_type=f32) + b1_ref[...]
    x1_tile = jnp.maximum(x1_tile, 0.0)
    acc2_ref[...] += jnp.dot(x1_tile.astype(bf16), w2_ref[...],
                             preferred_element_type=f32)

    @pl.when(k == pl.num_programs(0) - 1)
    def _():
        h = h_ref[...]
        H = h.shape[-1]

        x2 = jnp.maximum(acc2_ref[...] + b2_ref[...], 0.0)           # fc2 + ReLU
        x3 = jnp.dot(x2.astype(bf16), w3_ref[...],
                     preferred_element_type=f32) + b3_ref[...]        # fc3

        # nn.GRUCell.  ih path in bf16 (its input already went through bf16
        # layers); hh path fully in f32 so the recurrent state stays precise.
        gi = jnp.dot(x3.astype(bf16), wih_ref[...],
                     preferred_element_type=f32) + bih_ref[...]
        gh = jnp.dot(h, whh_ref[...], preferred_element_type=f32) + bhh_ref[...]
        r = jax.nn.sigmoid(gi[:, 0:H] + gh[:, 0:H])
        z = jax.nn.sigmoid(gi[:, H:2 * H] + gh[:, H:2 * H])
        n = jnp.tanh(gi[:, 2 * H:3 * H] + r * gh[:, 2 * H:3 * H])
        grux = (1.0 - z) * n + z * h
        grux_ref[...] = grux.astype(grux_ref.dtype)

        # Head: fc4 (ReLU) -> fc5 (ReLU) -> fc6.
        a = jnp.maximum(jnp.dot(grux.astype(bf16), w4_ref[...],
                                preferred_element_type=f32) + b4_ref[...], 0.0)
        a = jnp.maximum(jnp.dot(a.astype(bf16), w5_ref[...],
                                preferred_element_type=f32) + b5_ref[...], 0.0)
        v = jnp.dot(a, w6_ref[...].astype(f32),
                    preferred_element_type=f32) + b6_ref[...]
        value_ref[...] = v.astype(value_ref.dtype)


def critic_net_forward(params, data, h):
    """Mirrors CriticNet.forward: returns (value (B,1), grux (B, gru_size))."""
    B, input_size = data.shape
    _, gru_size = h.shape
    K2, N2 = params["fc2_w"].shape          # (4096, 2048)
    three_h = params["gru_w_ih"].shape[1]   # 3 * gru_size
    n4 = params["fc4_w"].shape[1]
    n5 = params["fc5_w"].shape[1]

    tile_budget, vmem_limit = _budgets()
    tk = _choose_tk(K2, N2, params["fc2_w"].dtype.itemsize, tile_budget)
    grid = (K2 // tk,)

    grid_spec = pltpu.PrefetchScalarGridSpec(
        num_scalar_prefetch=0,
        grid=grid,
        in_specs=[
            pl.BlockSpec((B, input_size), lambda k: (0, 0)),       # data
            pl.BlockSpec((B, gru_size), lambda k: (0, 0)),         # h
            pl.BlockSpec((input_size, tk), lambda k: (0, k)),      # fc1 w (tiled on k)
            pl.BlockSpec((1, tk), lambda k: (0, k)),               # fc1 b (tiled on k)
            pl.BlockSpec((tk, N2), lambda k: (k, 0)),              # fc2 w (streamed)
            pl.BlockSpec((1, N2), lambda k: (0, 0)),               # fc2 b (one DMA)
            pl.BlockSpec((N2, gru_size), lambda k: (0, 0)),        # fc3 w (resident)
            pl.BlockSpec((1, gru_size), lambda k: (0, 0)),         # fc3 b
            pl.BlockSpec((gru_size, three_h), lambda k: (0, 0)),   # gru w_ih
            pl.BlockSpec((gru_size, three_h), lambda k: (0, 0)),   # gru w_hh (f32)
            pl.BlockSpec((1, three_h), lambda k: (0, 0)),          # gru b_ih
            pl.BlockSpec((1, three_h), lambda k: (0, 0)),          # gru b_hh
            pl.BlockSpec((gru_size, n4), lambda k: (0, 0)),        # fc4 w
            pl.BlockSpec((1, n4), lambda k: (0, 0)),               # fc4 b
            pl.BlockSpec((n4, n5), lambda k: (0, 0)),              # fc5 w
            pl.BlockSpec((1, n5), lambda k: (0, 0)),               # fc5 b
            pl.BlockSpec((n5, 1), lambda k: (0, 0)),               # fc6 w
            pl.BlockSpec((1, 1), lambda k: (0, 0)),                # fc6 b
        ],
        out_specs=[
            pl.BlockSpec((B, 1), lambda k: (0, 0)),                # value
            pl.BlockSpec((B, gru_size), lambda k: (0, 0)),         # grux
        ],
        scratch_shapes=[pltpu.VMEM((B, N2), jnp.float32)],         # fc2 accumulator
    )

    value, grux = pl.pallas_call(
        _critic_fused_kernel,
        out_shape=(jax.ShapeDtypeStruct((B, 1), data.dtype),
                   jax.ShapeDtypeStruct((B, gru_size), data.dtype)),
        grid_spec=grid_spec,
        compiler_params=pltpu.CompilerParams(
            dimension_semantics=("arbitrary",),
            vmem_limit_bytes=vmem_limit),
    )(data, h,
      params["fc1_w"], params["fc1_b"],
      params["fc2_w"], params["fc2_b"],
      params["fc3_w"], params["fc3_b"],
      params["gru_w_ih"], params["gru_w_hh"],
      params["gru_b_ih"], params["gru_b_hh"],
      params["fc4_w"], params["fc4_b"],
      params["fc5_w"], params["fc5_b"],
      params["fc6_w"], params["fc6_b"])
    return value, grux


# ----------------------------------------------------------------------------
# Parameter construction (deterministic, mirrors CriticNet.__init__)
# ----------------------------------------------------------------------------
def normalized_columns_initializer(key, out_features, in_features, std=0.5):
    # Matches the PyTorch reference: out.pow(2).unsqueeze(0).sum(1) sums over
    # out_features (rows), i.e. each *column* is normalized.
    w = jax.random.normal(key, (out_features, in_features), dtype=jnp.float32)
    denom = jnp.sqrt(jnp.sum(w * w, axis=0, keepdims=True))
    return w * (std / denom)


def make_critic_params(key, input_size, gru_size, weight_dtype=jnp.bfloat16):
    dims = [
        ("fc1", input_size, 4096),
        ("fc2", 4096, 2048),
        ("fc3", 2048, gru_size),
        ("fc4", gru_size, 256),
        ("fc5", 256, 32),
        ("fc6", 32, 1),
    ]
    params = {}
    keys = jax.random.split(key, len(dims) + 2)
    for (name, fan_in, fan_out), k in zip(dims, keys[:len(dims)]):
        w = normalized_columns_initializer(k, fan_out, fan_in, std=0.5)
        # Stored transposed (in, out) in bf16: at tiny batch the forward is
        # HBM weight-streaming bound, so bf16 halves traffic (f32 accum).
        params[f"{name}_w"] = jnp.transpose(w).astype(weight_dtype)
        params[f"{name}_b"] = jnp.zeros((1, fan_out), jnp.float32)
    # GRUCell keeps the PyTorch default uniform(-1/sqrt(H), 1/sqrt(H)) weights;
    # the reference constructor zeroes only the GRU biases.
    stdv = 1.0 / jnp.sqrt(jnp.float32(gru_size))
    w_ih = jax.random.uniform(keys[-2], (3 * gru_size, gru_size),
                              jnp.float32, -stdv, stdv)
    w_hh = jax.random.uniform(keys[-1], (3 * gru_size, gru_size),
                              jnp.float32, -stdv, stdv)
    params["gru_w_ih"] = jnp.transpose(w_ih).astype(weight_dtype)   # (H, 3H) bf16
    params["gru_w_hh"] = jnp.transpose(w_hh).astype(jnp.float32)    # (H, 3H) f32 (recurrent path)
    params["gru_b_ih"] = jnp.zeros((1, 3 * gru_size), jnp.float32)
    params["gru_b_hh"] = jnp.zeros((1, 3 * gru_size), jnp.float32)
    return params


# ----------------------------------------------------------------------------
# Precision-mirrored pure-JAX reference (same bf16/f32 casts as the kernel)
# ----------------------------------------------------------------------------
def critic_net_reference(params, data, h):
    f32, bf16 = jnp.float32, jnp.bfloat16

    def lin(x, w, b):
        return jnp.dot(x.astype(bf16), w, preferred_element_type=f32) + b

    x1 = jnp.maximum(lin(data, params["fc1_w"], params["fc1_b"]), 0.0)
    x2 = jnp.maximum(lin(x1, params["fc2_w"], params["fc2_b"]), 0.0)
    x3 = lin(x2, params["fc3_w"], params["fc3_b"])
    gi = lin(x3, params["gru_w_ih"], params["gru_b_ih"])
    gh = jnp.dot(h, params["gru_w_hh"],
                 preferred_element_type=f32) + params["gru_b_hh"]
    H = h.shape[-1]
    r = jax.nn.sigmoid(gi[:, 0:H] + gh[:, 0:H])
    z = jax.nn.sigmoid(gi[:, H:2 * H] + gh[:, H:2 * H])
    n = jnp.tanh(gi[:, 2 * H:3 * H] + r * gh[:, 2 * H:3 * H])
    grux = (1.0 - z) * n + z * h
    a = jnp.maximum(lin(grux, params["fc4_w"], params["fc4_b"]), 0.0)
    a = jnp.maximum(lin(a, params["fc5_w"], params["fc5_b"]), 0.0)
    v = jnp.dot(a, params["fc6_w"].astype(f32),
                preferred_element_type=f32) + params["fc6_b"]
    return v, grux


if __name__ == "__main__":
    batch = 2
    input_size = 32
    gru_size = 256  # constructor arg kept small for the demo (PyTorch default: 1024)

    key = jax.random.PRNGKey(0)
    k_param, k_data, k_h = jax.random.split(key, 3)
    params = make_critic_params(k_param, input_size, gru_size)
    data = jax.random.normal(k_data, (batch, input_size), jnp.float32)
    h = jax.random.normal(k_h, (batch, gru_size), jnp.float32)

    fwd = jax.jit(critic_net_forward)
    value, grux = fwd(params, data, h)
    jax.block_until_ready((value, grux))

    assert value.shape == (batch, 1)
    assert grux.shape == (batch, gru_size)
    assert bool(jnp.all(jnp.isfinite(value))) and bool(jnp.all(jnp.isfinite(grux)))

    # Correctness check against a precision-mirrored pure-JAX reference.
    value_ref, grux_ref = jax.jit(critic_net_reference)(params, data, h)
    assert jnp.allclose(value, value_ref, atol=1e-2, rtol=1e-2)
    assert jnp.allclose(grux, grux_ref, atol=1e-2, rtol=1e-2)

    print("KERNEL_OK")
</pallas_src>

<mosaic_0001>
module attributes {stable_mosaic.version = 11 : i64} {
  func.func @_critic_fused_kernel(%arg0: i32, %arg1: memref<2x32xf32, #tpu.memory_space<vmem>>, %arg2: memref<2x256xf32, #tpu.memory_space<vmem>>, %arg3: memref<32x1024xbf16, #tpu.memory_space<vmem>>, %arg4: memref<1x1024xf32, #tpu.memory_space<vmem>>, %arg5: memref<1024x2048xbf16, #tpu.memory_space<vmem>>, %arg6: memref<1x2048xf32, #tpu.memory_space<vmem>>, %arg7: memref<2048x256xbf16, #tpu.memory_space<vmem>>, %arg8: memref<1x256xf32, #tpu.memory_space<vmem>>, %arg9: memref<256x768xbf16, #tpu.memory_space<vmem>>, %arg10: memref<256x768xf32, #tpu.memory_space<vmem>>, %arg11: memref<1x768xf32, #tpu.memory_space<vmem>>, %arg12: memref<1x768xf32, #tpu.memory_space<vmem>>, %arg13: memref<256x256xbf16, #tpu.memory_space<vmem>>, %arg14: memref<1x256xf32, #tpu.memory_space<vmem>>, %arg15: memref<256x32xbf16, #tpu.memory_space<vmem>>, %arg16: memref<1x32xf32, #tpu.memory_space<vmem>>, %arg17: memref<32x1xbf16, #tpu.memory_space<vmem>>, %arg18: memref<1x1xf32, #tpu.memory_space<vmem>>, %arg19: memref<2x1xf32, #tpu.memory_space<vmem>>, %arg20: memref<2x256xf32, #tpu.memory_space<vmem>>, %arg21: memref<2x2048xf32, #tpu.memory_space<vmem>>) attributes {dimension_semantics = [#tpu.dimension_semantics<arbitrary>], iteration_bounds = array<i64: 4>, scalar_prefetch = 0 : i64, scratch_operands = 1 : i64, tpu.core_type = #tpu.core_type<tc>, window_params = [{pipeline_mode = #tpu.pipeline_mode<synchronous>, transform_indices = @transform_0, window_bounds = array<i64: 2, 32>}, {pipeline_mode = #tpu.pipeline_mode<synchronous>, transform_indices = @transform_1, window_bounds = array<i64: 2, 256>}, {transform_indices = @transform_2, window_bounds = array<i64: 32, 1024>}, {transform_indices = @transform_3, window_bounds = array<i64: 1, 1024>}, {transform_indices = @transform_4, window_bounds = array<i64: 1024, 2048>}, {pipeline_mode = #tpu.pipeline_mode<synchronous>, transform_indices = @transform_5, window_bounds = array<i64: 1, 2048>}, {pipeline_mode = #tpu.pipeline_mode<synchronous>, transform_indices = @transform_6, window_bounds = array<i64: 2048, 256>}, {pipeline_mode = #tpu.pipeline_mode<synchronous>, transform_indices = @transform_7, window_bounds = array<i64: 1, 256>}, {pipeline_mode = #tpu.pipeline_mode<synchronous>, transform_indices = @transform_8, window_bounds = array<i64: 256, 768>}, {pipeline_mode = #tpu.pipeline_mode<synchronous>, transform_indices = @transform_9, window_bounds = array<i64: 256, 768>}, {pipeline_mode = #tpu.pipeline_mode<synchronous>, transform_indices = @transform_10, window_bounds = array<i64: 1, 768>}, {pipeline_mode = #tpu.pipeline_mode<synchronous>, transform_indices = @transform_11, window_bounds = array<i64: 1, 768>}, {pipeline_mode = #tpu.pipeline_mode<synchronous>, transform_indices = @transform_12, window_bounds = array<i64: 256, 256>}, {pipeline_mode = #tpu.pipeline_mode<synchronous>, transform_indices = @transform_13, window_bounds = array<i64: 1, 256>}, {pipeline_mode = #tpu.pipeline_mode<synchronous>, transform_indices = @transform_14, window_bounds = array<i64: 256, 32>}, {pipeline_mode = #tpu.pipeline_mode<synchronous>, transform_indices = @transform_15, window_bounds = array<i64: 1, 32>}, {pipeline_mode = #tpu.pipeline_mode<synchronous>, transform_indices = @transform_16, window_bounds = array<i64: 32, 1>}, {pipeline_mode = #tpu.pipeline_mode<synchronous>, transform_indices = @transform_17, window_bounds = array<i64: 1, 1>}, {pipeline_mode = #tpu.pipeline_mode<synchronous>, transform_indices = @transform_18, window_bounds = array<i64: 2, 1>}, {pipeline_mode = #tpu.pipeline_mode<synchronous>, transform_indices = @transform_19, window_bounds = array<i64: 2, 256>}]} {
    %c0_i32 = arith.constant 0 : i32
    %0 = arith.cmpi eq, %arg0, %c0_i32 : i32
    %1 = arith.extui %0 : i1 to i32
    %c0_i32_0 = arith.constant 0 : i32
    %2 = arith.cmpi ne, %1, %c0_i32_0 : i32
    scf.if %2 {
      %cst_15 = arith.constant 0.000000e+00 : f32
      %21 = vector.broadcast %cst_15 : f32 to vector<2x2048xf32>
      %c0_16 = arith.constant 0 : index
      %c0_17 = arith.constant 0 : index
      %22 = vector.load %arg21[%c0_16, %c0_17] : memref<2x2048xf32, #tpu.memory_space<vmem>>, vector<2x2048xf32>
      tpu.vector_store %arg21[%c0_16, %c0_17], %21 {strides = array<i32>} : memref<2x2048xf32, #tpu.memory_space<vmem>>, vector<2x2048xf32>,
    } else {
    }
    %c0 = arith.constant 0 : index
    %c0_1 = arith.constant 0 : index
    %3 = vector.load %arg1[%c0, %c0_1] : memref<2x32xf32, #tpu.memory_space<vmem>>, vector<2x32xf32>
    %4 = arith.truncf %3 : vector<2x32xf32> to vector<2x32xbf16>
    %c0_2 = arith.constant 0 : index
    %c0_3 = arith.constant 0 : index
    %5 = vector.load %arg3[%c0_2, %c0_3] : memref<32x1024xbf16, #tpu.memory_space<vmem>>, vector<32x1024xbf16>
    %cst = arith.constant dense<0.000000e+00> : vector<2x1024xf32>
    %6 = tpu.matmul %4, %5, %cst {dimension_numbers = #tpu.dot_dimension_numbers<[1], [0], [0], [1], [0, 0, 1, 1], [], []>} : vector<2x32xbf16>, vector<32x1024xbf16>, vector<2x1024xf32> -> vector<2x1024xf32>
    %c0_4 = arith.constant 0 : index
    %c0_5 = arith.constant 0 : index
    %7 = vector.load %arg4[%c0_4, %c0_5] : memref<1x1024xf32, #tpu.memory_space<vmem>>, vector<1x1024xf32>
    %8 = vector.broadcast %7 : vector<1x1024xf32> to vector<2x1024xf32>
    %9 = arith.addf %6, %8 : vector<2x1024xf32>
    %cst_6 = arith.constant 0.000000e+00 : f32
    %10 = vector.broadcast %cst_6 : f32 to vector<2x1024xf32>
    %11 = arith.maximumf %9, %10 : vector<2x1024xf32>
    %c0_7 = arith.constant 0 : index
    %c0_8 = arith.constant 0 : index
    %12 = vector.load %arg21[%c0_7, %c0_8] : memref<2x2048xf32, #tpu.memory_space<vmem>>, vector<2x2048xf32>
    %13 = arith.truncf %11 : vector<2x1024xf32> to vector<2x1024xbf16>
    %c0_9 = arith.constant 0 : index
    %c0_10 = arith.constant 0 : index
    %14 = vector.load %arg5[%c0_9, %c0_10] : memref<1024x2048xbf16, #tpu.memory_space<vmem>>, vector<1024x2048xbf16>
    %cst_11 = arith.constant dense<0.000000e+00> : vector<2x2048xf32>
    %15 = tpu.matmul %13, %14, %cst_11 {dimension_numbers = #tpu.dot_dimension_numbers<[1], [0], [0], [1], [0, 0, 1, 1], [], []>} : vector<2x1024xbf16>, vector<1024x2048xbf16>, vector<2x2048xf32> -> vector<2x2048xf32>
    %16 = arith.addf %12, %15 : vector<2x2048xf32>
    %c0_12 = arith.constant 0 : index
    %c0_13 = arith.constant 0 : index
    %17 = vector.load %arg21[%c0_12, %c0_13] : memref<2x2048xf32, #tpu.memory_space<vmem>>, vector<2x2048xf32>
    tpu.vector_store %arg21[%c0_12, %c0_13], %16 {strides = array<i32>} : memref<2x2048xf32, #tpu.memory_space<vmem>>, vector<2x2048xf32>,
    %c3_i32 = arith.constant 3 : i32
    %18 = arith.cmpi eq, %arg0, %c3_i32 : i32
    %19 = arith.extui %18 : i1 to i32
    %c0_i32_14 = arith.constant 0 : i32
    %20 = arith.cmpi ne, %19, %c0_i32_14 : i32
    scf.if %20 {
      %c0_15 = arith.constant 0 : index
      %c0_16 = arith.constant 0 : index
      %21 = vector.load %arg2[%c0_15, %c0_16] : memref<2x256xf32, #tpu.memory_space<vmem>>, vector<2x256xf32>
      %c0_17 = arith.constant 0 : index
      %c0_18 = arith.constant 0 : index
      %22 = vector.load %arg21[%c0_17, %c0_18] : memref<2x2048xf32, #tpu.memory_space<vmem>>, vector<2x2048xf32>
      %c0_19 = arith.constant 0 : index
      %c0_20 = arith.constant 0 : index
      %23 = vector.load %arg6[%c0_19, %c0_20] : memref<1x2048xf32, #tpu.memory_space<vmem>>, vector<1x2048xf32>
      %24 = vector.broadcast %23 : vector<1x2048xf32> to vector<2x2048xf32>
      %25 = arith.addf %22, %24 : vector<2x2048xf32>
      %cst_21 = arith.constant 0.000000e+00 : f32
      %26 = vector.broadcast %cst_21 : f32 to vector<2x2048xf32>
      %27 = arith.maximumf %25, %26 : vector<2x2048xf32>
      %28 = arith.truncf %27 : vector<2x2048xf32> to vector<2x2048xbf16>
      %c0_22 = arith.constant 0 : index
      %c0_23 = arith.constant 0 : index
      %29 = vector.load %arg7[%c0_22, %c0_23] : memref<2048x256xbf16, #tpu.memory_space<vmem>>, vector<2048x256xbf16>
      %cst_24 = arith.constant dense<0.000000e+00> : vector<2x256xf32>
      %30 = tpu.matmul %28, %29, %cst_24 {dimension_numbers = #tpu.dot_dimension_numbers<[1], [0], [0], [1], [0, 0, 1, 1], [], []>} : vector<2x2048xbf16>, vector<2048x256xbf16>, vector<2x256xf32> -> vector<2x256xf32>
      %c0_25 = arith.constant 0 : index
      %c0_26 = arith.constant 0 : index
      %31 = vector.load %arg8[%c0_25, %c0_26] : memref<1x256xf32, #tpu.memory_space<vmem>>, vector<1x256xf32>
      %32 = vector.broadcast %31 : vector<1x256xf32> to vector<2x256xf32>
      %33 = arith.addf %30, %32 : vector<2x256xf32>
      %34 = arith.truncf %33 : vector<2x256xf32> to vector<2x256xbf16>
      %c0_27 = arith.constant 0 : index
      %c0_28 = arith.constant 0 : index
      %35 = vector.load %arg9[%c0_27, %c0_28] : memref<256x768xbf16, #tpu.memory_space<vmem>>, vector<256x768xbf16>
      %cst_29 = arith.constant dense<0.000000e+00> : vector<2x768xf32>
      %36 = tpu.matmul %34, %35, %cst_29 {dimension_numbers = #tpu.dot_dimension_numbers<[1], [0], [0], [1], [0, 0, 1, 1], [], []>} : vector<2x256xbf16>, vector<256x768xbf16>, vector<2x768xf32> -> vector<2x768xf32>
      %c0_30 = arith.constant 0 : index
      %c0_31 = arith.constant 0 : index
      %37 = vector.load %arg11[%c0_30, %c0_31] : memref<1x768xf32, #tpu.memory_space<vmem>>, vector<1x768xf32>
      %38 = vector.broadcast %37 : vector<1x768xf32> to vector<2x768xf32>
      %39 = arith.addf %36, %38 : vector<2x768xf32>
      %c0_32 = arith.constant 0 : index
      %c0_33 = arith.constant 0 : index
      %40 = vector.load %arg10[%c0_32, %c0_33] : memref<256x768xf32, #tpu.memory_space<vmem>>, vector<256x768xf32>
      %cst_34 = arith.constant dense<0.000000e+00> : vector<2x768xf32>
      %41 = tpu.matmul %21, %40, %cst_34 {dimension_numbers = #tpu.dot_dimension_numbers<[1], [0], [0], [1], [0, 0, 1, 1], [], []>} : vector<2x256xf32>, vector<256x768xf32>, vector<2x768xf32> -> vector<2x768xf32>
      %c0_35 = arith.constant 0 : index
      %c0_36 = arith.constant 0 : index
      %42 = vector.load %arg12[%c0_35, %c0_36] : memref<1x768xf32, #tpu.memory_space<vmem>>, vector<1x768xf32>
      %43 = vector.broadcast %42 : vector<1x768xf32> to vector<2x768xf32>
      %44 = arith.addf %41, %43 : vector<2x768xf32>
      %45 = vector.extract_strided_slice %39 {offsets = [0, 0], sizes = [2, 256], strides = [1, 1]} : vector<2x768xf32> to vector<2x256xf32>
      %46 = vector.extract_strided_slice %44 {offsets = [0, 0], sizes = [2, 256], strides = [1, 1]} : vector<2x768xf32> to vector<2x256xf32>
      %47 = arith.addf %45, %46 : vector<2x256xf32>
      %48 = arith.negf %47 : vector<2x256xf32>
      %49 = math.exp %48 : vector<2x256xf32>
      %cst_37 = arith.constant 1.000000e+00 : f32
      %50 = vector.broadcast %cst_37 : f32 to vector<2x256xf32>
      %51 = arith.addf %50, %49 : vector<2x256xf32>
      %52 = arith.divf %50, %51 : vector<2x256xf32>
      %53 = vector.extract_strided_slice %39 {offsets = [0, 256], sizes = [2, 256], strides = [1, 1]} : vector<2x768xf32> to vector<2x256xf32>
      %54 = vector.extract_strided_slice %44 {offsets = [0, 256], sizes = [2, 256], strides = [1, 1]} : vector<2x768xf32> to vector<2x256xf32>
      %55 = arith.addf %53, %54 : vector<2x256xf32>
      %56 = arith.negf %55 : vector<2x256xf32>
      %57 = math.exp %56 : vector<2x256xf32>
      %cst_38 = arith.constant 1.000000e+00 : f32
      %58 = vector.broadcast %cst_38 : f32 to vector<2x256xf32>
      %59 = arith.addf %58, %57 : vector<2x256xf32>
      %60 = arith.divf %58, %59 : vector<2x256xf32>
      %61 = vector.extract_strided_slice %39 {offsets = [0, 512], sizes = [2, 256], strides = [1, 1]} : vector<2x768xf32> to vector<2x256xf32>
      %62 = vector.extract_strided_slice %44 {offsets = [0, 512], sizes = [2, 256], strides = [1, 1]} : vector<2x768xf32> to vector<2x256xf32>
      %63 = arith.mulf %52, %62 : vector<2x256xf32>
      %64 = arith.addf %61, %63 : vector<2x256xf32>
      %65 = math.tanh %64 : vector<2x256xf32>
      %cst_39 = arith.constant 1.000000e+00 : f32
      %66 = vector.broadcast %cst_39 : f32 to vector<2x256xf32>
      %67 = arith.subf %66, %60 : vector<2x256xf32>
      %68 = arith.mulf %67, %65 : vector<2x256xf32>
      %69 = arith.mulf %60, %21 : vector<2x256xf32>
      %70 = arith.addf %68, %69 : vector<2x256xf32>
      %c0_40 = arith.constant 0 : index
      %c0_41 = arith.constant 0 : index
      %71 = vector.load %arg20[%c0_40, %c0_41] : memref<2x256xf32, #tpu.memory_space<vmem>>, vector<2x256xf32>
      tpu.vector_store %arg20[%c0_40, %c0_41], %70 {strides = array<i32>} : memref<2x256xf32, #tpu.memory_space<vmem>>, vector<2x256xf32>,
      %72 = arith.truncf %70 : vector<2x256xf32> to vector<2x256xbf16>
      %c0_42 = arith.constant 0 : index
      %c0_43 = arith.constant 0 : index
      %73 = vector.load %arg13[%c0_42, %c0_43] : memref<256x256xbf16, #tpu.memory_space<vmem>>, vector<256x256xbf16>
      %cst_44 = arith.constant dense<0.000000e+00> : vector<2x256xf32>
      %74 = tpu.matmul %72, %73, %cst_44 {dimension_numbers = #tpu.dot_dimension_numbers<[1], [0], [0], [1], [0, 0, 1, 1], [], []>} : vector<2x256xbf16>, vector<256x256xbf16>, vector<2x256xf32> -> vector<2x256xf32>
      %c0_45 = arith.constant 0 : index
      %c0_46 = arith.constant 0 : index
      %75 = vector.load %arg14[%c0_45, %c0_46] : memref<1x256xf32, #tpu.memory_space<vmem>>, vector<1x256xf32>
      %76 = vector.broadcast %75 : vector<1x256xf32> to vector<2x256xf32>
      %77 = arith.addf %74, %76 : vector<2x256xf32>
      %cst_47 = arith.constant 0.000000e+00 : f32
      %78 = vector.broadcast %cst_47 : f32 to vector<2x256xf32>
      %79 = arith.maximumf %77, %78 : vector<2x256xf32>
      %80 = arith.truncf %79 : vector<2x256xf32> to vector<2x256xbf16>
      %c0_48 = arith.constant 0 : index
      %c0_49 = arith.constant 0 : index
      %81 = vector.load %arg15[%c0_48, %c0_49] : memref<256x32xbf16, #tpu.memory_space<vmem>>, vector<256x32xbf16>
      %cst_50 = arith.constant dense<0.000000e+00> : vector<2x32xf32>
      %82 = tpu.matmul %80, %81, %cst_50 {dimension_numbers = #tpu.dot_dimension_numbers<[1], [0], [0], [1], [0, 0, 1, 1], [], []>} : vector<2x256xbf16>, vector<256x32xbf16>, vector<2x32xf32> -> vector<2x32xf32>
      %c0_51 = arith.constant 0 : index
      %c0_52 = arith.constant 0 : index
      %83 = vector.load %arg16[%c0_51, %c0_52] : memref<1x32xf32, #tpu.memory_space<vmem>>, vector<1x32xf32>
      %84 = vector.broadcast %83 : vector<1x32xf32> to vector<2x32xf32>
      %85 = arith.addf %82, %84 : vector<2x32xf32>
      %cst_53 = arith.constant 0.000000e+00 : f32
      %86 = vector.broadcast %cst_53 : f32 to vector<2x32xf32>
      %87 = arith.maximumf %85, %86 : vector<2x32xf32>
      %c0_54 = arith.constant 0 : index
      %c0_55 = arith.constant 0 : index
      %88 = vector.load %arg17[%c0_54, %c0_55] : memref<32x1xbf16, #tpu.memory_space<vmem>>, vector<32x1xbf16>
      %89 = arith.extf %88 : vector<32x1xbf16> to vector<32x1xf32>
      %cst_56 = arith.constant dense<0.000000e+00> : vector<2x1xf32>
      %90 = tpu.matmul %87, %89, %cst_56 {dimension_numbers = #tpu.dot_dimension_numbers<[1], [0], [0], [1], [0, 0, 1, 1], [], []>} : vector<2x32xf32>, vector<32x1xf32>, vector<2x1xf32> -> vector<2x1xf32>
      %c0_57 = arith.constant 0 : index
      %c0_58 = arith.constant 0 : index
      %91 = vector.load %arg18[%c0_57, %c0_58] : memref<1x1xf32, #tpu.memory_space<vmem>>, vector<1x1xf32>
      %92 = vector.broadcast %91 : vector<1x1xf32> to vector<2x1xf32>
      %93 = arith.addf %90, %92 : vector<2x1xf32>
      %c0_59 = arith.constant 0 : index
      %c0_60 = arith.constant 0 : index
      %94 = vector.load %arg19[%c0_59, %c0_60] : memref<2x1xf32, #tpu.memory_space<vmem>>, vector<2x1xf32>
      tpu.vector_store %arg19[%c0_59, %c0_60], %93 {strides = array<i32>} : memref<2x1xf32, #tpu.memory_space<vmem>>, vector<2x1xf32>,
    } else {
    }
    return
  }
  func.func @transform_0(%arg0: i32) -> (i32, i32) {
    %c0_i32 = arith.constant 0 : i32
    %c0_i32_0 = arith.constant 0 : i32
    %c0_i32_1 = arith.constant 0 : i32
    return %c0_i32, %c0_i32_0 : i32, i32
  }
  func.func @transform_1(%arg0: i32) -> (i32, i32) {
    %c0_i32 = arith.constant 0 : i32
    %c0_i32_0 = arith.constant 0 : i32
    %c0_i32_1 = arith.constant 0 : i32
    return %c0_i32, %c0_i32_0 : i32, i32
  }
  func.func @transform_2(%arg0: i32) -> (i32, i32) {
    %c0_i32 = arith.constant 0 : i32
    %c0_i32_0 = arith.constant 0 : i32
    return %c0_i32, %arg0 : i32, i32
  }
  func.func @transform_3(%arg0: i32) -> (i32, i32) {
    %c0_i32 = arith.constant 0 : i32
    %c0_i32_0 = arith.constant 0 : i32
    return %c0_i32, %arg0 : i32, i32
  }
  func.func @transform_4(%arg0: i32) -> (i32, i32) {
    %c0_i32 = arith.constant 0 : i32
    %c0_i32_0 = arith.constant 0 : i32
    return %arg0, %c0_i32 : i32, i32
  }
  func.func @transform_5(%arg0: i32) -> (i32, i32) {
    %c0_i32 = arith.constant 0 : i32
    %c0_i32_0 = arith.constant 0 : i32
    %c0_i32_1 = arith.constant 0 : i32
    return %c0_i32, %c0_i32_0 : i32, i32
  }
  func.func @transform_6(%arg0: i32) -> (i32, i32) {
    %c0_i32 = arith.constant 0 : i32
    %c0_i32_0 = arith.constant 0 : i32
    %c0_i32_1 = arith.constant 0 : i32
    return %c0_i32, %c0_i32_0 : i32, i32
  }
  func.func @transform_7(%arg0: i32) -> (i32, i32) {
    %c0_i32 = arith.constant 0 : i32
    %c0_i32_0 = arith.constant 0 : i32
    %c0_i32_1 = arith.constant 0 : i32
    return %c0_i32, %c0_i32_0 : i32, i32
  }
  func.func @transform_8(%arg0: i32) -> (i32, i32) {
    %c0_i32 = arith.constant 0 : i32
    %c0_i32_0 = arith.constant 0 : i32
    %c0_i32_1 = arith.constant 0 : i32
    return %c0_i32, %c0_i32_0 : i32, i32
  }
  func.func @transform_9(%arg0: i32) -> (i32, i32) {
    %c0_i32 = arith.constant 0 : i32
    %c0_i32_0 = arith.constant 0 : i32
    %c0_i32_1 = arith.constant 0 : i32
    return %c0_i32, %c0_i32_0 : i32, i32
  }
  func.func @transform_10(%arg0: i32) -> (i32, i32) {
    %c0_i32 = arith.constant 0 : i32
    %c0_i32_0 = arith.constant 0 : i32
    %c0_i32_1 = arith.constant 0 : i32
    return %c0_i32, %c0_i32_0 : i32, i32
  }
  func.func @transform_11(%arg0: i32) -> (i32, i32) {
    %c0_i32 = arith.constant 0 : i32
    %c0_i32_0 = arith.constant 0 : i32
    %c0_i32_1 = arith.constant 0 : i32
    return %c0_i32, %c0_i32_0 : i32, i32
  }
  func.func @transform_12(%arg0: i32) -> (i32, i32) {
    %c0_i32 = arith.constant 0 : i32
    %c0_i32_0 = arith.constant 0 : i32
    %c0_i32_1 = arith.constant 0 : i32
    return %c0_i32, %c0_i32_0 : i32, i32
  }
  func.func @transform_13(%arg0: i32) -> (i32, i32) {
    %c0_i32 = arith.constant 0 : i32
    %c0_i32_0 = arith.constant 0 : i32
    %c0_i32_1 = arith.constant 0 : i32
    return %c0_i32, %c0_i32_0 : i32, i32
  }
  func.func @transform_14(%arg0: i32) -> (i32, i32) {
    %c0_i32 = arith.constant 0 : i32
    %c0_i32_0 = arith.constant 0 : i32
    %c0_i32_1 = arith.constant 0 : i32
    return %c0_i32, %c0_i32_0 : i32, i32
  }
  func.func @transform_15(%arg0: i32) -> (i32, i32) {
    %c0_i32 = arith.constant 0 : i32
    %c0_i32_0 = arith.constant 0 : i32
    %c0_i32_1 = arith.constant 0 : i32
    return %c0_i32, %c0_i32_0 : i32, i32
  }
  func.func @transform_16(%arg0: i32) -> (i32, i32) {
    %c0_i32 = arith.constant 0 : i32
    %c0_i32_0 = arith.constant 0 : i32
    %c0_i32_1 = arith.constant 0 : i32
    return %c0_i32, %c0_i32_0 : i32, i32
  }
  func.func @transform_17(%arg0: i32) -> (i32, i32) {
    %c0_i32 = arith.constant 0 : i32
    %c0_i32_0 = arith.constant 0 : i32
    %c0_i32_1 = arith.constant 0 : i32
    return %c0_i32, %c0_i32_0 : i32, i32
  }
  func.func @transform_18(%arg0: i32) -> (i32, i32) {
    %c0_i32 = arith.constant 0 : i32
    %c0_i32_0 = arith.constant 0 : i32
    %c0_i32_1 = arith.constant 0 : i32
    return %c0_i32, %c0_i32_0 : i32, i32
  }
  func.func @transform_19(%arg0: i32) -> (i32, i32) {
    %c0_i32 = arith.constant 0 : i32
    %c0_i32_0 = arith.constant 0 : i32
    %c0_i32_1 = arith.constant 0 : i32
    return %c0_i32, %c0_i32_0 : i32, i32
  }
}

</mosaic_0001>

<llo_original>
// kernel: critic_net_forward.1
$region0: #{critic_net_forward.1}
  #allocation0 [shape = 'u32[]', space=smem, size = 0x4, offset = 0x4, fixed_abs, tag = 'smem constant byte address 0x4 - core index']
  #allocation1 [shape = 'u32[72,128]{1,0:T(1,128)}', space=vmem, size = 0x9000, scoped, tag = 'internal scratch']
  #allocation2 [shape = 'f32[2,2048]{1,0:T(2,128)}', space=vmem, size = 0x4000, scoped, tag = 'scratch operand']
  #allocation3 [shape = 'f32[1,1]{1,0:T(1,128)S(1)}', space=vmem, size = 0x200, scoped, tag = 'scoped memory for critic_net_forward.1']
  %s0 = inlined_call_operand.hbm [shape: f32[2,32], index: 0, kind: input, shape index: {}]
  %s1 = inlined_call_operand.hbm [shape: f32[2,256], index: 1, kind: input, shape index: {}]
  %s2 = inlined_call_operand.hbm [shape: bf16[32,4096], index: 2, kind: input, shape index: {}]
  %s3 = inlined_call_operand.hbm [shape: f32[1,4096], index: 3, kind: input, shape index: {}]
  %s4 = inlined_call_operand.hbm [shape: bf16[4096,2048], index: 4, kind: input, shape index: {}]
  %s5 = inlined_call_operand.hbm [shape: f32[1,2048], index: 5, kind: input, shape index: {}]
  %s6 = inlined_call_operand.hbm [shape: bf16[2048,256], index: 6, kind: input, shape index: {}]
  %s7 = inlined_call_operand.hbm [shape: f32[1,256], index: 7, kind: input, shape index: {}]
  %s8 = inlined_call_operand.hbm [shape: bf16[256,768], index: 8, kind: input, shape index: {}]
  %s9 = inlined_call_operand.hbm [shape: f32[256,768], index: 9, kind: input, shape index: {}]
  %s10 = inlined_call_operand.hbm [shape: f32[1,768], index: 10, kind: input, shape index: {}]
  %s11 = inlined_call_operand.hbm [shape: f32[1,768], index: 11, kind: input, shape index: {}]
  %s12 = inlined_call_operand.hbm [shape: bf16[256,256], index: 12, kind: input, shape index: {}]
  %s13 = inlined_call_operand.hbm [shape: f32[1,256], index: 13, kind: input, shape index: {}]
  %s14 = inlined_call_operand.vmem [shape: bf16[256,32], index: 14, kind: input, shape index: {}]
  %s15 = inlined_call_operand.hbm [shape: f32[1,32], index: 15, kind: input, shape index: {}]
  %s16 = inlined_call_operand.vmem [shape: bf16[32,1], index: 16, kind: input, shape index: {}]
  %s17 = inlined_call_operand.<no memory space> [shape: f32[1,1], index: 17, kind: input, shape index: {}]
  %s18 = inlined_call_operand.vmem [shape: f32[2,1], index: 18, kind: output, shape index: {0}]
  %s19 = inlined_call_operand.hbm [shape: f32[2,256], index: 19, kind: output, shape index: {1}]
  %20 = xla_tuple %s18, %s19
  %s21 = sld [smem:[#allocation0]]
  $region181: #{critic_net_forward.1} parent=0
    _
  %s23 = ssub.s32 1, %s21
  %s24 = scalar_select 0, %s23, %s21
  %v25 = vstv %s17
  %26 = vst [vmem:[#allocation3] sm:$0x1] %v25
  $region1: #{critic_net_forward.1} parent=0
    #allocation4 [shape = 'u8[1024]{0}', space=vmem, size = 0x400, scoped, tag = 'input window, operand 0, single buffered']
    #allocation5 [shape = 's32[2]{0}', space=sflag, size = 0x8, scoped, tag = 'scoped memory for critic_net_forward.1']
    #allocation6 [shape = 's32[2]{0}', space=sflag, size = 0x8, scoped, tag = 'scoped memory for critic_net_forward.1']
    #allocation7 [shape = 'u8[2048]{0}', space=vmem, size = 0x800, scoped, tag = 'input window, operand 1, single buffered']
    #allocation8 [shape = 's32[1]{0}', space=sflag, size = 0x4, scoped, tag = 'scoped memory for critic_net_forward.1']
    #allocation9 [shape = 'u8[131072]{0}', space=vmem, size = 0x20000, scoped, tag = 'input window, operand 2']
    #allocation10 [shape = 'u8[8192]{0}', space=vmem, size = 0x2000, scoped, tag = 'input window, operand 3']
    #allocation11 [shape = 'u8[8388608]{0}', space=vmem, size = 0x800000, scoped, tag = 'input window, operand 4']
    #allocation12 [shape = 'u8[8192]{0}', space=vmem, size = 0x2000, scoped, tag = 'input window, operand 5, single buffered']
    #allocation13 [shape = 'u8[1048576]{0}', space=vmem, size = 0x100000, scoped, tag = 'input window, operand 6, single buffered']
    #allocation14 [shape = 's32[1]{0}', space=sflag, size = 0x4, scoped, tag = 'scoped memory for critic_net_forward.1']
    #allocation15 [shape = 'u8[1024]{0}', space=vmem, size = 0x400, scoped, tag = 'input window, operand 7, single buffered']
    #allocation16 [shape = 'u8[393216]{0}', space=vmem, size = 0x60000, scoped, tag = 'input window, operand 8, single buffered']
    #allocation17 [shape = 's32[1]{0}', space=sflag, size = 0x4, scoped, tag = 'scoped memory for critic_net_forward.1']
    #allocation18 [shape = 'u8[786432]{0}', space=vmem, size = 0xc0000, scoped, tag = 'input window, operand 9, single buffered']
    #allocation19 [shape = 'u8[3072]{0}', space=vmem, size = 0xc00, scoped, tag = 'input window, operand 10, single buffered']
    #allocation20 [shape = 's32[1]{0}', space=sflag, size = 0x4, scoped, tag = 'scoped memory for critic_net_forward.1']
    #allocation21 [shape = 'u8[3072]{0}', space=vmem, size = 0xc00, scoped, tag = 'input window, operand 11, single buffered']
    #allocation22 [shape = 'u8[131072]{0}', space=vmem, size = 0x20000, scoped, tag = 'input window, operand 12, single buffered']
    #allocation23 [shape = 's32[1]{0}', space=sflag, size = 0x4, scoped, tag = 'scoped memory for critic_net_forward.1']
    #allocation24 [shape = 'u8[1024]{0}', space=vmem, size = 0x400, scoped, tag = 'input window, operand 13, single buffered']
    #allocation25 [shape = 'u8[512]{0}', space=vmem, size = 0x400, scoped, tag = 'input window, operand 15, single buffered']
    #allocation26 [shape = 's32[1]{0}', space=sflag, size = 0x4, scoped, tag = 'scoped memory for critic_net_forward.1']
    #allocation27 [shape = 'u8[2048]{0}', space=vmem, size = 0x800, scoped, tag = 'output window, operand 1, single buffered']
    %27 = vsyncpa [#allocation5], 0
    %28 = vsyncpa [#allocation8], 0
    %29 = vsyncpa [#allocation14], 0
    %30 = vsyncpa [#allocation17], 0
    %31 = vsyncpa [#allocation20], 0
    %32 = vsyncpa [#allocation23], 0
    %33 = vsyncpa [#allocation26], 0
    %34 = vsyncpa [#allocation6], 0
    loop: start=0, step=1, limit=6
    $region2: #{critic_net_forward.1} parent=1 // loop_pre_header
      _
    $region3: #{critic_net_forward.1} parent=1 // loop_header
      %s36 = sphi 0, %s40
      %p37 = scmp.ge.s32.totalorder %s36, 6
      %s44 = sphi 0, %s44
      %s46 = sphi 0, %s44
      %s47 = sphi 0, %s46
      %s61 = sphi 0, %s47
      %s65 = sphi 0, %s65
      %s67 = sphi 0, %s65
      %s68 = sphi 0, %s67
      %s82 = sphi 0, %s68
      %s88 = sphi 0, %s90
      %s91 = sphi 0, %s88
      %s92 = sphi 0, %s91
      %s108 = sphi 0, %s92
      %s114 = sphi 0, %s116
      %s117 = sphi 0, %s114
      %s118 = sphi 0, %s117
      %s134 = sphi 0, %s118
      %s140 = sphi 0, %s142
      %s143 = sphi 0, %s140
      %s144 = sphi 0, %s143
      %s160 = sphi 0, %s144
      %s164 = sphi 0, %s164
      %s166 = sphi 0, %s164
      %s167 = sphi 0, %s166
      %s181 = sphi 0, %s167
      %s185 = sphi 0, %s185
      %s187 = sphi 0, %s185
      %s188 = sphi 0, %s187
      %s202 = sphi 0, %s188
      %s206 = sphi 0, %s206
      %s208 = sphi 0, %s206
      %s209 = sphi 0, %s208
      %s223 = sphi 0, %s209
      %s227 = sphi 0, %s227
      %s229 = sphi 0, %s227
      %s230 = sphi 0, %s229
      %s244 = sphi 0, %s230
      %s248 = sphi 0, %s248
      %s250 = sphi 0, %s248
      %s251 = sphi 0, %s250
      %s265 = sphi 0, %s251
      %s269 = sphi 0, %s269
      %s271 = sphi 0, %s269
      %s272 = sphi 0, %s271
      %s286 = sphi 0, %s272
      %s290 = sphi 0, %s290
      %s292 = sphi 0, %s290
      %s293 = sphi 0, %s292
      %s307 = sphi 0, %s293
      %s311 = sphi 0, %s311
      %s313 = sphi 0, %s311
      %s314 = sphi 0, %s313
      %s328 = sphi 0, %s314
      %s332 = sphi 0, %s332
      %s334 = sphi 0, %s332
      %s335 = sphi 0, %s334
      %s349 = sphi 0, %s335
      %s353 = sphi 0, %s353
      %s355 = sphi 0, %s353
      %s356 = sphi 0, %s355
      %s370 = sphi 0, %s356
      %s374 = sphi 0, %s374
      %s376 = sphi 0, %s374
      %s377 = sphi 0, %s376
      %s391 = sphi 0, %s377
      %s395 = sphi 0, %s395
      %s397 = sphi 0, %s395
      %s398 = sphi 0, %s397
      %s412 = sphi 0, %s398
      %s416 = sphi 0, %s416
      %s418 = sphi 0, %s416
      %s419 = sphi 0, %s418
      %s433 = sphi 0, %s419
      %s437 = sphi 0, %s437
      %s439 = sphi 0, %s437
      %s440 = sphi 0, %s439
      %s454 = sphi 0, %s440
      %s458 = sphi 0, %s458
      %s460 = sphi 0, %s458
      %s461 = sphi 0, %s460
      %s475 = sphi 0, %s461
    $region4: #{critic_net_forward.1} parent=1 // loop_header_branch
      %39 = sbr.rel (%p37) target = $region8
    $region5: #{critic_net_forward.1} parent=1 // loop_body
      %s41 = ssub.s32 %s36, 1
      %s42 = ssub.s32 %s36, 2
      %s43 = sadd.s32 %s36, 1
      %s45 = sadd.s32 %s44, 1
      %p48 = scmp.eq.s32.totalorder %s36, 3
      %p49 = scmp.ne.s32.totalorder %s44, %s46
      %p50 = scmp.eq.s32.totalorder %s36, 0
      %p51 = por %p49, %p50
      %p52 = scmp.ne.s32.totalorder %s44, %s46
      %p53 = scmp.eq.s32.totalorder %s41, 3
      %p54 = por %p52, %p53
      %p55 = scmp.ne.s32.totalorder %s46, %s47
      %p56 = scmp.eq.s32.totalorder %s41, 0
      %p57 = por %p55, %p56
      %p58 = scmp.ne.s32.totalorder %s46, %s47
      %p59 = scmp.eq.s32.totalorder %s42, 3
      %p60 = por %p58, %p59
      %p62 = scmp.ne.s32.totalorder %s47, %s61
      %p63 = scmp.eq.s32.totalorder %s42, 0
      %p64 = por %p62, %p63
      %s66 = sadd.s32 %s65, 1
      %p69 = scmp.eq.s32.totalorder %s36, 3
      %p70 = scmp.ne.s32.totalorder %s65, %s67
      %p71 = scmp.eq.s32.totalorder %s36, 0
      %p72 = por %p70, %p71
      %p73 = scmp.ne.s32.totalorder %s65, %s67
      %p74 = scmp.eq.s32.totalorder %s41, 3
      %p75 = por %p73, %p74
      %p76 = scmp.ne.s32.totalorder %s67, %s68
      %p77 = scmp.eq.s32.totalorder %s41, 0
      %p78 = por %p76, %p77
      %p79 = scmp.ne.s32.totalorder %s67, %s68
      %p80 = scmp.eq.s32.totalorder %s42, 3
      %p81 = por %p79, %p80
      %p83 = scmp.ne.s32.totalorder %s68, %s82
      %p84 = scmp.eq.s32.totalorder %s42, 0
      %p85 = por %p83, %p84
      %s86 = ssub.s32 %s36, %s43
      %p87 = scmp.eq.s32.totalorder %s86, 0
      %s89 = sadd.s32 %s88, 1
      %s90 = scalar_select %p87, %s88, %s89
      %p93 = pneg %p87
      %p94 = scmp.eq.s32.totalorder %s36, 3
      %p95 = por %p93, %p94
      %p96 = scmp.ne.s32.totalorder %s88, %s91
      %p97 = scmp.eq.s32.totalorder %s36, 0
      %p98 = por %p96, %p97
      %p99 = scmp.ne.s32.totalorder %s88, %s91
      %p100 = scmp.eq.s32.totalorder %s41, 3
      %p101 = por %p99, %p100
      %p102 = scmp.ne.s32.totalorder %s91, %s92
      %p103 = scmp.eq.s32.totalorder %s41, 0
      %p104 = por %p102, %p103
      %p105 = scmp.ne.s32.totalorder %s91, %s92
      %p106 = scmp.eq.s32.totalorder %s42, 3
      %p107 = por %p105, %p106
      %p109 = scmp.ne.s32.totalorder %s92, %s108
      %p110 = scmp.eq.s32.totalorder %s42, 0
      %p111 = por %p109, %p110
      %s112 = ssub.s32 %s36, %s43
      %p113 = scmp.eq.s32.totalorder %s112, 0
      %s115 = sadd.s32 %s114, 1
      %s116 = scalar_select %p113, %s114, %s115
      %p119 = pneg %p113
      %p120 = scmp.eq.s32.totalorder %s36, 3
      %p121 = por %p119, %p120
      %p122 = scmp.ne.s32.totalorder %s114, %s117
      %p123 = scmp.eq.s32.totalorder %s36, 0
      %p124 = por %p122, %p123
      %p125 = scmp.ne.s32.totalorder %s114, %s117
      %p126 = scmp.eq.s32.totalorder %s41, 3
      %p127 = por %p125, %p126
      %p128 = scmp.ne.s32.totalorder %s117, %s118
      %p129 = scmp.eq.s32.totalorder %s41, 0
      %p130 = por %p128, %p129
      %p131 = scmp.ne.s32.totalorder %s117, %s118
      %p132 = scmp.eq.s32.totalorder %s42, 3
      %p133 = por %p131, %p132
      %p135 = scmp.ne.s32.totalorder %s118, %s134
      %p136 = scmp.eq.s32.totalorder %s42, 0
      %p137 = por %p135, %p136
      %s138 = ssub.s32 %s36, %s43
      %p139 = scmp.eq.s32.totalorder %s138, 0
      %s141 = sadd.s32 %s140, 1
      %s142 = scalar_select %p139, %s140, %s141
      %p145 = pneg %p139
      %p146 = scmp.eq.s32.totalorder %s36, 3
      %p147 = por %p145, %p146
      %p148 = scmp.ne.s32.totalorder %s140, %s143
      %p149 = scmp.eq.s32.totalorder %s36, 0
      %p150 = por %p148, %p149
      %p151 = scmp.ne.s32.totalorder %s140, %s143
      %p152 = scmp.eq.s32.totalorder %s41, 3
      %p153 = por %p151, %p152
      %p154 = scmp.ne.s32.totalorder %s143, %s144
      %p155 = scmp.eq.s32.totalorder %s41, 0
      %p156 = por %p154, %p155
      %p157 = scmp.ne.s32.totalorder %s143, %s144
      %p158 = scmp.eq.s32.totalorder %s42, 3
      %p159 = por %p157, %p158
      %p161 = scmp.ne.s32.totalorder %s144, %s160
      %p162 = scmp.eq.s32.totalorder %s42, 0
      %p163 = por %p161, %p162
      %s165 = sadd.s32 %s164, 1
      %p168 = scmp.eq.s32.totalorder %s36, 3
      %p169 = scmp.ne.s32.totalorder %s164, %s166
      %p170 = scmp.eq.s32.totalorder %s36, 0
      %p171 = por %p169, %p170
      %p172 = scmp.ne.s32.totalorder %s164, %s166
      %p173 = scmp.eq.s32.totalorder %s41, 3
      %p174 = por %p172, %p173
      %p175 = scmp.ne.s32.totalorder %s166, %s167
      %p176 = scmp.eq.s32.totalorder %s41, 0
      %p177 = por %p175, %p176
      %p178 = scmp.ne.s32.totalorder %s166, %s167
      %p179 = scmp.eq.s32.totalorder %s42, 3
      %p180 = por %p178, %p179
      %p182 = scmp.ne.s32.totalorder %s167, %s181
      %p183 = scmp.eq.s32.totalorder %s42, 0
      %p184 = por %p182, %p183
      %s186 = sadd.s32 %s185, 1
      %p189 = scmp.eq.s32.totalorder %s36, 3
      %p190 = scmp.ne.s32.totalorder %s185, %s187
      %p191 = scmp.eq.s32.totalorder %s36, 0
      %p192 = por %p190, %p191
      %p193 = scmp.ne.s32.totalorder %s185, %s187
      %p194 = scmp.eq.s32.totalorder %s41, 3
      %p195 = por %p193, %p194
      %p196 = scmp.ne.s32.totalorder %s187, %s188
      %p197 = scmp.eq.s32.totalorder %s41, 0
      %p198 = por %p196, %p197
      %p199 = scmp.ne.s32.totalorder %s187, %s188
      %p200 = scmp.eq.s32.totalorder %s42, 3
      %p201 = por %p199, %p200
      %p203 = scmp.ne.s32.totalorder %s188, %s202
      %p204 = scmp.eq.s32.totalorder %s42, 0
      %p205 = por %p203, %p204
      %s207 = sadd.s32 %s206, 1
      %p210 = scmp.eq.s32.totalorder %s36, 3
      %p211 = scmp.ne.s32.totalorder %s206, %s208
      %p212 = scmp.eq.s32.totalorder %s36, 0
      %p213 = por %p211, %p212
      %p214 = scmp.ne.s32.totalorder %s206, %s208
      %p215 = scmp.eq.s32.totalorder %s41, 3
      %p216 = por %p214, %p215
      %p217 = scmp.ne.s32.totalorder %s208, %s209
      %p218 = scmp.eq.s32.totalorder %s41, 0
      %p219 = por %p217, %p218
      %p220 = scmp.ne.s32.totalorder %s208, %s209
      %p221 = scmp.eq.s32.totalorder %s42, 3
      %p222 = por %p220, %p221
      %p224 = scmp.ne.s32.totalorder %s209, %s223
      %p225 = scmp.eq.s32.totalorder %s42, 0
      %p226 = por %p224, %p225
      %s228 = sadd.s32 %s227, 1
      %p231 = scmp.eq.s32.totalorder %s36, 3
      %p232 = scmp.ne.s32.totalorder %s227, %s229
      %p233 = scmp.eq.s32.totalorder %s36, 0
      %p234 = por %p232, %p233
      %p235 = scmp.ne.s32.totalorder %s227, %s229
      %p236 = scmp.eq.s32.totalorder %s41, 3
      %p237 = por %p235, %p236
      %p238 = scmp.ne.s32.totalorder %s229, %s230
      %p239 = scmp.eq.s32.totalorder %s41, 0
      %p240 = por %p238, %p239
      %p241 = scmp.ne.s32.totalorder %s229, %s230
      %p242 = scmp.eq.s32.totalorder %s42, 3
      %p243 = por %p241, %p242
      %p245 = scmp.ne.s32.totalorder %s230, %s244
      %p246 = scmp.eq.s32.totalorder %s42, 0
      %p247 = por %p245, %p246
      %s249 = sadd.s32 %s248, 1
      %p252 = scmp.eq.s32.totalorder %s36, 3
      %p253 = scmp.ne.s32.totalorder %s248, %s250
      %p254 = scmp.eq.s32.totalorder %s36, 0
      %p255 = por %p253, %p254
      %p256 = scmp.ne.s32.totalorder %s248, %s250
      %p257 = scmp.eq.s32.totalorder %s41, 3
      %p258 = por %p256, %p257
      %p259 = scmp.ne.s32.totalorder %s250, %s251
      %p260 = scmp.eq.s32.totalorder %s41, 0
      %p261 = por %p259, %p260
      %p262 = scmp.ne.s32.totalorder %s250, %s251
      %p263 = scmp.eq.s32.totalorder %s42, 3
      %p264 = por %p262, %p263
      %p266 = scmp.ne.s32.totalorder %s251, %s265
      %p267 = scmp.eq.s32.totalorder %s42, 0
      %p268 = por %p266, %p267
      %s270 = sadd.s32 %s269, 1
      %p273 = scmp.eq.s32.totalorder %s36, 3
      %p274 = scmp.ne.s32.totalorder %s269, %s271
      %p275 = scmp.eq.s32.totalorder %s36, 0
      %p276 = por %p274, %p275
      %p277 = scmp.ne.s32.totalorder %s269, %s271
      %p278 = scmp.eq.s32.totalorder %s41, 3
      %p279 = por %p277, %p278
      %p280 = scmp.ne.s32.totalorder %s271, %s272
      %p281 = scmp.eq.s32.totalorder %s41, 0
      %p282 = por %p280, %p281
      %p283 = scmp.ne.s32.totalorder %s271, %s272
      %p284 = scmp.eq.s32.totalorder %s42, 3
      %p285 = por %p283, %p284
      %p287 = scmp.ne.s32.totalorder %s272, %s286
      %p288 = scmp.eq.s32.totalorder %s42, 0
      %p289 = por %p287, %p288
      %s291 = sadd.s32 %s290, 1
      %p294 = scmp.eq.s32.totalorder %s36, 3
      %p295 = scmp.ne.s32.totalorder %s290, %s292
      %p296 = scmp.eq.s32.totalorder %s36, 0
      %p297 = por %p295, %p296
      %p298 = scmp.ne.s32.totalorder %s290, %s292
      %p299 = scmp.eq.s32.totalorder %s41, 3
      %p300 = por %p298, %p299
      %p301 = scmp.ne.s32.totalorder %s292, %s293
      %p302 = scmp.eq.s32.totalorder %s41, 0
      %p303 = por %p301, %p302
      %p304 = scmp.ne.s32.totalorder %s292, %s293
      %p305 = scmp.eq.s32.totalorder %s42, 3
      %p306 = por %p304, %p305
      %p308 = scmp.ne.s32.totalorder %s293, %s307
      %p309 = scmp.eq.s32.totalorder %s42, 0
      %p310 = por %p308, %p309
      %s312 = sadd.s32 %s311, 1
      %p315 = scmp.eq.s32.totalorder %s36, 3
      %p316 = scmp.ne.s32.totalorder %s311, %s313
      %p317 = scmp.eq.s32.totalorder %s36, 0
      %p318 = por %p316, %p317
      %p319 = scmp.ne.s32.totalorder %s311, %s313
      %p320 = scmp.eq.s32.totalorder %s41, 3
      %p321 = por %p319, %p320
      %p322 = scmp.ne.s32.totalorder %s313, %s314
      %p323 = scmp.eq.s32.totalorder %s41, 0
      %p324 = por %p322, %p323
      %p325 = scmp.ne.s32.totalorder %s313, %s314
      %p326 = scmp.eq.s32.totalorder %s42, 3
      %p327 = por %p325, %p326
      %p329 = scmp.ne.s32.totalorder %s314, %s328
      %p330 = scmp.eq.s32.totalorder %s42, 0
      %p331 = por %p329, %p330
      %s333 = sadd.s32 %s332, 1
      %p336 = scmp.eq.s32.totalorder %s36, 3
      %p337 = scmp.ne.s32.totalorder %s332, %s334
      %p338 = scmp.eq.s32.totalorder %s36, 0
      %p339 = por %p337, %p338
      %p340 = scmp.ne.s32.totalorder %s332, %s334
      %p341 = scmp.eq.s32.totalorder %s41, 3
      %p342 = por %p340, %p341
      %p343 = scmp.ne.s32.totalorder %s334, %s335
      %p344 = scmp.eq.s32.totalorder %s41, 0
      %p345 = por %p343, %p344
      %p346 = scmp.ne.s32.totalorder %s334, %s335
      %p347 = scmp.eq.s32.totalorder %s42, 3
      %p348 = por %p346, %p347
      %p350 = scmp.ne.s32.totalorder %s335, %s349
      %p351 = scmp.eq.s32.totalorder %s42, 0
      %p352 = por %p350, %p351
      %s354 = sadd.s32 %s353, 1
      %p357 = scmp.eq.s32.totalorder %s36, 3
      %p358 = scmp.ne.s32.totalorder %s353, %s355
      %p359 = scmp.eq.s32.totalorder %s36, 0
      %p360 = por %p358, %p359
      %p361 = scmp.ne.s32.totalorder %s353, %s355
      %p362 = scmp.eq.s32.totalorder %s41, 3
      %p363 = por %p361, %p362
      %p364 = scmp.ne.s32.totalorder %s355, %s356
      %p365 = scmp.eq.s32.totalorder %s41, 0
      %p366 = por %p364, %p365
      %p367 = scmp.ne.s32.totalorder %s355, %s356
      %p368 = scmp.eq.s32.totalorder %s42, 3
      %p369 = por %p367, %p368
      %p371 = scmp.ne.s32.totalorder %s356, %s370
      %p372 = scmp.eq.s32.totalorder %s42, 0
      %p373 = por %p371, %p372
      %s375 = sadd.s32 %s374, 1
      %p378 = scmp.eq.s32.totalorder %s36, 3
      %p379 = scmp.ne.s32.totalorder %s374, %s376
      %p380 = scmp.eq.s32.totalorder %s36, 0
      %p381 = por %p379, %p380
      %p382 = scmp.ne.s32.totalorder %s374, %s376
      %p383 = scmp.eq.s32.totalorder %s41, 3
      %p384 = por %p382, %p383
      %p385 = scmp.ne.s32.totalorder %s376, %s377
      %p386 = scmp.eq.s32.totalorder %s41, 0
      %p387 = por %p385, %p386
      %p388 = scmp.ne.s32.totalorder %s376, %s377
      %p389 = scmp.eq.s32.totalorder %s42, 3
      %p390 = por %p388, %p389
      %p392 = scmp.ne.s32.totalorder %s377, %s391
      %p393 = scmp.eq.s32.totalorder %s42, 0
      %p394 = por %p392, %p393
      %s396 = sadd.s32 %s395, 1
      %p399 = scmp.eq.s32.totalorder %s36, 3
      %p400 = scmp.ne.s32.totalorder %s395, %s397
      %p401 = scmp.eq.s32.totalorder %s36, 0
      %p402 = por %p400, %p401
      %p403 = scmp.ne.s32.totalorder %s395, %s397
      %p404 = scmp.eq.s32.totalorder %s41, 3
      %p405 = por %p403, %p404
      %p406 = scmp.ne.s32.totalorder %s397, %s398
      %p407 = scmp.eq.s32.totalorder %s41, 0
      %p408 = por %p406, %p407
      %p409 = scmp.ne.s32.totalorder %s397, %s398
      %p410 = scmp.eq.s32.totalorder %s42, 3
      %p411 = por %p409, %p410
      %p413 = scmp.ne.s32.totalorder %s398, %s412
      %p414 = scmp.eq.s32.totalorder %s42, 0
      %p415 = por %p413, %p414
      %s417 = sadd.s32 %s416, 1
      %p420 = scmp.eq.s32.totalorder %s36, 3
      %p421 = scmp.ne.s32.totalorder %s416, %s418
      %p422 = scmp.eq.s32.totalorder %s36, 0
      %p423 = por %p421, %p422
      %p424 = scmp.ne.s32.totalorder %s416, %s418
      %p425 = scmp.eq.s32.totalorder %s41, 3
      %p426 = por %p424, %p425
      %p427 = scmp.ne.s32.totalorder %s418, %s419
      %p428 = scmp.eq.s32.totalorder %s41, 0
      %p429 = por %p427, %p428
      %p430 = scmp.ne.s32.totalorder %s418, %s419
      %p431 = scmp.eq.s32.totalorder %s42, 3
      %p432 = por %p430, %p431
      %p434 = scmp.ne.s32.totalorder %s419, %s433
      %p435 = scmp.eq.s32.totalorder %s42, 0
      %p436 = por %p434, %p435
      %s438 = sadd.s32 %s437, 1
      %p441 = scmp.eq.s32.totalorder %s36, 3
      %p442 = scmp.ne.s32.totalorder %s437, %s439
      %p443 = scmp.eq.s32.totalorder %s36, 0
      %p444 = por %p442, %p443
      %p445 = scmp.ne.s32.totalorder %s437, %s439
      %p446 = scmp.eq.s32.totalorder %s41, 3
      %p447 = por %p445, %p446
      %p448 = scmp.ne.s32.totalorder %s439, %s440
      %p449 = scmp.eq.s32.totalorder %s41, 0
      %p450 = por %p448, %p449
      %p451 = scmp.ne.s32.totalorder %s439, %s440
      %p452 = scmp.eq.s32.totalorder %s42, 3
      %p453 = por %p451, %p452
      %p455 = scmp.ne.s32.totalorder %s440, %s454
      %p456 = scmp.eq.s32.totalorder %s42, 0
      %p457 = por %p455, %p456
      %s459 = sadd.s32 %s458, 1
      %p462 = scmp.eq.s32.totalorder %s36, 3
      %p463 = scmp.ne.s32.totalorder %s458, %s460
      %p464 = scmp.eq.s32.totalorder %s36, 0
      %p465 = por %p463, %p464
      %p466 = scmp.ne.s32.totalorder %s458, %s460
      %p467 = scmp.eq.s32.totalorder %s41, 3
      %p468 = por %p466, %p467
      %p469 = scmp.ne.s32.totalorder %s460, %s461
      %p470 = scmp.eq.s32.totalorder %s41, 0
      %p471 = por %p469, %p470
      %p472 = scmp.ne.s32.totalorder %s460, %s461
      %p473 = scmp.eq.s32.totalorder %s42, 3
      %p474 = por %p472, %p473
      %p476 = scmp.ne.s32.totalorder %s461, %s475
      %p477 = scmp.eq.s32.totalorder %s42, 0
      %p478 = por %p476, %p477
      %p479 = scmp.le.s32.totalorder 1, %s36
      %p480 = scmp.lt.s32.totalorder %s36, 5
      %p481 = pnand %p479, %p480
      %p482 = pneg %p481
      // Predicated region
      $region9: #{critic_net_forward.1} parent=5 // pred_check
        _
      $region10: #{critic_net_forward.1} parent=5 // pred_check_branch
        %484 = sbr.rel (%p481) target = $region12
      $region11: #{critic_net_forward.1} parent=5 // pred_region
        %s485 = ssub.s32 %s36, 1
        // Predicated region
        $region13: #{critic_net_forward.1} parent=11 // pred_check
          %p486 = pneg %p57
        $region14: #{critic_net_forward.1} parent=11 // pred_check_branch
          %488 = sbr.rel (%p486) target = $region16
        $region15: #{critic_net_forward.1} parent=11 // pred_region
          %490 = vsyncadd [#allocation5], 0
          %s492 = sshll.u32 %s0, 4
          %s493 = int_to_ptr.hbm [resolvable:$true] %s492
          %s494 = sshll.u32 [#allocation4], 4
          %s495 = int_to_ptr.vmem [resolvable:$true] %s494
          %497 = dma.hbm_to_vmem [thread:$0]  %s493, 32, %s495, [#allocation5]
        $region16: #{critic_net_forward.1} parent=11 // pred_fallthru
          _
        // Predicated region
        $region17: #{critic_net_forward.1} parent=11 // pred_check
          %p498 = pneg %p78
        $region18: #{critic_net_forward.1} parent=11 // pred_check_branch
          %500 = sbr.rel (%p498) target = $region20
        $region19: #{critic_net_forward.1} parent=11 // pred_region
          %502 = vsyncadd [#allocation8], 0
          %s504 = sshll.u32 %s1, 4
          %s505 = int_to_ptr.hbm [resolvable:$true] %s504
          %s506 = sshll.u32 [#allocation7], 4
          %s507 = int_to_ptr.vmem [resolvable:$true] %s506
          %509 = dma.hbm_to_vmem [thread:$0]  %s505, 64, %s507, [#allocation8]
        $region20: #{critic_net_forward.1} parent=11 // pred_fallthru
          _
        // Predicated region
        $region21: #{critic_net_forward.1} parent=11 // pred_check
          %p510 = pneg %p177
        $region22: #{critic_net_forward.1} parent=11 // pred_check_branch
          %512 = sbr.rel (%p510) target = $region24
        $region23: #{critic_net_forward.1} parent=11 // pred_region
          %514 = vsyncadd [#allocation8], 0
          %s516 = sshll.u32 %s5, 4
          %s517 = int_to_ptr.hbm [resolvable:$true] %s516
          %s518 = sshll.u32 [#allocation12], 4
          %s519 = int_to_ptr.vmem [resolvable:$true] %s518
          %521 = dma.hbm_to_vmem [thread:$0]  %s517, 256, %s519, [#allocation8]
        $region24: #{critic_net_forward.1} parent=11 // pred_fallthru
          _
        // Predicated region
        $region25: #{critic_net_forward.1} parent=11 // pred_check
          %p522 = pneg %p198
        $region26: #{critic_net_forward.1} parent=11 // pred_check_branch
          %524 = sbr.rel (%p522) target = $region28
        $region27: #{critic_net_forward.1} parent=11 // pred_region
          %526 = vsyncadd [#allocation14], 0
          %s527 = sshll.u32 %s6, 4
          %s528 = int_to_ptr.hbm [resolvable:$true] %s527
          %s529 = sshll.u32 [#allocation13], 4
          %s530 = int_to_ptr.vmem [resolvable:$true] %s529
          %535 = dma.hbm_to_vmem [thread:$0]  %s528, 32768, %s530, [#allocation14], 128, 128, 8
        $region28: #{critic_net_forward.1} parent=11 // pred_fallthru
          _
        // Predicated region
        $region29: #{critic_net_forward.1} parent=11 // pred_check
          %p536 = pneg %p219
        $region30: #{critic_net_forward.1} parent=11 // pred_check_branch
          %538 = sbr.rel (%p536) target = $region32
        $region31: #{critic_net_forward.1} parent=11 // pred_region
          %540 = vsyncadd [#allocation14], 0
          %s542 = sshll.u32 %s7, 4
          %s543 = int_to_ptr.hbm [resolvable:$true] %s542
          %s544 = sshll.u32 [#allocation15], 4
          %s545 = int_to_ptr.vmem [resolvable:$true] %s544
          %547 = dma.hbm_to_vmem [thread:$0]  %s543, 32, %s545, [#allocation14]
        $region32: #{critic_net_forward.1} parent=11 // pred_fallthru
          _
        // Predicated region
        $region33: #{critic_net_forward.1} parent=11 // pred_check
          %p548 = pneg %p240
        $region34: #{critic_net_forward.1} parent=11 // pred_check_branch
          %550 = sbr.rel (%p548) target = $region36
        $region35: #{critic_net_forward.1} parent=11 // pred_region
          %552 = vsyncadd [#allocation17], 0
          %s553 = sshll.u32 %s8, 4
          %s554 = int_to_ptr.hbm [resolvable:$true] %s553
          %s555 = sshll.u32 [#allocation16], 4
          %s556 = int_to_ptr.vmem [resolvable:$true] %s555
          %561 = dma.hbm_to_vmem [thread:$0]  %s554, 12288, %s556, [#allocation17], 384, 384, 24
        $region36: #{critic_net_forward.1} parent=11 // pred_fallthru
          _
        // Predicated region
        $region37: #{critic_net_forward.1} parent=11 // pred_check
          %p562 = pneg %p261
        $region38: #{critic_net_forward.1} parent=11 // pred_check_branch
          %564 = sbr.rel (%p562) target = $region40
        $region39: #{critic_net_forward.1} parent=11 // pred_region
          %566 = vsyncadd [#allocation17], 0
          %s567 = sshll.u32 %s9, 4
          %s568 = int_to_ptr.hbm [resolvable:$true] %s567
          %s569 = sshll.u32 [#allocation18], 4
          %s570 = int_to_ptr.vmem [resolvable:$true] %s569
          %575 = dma.hbm_to_vmem [thread:$0]  %s568, 24576, %s570, [#allocation17], 768, 768, 48
        $region40: #{critic_net_forward.1} parent=11 // pred_fallthru
          _
        // Predicated region
        $region41: #{critic_net_forward.1} parent=11 // pred_check
          %p576 = pneg %p282
        $region42: #{critic_net_forward.1} parent=11 // pred_check_branch
          %578 = sbr.rel (%p576) target = $region44
        $region43: #{critic_net_forward.1} parent=11 // pred_region
          %580 = vsyncadd [#allocation20], 0
          %s582 = sshll.u32 %s10, 4
          %s583 = int_to_ptr.hbm [resolvable:$true] %s582
          %s584 = sshll.u32 [#allocation19], 4
          %s585 = int_to_ptr.vmem [resolvable:$true] %s584
          %587 = dma.hbm_to_vmem [thread:$0]  %s583, 96, %s585, [#allocation20]
        $region44: #{critic_net_forward.1} parent=11 // pred_fallthru
          _
        // Predicated region
        $region45: #{critic_net_forward.1} parent=11 // pred_check
          %p588 = pneg %p303
        $region46: #{critic_net_forward.1} parent=11 // pred_check_branch
          %590 = sbr.rel (%p588) target = $region48
        $region47: #{critic_net_forward.1} parent=11 // pred_region
          %592 = vsyncadd [#allocation20], 0
          %s594 = sshll.u32 %s11, 4
          %s595 = int_to_ptr.hbm [resolvable:$true] %s594
          %s596 = sshll.u32 [#allocation21], 4
          %s597 = int_to_ptr.vmem [resolvable:$true] %s596
          %599 = dma.hbm_to_vmem [thread:$0]  %s595, 96, %s597, [#allocation20]
        $region48: #{critic_net_forward.1} parent=11 // pred_fallthru
          _
        // Predicated region
        $region49: #{critic_net_forward.1} parent=11 // pred_check
          %p600 = pneg %p324
        $region50: #{critic_net_forward.1} parent=11 // pred_check_branch
          %602 = sbr.rel (%p600) target = $region52
        $region51: #{critic_net_forward.1} parent=11 // pred_region
          %604 = vsyncadd [#allocation23], 0
          %s605 = sshll.u32 %s12, 4
          %s606 = int_to_ptr.hbm [resolvable:$true] %s605
          %s607 = sshll.u32 [#allocation22], 4
          %s608 = int_to_ptr.vmem [resolvable:$true] %s607
          %613 = dma.hbm_to_vmem [thread:$0]  %s606, 4096, %s608, [#allocation23], 128, 128, 8
        $region52: #{critic_net_forward.1} parent=11 // pred_fallthru
          _
        // Predicated region
        $region53: #{critic_net_forward.1} parent=11 // pred_check
          %p614 = pneg %p345
        $region54: #{critic_net_forward.1} parent=11 // pred_check_branch
          %616 = sbr.rel (%p614) target = $region56
        $region55: #{critic_net_forward.1} parent=11 // pred_region
          %618 = vsyncadd [#allocation23], 0
          %s620 = sshll.u32 %s13, 4
          %s621 = int_to_ptr.hbm [resolvable:$true] %s620
          %s622 = sshll.u32 [#allocation24], 4
          %s623 = int_to_ptr.vmem [resolvable:$true] %s622
          %625 = dma.hbm_to_vmem [thread:$0]  %s621, 32, %s623, [#allocation23]
        $region56: #{critic_net_forward.1} parent=11 // pred_fallthru
          _
        // Predicated region
        $region57: #{critic_net_forward.1} parent=11 // pred_check
          %p626 = pneg %p366
        $region58: #{critic_net_forward.1} parent=11 // pred_check_branch
          %628 = sbr.rel (%p626) target = $region60
        $region59: #{critic_net_forward.1} parent=11 // pred_region
          _
        $region60: #{critic_net_forward.1} parent=11 // pred_fallthru
          _
        // Predicated region
        $region61: #{critic_net_forward.1} parent=11 // pred_check
          %p629 = pneg %p387
        $region62: #{critic_net_forward.1} parent=11 // pred_check_branch
          %631 = sbr.rel (%p629) target = $region64
        $region63: #{critic_net_forward.1} parent=11 // pred_region
          %633 = vsyncadd [#allocation26], 0
          %s635 = sshll.u32 %s15, 4
          %s636 = int_to_ptr.hbm [resolvable:$true] %s635
          %s637 = sshll.u32 [#allocation25], 4
          %s638 = int_to_ptr.vmem [resolvable:$true] %s637
          %640 = dma.hbm_to_vmem [thread:$0]  %s636, 16, %s638, [#allocation26]
        $region64: #{critic_net_forward.1} parent=11 // pred_fallthru
          _
        // Predicated region
        $region65: #{critic_net_forward.1} parent=11 // pred_check
          %p641 = pneg %p408
        $region66: #{critic_net_forward.1} parent=11 // pred_check_branch
          %643 = sbr.rel (%p641) target = $region68
        $region67: #{critic_net_forward.1} parent=11 // pred_region
          _
        $region68: #{critic_net_forward.1} parent=11 // pred_fallthru
          _
        // Predicated region
        $region69: #{critic_net_forward.1} parent=11 // pred_check
          %p644 = pneg %p429
        $region70: #{critic_net_forward.1} parent=11 // pred_check_branch
          %646 = sbr.rel (%p644) target = $region72
        $region71: #{critic_net_forward.1} parent=11 // pred_region
          _
        $region72: #{critic_net_forward.1} parent=11 // pred_fallthru
          _
      $region12: #{critic_net_forward.1} parent=5 // pred_fallthru
        _
      %p647 = scmp.lt.s32.totalorder %s36, 4
      // Predicated region
      $region73: #{critic_net_forward.1} parent=5 // pred_check
        %p648 = pneg %p647
      $region74: #{critic_net_forward.1} parent=5 // pred_check_branch
        %650 = sbr.rel (%p648) target = $region76
      $region75: #{critic_net_forward.1} parent=5 // pred_region
        // Predicated region
        $region77: #{critic_net_forward.1} parent=75 // pred_check
          %p651 = pneg %p98
        $region78: #{critic_net_forward.1} parent=75 // pred_check_branch
          %653 = sbr.rel (%p651) target = $region80
        $region79: #{critic_net_forward.1} parent=75 // pred_region
          %s654 = sand.u32 %s36, 1
          %s655 = scalar_lea.sflag [#allocation5], %s654
          %s656 = sand.u32 %s88, 1
          %s657 = smul.addr %s656, 128
          %s658 = scalar_lea.vmem [#allocation9], %s657
          %s659 = smul.u32 8, %s36
          %661 = vsyncadd %s655, 0
          %s662 = smul.addr %s659, 4
          %s663 = scalar_lea.hbm %s2, %s662
          %s664 = sshll.u32 %s663, 4
          %s665 = int_to_ptr.hbm [resolvable:$true] %s664
          %s666 = sshll.u32 %s658, 4
          %s667 = int_to_ptr.vmem [resolvable:$true] %s666
          %672 = dma.hbm_to_vmem [thread:$0]  %s665, 2048, %s667, %s655, 2048, 512, 32
        $region80: #{critic_net_forward.1} parent=75 // pred_fallthru
          _
        // Predicated region
        $region81: #{critic_net_forward.1} parent=75 // pred_check
          %p673 = pneg %p124
        $region82: #{critic_net_forward.1} parent=75 // pred_check_branch
          %675 = sbr.rel (%p673) target = $region84
        $region83: #{critic_net_forward.1} parent=75 // pred_region
          %s676 = sand.u32 %s36, 1
          %s677 = scalar_lea.sflag [#allocation5], %s676
          %s678 = sand.u32 %s114, 1
          %s679 = smul.addr %s678, 8
          %s680 = scalar_lea.vmem [#allocation10], %s679
          %s681 = smul.u32 8, %s36
          %683 = vsyncadd %s677, 0
          %s684 = scalar_lea.hbm %s3, %s681
          %s686 = sshll.u32 %s684, 4
          %s687 = int_to_ptr.hbm [resolvable:$true] %s686
          %s688 = sshll.u32 %s680, 4
          %s689 = int_to_ptr.vmem [resolvable:$true] %s688
          %691 = dma.hbm_to_vmem [thread:$0]  %s687, 128, %s689, %s677
        $region84: #{critic_net_forward.1} parent=75 // pred_fallthru
          _
        // Predicated region
        $region85: #{critic_net_forward.1} parent=75 // pred_check
          %p692 = pneg %p150
        $region86: #{critic_net_forward.1} parent=75 // pred_check_branch
          %694 = sbr.rel (%p692) target = $region88
        $region87: #{critic_net_forward.1} parent=75 // pred_region
          %s695 = sand.u32 %s36, 1
          %s696 = scalar_lea.sflag [#allocation5], %s695
          %s697 = sand.u32 %s140, 1
          %s698 = smul.addr %s697, 8192
          %s699 = scalar_lea.vmem [#allocation11], %s698
          %s700 = smul.u32 128, %s36
          %702 = vsyncadd %s696, 0
          %s703 = smul.addr %s700, 16
          %s704 = smul.addr %s703, 4
          %s705 = scalar_lea.hbm %s4, %s704
          %s706 = sshll.u32 %s705, 4
          %s707 = int_to_ptr.hbm [resolvable:$true] %s706
          %s708 = sshll.u32 %s699, 4
          %s709 = int_to_ptr.vmem [resolvable:$true] %s708
          %714 = dma.hbm_to_vmem [thread:$0]  %s707, 131072, %s709, %s696, 1024, 1024, 64
        $region88: #{critic_net_forward.1} parent=75 // pred_fallthru
          _
      $region76: #{critic_net_forward.1} parent=5 // pred_fallthru
        _
      %p715 = scmp.le.s32.totalorder 1, %s36
      %p716 = scmp.lt.s32.totalorder %s36, 5
      %p717 = pnand %p715, %p716
      %p718 = pneg %p717
      // Predicated region
      $region89: #{critic_net_forward.1} parent=5 // pred_check
        _
      $region90: #{critic_net_forward.1} parent=5 // pred_check_branch
        %720 = sbr.rel (%p717) target = $region92
      $region91: #{critic_net_forward.1} parent=5 // pred_region
        %s721 = ssub.s32 %s36, 1
        // Predicated region
        $region93: #{critic_net_forward.1} parent=91 // pred_check
          %p722 = pneg %p57
        $region94: #{critic_net_forward.1} parent=91 // pred_check_branch
          %724 = sbr.rel (%p722) target = $region96
        $region95: #{critic_net_forward.1} parent=91 // pred_region
          %726 = dma.done [#allocation5], 32
        $region96: #{critic_net_forward.1} parent=91 // pred_fallthru
          _
        // Predicated region
        $region97: #{critic_net_forward.1} parent=91 // pred_check
          %p727 = pneg %p78
        $region98: #{critic_net_forward.1} parent=91 // pred_check_branch
          %729 = sbr.rel (%p727) target = $region100
        $region99: #{critic_net_forward.1} parent=91 // pred_region
          %731 = dma.done [#allocation8], 64
        $region100: #{critic_net_forward.1} parent=91 // pred_fallthru
          _
        %s732 = sand.u32 %s41, 1
        %s733 = scalar_lea.sflag [#allocation5], %s732
        %s734 = sand.u32 %s91, 1
        %s735 = smul.addr %s734, 128
        %s736 = scalar_lea.vmem [#allocation9], %s735
        // Predicated region
        $region101: #{critic_net_forward.1} parent=91 // pred_check
          %p737 = pneg %p104
        $region102: #{critic_net_forward.1} parent=91 // pred_check_branch
          %739 = sbr.rel (%p737) target = $region104
        $region103: #{critic_net_forward.1} parent=91 // pred_region
          %741 = dma.done %s733, 2048
        $region104: #{critic_net_forward.1} parent=91 // pred_fallthru
          _
        %s742 = sand.u32 %s41, 1
        %s743 = scalar_lea.sflag [#allocation5], %s742
        %s744 = sand.u32 %s117, 1
        %s745 = smul.addr %s744, 8
        %s746 = scalar_lea.vmem [#allocation10], %s745
        // Predicated region
        $region105: #{critic_net_forward.1} parent=91 // pred_check
          %p747 = pneg %p130
        $region106: #{critic_net_forward.1} parent=91 // pred_check_branch
          %749 = sbr.rel (%p747) target = $region108
        $region107: #{critic_net_forward.1} parent=91 // pred_region
          %751 = dma.done %s743, 128
        $region108: #{critic_net_forward.1} parent=91 // pred_fallthru
          _
        %s752 = sand.u32 %s41, 1
        %s753 = scalar_lea.sflag [#allocation5], %s752
        %s754 = sand.u32 %s143, 1
        %s755 = smul.addr %s754, 8192
        %s756 = scalar_lea.vmem [#allocation11], %s755
        // Predicated region
        $region109: #{critic_net_forward.1} parent=91 // pred_check
          %p757 = pneg %p156
        $region110: #{critic_net_forward.1} parent=91 // pred_check_branch
          %759 = sbr.rel (%p757) target = $region112
        $region111: #{critic_net_forward.1} parent=91 // pred_region
          %761 = dma.done %s753, 131072
        $region112: #{critic_net_forward.1} parent=91 // pred_fallthru
          _
        // Predicated region
        $region113: #{critic_net_forward.1} parent=91 // pred_check
          %p762 = pneg %p177
        $region114: #{critic_net_forward.1} parent=91 // pred_check_branch
          %764 = sbr.rel (%p762) target = $region116
        $region115: #{critic_net_forward.1} parent=91 // pred_region
          %766 = dma.done [#allocation8], 256
        $region116: #{critic_net_forward.1} parent=91 // pred_fallthru
          _
        // Predicated region
        $region117: #{critic_net_forward.1} parent=91 // pred_check
          %p767 = pneg %p198
        $region118: #{critic_net_forward.1} parent=91 // pred_check_branch
          %769 = sbr.rel (%p767) target = $region120
        $region119: #{critic_net_forward.1} parent=91 // pred_region
          %771 = dma.done [#allocation14], 32768
        $region120: #{critic_net_forward.1} parent=91 // pred_fallthru
          _
        // Predicated region
        $region121: #{critic_net_forward.1} parent=91 // pred_check
          %p772 = pneg %p219
        $region122: #{critic_net_forward.1} parent=91 // pred_check_branch
          %774 = sbr.rel (%p772) target = $region124
        $region123: #{critic_net_forward.1} parent=91 // pred_region
          %776 = dma.done [#allocation14], 32
        $region124: #{critic_net_forward.1} parent=91 // pred_fallthru
          _
        // Predicated region
        $region125: #{critic_net_forward.1} parent=91 // pred_check
          %p777 = pneg %p240
        $region126: #{critic_net_forward.1} parent=91 // pred_check_branch
          %779 = sbr.rel (%p777) target = $region128
        $region127: #{critic_net_forward.1} parent=91 // pred_region
          %781 = dma.done [#allocation17], 12288
        $region128: #{critic_net_forward.1} parent=91 // pred_fallthru
          _
        // Predicated region
        $region129: #{critic_net_forward.1} parent=91 // pred_check
          %p782 = pneg %p261
        $region130: #{critic_net_forward.1} parent=91 // pred_check_branch
          %784 = sbr.rel (%p782) target = $region132
        $region131: #{critic_net_forward.1} parent=91 // pred_region
          %786 = dma.done [#allocation17], 24576
        $region132: #{critic_net_forward.1} parent=91 // pred_fallthru
          _
        // Predicated region
        $region133: #{critic_net_forward.1} parent=91 // pred_check
          %p787 = pneg %p282
        $region134: #{critic_net_forward.1} parent=91 // pred_check_branch
          %789 = sbr.rel (%p787) target = $region136
        $region135: #{critic_net_forward.1} parent=91 // pred_region
          %791 = dma.done [#allocation20], 96
        $region136: #{critic_net_forward.1} parent=91 // pred_fallthru
          _
        // Predicated region
        $region137: #{critic_net_forward.1} parent=91 // pred_check
          %p792 = pneg %p303
        $region138: #{critic_net_forward.1} parent=91 // pred_check_branch
          %794 = sbr.rel (%p792) target = $region140
        $region139: #{critic_net_forward.1} parent=91 // pred_region
          %796 = dma.done [#allocation20], 96
        $region140: #{critic_net_forward.1} parent=91 // pred_fallthru
          _
        // Predicated region
        $region141: #{critic_net_forward.1} parent=91 // pred_check
          %p797 = pneg %p324
        $region142: #{critic_net_forward.1} parent=91 // pred_check_branch
          %799 = sbr.rel (%p797) target = $region144
        $region143: #{critic_net_forward.1} parent=91 // pred_region
          %801 = dma.done [#allocation23], 4096
        $region144: #{critic_net_forward.1} parent=91 // pred_fallthru
          _
        // Predicated region
        $region145: #{critic_net_forward.1} parent=91 // pred_check
          %p802 = pneg %p345
        $region146: #{critic_net_forward.1} parent=91 // pred_check_branch
          %804 = sbr.rel (%p802) target = $region148
        $region147: #{critic_net_forward.1} parent=91 // pred_region
          %806 = dma.done [#allocation23], 32
        $region148: #{critic_net_forward.1} parent=91 // pred_fallthru
          _
        // Predicated region
        $region149: #{critic_net_forward.1} parent=91 // pred_check
          %p807 = pneg %p387
        $region150: #{critic_net_forward.1} parent=91 // pred_check_branch
          %809 = sbr.rel (%p807) target = $region152
        $region151: #{critic_net_forward.1} parent=91 // pred_region
          %811 = dma.done [#allocation26], 16
        $region152: #{critic_net_forward.1} parent=91 // pred_fallthru
          _
        %p812 = pneg %p57
        %p813 = pneg %p54
        %p814 = pneg %p78
        %p815 = pneg %p75
        %s816 = sand.u32 %s41, 1
        %s817 = scalar_lea.sflag [#allocation5], %s816
        %s818 = sand.u32 %s91, 1
        %s819 = smul.addr %s818, 128
        %s820 = scalar_lea.vmem [#allocation9], %s819
        %p821 = pneg %p104
        %p822 = pneg %p101
        %s823 = sand.u32 %s41, 1
        %s824 = scalar_lea.sflag [#allocation5], %s823
        %s825 = sand.u32 %s117, 1
        %s826 = smul.addr %s825, 8
        %s827 = scalar_lea.vmem [#allocation10], %s826
        %p828 = pneg %p130
        %p829 = pneg %p127
        %s830 = sand.u32 %s41, 1
        %s831 = scalar_lea.sflag [#allocation5], %s830
        %s832 = sand.u32 %s143, 1
        %s833 = smul.addr %s832, 8192
        %s834 = scalar_lea.vmem [#allocation11], %s833
        %p835 = pneg %p156
        %p836 = pneg %p153
        %p837 = pneg %p177
        %p838 = pneg %p174
        %p839 = pneg %p198
        %p840 = pneg %p195
        %p841 = pneg %p219
        %p842 = pneg %p216
        %p843 = pneg %p240
        %p844 = pneg %p237
        %p845 = pneg %p261
        %p846 = pneg %p258
        %p847 = pneg %p282
        %p848 = pneg %p279
        %p849 = pneg %p303
        %p850 = pneg %p300
        %p851 = pneg %p324
        %p852 = pneg %p321
        %p853 = pneg %p345
        %p854 = pneg %p342
        %p855 = pneg %p366
        %p856 = pneg %p363
        %p857 = pneg %p387
        %p858 = pneg %p384
        %p859 = pneg %p408
        %p860 = pneg %p405
        %p861 = pneg %p429
        %p862 = pneg %p426
        %p863 = pneg %p450
        %p864 = pneg %p447
        %p865 = pneg %p471
        %p866 = pneg %p468
        %s867 = smul.u32 8, %s41
        %s868 = smul.u32 8, %s41
        %s869 = smul.u32 128, %s41
        %p871 = scmp.eq.s32.totalorder %s41, 0
        // Predicated region
        $region153: #{critic_net_forward.1} parent=91 // pred_check
          %p872 = pneg %p871
        $region154: #{critic_net_forward.1} parent=91 // pred_check_branch
          %874 = sbr.rel (%p872) target = $region156
        $region155: #{critic_net_forward.1} parent=91 // pred_region
          %875 = vst [vmem:[#allocation2] sm:$0xff] 0.0
          %876 = vst [vmem:[#allocation2 + $0x8] sm:$0xff] 0.0
          %877 = vst [vmem:[#allocation2 + $0x10] sm:$0xff] 0.0
          %878 = vst [vmem:[#allocation2 + $0x18] sm:$0xff] 0.0
        $region156: #{critic_net_forward.1} parent=91 // pred_fallthru
          _
        %v879 = vld [vmem:[#allocation4] sm:$0x3]
        %v880 = vpack.c.bf16 %v879, %v879
        %v881 = vld [vmem:[%s736] sm:$0xff]
        %v882 = vld [vmem:[%s736 + $0x8] sm:$0xff]
        %v883 = vld [vmem:[%s736 + $0x10] sm:$0xff]
        %v884 = vld [vmem:[%s736 + $0x18] sm:$0xff]
        %v885 = vld [vmem:[%s736 + $0x20] sm:$0xff]
        %v886 = vld [vmem:[%s736 + $0x28] sm:$0xff]
        %v887 = vld [vmem:[%s736 + $0x30] sm:$0xff]
        %v888 = vld [vmem:[%s736 + $0x38] sm:$0xff]
        %v889 = vld [vmem:[%s736 + $0x40] sm:$0xff]
        %v890 = vld [vmem:[%s736 + $0x48] sm:$0xff]
        %v891 = vld [vmem:[%s736 + $0x50] sm:$0xff]
        %v892 = vld [vmem:[%s736 + $0x58] sm:$0xff]
        %v893 = vld [vmem:[%s736 + $0x60] sm:$0xff]
        %v894 = vld [vmem:[%s736 + $0x68] sm:$0xff]
        %v895 = vld [vmem:[%s736 + $0x70] sm:$0xff]
        %v896 = vld [vmem:[%s736 + $0x78] sm:$0xff]
        %v897 = vld [vmem:[%s746] sm:$0xff]
        %v899 = vperm.slane %v897, 0
        %v900 = vperm.slane %v897, 1
        %v901 = vperm.slane %v897, 2
        %v902 = vperm.slane %v897, 3
        %v903 = vperm.slane %v897, 4
        %v904 = vperm.slane %v897, 5
        %v905 = vperm.slane %v897, 6
        %v906 = vperm.slane %v897, 7
        %v931 = vunpack.c.l.b16 %v881
        %v932 = vunpack.c.h.b16 %v881
        %v933 = vunpack.c.l.b16 %v882
        %v934 = vunpack.c.h.b16 %v882
        %v935 = vunpack.c.l.b16 %v883
        %v936 = vunpack.c.h.b16 %v883
        %v937 = vunpack.c.l.b16 %v884
        %v938 = vunpack.c.h.b16 %v884
        %v939 = vunpack.c.l.b16 %v885
        %v940 = vunpack.c.h.b16 %v885
        %v941 = vunpack.c.l.b16 %v886
        %v942 = vunpack.c.h.b16 %v886
        %v943 = vunpack.c.l.b16 %v887
        %v944 = vunpack.c.h.b16 %v887
        %v945 = vunpack.c.l.b16 %v888
        %v946 = vunpack.c.h.b16 %v888
        %v947 = vunpack.c.l.b16 %v889
        %v948 = vunpack.c.h.b16 %v889
        %v949 = vunpack.c.l.b16 %v890
        %v950 = vunpack.c.h.b16 %v890
        %v951 = vunpack.c.l.b16 %v891
        %v952 = vunpack.c.h.b16 %v891
        %v953 = vunpack.c.l.b16 %v892
        %v954 = vunpack.c.h.b16 %v892
        %v955 = vunpack.c.l.b16 %v893
        %v956 = vunpack.c.h.b16 %v893
        %v957 = vunpack.c.l.b16 %v894
        %v958 = vunpack.c.h.b16 %v894
        %v959 = vunpack.c.l.b16 %v895
        %v960 = vunpack.c.h.b16 %v895
        %v961 = vunpack.c.l.b16 %v896
        %v962 = vunpack.c.h.b16 %v896
        %v963 = vpack.c.b16 %v939, %v931
        %v964 = vpack.c.b16 %v940, %v932
        %v965 = vpack.c.b16 %v941, %v933
        %v966 = vpack.c.b16 %v942, %v934
        %v967 = vpack.c.b16 %v943, %v935
        %v968 = vpack.c.b16 %v944, %v936
        %v969 = vpack.c.b16 %v945, %v937
        %v970 = vpack.c.b16 %v946, %v938
        %v971 = vpack.c.b16 %v955, %v947
        %v972 = vpack.c.b16 %v956, %v948
        %v973 = vpack.c.b16 %v957, %v949
        %v974 = vpack.c.b16 %v958, %v950
        %v975 = vpack.c.b16 %v959, %v951
        %v976 = vpack.c.b16 %v960, %v952
        %v977 = vpack.c.b16 %v961, %v953
        %v978 = vpack.c.b16 %v962, %v954
        %vm995 = vcmask 261120
        %v997 = vsel %vm995, %v880, 0
        %999 = vmatpush.bf16.msra.mxu0 0
        %1000 = vmatpush.bf16.msra.mxu0 0
        %1001 = vmatpush.bf16.msra.mxu0 0
        %1002 = vmatpush.bf16.msra.mxu0 0
        %1003 = vmatpush.bf16.msra.mxu0 0
        %1004 = vmatpush.bf16.msra.mxu0 0
        %1005 = vmatpush.bf16.msra.mxu0 %v971
        %1006 = vmatpush.bf16.msra.mxu0 %v963
        %1007 = vmatmul.bf16.gmra.mxu0 %v997
        %v1008 = vpop.f32.mrf.mxu0
        %v1009 = vadd.f32 %v899, %v1008
        %v1010 = vpop.f32.mrf.mxu0
        %1011 = vdwg.mxu0
        %1012 = vmatpush.bf16.msra.mxu0 0
        %1013 = vmatpush.bf16.msra.mxu0 0
        %1014 = vmatpush.bf16.msra.mxu0 0
        %1015 = vmatpush.bf16.msra.mxu0 0
        %1016 = vmatpush.bf16.msra.mxu0 0
        %1017 = vmatpush.bf16.msra.mxu0 0
        %1018 = vmatpush.bf16.msra.mxu0 %v972
        %1019 = vmatpush.bf16.msra.mxu0 %v964
        %1020 = vmatmul.bf16.gmra.mxu0 %v997
        %v1021 = vpop.f32.mrf.mxu0
        %v1022 = vadd.f32 %v900, %v1021
        %v1023 = vpop.f32.mrf.mxu0
        %1024 = vdwg.mxu0
        %1025 = vmatpush.bf16.msra.mxu0 0
        %1026 = vmatpush.bf16.msra.mxu0 0
        %1027 = vmatpush.bf16.msra.mxu0 0
        %1028 = vmatpush.bf16.msra.mxu0 0
        %1029 = vmatpush.bf16.msra.mxu0 0
        %1030 = vmatpush.bf16.msra.mxu0 0
        %1031 = vmatpush.bf16.msra.mxu0 %v973
        %1032 = vmatpush.bf16.msra.mxu0 %v965
        %1033 = vmatmul.bf16.gmra.mxu0 %v997
        %v1034 = vpop.f32.mrf.mxu0
        %v1035 = vadd.f32 %v901, %v1034
        %v1036 = vpop.f32.mrf.mxu0
        %1037 = vdwg.mxu0
        %1038 = vmatpush.bf16.msra.mxu0 0
        %1039 = vmatpush.bf16.msra.mxu0 0
        %1040 = vmatpush.bf16.msra.mxu0 0
        %1041 = vmatpush.bf16.msra.mxu0 0
        %1042 = vmatpush.bf16.msra.mxu0 0
        %1043 = vmatpush.bf16.msra.mxu0 0
        %1044 = vmatpush.bf16.msra.mxu0 %v974
        %1045 = vmatpush.bf16.msra.mxu0 %v966
        %1046 = vmatmul.bf16.gmra.mxu0 %v997
        %v1047 = vpop.f32.mrf.mxu0
        %v1048 = vadd.f32 %v902, %v1047
        %v1049 = vpop.f32.mrf.mxu0
        %1050 = vdwg.mxu0
        %1051 = vmatpush.bf16.msra.mxu0 0
        %1052 = vmatpush.bf16.msra.mxu0 0
        %1053 = vmatpush.bf16.msra.mxu0 0
        %1054 = vmatpush.bf16.msra.mxu0 0
        %1055 = vmatpush.bf16.msra.mxu0 0
        %1056 = vmatpush.bf16.msra.mxu0 0
        %1057 = vmatpush.bf16.msra.mxu0 %v975
        %1058 = vmatpush.bf16.msra.mxu0 %v967
        %1059 = vmatmul.bf16.gmra.mxu0 %v997
        %v1060 = vpop.f32.mrf.mxu0
        %v1061 = vadd.f32 %v903, %v1060
        %v1062 = vpop.f32.mrf.mxu0
        %1063 = vdwg.mxu0
        %1064 = vmatpush.bf16.msra.mxu0 0
        %1065 = vmatpush.bf16.msra.mxu0 0
        %1066 = vmatpush.bf16.msra.mxu0 0
        %1067 = vmatpush.bf16.msra.mxu0 0
        %1068 = vmatpush.bf16.msra.mxu0 0
        %1069 = vmatpush.bf16.msra.mxu0 0
        %1070 = vmatpush.bf16.msra.mxu0 %v976
        %1071 = vmatpush.bf16.msra.mxu0 %v968
        %1072 = vmatmul.bf16.gmra.mxu0 %v997
        %v1073 = vpop.f32.mrf.mxu0
        %v1074 = vadd.f32 %v904, %v1073
        %v1075 = vpop.f32.mrf.mxu0
        %1076 = vdwg.mxu0
        %1077 = vmatpush.bf16.msra.mxu0 0
        %1078 = vmatpush.bf16.msra.mxu0 0
        %1079 = vmatpush.bf16.msra.mxu0 0
        %1080 = vmatpush.bf16.msra.mxu0 0
        %1081 = vmatpush.bf16.msra.mxu0 0
        %1082 = vmatpush.bf16.msra.mxu0 0
        %1083 = vmatpush.bf16.msra.mxu0 %v977
        %1084 = vmatpush.bf16.msra.mxu0 %v969
        %1085 = vmatmul.bf16.gmra.mxu0 %v997
        %v1086 = vpop.f32.mrf.mxu0
        %v1087 = vadd.f32 %v905, %v1086
        %v1088 = vpop.f32.mrf.mxu0
        %1089 = vdwg.mxu0
        %1090 = vmatpush.bf16.msra.mxu0 0
        %1091 = vmatpush.bf16.msra.mxu0 0
        %1092 = vmatpush.bf16.msra.mxu0 0
        %1093 = vmatpush.bf16.msra.mxu0 0
        %1094 = vmatpush.bf16.msra.mxu0 0
        %1095 = vmatpush.bf16.msra.mxu0 0
        %1096 = vmatpush.bf16.msra.mxu0 %v978
        %1097 = vmatpush.bf16.msra.mxu0 %v970
        %1098 = vmatmul.bf16.gmra.mxu0 %v997
        %v1099 = vpop.f32.mrf.mxu0
        %v1100 = vadd.f32 %v906, %v1099
        %v1101 = vpop.f32.mrf.mxu0
        %1102 = vdwg.mxu0
        %v1103 = vmax.f32 %v1009, 0.0
        %v1104 = vmax.f32 %v1022, 0.0
        %v1105 = vmax.f32 %v1035, 0.0
        %v1106 = vmax.f32 %v1048, 0.0
        %v1107 = vmax.f32 %v1061, 0.0
        %v1108 = vmax.f32 %v1074, 0.0
        %v1109 = vmax.f32 %v1087, 0.0
        %v1110 = vmax.f32 %v1100, 0.0
        %v1111 = vld [vmem:[#allocation2] sm:$0xff]
        %v1112 = vld [vmem:[#allocation2 + $0x8] sm:$0xff]
        %v1113 = vld [vmem:[#allocation2 + $0x10] sm:$0xff]
        %v1114 = vld [vmem:[#allocation2 + $0x18] sm:$0xff]
        %v1115 = vpack.c.bf16 %v1103, %v1103
        %v1116 = vpack.c.bf16 %v1104, %v1104
        %v1117 = vpack.c.bf16 %v1105, %v1105
        %v1118 = vpack.c.bf16 %v1106, %v1106
        %v1119 = vpack.c.bf16 %v1107, %v1107
        %v1120 = vpack.c.bf16 %v1108, %v1108
        %v1121 = vpack.c.bf16 %v1109, %v1109
        %v1122 = vpack.c.bf16 %v1110, %v1110
        %v1123 = vld [vmem:[%s756] sm:$0xff]
        %v1124 = vld [vmem:[%s756 + $0x8] sm:$0xff]
        %v1125 = vld [vmem:[%s756 + $0x10] sm:$0xff]
        %v1126 = vld [vmem:[%s756 + $0x18] sm:$0xff]
        %v1127 = vld [vmem:[%s756 + $0x20] sm:$0xff]
        %v1128 = vld [vmem:[%s756 + $0x28] sm:$0xff]
        %v1129 = vld [vmem:[%s756 + $0x30] sm:$0xff]
        %v1130 = vld [vmem:[%s756 + $0x38] sm:$0xff]
        %v1131 = vld [vmem:[%s756 + $0x40] sm:$0xff]
        %v1132 = vld [vmem:[%s756 + $0x48] sm:$0xff]
        %v1133 = vld [vmem:[%s756 + $0x50] sm:$0xff]
        %v1134 = vld [vmem:[%s756 + $0x58] sm:$0xff]
        %v1135 = vld [vmem:[%s756 + $0x60] sm:$0xff]
        %v1136 = vld [vmem:[%s756 + $0x68] sm:$0xff]
        %v1137 = vld [vmem:[%s756 + $0x70] sm:$0xff]
        %v1138 = vld [vmem:[%s756 + $0x78] sm:$0xff]
        %v1139 = vld [vmem:[%s756 + $0x80] sm:$0xff]
        %v1140 = vld [vmem:[%s756 + $0x88] sm:$0xff]
        %v1141 = vld [vmem:[%s756 + $0x90] sm:$0xff]
        %v1142 = vld [vmem:[%s756 + $0x98] sm:$0xff]
        %v1143 = vld [vmem:[%s756 + $0xa0] sm:$0xff]
        %v1144 = vld [vmem:[%s756 + $0xa8] sm:$0xff]
        %v1145 = vld [vmem:[%s756 + $0xb0] sm:$0xff]
        %v1146 = vld [vmem:[%s756 + $0xb8] sm:$0xff]
        %v1147 = vld [vmem:[%s756 + $0xc0] sm:$0xff]
        %v1148 = vld [vmem:[%s756 + $0xc8] sm:$0xff]
        %v1149 = vld [vmem:[%s756 + $0xd0] sm:$0xff]
        %v1150 = vld [vmem:[%s756 + $0xd8] sm:$0xff]
        %v1151 = vld [vmem:[%s756 + $0xe0] sm:$0xff]
        %v1152 = vld [vmem:[%s756 + $0xe8] sm:$0xff]
        %v1153 = vld [vmem:[%s756 + $0xf0] sm:$0xff]
        %v1154 = vld [vmem:[%s756 + $0xf8] sm:$0xff]
        %v1155 = vld [vmem:[%s756 + $0x100] sm:$0xff]
        %v1156 = vld [vmem:[%s756 + $0x108] sm:$0xff]
        %v1157 = vld [vmem:[%s756 + $0x110] sm:$0xff]
        %v1158 = vld [vmem:[%s756 + $0x118] sm:$0xff]
        %v1159 = vld [vmem:[%s756 + $0x120] sm:$0xff]
        %v1160 = vld [vmem:[%s756 + $0x128] sm:$0xff]
        %v1161 = vld [vmem:[%s756 + $0x130] sm:$0xff]
        %v1162 = vld [vmem:[%s756 + $0x138] sm:$0xff]
        %v1163 = vld [vmem:[%s756 + $0x140] sm:$0xff]
        %v1164 = vld [vmem:[%s756 + $0x148] sm:$0xff]
        %v1165 = vld [vmem:[%s756 + $0x150] sm:$0xff]
        %v1166 = vld [vmem:[%s756 + $0x158] sm:$0xff]
        %v1167 = vld [vmem:[%s756 + $0x160] sm:$0xff]
        %v1168 = vld [vmem:[%s756 + $0x168] sm:$0xff]
        %v1169 = vld [vmem:[%s756 + $0x170] sm:$0xff]
        %v1170 = vld [vmem:[%s756 + $0x178] sm:$0xff]
        %v1171 = vld [vmem:[%s756 + $0x180] sm:$0xff]
        %v1172 = vld [vmem:[%s756 + $0x188] sm:$0xff]
        %v1173 = vld [vmem:[%s756 + $0x190] sm:$0xff]
        %v1174 = vld [vmem:[%s756 + $0x198] sm:$0xff]
        %v1175 = vld [vmem:[%s756 + $0x1a0] sm:$0xff]
        %v1176 = vld [vmem:[%s756 + $0x1a8] sm:$0xff]
        %v1177 = vld [vmem:[%s756 + $0x1b0] sm:$0xff]
        %v1178 = vld [vmem:[%s756 + $0x1b8] sm:$0xff]
        %v1179 = vld [vmem:[%s756 + $0x1c0] sm:$0xff]
        %v1180 = vld [vmem:[%s756 + $0x1c8] sm:$0xff]
        %v1181 = vld [vmem:[%s756 + $0x1d0] sm:$0xff]
        %v1182 = vld [vmem:[%s756 + $0x1d8] sm:$0xff]
        %v1183 = vld [vmem:[%s756 + $0x1e0] sm:$0xff]
        %v1184 = vld [vmem:[%s756 + $0x1e8] sm:$0xff]
        %v1185 = vld [vmem:[%s756 + $0x1f0] sm:$0xff]
        %v1186 = vld [vmem:[%s756 + $0x1f8] sm:$0xff]
        %v1187 = vld [vmem:[%s756 + $0x200] sm:$0xff]
        %v1188 = vld [vmem:[%s756 + $0x208] sm:$0xff]
        %v1189 = vld [vmem:[%s756 + $0x210] sm:$0xff]
        %v1190 = vld [vmem:[%s756 + $0x218] sm:$0xff]
        %v1191 = vld [vmem:[%s756 + $0x220] sm:$0xff]
        %v1192 = vld [vmem:[%s756 + $0x228] sm:$0xff]
        %v1193 = vld [vmem:[%s756 + $0x230] sm:$0xff]
        %v1194 = vld [vmem:[%s756 + $0x238] sm:$0xff]
        %v1195 = vld [vmem:[%s756 + $0x240] sm:$0xff]
        %v1196 = vld [vmem:[%s756 + $0x248] sm:$0xff]
        %v1197 = vld [vmem:[%s756 + $0x250] sm:$0xff]
        %v1198 = vld [vmem:[%s756 + $0x258] sm:$0xff]
        %v1199 = vld [vmem:[%s756 + $0x260] sm:$0xff]
        %v1200 = vld [vmem:[%s756 + $0x268] sm:$0xff]
        %v1201 = vld [vmem:[%s756 + $0x270] sm:$0xff]
        %v1202 = vld [vmem:[%s756 + $0x278] sm:$0xff]
        %v1203 = vld [vmem:[%s756 + $0x280] sm:$0xff]
        %v1204 = vld [vmem:[%s756 + $0x288] sm:$0xff]
        %v1205 = vld [vmem:[%s756 + $0x290] sm:$0xff]
        %v1206 = vld [vmem:[%s756 + $0x298] sm:$0xff]
        %v1207 = vld [vmem:[%s756 + $0x2a0] sm:$0xff]
        %v1208 = vld [vmem:[%s756 + $0x2a8] sm:$0xff]
        %v1209 = vld [vmem:[%s756 + $0x2b0] sm:$0xff]
        %v1210 = vld [vmem:[%s756 + $0x2b8] sm:$0xff]
        %v1211 = vld [vmem:[%s756 + $0x2c0] sm:$0xff]
        %v1212 = vld [vmem:[%s756 + $0x2c8] sm:$0xff]
        %v1213 = vld [vmem:[%s756 + $0x2d0] sm:$0xff]
        %v1214 = vld [vmem:[%s756 + $0x2d8] sm:$0xff]
        %v1215 = vld [vmem:[%s756 + $0x2e0] sm:$0xff]
        %v1216 = vld [vmem:[%s756 + $0x2e8] sm:$0xff]
        %v1217 = vld [vmem:[%s756 + $0x2f0] sm:$0xff]
        %v1218 = vld [vmem:[%s756 + $0x2f8] sm:$0xff]
        %v1219 = vld [vmem:[%s756 + $0x300] sm:$0xff]
        %v1220 = vld [vmem:[%s756 + $0x308] sm:$0xff]
        %v1221 = vld [vmem:[%s756 + $0x310] sm:$0xff]
        %v1222 = vld [vmem:[%s756 + $0x318] sm:$0xff]
        %v1223 = vld [vmem:[%s756 + $0x320] sm:$0xff]
        %v1224 = vld [vmem:[%s756 + $0x328] sm:$0xff]
        %v1225 = vld [vmem:[%s756 + $0x330] sm:$0xff]
        %v1226 = vld [vmem:[%s756 + $0x338] sm:$0xff]
        %v1227 = vld [vmem:[%s756 + $0x340] sm:$0xff]
        %v1228 = vld [vmem:[%s756 + $0x348] sm:$0xff]
        %v1229 = vld [vmem:[%s756 + $0x350] sm:$0xff]
        %v1230 = vld [vmem:[%s756 + $0x358] sm:$0xff]
        %v1231 = vld [vmem:[%s756 + $0x360] sm:$0xff]
        %v1232 = vld [vmem:[%s756 + $0x368] sm:$0xff]
        %v1233 = vld [vmem:[%s756 + $0x370] sm:$0xff]
        %v1234 = vld [vmem:[%s756 + $0x378] sm:$0xff]
        %v1235 = vld [vmem:[%s756 + $0x380] sm:$0xff]
        %v1236 = vld [vmem:[%s756 + $0x388] sm:$0xff]
        %v1237 = vld [vmem:[%s756 + $0x390] sm:$0xff]
        %v1238 = vld [vmem:[%s756 + $0x398] sm:$0xff]
        %v1239 = vld [vmem:[%s756 + $0x3a0] sm:$0xff]
        %v1240 = vld [vmem:[%s756 + $0x3a8] sm:$0xff]
        %v1241 = vld [vmem:[%s756 + $0x3b0] sm:$0xff]
        %v1242 = vld [vmem:[%s756 + $0x3b8] sm:$0xff]
        %v1243 = vld [vmem:[%s756 + $0x3c0] sm:$0xff]
        %v1244 = vld [vmem:[%s756 + $0x3c8] sm:$0xff]
        %v1245 = vld [vmem:[%s756 + $0x3d0] sm:$0xff]
        %v1246 = vld [vmem:[%s756 + $0x3d8] sm:$0xff]
        %v1247 = vld [vmem:[%s756 + $0x3e0] sm:$0xff]
        %v1248 = vld [vmem:[%s756 + $0x3e8] sm:$0xff]
        %v1249 = vld [vmem:[%s756 + $0x3f0] sm:$0xff]
        %v1250 = vld [vmem:[%s756 + $0x3f8] sm:$0xff]
        %v1251 = vld [vmem:[%s756 + $0x400] sm:$0xff]
        %v1252 = vld [vmem:[%s756 + $0x408] sm:$0xff]
        %v1253 = vld [vmem:[%s756 + $0x410] sm:$0xff]
        %v1254 = vld [vmem:[%s756 + $0x418] sm:$0xff]
        %v1255 = vld [vmem:[%s756 + $0x420] sm:$0xff]
        %v1256 = vld [vmem:[%s756 + $0x428] sm:$0xff]
        %v1257 = vld [vmem:[%s756 + $0x430] sm:$0xff]
        %v1258 = vld [vmem:[%s756 + $0x438] sm:$0xff]
        %v1259 = vld [vmem:[%s756 + $0x440] sm:$0xff]
        %v1260 = vld [vmem:[%s756 + $0x448] sm:$0xff]
        %v1261 = vld [vmem:[%s756 + $0x450] sm:$0xff]
        %v1262 = vld [vmem:[%s756 + $0x458] sm:$0xff]
        %v1263 = vld [vmem:[%s756 + $0x460] sm:$0xff]
        %v1264 = vld [vmem:[%s756 + $0x468] sm:$0xff]
        %v1265 = vld [vmem:[%s756 + $0x470] sm:$0xff]
        %v1266 = vld [vmem:[%s756 + $0x478] sm:$0xff]
        %v1267 = vld [vmem:[%s756 + $0x480] sm:$0xff]
        %v1268 = vld [vmem:[%s756 + $0x488] sm:$0xff]
        %v1269 = vld [vmem:[%s756 + $0x490] sm:$0xff]
        %v1270 = vld [vmem:[%s756 + $0x498] sm:$0xff]
        %v1271 = vld [vmem:[%s756 + $0x4a0] sm:$0xff]
        %v1272 = vld [vmem:[%s756 + $0x4a8] sm:$0xff]
        %v1273 = vld [vmem:[%s756 + $0x4b0] sm:$0xff]
        %v1274 = vld [vmem:[%s756 + $0x4b8] sm:$0xff]
        %v1275 = vld [vmem:[%s756 + $0x4c0] sm:$0xff]
        %v1276 = vld [vmem:[%s756 + $0x4c8] sm:$0xff]
        %v1277 = vld [vmem:[%s756 + $0x4d0] sm:$0xff]
        %v1278 = vld [vmem:[%s756 + $0x4d8] sm:$0xff]
        %v1279 = vld [vmem:[%s756 + $0x4e0] sm:$0xff]
        %v1280 = vld [vmem:[%s756 + $0x4e8] sm:$0xff]
        %v1281 = vld [vmem:[%s756 + $0x4f0] sm:$0xff]
        %v1282 = vld [vmem:[%s756 + $0x4f8] sm:$0xff]
        %v1283 = vld [vmem:[%s756 + $0x500] sm:$0xff]
        %v1284 = vld [vmem:[%s756 + $0x508] sm:$0xff]
        %v1285 = vld [vmem:[%s756 + $0x510] sm:$0xff]
        %v1286 = vld [vmem:[%s756 + $0x518] sm:$0xff]
        %v1287 = vld [vmem:[%s756 + $0x520] sm:$0xff]
        %v1288 = vld [vmem:[%s756 + $0x528] sm:$0xff]
        %v1289 = vld [vmem:[%s756 + $0x530] sm:$0xff]
        %v1290 = vld [vmem:[%s756 + $0x538] sm:$0xff]
        %v1291 = vld [vmem:[%s756 + $0x540] sm:$0xff]
        %v1292 = vld [vmem:[%s756 + $0x548] sm:$0xff]
        %v1293 = vld [vmem:[%s756 + $0x550] sm:$0xff]
        %v1294 = vld [vmem:[%s756 + $0x558] sm:$0xff]
        %v1295 = vld [vmem:[%s756 + $0x560] sm:$0xff]
        %v1296 = vld [vmem:[%s756 + $0x568] sm:$0xff]
        %v1297 = vld [vmem:[%s756 + $0x570] sm:$0xff]
        %v1298 = vld [vmem:[%s756 + $0x578] sm:$0xff]
        %v1299 = vld [vmem:[%s756 + $0x580] sm:$0xff]
        %v1300 = vld [vmem:[%s756 + $0x588] sm:$0xff]
        %v1301 = vld [vmem:[%s756 + $0x590] sm:$0xff]
        %v1302 = vld [vmem:[%s756 + $0x598] sm:$0xff]
        %v1303 = vld [vmem:[%s756 + $0x5a0] sm:$0xff]
        %v1304 = vld [vmem:[%s756 + $0x5a8] sm:$0xff]
        %v1305 = vld [vmem:[%s756 + $0x5b0] sm:$0xff]
        %v1306 = vld [vmem:[%s756 + $0x5b8] sm:$0xff]
        %v1307 = vld [vmem:[%s756 + $0x5c0] sm:$0xff]
        %v1308 = vld [vmem:[%s756 + $0x5c8] sm:$0xff]
        %v1309 = vld [vmem:[%s756 + $0x5d0] sm:$0xff]
        %v1310 = vld [vmem:[%s756 + $0x5d8] sm:$0xff]
        %v1311 = vld [vmem:[%s756 + $0x5e0] sm:$0xff]
        %v1312 = vld [vmem:[%s756 + $0x5e8] sm:$0xff]
        %v1313 = vld [vmem:[%s756 + $0x5f0] sm:$0xff]
        %v1314 = vld [vmem:[%s756 + $0x5f8] sm:$0xff]
        %v1315 = vld [vmem:[%s756 + $0x600] sm:$0xff]
        %v1316 = vld [vmem:[%s756 + $0x608] sm:$0xff]
        %v1317 = vld [vmem:[%s756 + $0x610] sm:$0xff]
        %v1318 = vld [vmem:[%s756 + $0x618] sm:$0xff]
        %v1319 = vld [vmem:[%s756 + $0x620] sm:$0xff]
        %v1320 = vld [vmem:[%s756 + $0x628] sm:$0xff]
        %v1321 = vld [vmem:[%s756 + $0x630] sm:$0xff]
        %v1322 = vld [vmem:[%s756 + $0x638] sm:$0xff]
        %v1323 = vld [vmem:[%s756 + $0x640] sm:$0xff]
        %v1324 = vld [vmem:[%s756 + $0x648] sm:$0xff]
        %v1325 = vld [vmem:[%s756 + $0x650] sm:$0xff]
        %v1326 = vld [vmem:[%s756 + $0x658] sm:$0xff]
        %v1327 = vld [vmem:[%s756 + $0x660] sm:$0xff]
        %v1328 = vld [vmem:[%s756 + $0x668] sm:$0xff]
        %v1329 = vld [vmem:[%s756 + $0x670] sm:$0xff]
        %v1330 = vld [vmem:[%s756 + $0x678] sm:$0xff]
        %v1331 = vld [vmem:[%s756 + $0x680] sm:$0xff]
        %v1332 = vld [vmem:[%s756 + $0x688] sm:$0xff]
        %v1333 = vld [vmem:[%s756 + $0x690] sm:$0xff]
        %v1334 = vld [vmem:[%s756 + $0x698] sm:$0xff]
        %v1335 = vld [vmem:[%s756 + $0x6a0] sm:$0xff]
        %v1336 = vld [vmem:[%s756 + $0x6a8] sm:$0xff]
        %v1337 = vld [vmem:[%s756 + $0x6b0] sm:$0xff]
        %v1338 = vld [vmem:[%s756 + $0x6b8] sm:$0xff]
        %v1339 = vld [vmem:[%s756 + $0x6c0] sm:$0xff]
        %v1340 = vld [vmem:[%s756 + $0x6c8] sm:$0xff]
        %v1341 = vld [vmem:[%s756 + $0x6d0] sm:$0xff]
        %v1342 = vld [vmem:[%s756 + $0x6d8] sm:$0xff]
        %v1343 = vld [vmem:[%s756 + $0x6e0] sm:$0xff]
        %v1344 = vld [vmem:[%s756 + $0x6e8] sm:$0xff]
        %v1345 = vld [vmem:[%s756 + $0x6f0] sm:$0xff]
        %v1346 = vld [vmem:[%s756 + $0x6f8] sm:$0xff]
        %v1347 = vld [vmem:[%s756 + $0x700] sm:$0xff]
        %v1348 = vld [vmem:[%s756 + $0x708] sm:$0xff]
        %v1349 = vld [vmem:[%s756 + $0x710] sm:$0xff]
        %v1350 = vld [vmem:[%s756 + $0x718] sm:$0xff]
        %v1351 = vld [vmem:[%s756 + $0x720] sm:$0xff]
        %v1352 = vld [vmem:[%s756 + $0x728] sm:$0xff]
        %v1353 = vld [vmem:[%s756 + $0x730] sm:$0xff]
        %v1354 = vld [vmem:[%s756 + $0x738] sm:$0xff]
        %v1355 = vld [vmem:[%s756 + $0x740] sm:$0xff]
        %v1356 = vld [vmem:[%s756 + $0x748] sm:$0xff]
        %v1357 = vld [vmem:[%s756 + $0x750] sm:$0xff]
        %v1358 = vld [vmem:[%s756 + $0x758] sm:$0xff]
        %v1359 = vld [vmem:[%s756 + $0x760] sm:$0xff]
        %v1360 = vld [vmem:[%s756 + $0x768] sm:$0xff]
        %v1361 = vld [vmem:[%s756 + $0x770] sm:$0xff]
        %v1362 = vld [vmem:[%s756 + $0x778] sm:$0xff]
        %v1363 = vld [vmem:[%s756 + $0x780] sm:$0xff]
        %v1364 = vld [vmem:[%s756 + $0x788] sm:$0xff]
        %v1365 = vld [vmem:[%s756 + $0x790] sm:$0xff]
        %v1366 = vld [vmem:[%s756 + $0x798] sm:$0xff]
        %v1367 = vld [vmem:[%s756 + $0x7a0] sm:$0xff]
        %v1368 = vld [vmem:[%s756 + $0x7a8] sm:$0xff]
        %v1369 = vld [vmem:[%s756 + $0x7b0] sm:$0xff]
        %v1370 = vld [vmem:[%s756 + $0x7b8] sm:$0xff]
        %v1371 = vld [vmem:[%s756 + $0x7c0] sm:$0xff]
        %v1372 = vld [vmem:[%s756 + $0x7c8] sm:$0xff]
        %v1373 = vld [vmem:[%s756 + $0x7d0] sm:$0xff]
        %v1374 = vld [vmem:[%s756 + $0x7d8] sm:$0xff]
        %v1375 = vld [vmem:[%s756 + $0x7e0] sm:$0xff]
        %v1376 = vld [vmem:[%s756 + $0x7e8] sm:$0xff]
        %v1377 = vld [vmem:[%s756 + $0x7f0] sm:$0xff]
        %v1378 = vld [vmem:[%s756 + $0x7f8] sm:$0xff]
        %v1379 = vld [vmem:[%s756 + $0x800] sm:$0xff]
        %v1380 = vld [vmem:[%s756 + $0x808] sm:$0xff]
        %v1381 = vld [vmem:[%s756 + $0x810] sm:$0xff]
        %v1382 = vld [vmem:[%s756 + $0x818] sm:$0xff]
        %v1383 = vld [vmem:[%s756 + $0x820] sm:$0xff]
        %v1384 = vld [vmem:[%s756 + $0x828] sm:$0xff]
        %v1385 = vld [vmem:[%s756 + $0x830] sm:$0xff]
        %v1386 = vld [vmem:[%s756 + $0x838] sm:$0xff]
        %v1387 = vld [vmem:[%s756 + $0x840] sm:$0xff]
        %v1388 = vld [vmem:[%s756 + $0x848] sm:$0xff]
        %v1389 = vld [vmem:[%s756 + $0x850] sm:$0xff]
        %v1390 = vld [vmem:[%s756 + $0x858] sm:$0xff]
        %v1391 = vld [vmem:[%s756 + $0x860] sm:$0xff]
        %v1392 = vld [vmem:[%s756 + $0x868] sm:$0xff]
        %v1393 = vld [vmem:[%s756 + $0x870] sm:$0xff]
        %v1394 = vld [vmem:[%s756 + $0x878] sm:$0xff]
        %v1395 = vld [vmem:[%s756 + $0x880] sm:$0xff]
        %v1396 = vld [vmem:[%s756 + $0x888] sm:$0xff]
        %v1397 = vld [vmem:[%s756 + $0x890] sm:$0xff]
        %v1398 = vld [vmem:[%s756 + $0x898] sm:$0xff]
        %v1399 = vld [vmem:[%s756 + $0x8a0] sm:$0xff]
        %v1400 = vld [vmem:[%s756 + $0x8a8] sm:$0xff]
        %v1401 = vld [vmem:[%s756 + $0x8b0] sm:$0xff]
        %v1402 = vld [vmem:[%s756 + $0x8b8] sm:$0xff]
        %v1403 = vld [vmem:[%s756 + $0x8c0] sm:$0xff]
        %v1404 = vld [vmem:[%s756 + $0x8c8] sm:$0xff]
        %v1405 = vld [vmem:[%s756 + $0x8d0] sm:$0xff]
        %v1406 = vld [vmem:[%s756 + $0x8d8] sm:$0xff]
        %v1407 = vld [vmem:[%s756 + $0x8e0] sm:$0xff]
        %v1408 = vld [vmem:[%s756 + $0x8e8] sm:$0xff]
        %v1409 = vld [vmem:[%s756 + $0x8f0] sm:$0xff]
        %v1410 = vld [vmem:[%s756 + $0x8f8] sm:$0xff]
        %v1411 = vld [vmem:[%s756 + $0x900] sm:$0xff]
        %v1412 = vld [vmem:[%s756 + $0x908] sm:$0xff]
        %v1413 = vld [vmem:[%s756 + $0x910] sm:$0xff]
        %v1414 = vld [vmem:[%s756 + $0x918] sm:$0xff]
        %v1415 = vld [vmem:[%s756 + $0x920] sm:$0xff]
        %v1416 = vld [vmem:[%s756 + $0x928] sm:$0xff]
        %v1417 = vld [vmem:[%s756 + $0x930] sm:$0xff]
        %v1418 = vld [vmem:[%s756 + $0x938] sm:$0xff]
        %v1419 = vld [vmem:[%s756 + $0x940] sm:$0xff]
        %v1420 = vld [vmem:[%s756 + $0x948] sm:$0xff]
        %v1421 = vld [vmem:[%s756 + $0x950] sm:$0xff]
        %v1422 = vld [vmem:[%s756 + $0x958] sm:$0xff]
        %v1423 = vld [vmem:[%s756 + $0x960] sm:$0xff]
        %v1424 = vld [vmem:[%s756 + $0x968] sm:$0xff]
        %v1425 = vld [vmem:[%s756 + $0x970] sm:$0xff]
        %v1426 = vld [vmem:[%s756 + $0x978] sm:$0xff]
        %v1427 = vld [vmem:[%s756 + $0x980] sm:$0xff]
        %v1428 = vld [vmem:[%s756 + $0x988] sm:$0xff]
        %v1429 = vld [vmem:[%s756 + $0x990] sm:$0xff]
        %v1430 = vld [vmem:[%s756 + $0x998] sm:$0xff]
        %v1431 = vld [vmem:[%s756 + $0x9a0] sm:$0xff]
        %v1432 = vld [vmem:[%s756 + $0x9a8] sm:$0xff]
        %v1433 = vld [vmem:[%s756 + $0x9b0] sm:$0xff]
        %v1434 = vld [vmem:[%s756 + $0x9b8] sm:$0xff]
        %v1435 = vld [vmem:[%s756 + $0x9c0] sm:$0xff]
        %v1436 = vld [vmem:[%s756 + $0x9c8] sm:$0xff]
        %v1437 = vld [vmem:[%s756 + $0x9d0] sm:$0xff]
        %v1438 = vld [vmem:[%s756 + $0x9d8] sm:$0xff]
        %v1439 = vld [vmem:[%s756 + $0x9e0] sm:$0xff]
        %v1440 = vld [vmem:[%s756 + $0x9e8] sm:$0xff]
        %v1441 = vld [vmem:[%s756 + $0x9f0] sm:$0xff]
        %v1442 = vld [vmem:[%s756 + $0x9f8] sm:$0xff]
        %v1443 = vld [vmem:[%s756 + $0xa00] sm:$0xff]
        %v1444 = vld [vmem:[%s756 + $0xa08] sm:$0xff]
        %v1445 = vld [vmem:[%s756 + $0xa10] sm:$0xff]
        %v1446 = vld [vmem:[%s756 + $0xa18] sm:$0xff]
        %v1447 = vld [vmem:[%s756 + $0xa20] sm:$0xff]
        %v1448 = vld [vmem:[%s756 + $0xa28] sm:$0xff]
        %v1449 = vld [vmem:[%s756 + $0xa30] sm:$0xff]
        %v1450 = vld [vmem:[%s756 + $0xa38] sm:$0xff]
        %v1451 = vld [vmem:[%s756 + $0xa40] sm:$0xff]
        %v1452 = vld [vmem:[%s756 + $0xa48] sm:$0xff]
        %v1453 = vld [vmem:[%s756 + $0xa50] sm:$0xff]
        %v1454 = vld [vmem:[%s756 + $0xa58] sm:$0xff]
        %v1455 = vld [vmem:[%s756 + $0xa60] sm:$0xff]
        %v1456 = vld [vmem:[%s756 + $0xa68] sm:$0xff]
        %v1457 = vld [vmem:[%s756 + $0xa70] sm:$0xff]
        %v1458 = vld [vmem:[%s756 + $0xa78] sm:$0xff]
        %v1459 = vld [vmem:[%s756 + $0xa80] sm:$0xff]
        %v1460 = vld [vmem:[%s756 + $0xa88] sm:$0xff]
        %v1461 = vld [vmem:[%s756 + $0xa90] sm:$0xff]
        %v1462 = vld [vmem:[%s756 + $0xa98] sm:$0xff]
        %v1463 = vld [vmem:[%s756 + $0xaa0] sm:$0xff]
        %v1464 = vld [vmem:[%s756 + $0xaa8] sm:$0xff]
        %v1465 = vld [vmem:[%s756 + $0xab0] sm:$0xff]
        %v1466 = vld [vmem:[%s756 + $0xab8] sm:$0xff]
        %v1467 = vld [vmem:[%s756 + $0xac0] sm:$0xff]
        %v1468 = vld [vmem:[%s756 + $0xac8] sm:$0xff]
        %v1469 = vld [vmem:[%s756 + $0xad0] sm:$0xff]
        %v1470 = vld [vmem:[%s756 + $0xad8] sm:$0xff]
        %v1471 = vld [vmem:[%s756 + $0xae0] sm:$0xff]
        %v1472 = vld [vmem:[%s756 + $0xae8] sm:$0xff]
        %v1473 = vld [vmem:[%s756 + $0xaf0] sm:$0xff]
        %v1474 = vld [vmem:[%s756 + $0xaf8] sm:$0xff]
        %v1475 = vld [vmem:[%s756 + $0xb00] sm:$0xff]
        %v1476 = vld [vmem:[%s756 + $0xb08] sm:$0xff]
        %v1477 = vld [vmem:[%s756 + $0xb10] sm:$0xff]
        %v1478 = vld [vmem:[%s756 + $0xb18] sm:$0xff]
        %v1479 = vld [vmem:[%s756 + $0xb20] sm:$0xff]
        %v1480 = vld [vmem:[%s756 + $0xb28] sm:$0xff]
        %v1481 = vld [vmem:[%s756 + $0xb30] sm:$0xff]
        %v1482 = vld [vmem:[%s756 + $0xb38] sm:$0xff]
        %v1483 = vld [vmem:[%s756 + $0xb40] sm:$0xff]
        %v1484 = vld [vmem:[%s756 + $0xb48] sm:$0xff]
        %v1485 = vld [vmem:[%s756 + $0xb50] sm:$0xff]
        %v1486 = vld [vmem:[%s756 + $0xb58] sm:$0xff]
        %v1487 = vld [vmem:[%s756 + $0xb60] sm:$0xff]
        %v1488 = vld [vmem:[%s756 + $0xb68] sm:$0xff]
        %v1489 = vld [vmem:[%s756 + $0xb70] sm:$0xff]
        %v1490 = vld [vmem:[%s756 + $0xb78] sm:$0xff]
        %v1491 = vld [vmem:[%s756 + $0xb80] sm:$0xff]
        %v1492 = vld [vmem:[%s756 + $0xb88] sm:$0xff]
        %v1493 = vld [vmem:[%s756 + $0xb90] sm:$0xff]
        %v1494 = vld [vmem:[%s756 + $0xb98] sm:$0xff]
        %v1495 = vld [vmem:[%s756 + $0xba0] sm:$0xff]
        %v1496 = vld [vmem:[%s756 + $0xba8] sm:$0xff]
        %v1497 = vld [vmem:[%s756 + $0xbb0] sm:$0xff]
        %v1498 = vld [vmem:[%s756 + $0xbb8] sm:$0xff]
        %v1499 = vld [vmem:[%s756 + $0xbc0] sm:$0xff]
        %v1500 = vld [vmem:[%s756 + $0xbc8] sm:$0xff]
        %v1501 = vld [vmem:[%s756 + $0xbd0] sm:$0xff]
        %v1502 = vld [vmem:[%s756 + $0xbd8] sm:$0xff]
        %v1503 = vld [vmem:[%s756 + $0xbe0] sm:$0xff]
        %v1504 = vld [vmem:[%s756 + $0xbe8] sm:$0xff]
        %v1505 = vld [vmem:[%s756 + $0xbf0] sm:$0xff]
        %v1506 = vld [vmem:[%s756 + $0xbf8] sm:$0xff]
        %v1507 = vld [vmem:[%s756 + $0xc00] sm:$0xff]
        %v1508 = vld [vmem:[%s756 + $0xc08] sm:$0xff]
        %v1509 = vld [vmem:[%s756 + $0xc10] sm:$0xff]
        %v1510 = vld [vmem:[%s756 + $0xc18] sm:$0xff]
        %v1511 = vld [vmem:[%s756 + $0xc20] sm:$0xff]
        %v1512 = vld [vmem:[%s756 + $0xc28] sm:$0xff]
        %v1513 = vld [vmem:[%s756 + $0xc30] sm:$0xff]
        %v1514 = vld [vmem:[%s756 + $0xc38] sm:$0xff]
        %v1515 = vld [vmem:[%s756 + $0xc40] sm:$0xff]
        %v1516 = vld [vmem:[%s756 + $0xc48] sm:$0xff]
        %v1517 = vld [vmem:[%s756 + $0xc50] sm:$0xff]
        %v1518 = vld [vmem:[%s756 + $0xc58] sm:$0xff]
        %v1519 = vld [vmem:[%s756 + $0xc60] sm:$0xff]
        %v1520 = vld [vmem:[%s756 + $0xc68] sm:$0xff]
        %v1521 = vld [vmem:[%s756 + $0xc70] sm:$0xff]
        %v1522 = vld [vmem:[%s756 + $0xc78] sm:$0xff]
        %v1523 = vld [vmem:[%s756 + $0xc80] sm:$0xff]
        %v1524 = vld [vmem:[%s756 + $0xc88] sm:$0xff]
        %v1525 = vld [vmem:[%s756 + $0xc90] sm:$0xff]
        %v1526 = vld [vmem:[%s756 + $0xc98] sm:$0xff]
        %v1527 = vld [vmem:[%s756 + $0xca0] sm:$0xff]
        %v1528 = vld [vmem:[%s756 + $0xca8] sm:$0xff]
        %v1529 = vld [vmem:[%s756 + $0xcb0] sm:$0xff]
        %v1530 = vld [vmem:[%s756 + $0xcb8] sm:$0xff]
        %v1531 = vld [vmem:[%s756 + $0xcc0] sm:$0xff]
        %v1532 = vld [vmem:[%s756 + $0xcc8] sm:$0xff]
        %v1533 = vld [vmem:[%s756 + $0xcd0] sm:$0xff]
        %v1534 = vld [vmem:[%s756 + $0xcd8] sm:$0xff]
        %v1535 = vld [vmem:[%s756 + $0xce0] sm:$0xff]
        %v1536 = vld [vmem:[%s756 + $0xce8] sm:$0xff]
        %v1537 = vld [vmem:[%s756 + $0xcf0] sm:$0xff]
        %v1538 = vld [vmem:[%s756 + $0xcf8] sm:$0xff]
        %v1539 = vld [vmem:[%s756 + $0xd00] sm:$0xff]
        %v1540 = vld [vmem:[%s756 + $0xd08] sm:$0xff]
        %v1541 = vld [vmem:[%s756 + $0xd10] sm:$0xff]
        %v1542 = vld [vmem:[%s756 + $0xd18] sm:$0xff]
        %v1543 = vld [vmem:[%s756 + $0xd20] sm:$0xff]
        %v1544 = vld [vmem:[%s756 + $0xd28] sm:$0xff]
        %v1545 = vld [vmem:[%s756 + $0xd30] sm:$0xff]
        %v1546 = vld [vmem:[%s756 + $0xd38] sm:$0xff]
        %v1547 = vld [vmem:[%s756 + $0xd40] sm:$0xff]
        %v1548 = vld [vmem:[%s756 + $0xd48] sm:$0xff]
        %v1549 = vld [vmem:[%s756 + $0xd50] sm:$0xff]
        %v1550 = vld [vmem:[%s756 + $0xd58] sm:$0xff]
        %v1551 = vld [vmem:[%s756 + $0xd60] sm:$0xff]
        %v1552 = vld [vmem:[%s756 + $0xd68] sm:$0xff]
        %v1553 = vld [vmem:[%s756 + $0xd70] sm:$0xff]
        %v1554 = vld [vmem:[%s756 + $0xd78] sm:$0xff]
        %v1555 = vld [vmem:[%s756 + $0xd80] sm:$0xff]
        %v1556 = vld [vmem:[%s756 + $0xd88] sm:$0xff]
        %v1557 = vld [vmem:[%s756 + $0xd90] sm:$0xff]
        %v1558 = vld [vmem:[%s756 + $0xd98] sm:$0xff]
        %v1559 = vld [vmem:[%s756 + $0xda0] sm:$0xff]
        %v1560 = vld [vmem:[%s756 + $0xda8] sm:$0xff]
        %v1561 = vld [vmem:[%s756 + $0xdb0] sm:$0xff]
        %v1562 = vld [vmem:[%s756 + $0xdb8] sm:$0xff]
        %v1563 = vld [vmem:[%s756 + $0xdc0] sm:$0xff]
        %v1564 = vld [vmem:[%s756 + $0xdc8] sm:$0xff]
        %v1565 = vld [vmem:[%s756 + $0xdd0] sm:$0xff]
        %v1566 = vld [vmem:[%s756 + $0xdd8] sm:$0xff]
        %v1567 = vld [vmem:[%s756 + $0xde0] sm:$0xff]
        %v1568 = vld [vmem:[%s756 + $0xde8] sm:$0xff]
        %v1569 = vld [vmem:[%s756 + $0xdf0] sm:$0xff]
        %v1570 = vld [vmem:[%s756 + $0xdf8] sm:$0xff]
        %v1571 = vld [vmem:[%s756 + $0xe00] sm:$0xff]
        %v1572 = vld [vmem:[%s756 + $0xe08] sm:$0xff]
        %v1573 = vld [vmem:[%s756 + $0xe10] sm:$0xff]
        %v1574 = vld [vmem:[%s756 + $0xe18] sm:$0xff]
        %v1575 = vld [vmem:[%s756 + $0xe20] sm:$0xff]
        %v1576 = vld [vmem:[%s756 + $0xe28] sm:$0xff]
        %v1577 = vld [vmem:[%s756 + $0xe30] sm:$0xff]
        %v1578 = vld [vmem:[%s756 + $0xe38] sm:$0xff]
        %v1579 = vld [vmem:[%s756 + $0xe40] sm:$0xff]
        %v1580 = vld [vmem:[%s756 + $0xe48] sm:$0xff]
        %v1581 = vld [vmem:[%s756 + $0xe50] sm:$0xff]
        %v1582 = vld [vmem:[%s756 + $0xe58] sm:$0xff]
        %v1583 = vld [vmem:[%s756 + $0xe60] sm:$0xff]
        %v1584 = vld [vmem:[%s756 + $0xe68] sm:$0xff]
        %v1585 = vld [vmem:[%s756 + $0xe70] sm:$0xff]
        %v1586 = vld [vmem:[%s756 + $0xe78] sm:$0xff]
        %v1587 = vld [vmem:[%s756 + $0xe80] sm:$0xff]
        %v1588 = vld [vmem:[%s756 + $0xe88] sm:$0xff]
        %v1589 = vld [vmem:[%s756 + $0xe90] sm:$0xff]
        %v1590 = vld [vmem:[%s756 + $0xe98] sm:$0xff]
        %v1591 = vld [vmem:[%s756 + $0xea0] sm:$0xff]
        %v1592 = vld [vmem:[%s756 + $0xea8] sm:$0xff]
        %v1593 = vld [vmem:[%s756 + $0xeb0] sm:$0xff]
        %v1594 = vld [vmem:[%s756 + $0xeb8] sm:$0xff]
        %v1595 = vld [vmem:[%s756 + $0xec0] sm:$0xff]
        %v1596 = vld [vmem:[%s756 + $0xec8] sm:$0xff]
        %v1597 = vld [vmem:[%s756 + $0xed0] sm:$0xff]
        %v1598 = vld [vmem:[%s756 + $0xed8] sm:$0xff]
        %v1599 = vld [vmem:[%s756 + $0xee0] sm:$0xff]
        %v1600 = vld [vmem:[%s756 + $0xee8] sm:$0xff]
        %v1601 = vld [vmem:[%s756 + $0xef0] sm:$0xff]
        %v1602 = vld [vmem:[%s756 + $0xef8] sm:$0xff]
        %v1603 = vld [vmem:[%s756 + $0xf00] sm:$0xff]
        %v1604 = vld [vmem:[%s756 + $0xf08] sm:$0xff]
        %v1605 = vld [vmem:[%s756 + $0xf10] sm:$0xff]
        %v1606 = vld [vmem:[%s756 + $0xf18] sm:$0xff]
        %v1607 = vld [vmem:[%s756 + $0xf20] sm:$0xff]
        %v1608 = vld [vmem:[%s756 + $0xf28] sm:$0xff]
        %v1609 = vld [vmem:[%s756 + $0xf30] sm:$0xff]
        %v1610 = vld [vmem:[%s756 + $0xf38] sm:$0xff]
        %v1611 = vld [vmem:[%s756 + $0xf40] sm:$0xff]
        %v1612 = vld [vmem:[%s756 + $0xf48] sm:$0xff]
        %v1613 = vld [vmem:[%s756 + $0xf50] sm:$0xff]
        %v1614 = vld [vmem:[%s756 + $0xf58] sm:$0xff]
        %v1615 = vld [vmem:[%s756 + $0xf60] sm:$0xff]
        %v1616 = vld [vmem:[%s756 + $0xf68] sm:$0xff]
        %v1617 = vld [vmem:[%s756 + $0xf70] sm:$0xff]
        %v1618 = vld [vmem:[%s756 + $0xf78] sm:$0xff]
        %v1619 = vld [vmem:[%s756 + $0xf80] sm:$0xff]
        %v1620 = vld [vmem:[%s756 + $0xf88] sm:$0xff]
        %v1621 = vld [vmem:[%s756 + $0xf90] sm:$0xff]
        %v1622 = vld [vmem:[%s756 + $0xf98] sm:$0xff]
        %v1623 = vld [vmem:[%s756 + $0xfa0] sm:$0xff]
        %v1624 = vld [vmem:[%s756 + $0xfa8] sm:$0xff]
        %v1625 = vld [vmem:[%s756 + $0xfb0] sm:$0xff]
        %v1626 = vld [vmem:[%s756 + $0xfb8] sm:$0xff]
        %v1627 = vld [vmem:[%s756 + $0xfc0] sm:$0xff]
        %v1628 = vld [vmem:[%s756 + $0xfc8] sm:$0xff]
        %v1629 = vld [vmem:[%s756 + $0xfd0] sm:$0xff]
        %v1630 = vld [vmem:[%s756 + $0xfd8] sm:$0xff]
        %v1631 = vld [vmem:[%s756 + $0xfe0] sm:$0xff]
        %v1632 = vld [vmem:[%s756 + $0xfe8] sm:$0xff]
        %v1633 = vld [vmem:[%s756 + $0xff0] sm:$0xff]
        %v1634 = vld [vmem:[%s756 + $0xff8] sm:$0xff]
        %v1635 = vld [vmem:[%s756 + $0x1000] sm:$0xff]
        %v1636 = vld [vmem:[%s756 + $0x1008] sm:$0xff]
        %v1637 = vld [vmem:[%s756 + $0x1010] sm:$0xff]
        %v1638 = vld [vmem:[%s756 + $0x1018] sm:$0xff]
        %v1639 = vld [vmem:[%s756 + $0x1020] sm:$0xff]
        %v1640 = vld [vmem:[%s756 + $0x1028] sm:$0xff]
        %v1641 = vld [vmem:[%s756 + $0x1030] sm:$0xff]
        %v1642 = vld [vmem:[%s756 + $0x1038] sm:$0xff]
        %v1643 = vld [vmem:[%s756 + $0x1040] sm:$0xff]
        %v1644 = vld [vmem:[%s756 + $0x1048] sm:$0xff]
        %v1645 = vld [vmem:[%s756 + $0x1050] sm:$0xff]
        %v1646 = vld [vmem:[%s756 + $0x1058] sm:$0xff]
        %v1647 = vld [vmem:[%s756 + $0x1060] sm:$0xff]
        %v1648 = vld [vmem:[%s756 + $0x1068] sm:$0xff]
        %v1649 = vld [vmem:[%s756 + $0x1070] sm:$0xff]
        %v1650 = vld [vmem:[%s756 + $0x1078] sm:$0xff]
        %v1651 = vld [vmem:[%s756 + $0x1080] sm:$0xff]
        %v1652 = vld [vmem:[%s756 + $0x1088] sm:$0xff]
        %v1653 = vld [vmem:[%s756 + $0x1090] sm:$0xff]
        %v1654 = vld [vmem:[%s756 + $0x1098] sm:$0xff]
        %v1655 = vld [vmem:[%s756 + $0x10a0] sm:$0xff]
        %v1656 = vld [vmem:[%s756 + $0x10a8] sm:$0xff]
        %v1657 = vld [vmem:[%s756 + $0x10b0] sm:$0xff]
        %v1658 = vld [vmem:[%s756 + $0x10b8] sm:$0xff]
        %v1659 = vld [vmem:[%s756 + $0x10c0] sm:$0xff]
        %v1660 = vld [vmem:[%s756 + $0x10c8] sm:$0xff]
        %v1661 = vld [vmem:[%s756 + $0x10d0] sm:$0xff]
        %v1662 = vld [vmem:[%s756 + $0x10d8] sm:$0xff]
        %v1663 = vld [vmem:[%s756 + $0x10e0] sm:$0xff]
        %v1664 = vld [vmem:[%s756 + $0x10e8] sm:$0xff]
        %v1665 = vld [vmem:[%s756 + $0x10f0] sm:$0xff]
        %v1666 = vld [vmem:[%s756 + $0x10f8] sm:$0xff]
        %v1667 = vld [vmem:[%s756 + $0x1100] sm:$0xff]
        %v1668 = vld [vmem:[%s756 + $0x1108] sm:$0xff]
        %v1669 = vld [vmem:[%s756 + $0x1110] sm:$0xff]
        %v1670 = vld [vmem:[%s756 + $0x1118] sm:$0xff]
        %v1671 = vld [vmem:[%s756 + $0x1120] sm:$0xff]
        %v1672 = vld [vmem:[%s756 + $0x1128] sm:$0xff]
        %v1673 = vld [vmem:[%s756 + $0x1130] sm:$0xff]
        %v1674 = vld [vmem:[%s756 + $0x1138] sm:$0xff]
        %v1675 = vld [vmem:[%s756 + $0x1140] sm:$0xff]
        %v1676 = vld [vmem:[%s756 + $0x1148] sm:$0xff]
        %v1677 = vld [vmem:[%s756 + $0x1150] sm:$0xff]
        %v1678 = vld [vmem:[%s756 + $0x1158] sm:$0xff]
        %v1679 = vld [vmem:[%s756 + $0x1160] sm:$0xff]
        %v1680 = vld [vmem:[%s756 + $0x1168] sm:$0xff]
        %v1681 = vld [vmem:[%s756 + $0x1170] sm:$0xff]
        %v1682 = vld [vmem:[%s756 + $0x1178] sm:$0xff]
        %v1683 = vld [vmem:[%s756 + $0x1180] sm:$0xff]
        %v1684 = vld [vmem:[%s756 + $0x1188] sm:$0xff]
        %v1685 = vld [vmem:[%s756 + $0x1190] sm:$0xff]
        %v1686 = vld [vmem:[%s756 + $0x1198] sm:$0xff]
        %v1687 = vld [vmem:[%s756 + $0x11a0] sm:$0xff]
        %v1688 = vld [vmem:[%s756 + $0x11a8] sm:$0xff]
        %v1689 = vld [vmem:[%s756 + $0x11b0] sm:$0xff]
        %v1690 = vld [vmem:[%s756 + $0x11b8] sm:$0xff]
        %v1691 = vld [vmem:[%s756 + $0x11c0] sm:$0xff]
        %v1692 = vld [vmem:[%s756 + $0x11c8] sm:$0xff]
        %v1693 = vld [vmem:[%s756 + $0x11d0] sm:$0xff]
        %v1694 = vld [vmem:[%s756 + $0x11d8] sm:$0xff]
        %v1695 = vld [vmem:[%s756 + $0x11e0] sm:$0xff]
        %v1696 = vld [vmem:[%s756 + $0x11e8] sm:$0xff]
        %v1697 = vld [vmem:[%s756 + $0x11f0] sm:$0xff]
        %v1698 = vld [vmem:[%s756 + $0x11f8] sm:$0xff]
        %v1699 = vld [vmem:[%s756 + $0x1200] sm:$0xff]
        %v1700 = vld [vmem:[%s756 + $0x1208] sm:$0xff]
        %v1701 = vld [vmem:[%s756 + $0x1210] sm:$0xff]
        %v1702 = vld [vmem:[%s756 + $0x1218] sm:$0xff]
        %v1703 = vld [vmem:[%s756 + $0x1220] sm:$0xff]
        %v1704 = vld [vmem:[%s756 + $0x1228] sm:$0xff]
        %v1705 = vld [vmem:[%s756 + $0x1230] sm:$0xff]
        %v1706 = vld [vmem:[%s756 + $0x1238] sm:$0xff]
        %v1707 = vld [vmem:[%s756 + $0x1240] sm:$0xff]
        %v1708 = vld [vmem:[%s756 + $0x1248] sm:$0xff]
        %v1709 = vld [vmem:[%s756 + $0x1250] sm:$0xff]
        %v1710 = vld [vmem:[%s756 + $0x1258] sm:$0xff]
        %v1711 = vld [vmem:[%s756 + $0x1260] sm:$0xff]
        %v1712 = vld [vmem:[%s756 + $0x1268] sm:$0xff]
        %v1713 = vld [vmem:[%s756 + $0x1270] sm:$0xff]
        %v1714 = vld [vmem:[%s756 + $0x1278] sm:$0xff]
        %v1715 = vld [vmem:[%s756 + $0x1280] sm:$0xff]
        %v1716 = vld [vmem:[%s756 + $0x1288] sm:$0xff]
        %v1717 = vld [vmem:[%s756 + $0x1290] sm:$0xff]
        %v1718 = vld [vmem:[%s756 + $0x1298] sm:$0xff]
        %v1719 = vld [vmem:[%s756 + $0x12a0] sm:$0xff]
        %v1720 = vld [vmem:[%s756 + $0x12a8] sm:$0xff]
        %v1721 = vld [vmem:[%s756 + $0x12b0] sm:$0xff]
        %v1722 = vld [vmem:[%s756 + $0x12b8] sm:$0xff]
        %v1723 = vld [vmem:[%s756 + $0x12c0] sm:$0xff]
        %v1724 = vld [vmem:[%s756 + $0x12c8] sm:$0xff]
        %v1725 = vld [vmem:[%s756 + $0x12d0] sm:$0xff]
        %v1726 = vld [vmem:[%s756 + $0x12d8] sm:$0xff]
        %v1727 = vld [vmem:[%s756 + $0x12e0] sm:$0xff]
        %v1728 = vld [vmem:[%s756 + $0x12e8] sm:$0xff]
        %v1729 = vld [vmem:[%s756 + $0x12f0] sm:$0xff]
        %v1730 = vld [vmem:[%s756 + $0x12f8] sm:$0xff]
        %v1731 = vld [vmem:[%s756 + $0x1300] sm:$0xff]
        %v1732 = vld [vmem:[%s756 + $0x1308] sm:$0xff]
        %v1733 = vld [vmem:[%s756 + $0x1310] sm:$0xff]
        %v1734 = vld [vmem:[%s756 + $0x1318] sm:$0xff]
        %v1735 = vld [vmem:[%s756 + $0x1320] sm:$0xff]
        %v1736 = vld [vmem:[%s756 + $0x1328] sm:$0xff]
        %v1737 = vld [vmem:[%s756 + $0x1330] sm:$0xff]
        %v1738 = vld [vmem:[%s756 + $0x1338] sm:$0xff]
        %v1739 = vld [vmem:[%s756 + $0x1340] sm:$0xff]
        %v1740 = vld [vmem:[%s756 + $0x1348] sm:$0xff]
        %v1741 = vld [vmem:[%s756 + $0x1350] sm:$0xff]
        %v1742 = vld [vmem:[%s756 + $0x1358] sm:$0xff]
        %v1743 = vld [vmem:[%s756 + $0x1360] sm:$0xff]
        %v1744 = vld [vmem:[%s756 + $0x1368] sm:$0xff]
        %v1745 = vld [vmem:[%s756 + $0x1370] sm:$0xff]
        %v1746 = vld [vmem:[%s756 + $0x1378] sm:$0xff]
        %v1747 = vld [vmem:[%s756 + $0x1380] sm:$0xff]
        %v1748 = vld [vmem:[%s756 + $0x1388] sm:$0xff]
        %v1749 = vld [vmem:[%s756 + $0x1390] sm:$0xff]
        %v1750 = vld [vmem:[%s756 + $0x1398] sm:$0xff]
        %v1751 = vld [vmem:[%s756 + $0x13a0] sm:$0xff]
        %v1752 = vld [vmem:[%s756 + $0x13a8] sm:$0xff]
        %v1753 = vld [vmem:[%s756 + $0x13b0] sm:$0xff]
        %v1754 = vld [vmem:[%s756 + $0x13b8] sm:$0xff]
        %v1755 = vld [vmem:[%s756 + $0x13c0] sm:$0xff]
        %v1756 = vld [vmem:[%s756 + $0x13c8] sm:$0xff]
        %v1757 = vld [vmem:[%s756 + $0x13d0] sm:$0xff]
        %v1758 = vld [vmem:[%s756 + $0x13d8] sm:$0xff]
        %v1759 = vld [vmem:[%s756 + $0x13e0] sm:$0xff]
        %v1760 = vld [vmem:[%s756 + $0x13e8] sm:$0xff]
        %v1761 = vld [vmem:[%s756 + $0x13f0] sm:$0xff]
        %v1762 = vld [vmem:[%s756 + $0x13f8] sm:$0xff]
        %v1763 = vld [vmem:[%s756 + $0x1400] sm:$0xff]
        %v1764 = vld [vmem:[%s756 + $0x1408] sm:$0xff]
        %v1765 = vld [vmem:[%s756 + $0x1410] sm:$0xff]
        %v1766 = vld [vmem:[%s756 + $0x1418] sm:$0xff]
        %v1767 = vld [vmem:[%s756 + $0x1420] sm:$0xff]
        %v1768 = vld [vmem:[%s756 + $0x1428] sm:$0xff]
        %v1769 = vld [vmem:[%s756 + $0x1430] sm:$0xff]
        %v1770 = vld [vmem:[%s756 + $0x1438] sm:$0xff]
        %v1771 = vld [vmem:[%s756 + $0x1440] sm:$0xff]
        %v1772 = vld [vmem:[%s756 + $0x1448] sm:$0xff]
        %v1773 = vld [vmem:[%s756 + $0x1450] sm:$0xff]
        %v1774 = vld [vmem:[%s756 + $0x1458] sm:$0xff]
        %v1775 = vld [vmem:[%s756 + $0x1460] sm:$0xff]
        %v1776 = vld [vmem:[%s756 + $0x1468] sm:$0xff]
        %v1777 = vld [vmem:[%s756 + $0x1470] sm:$0xff]
        %v1778 = vld [vmem:[%s756 + $0x1478] sm:$0xff]
        %v1779 = vld [vmem:[%s756 + $0x1480] sm:$0xff]
        %v1780 = vld [vmem:[%s756 + $0x1488] sm:$0xff]
        %v1781 = vld [vmem:[%s756 + $0x1490] sm:$0xff]
        %v1782 = vld [vmem:[%s756 + $0x1498] sm:$0xff]
        %v1783 = vld [vmem:[%s756 + $0x14a0] sm:$0xff]
        %v1784 = vld [vmem:[%s756 + $0x14a8] sm:$0xff]
        %v1785 = vld [vmem:[%s756 + $0x14b0] sm:$0xff]
        %v1786 = vld [vmem:[%s756 + $0x14b8] sm:$0xff]
        %v1787 = vld [vmem:[%s756 + $0x14c0] sm:$0xff]
        %v1788 = vld [vmem:[%s756 + $0x14c8] sm:$0xff]
        %v1789 = vld [vmem:[%s756 + $0x14d0] sm:$0xff]
        %v1790 = vld [vmem:[%s756 + $0x14d8] sm:$0xff]
        %v1791 = vld [vmem:[%s756 + $0x14e0] sm:$0xff]
        %v1792 = vld [vmem:[%s756 + $0x14e8] sm:$0xff]
        %v1793 = vld [vmem:[%s756 + $0x14f0] sm:$0xff]
        %v1794 = vld [vmem:[%s756 + $0x14f8] sm:$0xff]
        %v1795 = vld [vmem:[%s756 + $0x1500] sm:$0xff]
        %v1796 = vld [vmem:[%s756 + $0x1508] sm:$0xff]
        %v1797 = vld [vmem:[%s756 + $0x1510] sm:$0xff]
        %v1798 = vld [vmem:[%s756 + $0x1518] sm:$0xff]
        %v1799 = vld [vmem:[%s756 + $0x1520] sm:$0xff]
        %v1800 = vld [vmem:[%s756 + $0x1528] sm:$0xff]
        %v1801 = vld [vmem:[%s756 + $0x1530] sm:$0xff]
        %v1802 = vld [vmem:[%s756 + $0x1538] sm:$0xff]
        %v1803 = vld [vmem:[%s756 + $0x1540] sm:$0xff]
        %v1804 = vld [vmem:[%s756 + $0x1548] sm:$0xff]
        %v1805 = vld [vmem:[%s756 + $0x1550] sm:$0xff]
        %v1806 = vld [vmem:[%s756 + $0x1558] sm:$0xff]
        %v1807 = vld [vmem:[%s756 + $0x1560] sm:$0xff]
        %v1808 = vld [vmem:[%s756 + $0x1568] sm:$0xff]
        %v1809 = vld [vmem:[%s756 + $0x1570] sm:$0xff]
        %v1810 = vld [vmem:[%s756 + $0x1578] sm:$0xff]
        %v1811 = vld [vmem:[%s756 + $0x1580] sm:$0xff]
        %v1812 = vld [vmem:[%s756 + $0x1588] sm:$0xff]
        %v1813 = vld [vmem:[%s756 + $0x1590] sm:$0xff]
        %v1814 = vld [vmem:[%s756 + $0x1598] sm:$0xff]
        %v1815 = vld [vmem:[%s756 + $0x15a0] sm:$0xff]
        %v1816 = vld [vmem:[%s756 + $0x15a8] sm:$0xff]
        %v1817 = vld [vmem:[%s756 + $0x15b0] sm:$0xff]
        %v1818 = vld [vmem:[%s756 + $0x15b8] sm:$0xff]
        %v1819 = vld [vmem:[%s756 + $0x15c0] sm:$0xff]
        %v1820 = vld [vmem:[%s756 + $0x15c8] sm:$0xff]
        %v1821 = vld [vmem:[%s756 + $0x15d0] sm:$0xff]
        %v1822 = vld [vmem:[%s756 + $0x15d8] sm:$0xff]
        %v1823 = vld [vmem:[%s756 + $0x15e0] sm:$0xff]
        %v1824 = vld [vmem:[%s756 + $0x15e8] sm:$0xff]
        %v1825 = vld [vmem:[%s756 + $0x15f0] sm:$0xff]
        %v1826 = vld [vmem:[%s756 + $0x15f8] sm:$0xff]
        %v1827 = vld [vmem:[%s756 + $0x1600] sm:$0xff]
        %v1828 = vld [vmem:[%s756 + $0x1608] sm:$0xff]
        %v1829 = vld [vmem:[%s756 + $0x1610] sm:$0xff]
        %v1830 = vld [vmem:[%s756 + $0x1618] sm:$0xff]
        %v1831 = vld [vmem:[%s756 + $0x1620] sm:$0xff]
        %v1832 = vld [vmem:[%s756 + $0x1628] sm:$0xff]
        %v1833 = vld [vmem:[%s756 + $0x1630] sm:$0xff]
        %v1834 = vld [vmem:[%s756 + $0x1638] sm:$0xff]
        %v1835 = vld [vmem:[%s756 + $0x1640] sm:$0xff]
        %v1836 = vld [vmem:[%s756 + $0x1648] sm:$0xff]
        %v1837 = vld [vmem:[%s756 + $0x1650] sm:$0xff]
        %v1838 = vld [vmem:[%s756 + $0x1658] sm:$0xff]
        %v1839 = vld [vmem:[%s756 + $0x1660] sm:$0xff]
        %v1840 = vld [vmem:[%s756 + $0x1668] sm:$0xff]
        %v1841 = vld [vmem:[%s756 + $0x1670] sm:$0xff]
        %v1842 = vld [vmem:[%s756 + $0x1678] sm:$0xff]
        %v1843 = vld [vmem:[%s756 + $0x1680] sm:$0xff]
        %v1844 = vld [vmem:[%s756 + $0x1688] sm:$0xff]
        %v1845 = vld [vmem:[%s756 + $0x1690] sm:$0xff]
        %v1846 = vld [vmem:[%s756 + $0x1698] sm:$0xff]
        %v1847 = vld [vmem:[%s756 + $0x16a0] sm:$0xff]
        %v1848 = vld [vmem:[%s756 + $0x16a8] sm:$0xff]
        %v1849 = vld [vmem:[%s756 + $0x16b0] sm:$0xff]
        %v1850 = vld [vmem:[%s756 + $0x16b8] sm:$0xff]
        %v1851 = vld [vmem:[%s756 + $0x16c0] sm:$0xff]
        %v1852 = vld [vmem:[%s756 + $0x16c8] sm:$0xff]
        %v1853 = vld [vmem:[%s756 + $0x16d0] sm:$0xff]
        %v1854 = vld [vmem:[%s756 + $0x16d8] sm:$0xff]
        %v1855 = vld [vmem:[%s756 + $0x16e0] sm:$0xff]
        %v1856 = vld [vmem:[%s756 + $0x16e8] sm:$0xff]
        %v1857 = vld [vmem:[%s756 + $0x16f0] sm:$0xff]
        %v1858 = vld [vmem:[%s756 + $0x16f8] sm:$0xff]
        %v1859 = vld [vmem:[%s756 + $0x1700] sm:$0xff]
        %v1860 = vld [vmem:[%s756 + $0x1708] sm:$0xff]
        %v1861 = vld [vmem:[%s756 + $0x1710] sm:$0xff]
        %v1862 = vld [vmem:[%s756 + $0x1718] sm:$0xff]
        %v1863 = vld [vmem:[%s756 + $0x1720] sm:$0xff]
        %v1864 = vld [vmem:[%s756 + $0x1728] sm:$0xff]
        %v1865 = vld [vmem:[%s756 + $0x1730] sm:$0xff]
        %v1866 = vld [vmem:[%s756 + $0x1738] sm:$0xff]
        %v1867 = vld [vmem:[%s756 + $0x1740] sm:$0xff]
        %v1868 = vld [vmem:[%s756 + $0x1748] sm:$0xff]
        %v1869 = vld [vmem:[%s756 + $0x1750] sm:$0xff]
        %v1870 = vld [vmem:[%s756 + $0x1758] sm:$0xff]
        %v1871 = vld [vmem:[%s756 + $0x1760] sm:$0xff]
        %v1872 = vld [vmem:[%s756 + $0x1768] sm:$0xff]
        %v1873 = vld [vmem:[%s756 + $0x1770] sm:$0xff]
        %v1874 = vld [vmem:[%s756 + $0x1778] sm:$0xff]
        %v1875 = vld [vmem:[%s756 + $0x1780] sm:$0xff]
        %v1876 = vld [vmem:[%s756 + $0x1788] sm:$0xff]
        %v1877 = vld [vmem:[%s756 + $0x1790] sm:$0xff]
        %v1878 = vld [vmem:[%s756 + $0x1798] sm:$0xff]
        %v1879 = vld [vmem:[%s756 + $0x17a0] sm:$0xff]
        %v1880 = vld [vmem:[%s756 + $0x17a8] sm:$0xff]
        %v1881 = vld [vmem:[%s756 + $0x17b0] sm:$0xff]
        %v1882 = vld [vmem:[%s756 + $0x17b8] sm:$0xff]
        %v1883 = vld [vmem:[%s756 + $0x17c0] sm:$0xff]
        %v1884 = vld [vmem:[%s756 + $0x17c8] sm:$0xff]
        %v1885 = vld [vmem:[%s756 + $0x17d0] sm:$0xff]
        %v1886 = vld [vmem:[%s756 + $0x17d8] sm:$0xff]
        %v1887 = vld [vmem:[%s756 + $0x17e0] sm:$0xff]
        %v1888 = vld [vmem:[%s756 + $0x17e8] sm:$0xff]
        %v1889 = vld [vmem:[%s756 + $0x17f0] sm:$0xff]
        %v1890 = vld [vmem:[%s756 + $0x17f8] sm:$0xff]
        %v1891 = vld [vmem:[%s756 + $0x1800] sm:$0xff]
        %v1892 = vld [vmem:[%s756 + $0x1808] sm:$0xff]
        %v1893 = vld [vmem:[%s756 + $0x1810] sm:$0xff]
        %v1894 = vld [vmem:[%s756 + $0x1818] sm:$0xff]
        %v1895 = vld [vmem:[%s756 + $0x1820] sm:$0xff]
        %v1896 = vld [vmem:[%s756 + $0x1828] sm:$0xff]
        %v1897 = vld [vmem:[%s756 + $0x1830] sm:$0xff]
        %v1898 = vld [vmem:[%s756 + $0x1838] sm:$0xff]
        %v1899 = vld [vmem:[%s756 + $0x1840] sm:$0xff]
        %v1900 = vld [vmem:[%s756 + $0x1848] sm:$0xff]
        %v1901 = vld [vmem:[%s756 + $0x1850] sm:$0xff]
        %v1902 = vld [vmem:[%s756 + $0x1858] sm:$0xff]
        %v1903 = vld [vmem:[%s756 + $0x1860] sm:$0xff]
        %v1904 = vld [vmem:[%s756 + $0x1868] sm:$0xff]
        %v1905 = vld [vmem:[%s756 + $0x1870] sm:$0xff]
        %v1906 = vld [vmem:[%s756 + $0x1878] sm:$0xff]
        %v1907 = vld [vmem:[%s756 + $0x1880] sm:$0xff]
        %v1908 = vld [vmem:[%s756 + $0x1888] sm:$0xff]
        %v1909 = vld [vmem:[%s756 + $0x1890] sm:$0xff]
        %v1910 = vld [vmem:[%s756 + $0x1898] sm:$0xff]
        %v1911 = vld [vmem:[%s756 + $0x18a0] sm:$0xff]
        %v1912 = vld [vmem:[%s756 + $0x18a8] sm:$0xff]
        %v1913 = vld [vmem:[%s756 + $0x18b0] sm:$0xff]
        %v1914 = vld [vmem:[%s756 + $0x18b8] sm:$0xff]
        %v1915 = vld [vmem:[%s756 + $0x18c0] sm:$0xff]
        %v1916 = vld [vmem:[%s756 + $0x18c8] sm:$0xff]
        %v1917 = vld [vmem:[%s756 + $0x18d0] sm:$0xff]
        %v1918 = vld [vmem:[%s756 + $0x18d8] sm:$0xff]
        %v1919 = vld [vmem:[%s756 + $0x18e0] sm:$0xff]
        %v1920 = vld [vmem:[%s756 + $0x18e8] sm:$0xff]
        %v1921 = vld [vmem:[%s756 + $0x18f0] sm:$0xff]
        %v1922 = vld [vmem:[%s756 + $0x18f8] sm:$0xff]
        %v1923 = vld [vmem:[%s756 + $0x1900] sm:$0xff]
        %v1924 = vld [vmem:[%s756 + $0x1908] sm:$0xff]
        %v1925 = vld [vmem:[%s756 + $0x1910] sm:$0xff]
        %v1926 = vld [vmem:[%s756 + $0x1918] sm:$0xff]
        %v1927 = vld [vmem:[%s756 + $0x1920] sm:$0xff]
        %v1928 = vld [vmem:[%s756 + $0x1928] sm:$0xff]
        %v1929 = vld [vmem:[%s756 + $0x1930] sm:$0xff]
        %v1930 = vld [vmem:[%s756 + $0x1938] sm:$0xff]
        %v1931 = vld [vmem:[%s756 + $0x1940] sm:$0xff]
        %v1932 = vld [vmem:[%s756 + $0x1948] sm:$0xff]
        %v1933 = vld [vmem:[%s756 + $0x1950] sm:$0xff]
        %v1934 = vld [vmem:[%s756 + $0x1958] sm:$0xff]
        %v1935 = vld [vmem:[%s756 + $0x1960] sm:$0xff]
        %v1936 = vld [vmem:[%s756 + $0x1968] sm:$0xff]
        %v1937 = vld [vmem:[%s756 + $0x1970] sm:$0xff]
        %v1938 = vld [vmem:[%s756 + $0x1978] sm:$0xff]
        %v1939 = vld [vmem:[%s756 + $0x1980] sm:$0xff]
        %v1940 = vld [vmem:[%s756 + $0x1988] sm:$0xff]
        %v1941 = vld [vmem:[%s756 + $0x1990] sm:$0xff]
        %v1942 = vld [vmem:[%s756 + $0x1998] sm:$0xff]
        %v1943 = vld [vmem:[%s756 + $0x19a0] sm:$0xff]
        %v1944 = vld [vmem:[%s756 + $0x19a8] sm:$0xff]
        %v1945 = vld [vmem:[%s756 + $0x19b0] sm:$0xff]
        %v1946 = vld [vmem:[%s756 + $0x19b8] sm:$0xff]
        %v1947 = vld [vmem:[%s756 + $0x19c0] sm:$0xff]
        %v1948 = vld [vmem:[%s756 + $0x19c8] sm:$0xff]
        %v1949 = vld [vmem:[%s756 + $0x19d0] sm:$0xff]
        %v1950 = vld [vmem:[%s756 + $0x19d8] sm:$0xff]
        %v1951 = vld [vmem:[%s756 + $0x19e0] sm:$0xff]
        %v1952 = vld [vmem:[%s756 + $0x19e8] sm:$0xff]
        %v1953 = vld [vmem:[%s756 + $0x19f0] sm:$0xff]
        %v1954 = vld [vmem:[%s756 + $0x19f8] sm:$0xff]
        %v1955 = vld [vmem:[%s756 + $0x1a00] sm:$0xff]
        %v1956 = vld [vmem:[%s756 + $0x1a08] sm:$0xff]
        %v1957 = vld [vmem:[%s756 + $0x1a10] sm:$0xff]
        %v1958 = vld [vmem:[%s756 + $0x1a18] sm:$0xff]
        %v1959 = vld [vmem:[%s756 + $0x1a20] sm:$0xff]
        %v1960 = vld [vmem:[%s756 + $0x1a28] sm:$0xff]
        %v1961 = vld [vmem:[%s756 + $0x1a30] sm:$0xff]
        %v1962 = vld [vmem:[%s756 + $0x1a38] sm:$0xff]
        %v1963 = vld [vmem:[%s756 + $0x1a40] sm:$0xff]
        %v1964 = vld [vmem:[%s756 + $0x1a48] sm:$0xff]
        %v1965 = vld [vmem:[%s756 + $0x1a50] sm:$0xff]
        %v1966 = vld [vmem:[%s756 + $0x1a58] sm:$0xff]
        %v1967 = vld [vmem:[%s756 + $0x1a60] sm:$0xff]
        %v1968 = vld [vmem:[%s756 + $0x1a68] sm:$0xff]
        %v1969 = vld [vmem:[%s756 + $0x1a70] sm:$0xff]
        %v1970 = vld [vmem:[%s756 + $0x1a78] sm:$0xff]
        %v1971 = vld [vmem:[%s756 + $0x1a80] sm:$0xff]
        %v1972 = vld [vmem:[%s756 + $0x1a88] sm:$0xff]
        %v1973 = vld [vmem:[%s756 + $0x1a90] sm:$0xff]
        %v1974 = vld [vmem:[%s756 + $0x1a98] sm:$0xff]
        %v1975 = vld [vmem:[%s756 + $0x1aa0] sm:$0xff]
        %v1976 = vld [vmem:[%s756 + $0x1aa8] sm:$0xff]
        %v1977 = vld [vmem:[%s756 + $0x1ab0] sm:$0xff]
        %v1978 = vld [vmem:[%s756 + $0x1ab8] sm:$0xff]
        %v1979 = vld [vmem:[%s756 + $0x1ac0] sm:$0xff]
        %v1980 = vld [vmem:[%s756 + $0x1ac8] sm:$0xff]
        %v1981 = vld [vmem:[%s756 + $0x1ad0] sm:$0xff]
        %v1982 = vld [vmem:[%s756 + $0x1ad8] sm:$0xff]
        %v1983 = vld [vmem:[%s756 + $0x1ae0] sm:$0xff]
        %v1984 = vld [vmem:[%s756 + $0x1ae8] sm:$0xff]
        %v1985 = vld [vmem:[%s756 + $0x1af0] sm:$0xff]
        %v1986 = vld [vmem:[%s756 + $0x1af8] sm:$0xff]
        %v1987 = vld [vmem:[%s756 + $0x1b00] sm:$0xff]
        %v1988 = vld [vmem:[%s756 + $0x1b08] sm:$0xff]
        %v1989 = vld [vmem:[%s756 + $0x1b10] sm:$0xff]
        %v1990 = vld [vmem:[%s756 + $0x1b18] sm:$0xff]
        %v1991 = vld [vmem:[%s756 + $0x1b20] sm:$0xff]
        %v1992 = vld [vmem:[%s756 + $0x1b28] sm:$0xff]
        %v1993 = vld [vmem:[%s756 + $0x1b30] sm:$0xff]
        %v1994 = vld [vmem:[%s756 + $0x1b38] sm:$0xff]
        %v1995 = vld [vmem:[%s756 + $0x1b40] sm:$0xff]
        %v1996 = vld [vmem:[%s756 + $0x1b48] sm:$0xff]
        %v1997 = vld [vmem:[%s756 + $0x1b50] sm:$0xff]
        %v1998 = vld [vmem:[%s756 + $0x1b58] sm:$0xff]
        %v1999 = vld [vmem:[%s756 + $0x1b60] sm:$0xff]
        %v2000 = vld [vmem:[%s756 + $0x1b68] sm:$0xff]
        %v2001 = vld [vmem:[%s756 + $0x1b70] sm:$0xff]
        %v2002 = vld [vmem:[%s756 + $0x1b78] sm:$0xff]
        %v2003 = vld [vmem:[%s756 + $0x1b80] sm:$0xff]
        %v2004 = vld [vmem:[%s756 + $0x1b88] sm:$0xff]
        %v2005 = vld [vmem:[%s756 + $0x1b90] sm:$0xff]
        %v2006 = vld [vmem:[%s756 + $0x1b98] sm:$0xff]
        %v2007 = vld [vmem:[%s756 + $0x1ba0] sm:$0xff]
        %v2008 = vld [vmem:[%s756 + $0x1ba8] sm:$0xff]
        %v2009 = vld [vmem:[%s756 + $0x1bb0] sm:$0xff]
        %v2010 = vld [vmem:[%s756 + $0x1bb8] sm:$0xff]
        %v2011 = vld [vmem:[%s756 + $0x1bc0] sm:$0xff]
        %v2012 = vld [vmem:[%s756 + $0x1bc8] sm:$0xff]
        %v2013 = vld [vmem:[%s756 + $0x1bd0] sm:$0xff]
        %v2014 = vld [vmem:[%s756 + $0x1bd8] sm:$0xff]
        %v2015 = vld [vmem:[%s756 + $0x1be0] sm:$0xff]
        %v2016 = vld [vmem:[%s756 + $0x1be8] sm:$0xff]
        %v2017 = vld [vmem:[%s756 + $0x1bf0] sm:$0xff]
        %v2018 = vld [vmem:[%s756 + $0x1bf8] sm:$0xff]
        %v2019 = vld [vmem:[%s756 + $0x1c00] sm:$0xff]
        %v2020 = vld [vmem:[%s756 + $0x1c08] sm:$0xff]
        %v2021 = vld [vmem:[%s756 + $0x1c10] sm:$0xff]
        %v2022 = vld [vmem:[%s756 + $0x1c18] sm:$0xff]
        %v2023 = vld [vmem:[%s756 + $0x1c20] sm:$0xff]
        %v2024 = vld [vmem:[%s756 + $0x1c28] sm:$0xff]
        %v2025 = vld [vmem:[%s756 + $0x1c30] sm:$0xff]
        %v2026 = vld [vmem:[%s756 + $0x1c38] sm:$0xff]
        %v2027 = vld [vmem:[%s756 + $0x1c40] sm:$0xff]
        %v2028 = vld [vmem:[%s756 + $0x1c48] sm:$0xff]
        %v2029 = vld [vmem:[%s756 + $0x1c50] sm:$0xff]
        %v2030 = vld [vmem:[%s756 + $0x1c58] sm:$0xff]
        %v2031 = vld [vmem:[%s756 + $0x1c60] sm:$0xff]
        %v2032 = vld [vmem:[%s756 + $0x1c68] sm:$0xff]
        %v2033 = vld [vmem:[%s756 + $0x1c70] sm:$0xff]
        %v2034 = vld [vmem:[%s756 + $0x1c78] sm:$0xff]
        %v2035 = vld [vmem:[%s756 + $0x1c80] sm:$0xff]
        %v2036 = vld [vmem:[%s756 + $0x1c88] sm:$0xff]
        %v2037 = vld [vmem:[%s756 + $0x1c90] sm:$0xff]
        %v2038 = vld [vmem:[%s756 + $0x1c98] sm:$0xff]
        %v2039 = vld [vmem:[%s756 + $0x1ca0] sm:$0xff]
        %v2040 = vld [vmem:[%s756 + $0x1ca8] sm:$0xff]
        %v2041 = vld [vmem:[%s756 + $0x1cb0] sm:$0xff]
        %v2042 = vld [vmem:[%s756 + $0x1cb8] sm:$0xff]
        %v2043 = vld [vmem:[%s756 + $0x1cc0] sm:$0xff]
        %v2044 = vld [vmem:[%s756 + $0x1cc8] sm:$0xff]
        %v2045 = vld [vmem:[%s756 + $0x1cd0] sm:$0xff]
        %v2046 = vld [vmem:[%s756 + $0x1cd8] sm:$0xff]
        %v2047 = vld [vmem:[%s756 + $0x1ce0] sm:$0xff]
        %v2048 = vld [vmem:[%s756 + $0x1ce8] sm:$0xff]
        %v2049 = vld [vmem:[%s756 + $0x1cf0] sm:$0xff]
        %v2050 = vld [vmem:[%s756 + $0x1cf8] sm:$0xff]
        %v2051 = vld [vmem:[%s756 + $0x1d00] sm:$0xff]
        %v2052 = vld [vmem:[%s756 + $0x1d08] sm:$0xff]
        %v2053 = vld [vmem:[%s756 + $0x1d10] sm:$0xff]
        %v2054 = vld [vmem:[%s756 + $0x1d18] sm:$0xff]
        %v2055 = vld [vmem:[%s756 + $0x1d20] sm:$0xff]
        %v2056 = vld [vmem:[%s756 + $0x1d28] sm:$0xff]
        %v2057 = vld [vmem:[%s756 + $0x1d30] sm:$0xff]
        %v2058 = vld [vmem:[%s756 + $0x1d38] sm:$0xff]
        %v2059 = vld [vmem:[%s756 + $0x1d40] sm:$0xff]
        %v2060 = vld [vmem:[%s756 + $0x1d48] sm:$0xff]
        %v2061 = vld [vmem:[%s756 + $0x1d50] sm:$0xff]
        %v2062 = vld [vmem:[%s756 + $0x1d58] sm:$0xff]
        %v2063 = vld [vmem:[%s756 + $0x1d60] sm:$0xff]
        %v2064 = vld [vmem:[%s756 + $0x1d68] sm:$0xff]
        %v2065 = vld [vmem:[%s756 + $0x1d70] sm:$0xff]
        %v2066 = vld [vmem:[%s756 + $0x1d78] sm:$0xff]
        %v2067 = vld [vmem:[%s756 + $0x1d80] sm:$0xff]
        %v2068 = vld [vmem:[%s756 + $0x1d88] sm:$0xff]
        %v2069 = vld [vmem:[%s756 + $0x1d90] sm:$0xff]
        %v2070 = vld [vmem:[%s756 + $0x1d98] sm:$0xff]
        %v2071 = vld [vmem:[%s756 + $0x1da0] sm:$0xff]
        %v2072 = vld [vmem:[%s756 + $0x1da8] sm:$0xff]
        %v2073 = vld [vmem:[%s756 + $0x1db0] sm:$0xff]
        %v2074 = vld [vmem:[%s756 + $0x1db8] sm:$0xff]
        %v2075 = vld [vmem:[%s756 + $0x1dc0] sm:$0xff]
        %v2076 = vld [vmem:[%s756 + $0x1dc8] sm:$0xff]
        %v2077 = vld [vmem:[%s756 + $0x1dd0] sm:$0xff]
        %v2078 = vld [vmem:[%s756 + $0x1dd8] sm:$0xff]
        %v2079 = vld [vmem:[%s756 + $0x1de0] sm:$0xff]
        %v2080 = vld [vmem:[%s756 + $0x1de8] sm:$0xff]
        %v2081 = vld [vmem:[%s756 + $0x1df0] sm:$0xff]
        %v2082 = vld [vmem:[%s756 + $0x1df8] sm:$0xff]
        %v2083 = vld [vmem:[%s756 + $0x1e00] sm:$0xff]
        %v2084 = vld [vmem:[%s756 + $0x1e08] sm:$0xff]
        %v2085 = vld [vmem:[%s756 + $0x1e10] sm:$0xff]
        %v2086 = vld [vmem:[%s756 + $0x1e18] sm:$0xff]
        %v2087 = vld [vmem:[%s756 + $0x1e20] sm:$0xff]
        %v2088 = vld [vmem:[%s756 + $0x1e28] sm:$0xff]
        %v2089 = vld [vmem:[%s756 + $0x1e30] sm:$0xff]
        %v2090 = vld [vmem:[%s756 + $0x1e38] sm:$0xff]
        %v2091 = vld [vmem:[%s756 + $0x1e40] sm:$0xff]
        %v2092 = vld [vmem:[%s756 + $0x1e48] sm:$0xff]
        %v2093 = vld [vmem:[%s756 + $0x1e50] sm:$0xff]
        %v2094 = vld [vmem:[%s756 + $0x1e58] sm:$0xff]
        %v2095 = vld [vmem:[%s756 + $0x1e60] sm:$0xff]
        %v2096 = vld [vmem:[%s756 + $0x1e68] sm:$0xff]
        %v2097 = vld [vmem:[%s756 + $0x1e70] sm:$0xff]
        %v2098 = vld [vmem:[%s756 + $0x1e78] sm:$0xff]
        %v2099 = vld [vmem:[%s756 + $0x1e80] sm:$0xff]
        %v2100 = vld [vmem:[%s756 + $0x1e88] sm:$0xff]
        %v2101 = vld [vmem:[%s756 + $0x1e90] sm:$0xff]
        %v2102 = vld [vmem:[%s756 + $0x1e98] sm:$0xff]
        %v2103 = vld [vmem:[%s756 + $0x1ea0] sm:$0xff]
        %v2104 = vld [vmem:[%s756 + $0x1ea8] sm:$0xff]
        %v2105 = vld [vmem:[%s756 + $0x1eb0] sm:$0xff]
        %v2106 = vld [vmem:[%s756 + $0x1eb8] sm:$0xff]
        %v2107 = vld [vmem:[%s756 + $0x1ec0] sm:$0xff]
        %v2108 = vld [vmem:[%s756 + $0x1ec8] sm:$0xff]
        %v2109 = vld [vmem:[%s756 + $0x1ed0] sm:$0xff]
        %v2110 = vld [vmem:[%s756 + $0x1ed8] sm:$0xff]
        %v2111 = vld [vmem:[%s756 + $0x1ee0] sm:$0xff]
        %v2112 = vld [vmem:[%s756 + $0x1ee8] sm:$0xff]
        %v2113 = vld [vmem:[%s756 + $0x1ef0] sm:$0xff]
        %v2114 = vld [vmem:[%s756 + $0x1ef8] sm:$0xff]
        %v2115 = vld [vmem:[%s756 + $0x1f00] sm:$0xff]
        %v2116 = vld [vmem:[%s756 + $0x1f08] sm:$0xff]
        %v2117 = vld [vmem:[%s756 + $0x1f10] sm:$0xff]
        %v2118 = vld [vmem:[%s756 + $0x1f18] sm:$0xff]
        %v2119 = vld [vmem:[%s756 + $0x1f20] sm:$0xff]
        %v2120 = vld [vmem:[%s756 + $0x1f28] sm:$0xff]
        %v2121 = vld [vmem:[%s756 + $0x1f30] sm:$0xff]
        %v2122 = vld [vmem:[%s756 + $0x1f38] sm:$0xff]
        %v2123 = vld [vmem:[%s756 + $0x1f40] sm:$0xff]
        %v2124 = vld [vmem:[%s756 + $0x1f48] sm:$0xff]
        %v2125 = vld [vmem:[%s756 + $0x1f50] sm:$0xff]
        %v2126 = vld [vmem:[%s756 + $0x1f58] sm:$0xff]
        %v2127 = vld [vmem:[%s756 + $0x1f60] sm:$0xff]
        %v2128 = vld [vmem:[%s756 + $0x1f68] sm:$0xff]
        %v2129 = vld [vmem:[%s756 + $0x1f70] sm:$0xff]
        %v2130 = vld [vmem:[%s756 + $0x1f78] sm:$0xff]
        %v2131 = vld [vmem:[%s756 + $0x1f80] sm:$0xff]
        %v2132 = vld [vmem:[%s756 + $0x1f88] sm:$0xff]
        %v2133 = vld [vmem:[%s756 + $0x1f90] sm:$0xff]
        %v2134 = vld [vmem:[%s756 + $0x1f98] sm:$0xff]
        %v2135 = vld [vmem:[%s756 + $0x1fa0] sm:$0xff]
        %v2136 = vld [vmem:[%s756 + $0x1fa8] sm:$0xff]
        %v2137 = vld [vmem:[%s756 + $0x1fb0] sm:$0xff]
        %v2138 = vld [vmem:[%s756 + $0x1fb8] sm:$0xff]
        %v2139 = vld [vmem:[%s756 + $0x1fc0] sm:$0xff]
        %v2140 = vld [vmem:[%s756 + $0x1fc8] sm:$0xff]
        %v2141 = vld [vmem:[%s756 + $0x1fd0] sm:$0xff]
        %v2142 = vld [vmem:[%s756 + $0x1fd8] sm:$0xff]
        %v2143 = vld [vmem:[%s756 + $0x1fe0] sm:$0xff]
        %v2144 = vld [vmem:[%s756 + $0x1fe8] sm:$0xff]
        %v2145 = vld [vmem:[%s756 + $0x1ff0] sm:$0xff]
        %v2146 = vld [vmem:[%s756 + $0x1ff8] sm:$0xff]
        %v3171 = vunpack.c.l.b16 %v1123
        %v3172 = vunpack.c.h.b16 %v1123
        %v3173 = vunpack.c.l.b16 %v1124
        %v3174 = vunpack.c.h.b16 %v1124
        %v3175 = vunpack.c.l.b16 %v1125
        %v3176 = vunpack.c.h.b16 %v1125
        %v3177 = vunpack.c.l.b16 %v1126
        %v3178 = vunpack.c.h.b16 %v1126
        %v3179 = vunpack.c.l.b16 %v1127
        %v3180 = vunpack.c.h.b16 %v1127
        %v3181 = vunpack.c.l.b16 %v1128
        %v3182 = vunpack.c.h.b16 %v1128
        %v3183 = vunpack.c.l.b16 %v1129
        %v3184 = vunpack.c.h.b16 %v1129
        %v3185 = vunpack.c.l.b16 %v1130
        %v3186 = vunpack.c.h.b16 %v1130
        %v3187 = vunpack.c.l.b16 %v1131
        %v3188 = vunpack.c.h.b16 %v1131
        %v3189 = vunpack.c.l.b16 %v1132
        %v3190 = vunpack.c.h.b16 %v1132
        %v3191 = vunpack.c.l.b16 %v1133
        %v3192 = vunpack.c.h.b16 %v1133
        %v3193 = vunpack.c.l.b16 %v1134
        %v3194 = vunpack.c.h.b16 %v1134
        %v3195 = vunpack.c.l.b16 %v1135
        %v3196 = vunpack.c.h.b16 %v1135
        %v3197 = vunpack.c.l.b16 %v1136
        %v3198 = vunpack.c.h.b16 %v1136
        %v3199 = vunpack.c.l.b16 %v1137
        %v3200 = vunpack.c.h.b16 %v1137
        %v3201 = vunpack.c.l.b16 %v1138
        %v3202 = vunpack.c.h.b16 %v1138
        %v3203 = vunpack.c.l.b16 %v1139
        %v3204 = vunpack.c.h.b16 %v1139
        %v3205 = vunpack.c.l.b16 %v1140
        %v3206 = vunpack.c.h.b16 %v1140
        %v3207 = vunpack.c.l.b16 %v1141
        %v3208 = vunpack.c.h.b16 %v1141
        %v3209 = vunpack.c.l.b16 %v1142
        %v3210 = vunpack.c.h.b16 %v1142
        %v3211 = vunpack.c.l.b16 %v1143
        %v3212 = vunpack.c.h.b16 %v1143
        %v3213 = vunpack.c.l.b16 %v1144
        %v3214 = vunpack.c.h.b16 %v1144
        %v3215 = vunpack.c.l.b16 %v1145
        %v3216 = vunpack.c.h.b16 %v1145
        %v3217 = vunpack.c.l.b16 %v1146
        %v3218 = vunpack.c.h.b16 %v1146
        %v3219 = vunpack.c.l.b16 %v1147
        %v3220 = vunpack.c.h.b16 %v1147
        %v3221 = vunpack.c.l.b16 %v1148
        %v3222 = vunpack.c.h.b16 %v1148
        %v3223 = vunpack.c.l.b16 %v1149
        %v3224 = vunpack.c.h.b16 %v1149
        %v3225 = vunpack.c.l.b16 %v1150
        %v3226 = vunpack.c.h.b16 %v1150
        %v3227 = vunpack.c.l.b16 %v1151
        %v3228 = vunpack.c.h.b16 %v1151
        %v3229 = vunpack.c.l.b16 %v1152
        %v3230 = vunpack.c.h.b16 %v1152
        %v3231 = vunpack.c.l.b16 %v1153
        %v3232 = vunpack.c.h.b16 %v1153
        %v3233 = vunpack.c.l.b16 %v1154
        %v3234 = vunpack.c.h.b16 %v1154
        %v3235 = vunpack.c.l.b16 %v1155
        %v3236 = vunpack.c.h.b16 %v1155
        %v3237 = vunpack.c.l.b16 %v1156
        %v3238 = vunpack.c.h.b16 %v1156
        %v3239 = vunpack.c.l.b16 %v1157
        %v3240 = vunpack.c.h.b16 %v1157
        %v3241 = vunpack.c.l.b16 %v1158
        %v3242 = vunpack.c.h.b16 %v1158
        %v3243 = vunpack.c.l.b16 %v1159
        %v3244 = vunpack.c.h.b16 %v1159
        %v3245 = vunpack.c.l.b16 %v1160
        %v3246 = vunpack.c.h.b16 %v1160
        %v3247 = vunpack.c.l.b16 %v1161
        %v3248 = vunpack.c.h.b16 %v1161
        %v3249 = vunpack.c.l.b16 %v1162
        %v3250 = vunpack.c.h.b16 %v1162
        %v3251 = vunpack.c.l.b16 %v1163
        %v3252 = vunpack.c.h.b16 %v1163
        %v3253 = vunpack.c.l.b16 %v1164
        %v3254 = vunpack.c.h.b16 %v1164
        %v3255 = vunpack.c.l.b16 %v1165
        %v3256 = vunpack.c.h.b16 %v1165
        %v3257 = vunpack.c.l.b16 %v1166
        %v3258 = vunpack.c.h.b16 %v1166
        %v3259 = vunpack.c.l.b16 %v1167
        %v3260 = vunpack.c.h.b16 %v1167
        %v3261 = vunpack.c.l.b16 %v1168
        %v3262 = vunpack.c.h.b16 %v1168
        %v3263 = vunpack.c.l.b16 %v1169
        %v3264 = vunpack.c.h.b16 %v1169
        %v3265 = vunpack.c.l.b16 %v1170
        %v3266 = vunpack.c.h.b16 %v1170
        %v3267 = vunpack.c.l.b16 %v1171
        %v3268 = vunpack.c.h.b16 %v1171
        %v3269 = vunpack.c.l.b16 %v1172
        %v3270 = vunpack.c.h.b16 %v1172
        %v3271 = vunpack.c.l.b16 %v1173
        %v3272 = vunpack.c.h.b16 %v1173
        %v3273 = vunpack.c.l.b16 %v1174
        %v3274 = vunpack.c.h.b16 %v1174
        %v3275 = vunpack.c.l.b16 %v1175
        %v3276 = vunpack.c.h.b16 %v1175
        %v3277 = vunpack.c.l.b16 %v1176
        %v3278 = vunpack.c.h.b16 %v1176
        %v3279 = vunpack.c.l.b16 %v1177
        %v3280 = vunpack.c.h.b16 %v1177
        %v3281 = vunpack.c.l.b16 %v1178
        %v3282 = vunpack.c.h.b16 %v1178
        %v3283 = vunpack.c.l.b16 %v1179
        %v3284 = vunpack.c.h.b16 %v1179
        %v3285 = vunpack.c.l.b16 %v1180
        %v3286 = vunpack.c.h.b16 %v1180
        %v3287 = vunpack.c.l.b16 %v1181
        %v3288 = vunpack.c.h.b16 %v1181
        %v3289 = vunpack.c.l.b16 %v1182
        %v3290 = vunpack.c.h.b16 %v1182
        %v3291 = vunpack.c.l.b16 %v1183
        %v3292 = vunpack.c.h.b16 %v1183
        %v3293 = vunpack.c.l.b16 %v1184
        %v3294 = vunpack.c.h.b16 %v1184
        %v3295 = vunpack.c.l.b16 %v1185
        %v3296 = vunpack.c.h.b16 %v1185
        %v3297 = vunpack.c.l.b16 %v1186
        %v3298 = vunpack.c.h.b16 %v1186
        %v3299 = vunpack.c.l.b16 %v1187
        %v3300 = vunpack.c.h.b16 %v1187
        %v3301 = vunpack.c.l.b16 %v1188
        %v3302 = vunpack.c.h.b16 %v1188
        %v3303 = vunpack.c.l.b16 %v1189
        %v3304 = vunpack.c.h.b16 %v1189
        %v3305 = vunpack.c.l.b16 %v1190
        %v3306 = vunpack.c.h.b16 %v1190
        %v3307 = vunpack.c.l.b16 %v1191
        %v3308 = vunpack.c.h.b16 %v1191
        %v3309 = vunpack.c.l.b16 %v1192
        %v3310 = vunpack.c.h.b16 %v1192
        %v3311 = vunpack.c.l.b16 %v1193
        %v3312 = vunpack.c.h.b16 %v1193
        %v3313 = vunpack.c.l.b16 %v1194
        %v3314 = vunpack.c.h.b16 %v1194
        %v3315 = vunpack.c.l.b16 %v1195
        %v3316 = vunpack.c.h.b16 %v1195
        %v3317 = vunpack.c.l.b16 %v1196
        %v3318 = vunpack.c.h.b16 %v1196
        %v3319 = vunpack.c.l.b16 %v1197
        %v3320 = vunpack.c.h.b16 %v1197
        %v3321 = vunpack.c.l.b16 %v1198
        %v3322 = vunpack.c.h.b16 %v1198
        %v3323 = vunpack.c.l.b16 %v1199
        %v3324 = vunpack.c.h.b16 %v1199
        %v3325 = vunpack.c.l.b16 %v1200
        %v3326 = vunpack.c.h.b16 %v1200
        %v3327 = vunpack.c.l.b16 %v1201
        %v3328 = vunpack.c.h.b16 %v1201
        %v3329 = vunpack.c.l.b16 %v1202
        %v3330 = vunpack.c.h.b16 %v1202
        %v3331 = vunpack.c.l.b16 %v1203
        %v3332 = vunpack.c.h.b16 %v1203
        %v3333 = vunpack.c.l.b16 %v1204
        %v3334 = vunpack.c.h.b16 %v1204
        %v3335 = vunpack.c.l.b16 %v1205
        %v3336 = vunpack.c.h.b16 %v1205
        %v3337 = vunpack.c.l.b16 %v1206
        %v3338 = vunpack.c.h.b16 %v1206
        %v3339 = vunpack.c.l.b16 %v1207
        %v3340 = vunpack.c.h.b16 %v1207
        %v3341 = vunpack.c.l.b16 %v1208
        %v3342 = vunpack.c.h.b16 %v1208
        %v3343 = vunpack.c.l.b16 %v1209
        %v3344 = vunpack.c.h.b16 %v1209
        %v3345 = vunpack.c.l.b16 %v1210
        %v3346 = vunpack.c.h.b16 %v1210
        %v3347 = vunpack.c.l.b16 %v1211
        %v3348 = vunpack.c.h.b16 %v1211
        %v3349 = vunpack.c.l.b16 %v1212
        %v3350 = vunpack.c.h.b16 %v1212
        %v3351 = vunpack.c.l.b16 %v1213
        %v3352 = vunpack.c.h.b16 %v1213
        %v3353 = vunpack.c.l.b16 %v1214
        %v3354 = vunpack.c.h.b16 %v1214
        %v3355 = vunpack.c.l.b16 %v1215
        %v3356 = vunpack.c.h.b16 %v1215
        %v3357 = vunpack.c.l.b16 %v1216
        %v3358 = vunpack.c.h.b16 %v1216
        %v3359 = vunpack.c.l.b16 %v1217
        %v3360 = vunpack.c.h.b16 %v1217
        %v3361 = vunpack.c.l.b16 %v1218
        %v3362 = vunpack.c.h.b16 %v1218
        %v3363 = vunpack.c.l.b16 %v1219
        %v3364 = vunpack.c.h.b16 %v1219
        %v3365 = vunpack.c.l.b16 %v1220
        %v3366 = vunpack.c.h.b16 %v1220
        %v3367 = vunpack.c.l.b16 %v1221
        %v3368 = vunpack.c.h.b16 %v1221
        %v3369 = vunpack.c.l.b16 %v1222
        %v3370 = vunpack.c.h.b16 %v1222
        %v3371 = vunpack.c.l.b16 %v1223
        %v3372 = vunpack.c.h.b16 %v1223
        %v3373 = vunpack.c.l.b16 %v1224
        %v3374 = vunpack.c.h.b16 %v1224
        %v3375 = vunpack.c.l.b16 %v1225
        %v3376 = vunpack.c.h.b16 %v1225
        %v3377 = vunpack.c.l.b16 %v1226
        %v3378 = vunpack.c.h.b16 %v1226
        %v3379 = vunpack.c.l.b16 %v1227
        %v3380 = vunpack.c.h.b16 %v1227
        %v3381 = vunpack.c.l.b16 %v1228
        %v3382 = vunpack.c.h.b16 %v1228
        %v3383 = vunpack.c.l.b16 %v1229
        %v3384 = vunpack.c.h.b16 %v1229
        %v3385 = vunpack.c.l.b16 %v1230
        %v3386 = vunpack.c.h.b16 %v1230
        %v3387 = vunpack.c.l.b16 %v1231
        %v3388 = vunpack.c.h.b16 %v1231
        %v3389 = vunpack.c.l.b16 %v1232
        %v3390 = vunpack.c.h.b16 %v1232
        %v3391 = vunpack.c.l.b16 %v1233
        %v3392 = vunpack.c.h.b16 %v1233
        %v3393 = vunpack.c.l.b16 %v1234
        %v3394 = vunpack.c.h.b16 %v1234
        %v3395 = vunpack.c.l.b16 %v1235
        %v3396 = vunpack.c.h.b16 %v1235
        %v3397 = vunpack.c.l.b16 %v1236
        %v3398 = vunpack.c.h.b16 %v1236
        %v3399 = vunpack.c.l.b16 %v1237
        %v3400 = vunpack.c.h.b16 %v1237
        %v3401 = vunpack.c.l.b16 %v1238
        %v3402 = vunpack.c.h.b16 %v1238
        %v3403 = vunpack.c.l.b16 %v1239
        %v3404 = vunpack.c.h.b16 %v1239
        %v3405 = vunpack.c.l.b16 %v1240
        %v3406 = vunpack.c.h.b16 %v1240
        %v3407 = vunpack.c.l.b16 %v1241
        %v3408 = vunpack.c.h.b16 %v1241
        %v3409 = vunpack.c.l.b16 %v1242
        %v3410 = vunpack.c.h.b16 %v1242
        %v3411 = vunpack.c.l.b16 %v1243
        %v3412 = vunpack.c.h.b16 %v1243
        %v3413 = vunpack.c.l.b16 %v1244
        %v3414 = vunpack.c.h.b16 %v1244
        %v3415 = vunpack.c.l.b16 %v1245
        %v3416 = vunpack.c.h.b16 %v1245
        %v3417 = vunpack.c.l.b16 %v1246
        %v3418 = vunpack.c.h.b16 %v1246
        %v3419 = vunpack.c.l.b16 %v1247
        %v3420 = vunpack.c.h.b16 %v1247
        %v3421 = vunpack.c.l.b16 %v1248
        %v3422 = vunpack.c.h.b16 %v1248
        %v3423 = vunpack.c.l.b16 %v1249
        %v3424 = vunpack.c.h.b16 %v1249
        %v3425 = vunpack.c.l.b16 %v1250
        %v3426 = vunpack.c.h.b16 %v1250
        %v3427 = vunpack.c.l.b16 %v1251
        %v3428 = vunpack.c.h.b16 %v1251
        %v3429 = vunpack.c.l.b16 %v1252
        %v3430 = vunpack.c.h.b16 %v1252
        %v3431 = vunpack.c.l.b16 %v1253
        %v3432 = vunpack.c.h.b16 %v1253
        %v3433 = vunpack.c.l.b16 %v1254
        %v3434 = vunpack.c.h.b16 %v1254
        %v3435 = vunpack.c.l.b16 %v1255
        %v3436 = vunpack.c.h.b16 %v1255
        %v3437 = vunpack.c.l.b16 %v1256
        %v3438 = vunpack.c.h.b16 %v1256
        %v3439 = vunpack.c.l.b16 %v1257
        %v3440 = vunpack.c.h.b16 %v1257
        %v3441 = vunpack.c.l.b16 %v1258
        %v3442 = vunpack.c.h.b16 %v1258
        %v3443 = vunpack.c.l.b16 %v1259
        %v3444 = vunpack.c.h.b16 %v1259
        %v3445 = vunpack.c.l.b16 %v1260
        %v3446 = vunpack.c.h.b16 %v1260
        %v3447 = vunpack.c.l.b16 %v1261
        %v3448 = vunpack.c.h.b16 %v1261
        %v3449 = vunpack.c.l.b16 %v1262
        %v3450 = vunpack.c.h.b16 %v1262
        %v3451 = vunpack.c.l.b16 %v1263
        %v3452 = vunpack.c.h.b16 %v1263
        %v3453 = vunpack.c.l.b16 %v1264
        %v3454 = vunpack.c.h.b16 %v1264
        %v3455 = vunpack.c.l.b16 %v1265
        %v3456 = vunpack.c.h.b16 %v1265
        %v3457 = vunpack.c.l.b16 %v1266
        %v3458 = vunpack.c.h.b16 %v1266
        %v3459 = vunpack.c.l.b16 %v1267
        %v3460 = vunpack.c.h.b16 %v1267
        %v3461 = vunpack.c.l.b16 %v1268
        %v3462 = vunpack.c.h.b16 %v1268
        %v3463 = vunpack.c.l.b16 %v1269
        %v3464 = vunpack.c.h.b16 %v1269
        %v3465 = vunpack.c.l.b16 %v1270
        %v3466 = vunpack.c.h.b16 %v1270
        %v3467 = vunpack.c.l.b16 %v1271
        %v3468 = vunpack.c.h.b16 %v1271
        %v3469 = vunpack.c.l.b16 %v1272
        %v3470 = vunpack.c.h.b16 %v1272
        %v3471 = vunpack.c.l.b16 %v1273
        %v3472 = vunpack.c.h.b16 %v1273
        %v3473 = vunpack.c.l.b16 %v1274
        %v3474 = vunpack.c.h.b16 %v1274
        %v3475 = vunpack.c.l.b16 %v1275
        %v3476 = vunpack.c.h.b16 %v1275
        %v3477 = vunpack.c.l.b16 %v1276
        %v3478 = vunpack.c.h.b16 %v1276
        %v3479 = vunpack.c.l.b16 %v1277
        %v3480 = vunpack.c.h.b16 %v1277
        %v3481 = vunpack.c.l.b16 %v1278
        %v3482 = vunpack.c.h.b16 %v1278
        %v3483 = vunpack.c.l.b16 %v1279
        %v3484 = vunpack.c.h.b16 %v1279
        %v3485 = vunpack.c.l.b16 %v1280
        %v3486 = vunpack.c.h.b16 %v1280
        %v3487 = vunpack.c.l.b16 %v1281
        %v3488 = vunpack.c.h.b16 %v1281
        %v3489 = vunpack.c.l.b16 %v1282
        %v3490 = vunpack.c.h.b16 %v1282
        %v3491 = vunpack.c.l.b16 %v1283
        %v3492 = vunpack.c.h.b16 %v1283
        %v3493 = vunpack.c.l.b16 %v1284
        %v3494 = vunpack.c.h.b16 %v1284
        %v3495 = vunpack.c.l.b16 %v1285
        %v3496 = vunpack.c.h.b16 %v1285
        %v3497 = vunpack.c.l.b16 %v1286
        %v3498 = vunpack.c.h.b16 %v1286
        %v3499 = vunpack.c.l.b16 %v1287
        %v3500 = vunpack.c.h.b16 %v1287
        %v3501 = vunpack.c.l.b16 %v1288
        %v3502 = vunpack.c.h.b16 %v1288
        %v3503 = vunpack.c.l.b16 %v1289
        %v3504 = vunpack.c.h.b16 %v1289
        %v3505 = vunpack.c.l.b16 %v1290
        %v3506 = vunpack.c.h.b16 %v1290
        %v3507 = vunpack.c.l.b16 %v1291
        %v3508 = vunpack.c.h.b16 %v1291
        %v3509 = vunpack.c.l.b16 %v1292
        %v3510 = vunpack.c.h.b16 %v1292
        %v3511 = vunpack.c.l.b16 %v1293
        %v3512 = vunpack.c.h.b16 %v1293
        %v3513 = vunpack.c.l.b16 %v1294
        %v3514 = vunpack.c.h.b16 %v1294
        %v3515 = vunpack.c.l.b16 %v1295
        %v3516 = vunpack.c.h.b16 %v1295
        %v3517 = vunpack.c.l.b16 %v1296
        %v3518 = vunpack.c.h.b16 %v1296
        %v3519 = vunpack.c.l.b16 %v1297
        %v3520 = vunpack.c.h.b16 %v1297
        %v3521 = vunpack.c.l.b16 %v1298
        %v3522 = vunpack.c.h.b16 %v1298
        %v3523 = vunpack.c.l.b16 %v1299
        %v3524 = vunpack.c.h.b16 %v1299
        %v3525 = vunpack.c.l.b16 %v1300
        %v3526 = vunpack.c.h.b16 %v1300
        %v3527 = vunpack.c.l.b16 %v1301
        %v3528 = vunpack.c.h.b16 %v1301
        %v3529 = vunpack.c.l.b16 %v1302
        %v3530 = vunpack.c.h.b16 %v1302
        %v3531 = vunpack.c.l.b16 %v1303
        %v3532 = vunpack.c.h.b16 %v1303
        %v3533 = vunpack.c.l.b16 %v1304
        %v3534 = vunpack.c.h.b16 %v1304
        %v3535 = vunpack.c.l.b16 %v1305
        %v3536 = vunpack.c.h.b16 %v1305
        %v3537 = vunpack.c.l.b16 %v1306
        %v3538 = vunpack.c.h.b16 %v1306
        %v3539 = vunpack.c.l.b16 %v1307
        %v3540 = vunpack.c.h.b16 %v1307
        %v3541 = vunpack.c.l.b16 %v1308
        %v3542 = vunpack.c.h.b16 %v1308
        %v3543 = vunpack.c.l.b16 %v1309
        %v3544 = vunpack.c.h.b16 %v1309
        %v3545 = vunpack.c.l.b16 %v1310
        %v3546 = vunpack.c.h.b16 %v1310
        %v3547 = vunpack.c.l.b16 %v1311
        %v3548 = vunpack.c.h.b16 %v1311
        %v3549 = vunpack.c.l.b16 %v1312
        %v3550 = vunpack.c.h.b16 %v1312
        %v3551 = vunpack.c.l.b16 %v1313
        %v3552 = vunpack.c.h.b16 %v1313
        %v3553 = vunpack.c.l.b16 %v1314
        %v3554 = vunpack.c.h.b16 %v1314
        %v3555 = vunpack.c.l.b16 %v1315
        %v3556 = vunpack.c.h.b16 %v1315
        %v3557 = vunpack.c.l.b16 %v1316
        %v3558 = vunpack.c.h.b16 %v1316
        %v3559 = vunpack.c.l.b16 %v1317
        %v3560 = vunpack.c.h.b16 %v1317
        %v3561 = vunpack.c.l.b16 %v1318
        %v3562 = vunpack.c.h.b16 %v1318
        %v3563 = vunpack.c.l.b16 %v1319
        %v3564 = vunpack.c.h.b16 %v1319
        %v3565 = vunpack.c.l.b16 %v1320
        %v3566 = vunpack.c.h.b16 %v1320
        %v3567 = vunpack.c.l.b16 %v1321
        %v3568 = vunpack.c.h.b16 %v1321
        %v3569 = vunpack.c.l.b16 %v1322
        %v3570 = vunpack.c.h.b16 %v1322
        %v3571 = vunpack.c.l.b16 %v1323
        %v3572 = vunpack.c.h.b16 %v1323
        %v3573 = vunpack.c.l.b16 %v1324
        %v3574 = vunpack.c.h.b16 %v1324
        %v3575 = vunpack.c.l.b16 %v1325
        %v3576 = vunpack.c.h.b16 %v1325
        %v3577 = vunpack.c.l.b16 %v1326
        %v3578 = vunpack.c.h.b16 %v1326
        %v3579 = vunpack.c.l.b16 %v1327
        %v3580 = vunpack.c.h.b16 %v1327
        %v3581 = vunpack.c.l.b16 %v1328
        %v3582 = vunpack.c.h.b16 %v1328
        %v3583 = vunpack.c.l.b16 %v1329
        %v3584 = vunpack.c.h.b16 %v1329
        %v3585 = vunpack.c.l.b16 %v1330
        %v3586 = vunpack.c.h.b16 %v1330
        %v3587 = vunpack.c.l.b16 %v1331
        %v3588 = vunpack.c.h.b16 %v1331
        %v3589 = vunpack.c.l.b16 %v1332
        %v3590 = vunpack.c.h.b16 %v1332
        %v3591 = vunpack.c.l.b16 %v1333
        %v3592 = vunpack.c.h.b16 %v1333
        %v3593 = vunpack.c.l.b16 %v1334
        %v3594 = vunpack.c.h.b16 %v1334
        %v3595 = vunpack.c.l.b16 %v1335
        %v3596 = vunpack.c.h.b16 %v1335
        %v3597 = vunpack.c.l.b16 %v1336
        %v3598 = vunpack.c.h.b16 %v1336
        %v3599 = vunpack.c.l.b16 %v1337
        %v3600 = vunpack.c.h.b16 %v1337
        %v3601 = vunpack.c.l.b16 %v1338
        %v3602 = vunpack.c.h.b16 %v1338
        %v3603 = vunpack.c.l.b16 %v1339
        %v3604 = vunpack.c.h.b16 %v1339
        %v3605 = vunpack.c.l.b16 %v1340
        %v3606 = vunpack.c.h.b16 %v1340
        %v3607 = vunpack.c.l.b16 %v1341
        %v3608 = vunpack.c.h.b16 %v1341
        %v3609 = vunpack.c.l.b16 %v1342
        %v3610 = vunpack.c.h.b16 %v1342
        %v3611 = vunpack.c.l.b16 %v1343
        %v3612 = vunpack.c.h.b16 %v1343
        %v3613 = vunpack.c.l.b16 %v1344
        %v3614 = vunpack.c.h.b16 %v1344
        %v3615 = vunpack.c.l.b16 %v1345
        %v3616 = vunpack.c.h.b16 %v1345
        %v3617 = vunpack.c.l.b16 %v1346
        %v3618 = vunpack.c.h.b16 %v1346
        %v3619 = vunpack.c.l.b16 %v1347
        %v3620 = vunpack.c.h.b16 %v1347
        %v3621 = vunpack.c.l.b16 %v1348
        %v3622 = vunpack.c.h.b16 %v1348
        %v3623 = vunpack.c.l.b16 %v1349
        %v3624 = vunpack.c.h.b16 %v1349
        %v3625 = vunpack.c.l.b16 %v1350
        %v3626 = vunpack.c.h.b16 %v1350
        %v3627 = vunpack.c.l.b16 %v1351
        %v3628 = vunpack.c.h.b16 %v1351
        %v3629 = vunpack.c.l.b16 %v1352
        %v3630 = vunpack.c.h.b16 %v1352
        %v3631 = vunpack.c.l.b16 %v1353
        %v3632 = vunpack.c.h.b16 %v1353
        %v3633 = vunpack.c.l.b16 %v1354
        %v3634 = vunpack.c.h.b16 %v1354
        %v3635 = vunpack.c.l.b16 %v1355
        %v3636 = vunpack.c.h.b16 %v1355
        %v3637 = vunpack.c.l.b16 %v1356
        %v3638 = vunpack.c.h.b16 %v1356
        %v3639 = vunpack.c.l.b16 %v1357
        %v3640 = vunpack.c.h.b16 %v1357
        %v3641 = vunpack.c.l.b16 %v1358
        %v3642 = vunpack.c.h.b16 %v1358
        %v3643 = vunpack.c.l.b16 %v1359
        %v3644 = vunpack.c.h.b16 %v1359
        %v3645 = vunpack.c.l.b16 %v1360
        %v3646 = vunpack.c.h.b16 %v1360
        %v3647 = vunpack.c.l.b16 %v1361
        %v3648 = vunpack.c.h.b16 %v1361
        %v3649 = vunpack.c.l.b16 %v1362
        %v3650 = vunpack.c.h.b16 %v1362
        %v3651 = vunpack.c.l.b16 %v1363
        %v3652 = vunpack.c.h.b16 %v1363
        %v3653 = vunpack.c.l.b16 %v1364
        %v3654 = vunpack.c.h.b16 %v1364
        %v3655 = vunpack.c.l.b16 %v1365
        %v3656 = vunpack.c.h.b16 %v1365
        %v3657 = vunpack.c.l.b16 %v1366
        %v3658 = vunpack.c.h.b16 %v1366
        %v3659 = vunpack.c.l.b16 %v1367
        %v3660 = vunpack.c.h.b16 %v1367
        %v3661 = vunpack.c.l.b16 %v1368
        %v3662 = vunpack.c.h.b16 %v1368
        %v3663 = vunpack.c.l.b16 %v1369
        %v3664 = vunpack.c.h.b16 %v1369
        %v3665 = vunpack.c.l.b16 %v1370
        %v3666 = vunpack.c.h.b16 %v1370
        %v3667 = vunpack.c.l.b16 %v1371
        %v3668 = vunpack.c.h.b16 %v1371
        %v3669 = vunpack.c.l.b16 %v1372
        %v3670 = vunpack.c.h.b16 %v1372
        %v3671 = vunpack.c.l.b16 %v1373
        %v3672 = vunpack.c.h.b16 %v1373
        %v3673 = vunpack.c.l.b16 %v1374
        %v3674 = vunpack.c.h.b16 %v1374
        %v3675 = vunpack.c.l.b16 %v1375
        %v3676 = vunpack.c.h.b16 %v1375
        %v3677 = vunpack.c.l.b16 %v1376
        %v3678 = vunpack.c.h.b16 %v1376
        %v3679 = vunpack.c.l.b16 %v1377
        %v3680 = vunpack.c.h.b16 %v1377
        %v3681 = vunpack.c.l.b16 %v1378
        %v3682 = vunpack.c.h.b16 %v1378
        %v3683 = vunpack.c.l.b16 %v1379
        %v3684 = vunpack.c.h.b16 %v1379
        %v3685 = vunpack.c.l.b16 %v1380
        %v3686 = vunpack.c.h.b16 %v1380
        %v3687 = vunpack.c.l.b16 %v1381
        %v3688 = vunpack.c.h.b16 %v1381
        %v3689 = vunpack.c.l.b16 %v1382
        %v3690 = vunpack.c.h.b16 %v1382
        %v3691 = vunpack.c.l.b16 %v1383
        %v3692 = vunpack.c.h.b16 %v1383
        %v3693 = vunpack.c.l.b16 %v1384
        %v3694 = vunpack.c.h.b16 %v1384
        %v3695 = vunpack.c.l.b16 %v1385
        %v3696 = vunpack.c.h.b16 %v1385
        %v3697 = vunpack.c.l.b16 %v1386
        %v3698 = vunpack.c.h.b16 %v1386
        %v3699 = vunpack.c.l.b16 %v1387
        %v3700 = vunpack.c.h.b16 %v1387
        %v3701 = vunpack.c.l.b16 %v1388
        %v3702 = vunpack.c.h.b16 %v1388
        %v3703 = vunpack.c.l.b16 %v1389
        %v3704 = vunpack.c.h.b16 %v1389
        %v3705 = vunpack.c.l.b16 %v1390
        %v3706 = vunpack.c.h.b16 %v1390
        %v3707 = vunpack.c.l.b16 %v1391
        %v3708 = vunpack.c.h.b16 %v1391
        %v3709 = vunpack.c.l.b16 %v1392
        %v3710 = vunpack.c.h.b16 %v1392
        %v3711 = vunpack.c.l.b16 %v1393
        %v3712 = vunpack.c.h.b16 %v1393
        %v3713 = vunpack.c.l.b16 %v1394
        %v3714 = vunpack.c.h.b16 %v1394
        %v3715 = vunpack.c.l.b16 %v1395
        %v3716 = vunpack.c.h.b16 %v1395
        %v3717 = vunpack.c.l.b16 %v1396
        %v3718 = vunpack.c.h.b16 %v1396
        %v3719 = vunpack.c.l.b16 %v1397
        %v3720 = vunpack.c.h.b16 %v1397
        %v3721 = vunpack.c.l.b16 %v1398
        %v3722 = vunpack.c.h.b16 %v1398
        %v3723 = vunpack.c.l.b16 %v1399
        %v3724 = vunpack.c.h.b16 %v1399
        %v3725 = vunpack.c.l.b16 %v1400
        %v3726 = vunpack.c.h.b16 %v1400
        %v3727 = vunpack.c.l.b16 %v1401
        %v3728 = vunpack.c.h.b16 %v1401
        %v3729 = vunpack.c.l.b16 %v1402
        %v3730 = vunpack.c.h.b16 %v1402
        %v3731 = vunpack.c.l.b16 %v1403
        %v3732 = vunpack.c.h.b16 %v1403
        %v3733 = vunpack.c.l.b16 %v1404
        %v3734 = vunpack.c.h.b16 %v1404
        %v3735 = vunpack.c.l.b16 %v1405
        %v3736 = vunpack.c.h.b16 %v1405
        %v3737 = vunpack.c.l.b16 %v1406
        %v3738 = vunpack.c.h.b16 %v1406
        %v3739 = vunpack.c.l.b16 %v1407
        %v3740 = vunpack.c.h.b16 %v1407
        %v3741 = vunpack.c.l.b16 %v1408
        %v3742 = vunpack.c.h.b16 %v1408
        %v3743 = vunpack.c.l.b16 %v1409
        %v3744 = vunpack.c.h.b16 %v1409
        %v3745 = vunpack.c.l.b16 %v1410
        %v3746 = vunpack.c.h.b16 %v1410
        %v3747 = vunpack.c.l.b16 %v1411
        %v3748 = vunpack.c.h.b16 %v1411
        %v3749 = vunpack.c.l.b16 %v1412
        %v3750 = vunpack.c.h.b16 %v1412
        %v3751 = vunpack.c.l.b16 %v1413
        %v3752 = vunpack.c.h.b16 %v1413
        %v3753 = vunpack.c.l.b16 %v1414
        %v3754 = vunpack.c.h.b16 %v1414
        %v3755 = vunpack.c.l.b16 %v1415
        %v3756 = vunpack.c.h.b16 %v1415
        %v3757 = vunpack.c.l.b16 %v1416
        %v3758 = vunpack.c.h.b16 %v1416
        %v3759 = vunpack.c.l.b16 %v1417
        %v3760 = vunpack.c.h.b16 %v1417
        %v3761 = vunpack.c.l.b16 %v1418
        %v3762 = vunpack.c.h.b16 %v1418
        %v3763 = vunpack.c.l.b16 %v1419
        %v3764 = vunpack.c.h.b16 %v1419
        %v3765 = vunpack.c.l.b16 %v1420
        %v3766 = vunpack.c.h.b16 %v1420
        %v3767 = vunpack.c.l.b16 %v1421
        %v3768 = vunpack.c.h.b16 %v1421
        %v3769 = vunpack.c.l.b16 %v1422
        %v3770 = vunpack.c.h.b16 %v1422
        %v3771 = vunpack.c.l.b16 %v1423
        %v3772 = vunpack.c.h.b16 %v1423
        %v3773 = vunpack.c.l.b16 %v1424
        %v3774 = vunpack.c.h.b16 %v1424
        %v3775 = vunpack.c.l.b16 %v1425
        %v3776 = vunpack.c.h.b16 %v1425
        %v3777 = vunpack.c.l.b16 %v1426
        %v3778 = vunpack.c.h.b16 %v1426
        %v3779 = vunpack.c.l.b16 %v1427
        %v3780 = vunpack.c.h.b16 %v1427
        %v3781 = vunpack.c.l.b16 %v1428
        %v3782 = vunpack.c.h.b16 %v1428
        %v3783 = vunpack.c.l.b16 %v1429
        %v3784 = vunpack.c.h.b16 %v1429
        %v3785 = vunpack.c.l.b16 %v1430
        %v3786 = vunpack.c.h.b16 %v1430
        %v3787 = vunpack.c.l.b16 %v1431
        %v3788 = vunpack.c.h.b16 %v1431
        %v3789 = vunpack.c.l.b16 %v1432
        %v3790 = vunpack.c.h.b16 %v1432
        %v3791 = vunpack.c.l.b16 %v1433
        %v3792 = vunpack.c.h.b16 %v1433
        %v3793 = vunpack.c.l.b16 %v1434
        %v3794 = vunpack.c.h.b16 %v1434
        %v3795 = vunpack.c.l.b16 %v1435
        %v3796 = vunpack.c.h.b16 %v1435
        %v3797 = vunpack.c.l.b16 %v1436
        %v3798 = vunpack.c.h.b16 %v1436
        %v3799 = vunpack.c.l.b16 %v1437
        %v3800 = vunpack.c.h.b16 %v1437
        %v3801 = vunpack.c.l.b16 %v1438
        %v3802 = vunpack.c.h.b16 %v1438
        %v3803 = vunpack.c.l.b16 %v1439
        %v3804 = vunpack.c.h.b16 %v1439
        %v3805 = vunpack.c.l.b16 %v1440
        %v3806 = vunpack.c.h.b16 %v1440
        %v3807 = vunpack.c.l.b16 %v1441
        %v3808 = vunpack.c.h.b16 %v1441
        %v3809 = vunpack.c.l.b16 %v1442
        %v3810 = vunpack.c.h.b16 %v1442
        %v3811 = vunpack.c.l.b16 %v1443
        %v3812 = vunpack.c.h.b16 %v1443
        %v3813 = vunpack.c.l.b16 %v1444
        %v3814 = vunpack.c.h.b16 %v1444
        %v3815 = vunpack.c.l.b16 %v1445
        %v3816 = vunpack.c.h.b16 %v1445
        %v3817 = vunpack.c.l.b16 %v1446
        %v3818 = vunpack.c.h.b16 %v1446
        %v3819 = vunpack.c.l.b16 %v1447
        %v3820 = vunpack.c.h.b16 %v1447
        %v3821 = vunpack.c.l.b16 %v1448
        %v3822 = vunpack.c.h.b16 %v1448
        %v3823 = vunpack.c.l.b16 %v1449
        %v3824 = vunpack.c.h.b16 %v1449
        %v3825 = vunpack.c.l.b16 %v1450
        %v3826 = vunpack.c.h.b16 %v1450
        %v3827 = vunpack.c.l.b16 %v1451
        %v3828 = vunpack.c.h.b16 %v1451
        %v3829 = vunpack.c.l.b16 %v1452
        %v3830 = vunpack.c.h.b16 %v1452
        %v3831 = vunpack.c.l.b16 %v1453
        %v3832 = vunpack.c.h.b16 %v1453
        %v3833 = vunpack.c.l.b16 %v1454
        %v3834 = vunpack.c.h.b16 %v1454
        %v3835 = vunpack.c.l.b16 %v1455
        %v3836 = vunpack.c.h.b16 %v1455
        %v3837 = vunpack.c.l.b16 %v1456
        %v3838 = vunpack.c.h.b16 %v1456
        %v3839 = vunpack.c.l.b16 %v1457
        %v3840 = vunpack.c.h.b16 %v1457
        %v3841 = vunpack.c.l.b16 %v1458
        %v3842 = vunpack.c.h.b16 %v1458
        %v3843 = vunpack.c.l.b16 %v1459
        %v3844 = vunpack.c.h.b16 %v1459
        %v3845 = vunpack.c.l.b16 %v1460
        %v3846 = vunpack.c.h.b16 %v1460
        %v3847 = vunpack.c.l.b16 %v1461
        %v3848 = vunpack.c.h.b16 %v1461
        %v3849 = vunpack.c.l.b16 %v1462
        %v3850 = vunpack.c.h.b16 %v1462
        %v3851 = vunpack.c.l.b16 %v1463
        %v3852 = vunpack.c.h.b16 %v1463
        %v3853 = vunpack.c.l.b16 %v1464
        %v3854 = vunpack.c.h.b16 %v1464
        %v3855 = vunpack.c.l.b16 %v1465
        %v3856 = vunpack.c.h.b16 %v1465
        %v3857 = vunpack.c.l.b16 %v1466
        %v3858 = vunpack.c.h.b16 %v1466
        %v3859 = vunpack.c.l.b16 %v1467
        %v3860 = vunpack.c.h.b16 %v1467
        %v3861 = vunpack.c.l.b16 %v1468
        %v3862 = vunpack.c.h.b16 %v1468
        %v3863 = vunpack.c.l.b16 %v1469
        %v3864 = vunpack.c.h.b16 %v1469
        %v3865 = vunpack.c.l.b16 %v1470
        %v3866 = vunpack.c.h.b16 %v1470
        %v3867 = vunpack.c.l.b16 %v1471
        %v3868 = vunpack.c.h.b16 %v1471
        %v3869 = vunpack.c.l.b16 %v1472
        %v3870 = vunpack.c.h.b16 %v1472
        %v3871 = vunpack.c.l.b16 %v1473
        %v3872 = vunpack.c.h.b16 %v1473
        %v3873 = vunpack.c.l.b16 %v1474
        %v3874 = vunpack.c.h.b16 %v1474
        %v3875 = vunpack.c.l.b16 %v1475
        %v3876 = vunpack.c.h.b16 %v1475
        %v3877 = vunpack.c.l.b16 %v1476
        %v3878 = vunpack.c.h.b16 %v1476
        %v3879 = vunpack.c.l.b16 %v1477
        %v3880 = vunpack.c.h.b16 %v1477
        %v3881 = vunpack.c.l.b16 %v1478
        %v3882 = vunpack.c.h.b16 %v1478
        %v3883 = vunpack.c.l.b16 %v1479
        %v3884 = vunpack.c.h.b16 %v1479
        %v3885 = vunpack.c.l.b16 %v1480
        %v3886 = vunpack.c.h.b16 %v1480
        %v3887 = vunpack.c.l.b16 %v1481
        %v3888 = vunpack.c.h.b16 %v1481
        %v3889 = vunpack.c.l.b16 %v1482
        %v3890 = vunpack.c.h.b16 %v1482
        %v3891 = vunpack.c.l.b16 %v1483
        %v3892 = vunpack.c.h.b16 %v1483
        %v3893 = vunpack.c.l.b16 %v1484
        %v3894 = vunpack.c.h.b16 %v1484
        %v3895 = vunpack.c.l.b16 %v1485
        %v3896 = vunpack.c.h.b16 %v1485
        %v3897 = vunpack.c.l.b16 %v1486
        %v3898 = vunpack.c.h.b16 %v1486
        %v3899 = vunpack.c.l.b16 %v1487
        %v3900 = vunpack.c.h.b16 %v1487
        %v3901 = vunpack.c.l.b16 %v1488
        %v3902 = vunpack.c.h.b16 %v1488
        %v3903 = vunpack.c.l.b16 %v1489
        %v3904 = vunpack.c.h.b16 %v1489
        %v3905 = vunpack.c.l.b16 %v1490
        %v3906 = vunpack.c.h.b16 %v1490
        %v3907 = vunpack.c.l.b16 %v1491
        %v3908 = vunpack.c.h.b16 %v1491
        %v3909 = vunpack.c.l.b16 %v1492
        %v3910 = vunpack.c.h.b16 %v1492
        %v3911 = vunpack.c.l.b16 %v1493
        %v3912 = vunpack.c.h.b16 %v1493
        %v3913 = vunpack.c.l.b16 %v1494
        %v3914 = vunpack.c.h.b16 %v1494
        %v3915 = vunpack.c.l.b16 %v1495
        %v3916 = vunpack.c.h.b16 %v1495
        %v3917 = vunpack.c.l.b16 %v1496
        %v3918 = vunpack.c.h.b16 %v1496
        %v3919 = vunpack.c.l.b16 %v1497
        %v3920 = vunpack.c.h.b16 %v1497
        %v3921 = vunpack.c.l.b16 %v1498
        %v3922 = vunpack.c.h.b16 %v1498
        %v3923 = vunpack.c.l.b16 %v1499
        %v3924 = vunpack.c.h.b16 %v1499
        %v3925 = vunpack.c.l.b16 %v1500
        %v3926 = vunpack.c.h.b16 %v1500
        %v3927 = vunpack.c.l.b16 %v1501
        %v3928 = vunpack.c.h.b16 %v1501
        %v3929 = vunpack.c.l.b16 %v1502
        %v3930 = vunpack.c.h.b16 %v1502
        %v3931 = vunpack.c.l.b16 %v1503
        %v3932 = vunpack.c.h.b16 %v1503
        %v3933 = vunpack.c.l.b16 %v1504
        %v3934 = vunpack.c.h.b16 %v1504
        %v3935 = vunpack.c.l.b16 %v1505
        %v3936 = vunpack.c.h.b16 %v1505
        %v3937 = vunpack.c.l.b16 %v1506
        %v3938 = vunpack.c.h.b16 %v1506
        %v3939 = vunpack.c.l.b16 %v1507
        %v3940 = vunpack.c.h.b16 %v1507
        %v3941 = vunpack.c.l.b16 %v1508
        %v3942 = vunpack.c.h.b16 %v1508
        %v3943 = vunpack.c.l.b16 %v1509
        %v3944 = vunpack.c.h.b16 %v1509
        %v3945 = vunpack.c.l.b16 %v1510
        %v3946 = vunpack.c.h.b16 %v1510
        %v3947 = vunpack.c.l.b16 %v1511
        %v3948 = vunpack.c.h.b16 %v1511
        %v3949 = vunpack.c.l.b16 %v1512
        %v3950 = vunpack.c.h.b16 %v1512
        %v3951 = vunpack.c.l.b16 %v1513
        %v3952 = vunpack.c.h.b16 %v1513
        %v3953 = vunpack.c.l.b16 %v1514
        %v3954 = vunpack.c.h.b16 %v1514
        %v3955 = vunpack.c.l.b16 %v1515
        %v3956 = vunpack.c.h.b16 %v1515
        %v3957 = vunpack.c.l.b16 %v1516
        %v3958 = vunpack.c.h.b16 %v1516
        %v3959 = vunpack.c.l.b16 %v1517
        %v3960 = vunpack.c.h.b16 %v1517
        %v3961 = vunpack.c.l.b16 %v1518
        %v3962 = vunpack.c.h.b16 %v1518
        %v3963 = vunpack.c.l.b16 %v1519
        %v3964 = vunpack.c.h.b16 %v1519
        %v3965 = vunpack.c.l.b16 %v1520
        %v3966 = vunpack.c.h.b16 %v1520
        %v3967 = vunpack.c.l.b16 %v1521
        %v3968 = vunpack.c.h.b16 %v1521
        %v3969 = vunpack.c.l.b16 %v1522
        %v3970 = vunpack.c.h.b16 %v1522
        %v3971 = vunpack.c.l.b16 %v1523
        %v3972 = vunpack.c.h.b16 %v1523
        %v3973 = vunpack.c.l.b16 %v1524
        %v3974 = vunpack.c.h.b16 %v1524
        %v3975 = vunpack.c.l.b16 %v1525
        %v3976 = vunpack.c.h.b16 %v1525
        %v3977 = vunpack.c.l.b16 %v1526
        %v3978 = vunpack.c.h.b16 %v1526
        %v3979 = vunpack.c.l.b16 %v1527
        %v3980 = vunpack.c.h.b16 %v1527
        %v3981 = vunpack.c.l.b16 %v1528
        %v3982 = vunpack.c.h.b16 %v1528
        %v3983 = vunpack.c.l.b16 %v1529
        %v3984 = vunpack.c.h.b16 %v1529
        %v3985 = vunpack.c.l.b16 %v1530
        %v3986 = vunpack.c.h.b16 %v1530
        %v3987 = vunpack.c.l.b16 %v1531
        %v3988 = vunpack.c.h.b16 %v1531
        %v3989 = vunpack.c.l.b16 %v1532
        %v3990 = vunpack.c.h.b16 %v1532
        %v3991 = vunpack.c.l.b16 %v1533
        %v3992 = vunpack.c.h.b16 %v1533
        %v3993 = vunpack.c.l.b16 %v1534
        %v3994 = vunpack.c.h.b16 %v1534
        %v3995 = vunpack.c.l.b16 %v1535
        %v3996 = vunpack.c.h.b16 %v1535
        %v3997 = vunpack.c.l.b16 %v1536
        %v3998 = vunpack.c.h.b16 %v1536
        %v3999 = vunpack.c.l.b16 %v1537
        %v4000 = vunpack.c.h.b16 %v1537
        %v4001 = vunpack.c.l.b16 %v1538
        %v4002 = vunpack.c.h.b16 %v1538
        %v4003 = vunpack.c.l.b16 %v1539
        %v4004 = vunpack.c.h.b16 %v1539
        %v4005 = vunpack.c.l.b16 %v1540
        %v4006 = vunpack.c.h.b16 %v1540
        %v4007 = vunpack.c.l.b16 %v1541
        %v4008 = vunpack.c.h.b16 %v1541
        %v4009 = vunpack.c.l.b16 %v1542
        %v4010 = vunpack.c.h.b16 %v1542
        %v4011 = vunpack.c.l.b16 %v1543
        %v4012 = vunpack.c.h.b16 %v1543
        %v4013 = vunpack.c.l.b16 %v1544
        %v4014 = vunpack.c.h.b16 %v1544
        %v4015 = vunpack.c.l.b16 %v1545
        %v4016 = vunpack.c.h.b16 %v1545
        %v4017 = vunpack.c.l.b16 %v1546
        %v4018 = vunpack.c.h.b16 %v1546
        %v4019 = vunpack.c.l.b16 %v1547
        %v4020 = vunpack.c.h.b16 %v1547
        %v4021 = vunpack.c.l.b16 %v1548
        %v4022 = vunpack.c.h.b16 %v1548
        %v4023 = vunpack.c.l.b16 %v1549
        %v4024 = vunpack.c.h.b16 %v1549
        %v4025 = vunpack.c.l.b16 %v1550
        %v4026 = vunpack.c.h.b16 %v1550
        %v4027 = vunpack.c.l.b16 %v1551
        %v4028 = vunpack.c.h.b16 %v1551
        %v4029 = vunpack.c.l.b16 %v1552
        %v4030 = vunpack.c.h.b16 %v1552
        %v4031 = vunpack.c.l.b16 %v1553
        %v4032 = vunpack.c.h.b16 %v1553
        %v4033 = vunpack.c.l.b16 %v1554
        %v4034 = vunpack.c.h.b16 %v1554
        %v4035 = vunpack.c.l.b16 %v1555
        %v4036 = vunpack.c.h.b16 %v1555
        %v4037 = vunpack.c.l.b16 %v1556
        %v4038 = vunpack.c.h.b16 %v1556
        %v4039 = vunpack.c.l.b16 %v1557
        %v4040 = vunpack.c.h.b16 %v1557
        %v4041 = vunpack.c.l.b16 %v1558
        %v4042 = vunpack.c.h.b16 %v1558
        %v4043 = vunpack.c.l.b16 %v1559
        %v4044 = vunpack.c.h.b16 %v1559
        %v4045 = vunpack.c.l.b16 %v1560
        %v4046 = vunpack.c.h.b16 %v1560
        %v4047 = vunpack.c.l.b16 %v1561
        %v4048 = vunpack.c.h.b16 %v1561
        %v4049 = vunpack.c.l.b16 %v1562
        %v4050 = vunpack.c.h.b16 %v1562
        %v4051 = vunpack.c.l.b16 %v1563
        %v4052 = vunpack.c.h.b16 %v1563
        %v4053 = vunpack.c.l.b16 %v1564
        %v4054 = vunpack.c.h.b16 %v1564
        %v4055 = vunpack.c.l.b16 %v1565
        %v4056 = vunpack.c.h.b16 %v1565
        %v4057 = vunpack.c.l.b16 %v1566
        %v4058 = vunpack.c.h.b16 %v1566
        %v4059 = vunpack.c.l.b16 %v1567
        %v4060 = vunpack.c.h.b16 %v1567
        %v4061 = vunpack.c.l.b16 %v1568
        %v4062 = vunpack.c.h.b16 %v1568
        %v4063 = vunpack.c.l.b16 %v1569
        %v4064 = vunpack.c.h.b16 %v1569
        %v4065 = vunpack.c.l.b16 %v1570
        %v4066 = vunpack.c.h.b16 %v1570
        %v4067 = vunpack.c.l.b16 %v1571
        %v4068 = vunpack.c.h.b16 %v1571
        %v4069 = vunpack.c.l.b16 %v1572
        %v4070 = vunpack.c.h.b16 %v1572
        %v4071 = vunpack.c.l.b16 %v1573
        %v4072 = vunpack.c.h.b16 %v1573
        %v4073 = vunpack.c.l.b16 %v1574
        %v4074 = vunpack.c.h.b16 %v1574
        %v4075 = vunpack.c.l.b16 %v1575
        %v4076 = vunpack.c.h.b16 %v1575
        %v4077 = vunpack.c.l.b16 %v1576
        %v4078 = vunpack.c.h.b16 %v1576
        %v4079 = vunpack.c.l.b16 %v1577
        %v4080 = vunpack.c.h.b16 %v1577
        %v4081 = vunpack.c.l.b16 %v1578
        %v4082 = vunpack.c.h.b16 %v1578
        %v4083 = vunpack.c.l.b16 %v1579
        %v4084 = vunpack.c.h.b16 %v1579
        %v4085 = vunpack.c.l.b16 %v1580
        %v4086 = vunpack.c.h.b16 %v1580
        %v4087 = vunpack.c.l.b16 %v1581
        %v4088 = vunpack.c.h.b16 %v1581
        %v4089 = vunpack.c.l.b16 %v1582
        %v4090 = vunpack.c.h.b16 %v1582
        %v4091 = vunpack.c.l.b16 %v1583
        %v4092 = vunpack.c.h.b16 %v1583
        %v4093 = vunpack.c.l.b16 %v1584
        %v4094 = vunpack.c.h.b16 %v1584
        %v4095 = vunpack.c.l.b16 %v1585
        %v4096 = vunpack.c.h.b16 %v1585
        %v4097 = vunpack.c.l.b16 %v1586
        %v4098 = vunpack.c.h.b16 %v1586
        %v4099 = vunpack.c.l.b16 %v1587
        %v4100 = vunpack.c.h.b16 %v1587
        %v4101 = vunpack.c.l.b16 %v1588
        %v4102 = vunpack.c.h.b16 %v1588
        %v4103 = vunpack.c.l.b16 %v1589
        %v4104 = vunpack.c.h.b16 %v1589
        %v4105 = vunpack.c.l.b16 %v1590
        %v4106 = vunpack.c.h.b16 %v1590
        %v4107 = vunpack.c.l.b16 %v1591
        %v4108 = vunpack.c.h.b16 %v1591
        %v4109 = vunpack.c.l.b16 %v1592
        %v4110 = vunpack.c.h.b16 %v1592
        %v4111 = vunpack.c.l.b16 %v1593
        %v4112 = vunpack.c.h.b16 %v1593
        %v4113 = vunpack.c.l.b16 %v1594
        %v4114 = vunpack.c.h.b16 %v1594
        %v4115 = vunpack.c.l.b16 %v1595
        %v4116 = vunpack.c.h.b16 %v1595
        %v4117 = vunpack.c.l.b16 %v1596
        %v4118 = vunpack.c.h.b16 %v1596
        %v4119 = vunpack.c.l.b16 %v1597
        %v4120 = vunpack.c.h.b16 %v1597
        %v4121 = vunpack.c.l.b16 %v1598
        %v4122 = vunpack.c.h.b16 %v1598
        %v4123 = vunpack.c.l.b16 %v1599
        %v4124 = vunpack.c.h.b16 %v1599
        %v4125 = vunpack.c.l.b16 %v1600
        %v4126 = vunpack.c.h.b16 %v1600
        %v4127 = vunpack.c.l.b16 %v1601
        %v4128 = vunpack.c.h.b16 %v1601
        %v4129 = vunpack.c.l.b16 %v1602
        %v4130 = vunpack.c.h.b16 %v1602
        %v4131 = vunpack.c.l.b16 %v1603
        %v4132 = vunpack.c.h.b16 %v1603
        %v4133 = vunpack.c.l.b16 %v1604
        %v4134 = vunpack.c.h.b16 %v1604
        %v4135 = vunpack.c.l.b16 %v1605
        %v4136 = vunpack.c.h.b16 %v1605
        %v4137 = vunpack.c.l.b16 %v1606
        %v4138 = vunpack.c.h.b16 %v1606
        %v4139 = vunpack.c.l.b16 %v1607
        %v4140 = vunpack.c.h.b16 %v1607
        %v4141 = vunpack.c.l.b16 %v1608
        %v4142 = vunpack.c.h.b16 %v1608
        %v4143 = vunpack.c.l.b16 %v1609
        %v4144 = vunpack.c.h.b16 %v1609
        %v4145 = vunpack.c.l.b16 %v1610
        %v4146 = vunpack.c.h.b16 %v1610
        %v4147 = vunpack.c.l.b16 %v1611
        %v4148 = vunpack.c.h.b16 %v1611
        %v4149 = vunpack.c.l.b16 %v1612
        %v4150 = vunpack.c.h.b16 %v1612
        %v4151 = vunpack.c.l.b16 %v1613
        %v4152 = vunpack.c.h.b16 %v1613
        %v4153 = vunpack.c.l.b16 %v1614
        %v4154 = vunpack.c.h.b16 %v1614
        %v4155 = vunpack.c.l.b16 %v1615
        %v4156 = vunpack.c.h.b16 %v1615
        %v4157 = vunpack.c.l.b16 %v1616
        %v4158 = vunpack.c.h.b16 %v1616
        %v4159 = vunpack.c.l.b16 %v1617
        %v4160 = vunpack.c.h.b16 %v1617
        %v4161 = vunpack.c.l.b16 %v1618
        %v4162 = vunpack.c.h.b16 %v1618
        %v4163 = vunpack.c.l.b16 %v1619
        %v4164 = vunpack.c.h.b16 %v1619
        %v4165 = vunpack.c.l.b16 %v1620
        %v4166 = vunpack.c.h.b16 %v1620
        %v4167 = vunpack.c.l.b16 %v1621
        %v4168 = vunpack.c.h.b16 %v1621
        %v4169 = vunpack.c.l.b16 %v1622
        %v4170 = vunpack.c.h.b16 %v1622
        %v4171 = vunpack.c.l.b16 %v1623
        %v4172 = vunpack.c.h.b16 %v1623
        %v4173 = vunpack.c.l.b16 %v1624
        %v4174 = vunpack.c.h.b16 %v1624
        %v4175 = vunpack.c.l.b16 %v1625
        %v4176 = vunpack.c.h.b16 %v1625
        %v4177 = vunpack.c.l.b16 %v1626
        %v4178 = vunpack.c.h.b16 %v1626
        %v4179 = vunpack.c.l.b16 %v1627
        %v4180 = vunpack.c.h.b16 %v1627
        %v4181 = vunpack.c.l.b16 %v1628
        %v4182 = vunpack.c.h.b16 %v1628
        %v4183 = vunpack.c.l.b16 %v1629
        %v4184 = vunpack.c.h.b16 %v1629
        %v4185 = vunpack.c.l.b16 %v1630
        %v4186 = vunpack.c.h.b16 %v1630
        %v4187 = vunpack.c.l.b16 %v1631
        %v4188 = vunpack.c.h.b16 %v1631
        %v4189 = vunpack.c.l.b16 %v1632
        %v4190 = vunpack.c.h.b16 %v1632
        %v4191 = vunpack.c.l.b16 %v1633
        %v4192 = vunpack.c.h.b16 %v1633
        %v4193 = vunpack.c.l.b16 %v1634
        %v4194 = vunpack.c.h.b16 %v1634
        %v4195 = vunpack.c.l.b16 %v1635
        %v4196 = vunpack.c.h.b16 %v1635
        %v4197 = vunpack.c.l.b16 %v1636
        %v4198 = vunpack.c.h.b16 %v1636
        %v4199 = vunpack.c.l.b16 %v1637
        %v4200 = vunpack.c.h.b16 %v1637
        %v4201 = vunpack.c.l.b16 %v1638
        %v4202 = vunpack.c.h.b16 %v1638
        %v4203 = vunpack.c.l.b16 %v1639
        %v4204 = vunpack.c.h.b16 %v1639
        %v4205 = vunpack.c.l.b16 %v1640
        %v4206 = vunpack.c.h.b16 %v1640
        %v4207 = vunpack.c.l.b16 %v1641
        %v4208 = vunpack.c.h.b16 %v1641
        %v4209 = vunpack.c.l.b16 %v1642
        %v4210 = vunpack.c.h.b16 %v1642
        %v4211 = vunpack.c.l.b16 %v1643
        %v4212 = vunpack.c.h.b16 %v1643
        %v4213 = vunpack.c.l.b16 %v1644
        %v4214 = vunpack.c.h.b16 %v1644
        %v4215 = vunpack.c.l.b16 %v1645
        %v4216 = vunpack.c.h.b16 %v1645
        %v4217 = vunpack.c.l.b16 %v1646
        %v4218 = vunpack.c.h.b16 %v1646
        %v4219 = vunpack.c.l.b16 %v1647
        %v4220 = vunpack.c.h.b16 %v1647
        %v4221 = vunpack.c.l.b16 %v1648
        %v4222 = vunpack.c.h.b16 %v1648
        %v4223 = vunpack.c.l.b16 %v1649
        %v4224 = vunpack.c.h.b16 %v1649
        %v4225 = vunpack.c.l.b16 %v1650
        %v4226 = vunpack.c.h.b16 %v1650
        %v4227 = vunpack.c.l.b16 %v1651
        %v4228 = vunpack.c.h.b16 %v1651
        %v4229 = vunpack.c.l.b16 %v1652
        %v4230 = vunpack.c.h.b16 %v1652
        %v4231 = vunpack.c.l.b16 %v1653
        %v4232 = vunpack.c.h.b16 %v1653
        %v4233 = vunpack.c.l.b16 %v1654
        %v4234 = vunpack.c.h.b16 %v1654
        %v4235 = vunpack.c.l.b16 %v1655
        %v4236 = vunpack.c.h.b16 %v1655
        %v4237 = vunpack.c.l.b16 %v1656
        %v4238 = vunpack.c.h.b16 %v1656
        %v4239 = vunpack.c.l.b16 %v1657
        %v4240 = vunpack.c.h.b16 %v1657
        %v4241 = vunpack.c.l.b16 %v1658
        %v4242 = vunpack.c.h.b16 %v1658
        %v4243 = vunpack.c.l.b16 %v1659
        %v4244 = vunpack.c.h.b16 %v1659
        %v4245 = vunpack.c.l.b16 %v1660
        %v4246 = vunpack.c.h.b16 %v1660
        %v4247 = vunpack.c.l.b16 %v1661
        %v4248 = vunpack.c.h.b16 %v1661
        %v4249 = vunpack.c.l.b16 %v1662
        %v4250 = vunpack.c.h.b16 %v1662
        %v4251 = vunpack.c.l.b16 %v1663
        %v4252 = vunpack.c.h.b16 %v1663
        %v4253 = vunpack.c.l.b16 %v1664
        %v4254 = vunpack.c.h.b16 %v1664
        %v4255 = vunpack.c.l.b16 %v1665
        %v4256 = vunpack.c.h.b16 %v1665
        %v4257 = vunpack.c.l.b16 %v1666
        %v4258 = vunpack.c.h.b16 %v1666
        %v4259 = vunpack.c.l.b16 %v1667
        %v4260 = vunpack.c.h.b16 %v1667
        %v4261 = vunpack.c.l.b16 %v1668
        %v4262 = vunpack.c.h.b16 %v1668
        %v4263 = vunpack.c.l.b16 %v1669
        %v4264 = vunpack.c.h.b16 %v1669
        %v4265 = vunpack.c.l.b16 %v1670
        %v4266 = vunpack.c.h.b16 %v1670
        %v4267 = vunpack.c.l.b16 %v1671
        %v4268 = vunpack.c.h.b16 %v1671
        %v4269 = vunpack.c.l.b16 %v1672
        %v4270 = vunpack.c.h.b16 %v1672
        %v4271 = vunpack.c.l.b16 %v1673
        %v4272 = vunpack.c.h.b16 %v1673
        %v4273 = vunpack.c.l.b16 %v1674
        %v4274 = vunpack.c.h.b16 %v1674
        %v4275 = vunpack.c.l.b16 %v1675
        %v4276 = vunpack.c.h.b16 %v1675
        %v4277 = vunpack.c.l.b16 %v1676
        %v4278 = vunpack.c.h.b16 %v1676
        %v4279 = vunpack.c.l.b16 %v1677
        %v4280 = vunpack.c.h.b16 %v1677
        %v4281 = vunpack.c.l.b16 %v1678
        %v4282 = vunpack.c.h.b16 %v1678
        %v4283 = vunpack.c.l.b16 %v1679
        %v4284 = vunpack.c.h.b16 %v1679
        %v4285 = vunpack.c.l.b16 %v1680
        %v4286 = vunpack.c.h.b16 %v1680
        %v4287 = vunpack.c.l.b16 %v1681
        %v4288 = vunpack.c.h.b16 %v1681
        %v4289 = vunpack.c.l.b16 %v1682
        %v4290 = vunpack.c.h.b16 %v1682
        %v4291 = vunpack.c.l.b16 %v1683
        %v4292 = vunpack.c.h.b16 %v1683
        %v4293 = vunpack.c.l.b16 %v1684
        %v4294 = vunpack.c.h.b16 %v1684
        %v4295 = vunpack.c.l.b16 %v1685
        %v4296 = vunpack.c.h.b16 %v1685
        %v4297 = vunpack.c.l.b16 %v1686
        %v4298 = vunpack.c.h.b16 %v1686
        %v4299 = vunpack.c.l.b16 %v1687
        %v4300 = vunpack.c.h.b16 %v1687
        %v4301 = vunpack.c.l.b16 %v1688
        %v4302 = vunpack.c.h.b16 %v1688
        %v4303 = vunpack.c.l.b16 %v1689
        %v4304 = vunpack.c.h.b16 %v1689
        %v4305 = vunpack.c.l.b16 %v1690
        %v4306 = vunpack.c.h.b16 %v1690
        %v4307 = vunpack.c.l.b16 %v1691
        %v4308 = vunpack.c.h.b16 %v1691
        %v4309 = vunpack.c.l.b16 %v1692
        %v4310 = vunpack.c.h.b16 %v1692
        %v4311 = vunpack.c.l.b16 %v1693
        %v4312 = vunpack.c.h.b16 %v1693
        %v4313 = vunpack.c.l.b16 %v1694
        %v4314 = vunpack.c.h.b16 %v1694
        %v4315 = vunpack.c.l.b16 %v1695
        %v4316 = vunpack.c.h.b16 %v1695
        %v4317 = vunpack.c.l.b16 %v1696
        %v4318 = vunpack.c.h.b16 %v1696
        %v4319 = vunpack.c.l.b16 %v1697
        %v4320 = vunpack.c.h.b16 %v1697
        %v4321 = vunpack.c.l.b16 %v1698
        %v4322 = vunpack.c.h.b16 %v1698
        %v4323 = vunpack.c.l.b16 %v1699
        %v4324 = vunpack.c.h.b16 %v1699
        %v4325 = vunpack.c.l.b16 %v1700
        %v4326 = vunpack.c.h.b16 %v1700
        %v4327 = vunpack.c.l.b16 %v1701
        %v4328 = vunpack.c.h.b16 %v1701
        %v4329 = vunpack.c.l.b16 %v1702
        %v4330 = vunpack.c.h.b16 %v1702
        %v4331 = vunpack.c.l.b16 %v1703
        %v4332 = vunpack.c.h.b16 %v1703
        %v4333 = vunpack.c.l.b16 %v1704
        %v4334 = vunpack.c.h.b16 %v1704
        %v4335 = vunpack.c.l.b16 %v1705
        %v4336 = vunpack.c.h.b16 %v1705
        %v4337 = vunpack.c.l.b16 %v1706
        %v4338 = vunpack.c.h.b16 %v1706
        %v4339 = vunpack.c.l.b16 %v1707
        %v4340 = vunpack.c.h.b16 %v1707
        %v4341 = vunpack.c.l.b16 %v1708
        %v4342 = vunpack.c.h.b16 %v1708
        %v4343 = vunpack.c.l.b16 %v1709
        %v4344 = vunpack.c.h.b16 %v1709
        %v4345 = vunpack.c.l.b16 %v1710
        %v4346 = vunpack.c.h.b16 %v1710
        %v4347 = vunpack.c.l.b16 %v1711
        %v4348 = vunpack.c.h.b16 %v1711
        %v4349 = vunpack.c.l.b16 %v1712
        %v4350 = vunpack.c.h.b16 %v1712
        %v4351 = vunpack.c.l.b16 %v1713
        %v4352 = vunpack.c.h.b16 %v1713
        %v4353 = vunpack.c.l.b16 %v1714
        %v4354 = vunpack.c.h.b16 %v1714
        %v4355 = vunpack.c.l.b16 %v1715
        %v4356 = vunpack.c.h.b16 %v1715
        %v4357 = vunpack.c.l.b16 %v1716
        %v4358 = vunpack.c.h.b16 %v1716
        %v4359 = vunpack.c.l.b16 %v1717
        %v4360 = vunpack.c.h.b16 %v1717
        %v4361 = vunpack.c.l.b16 %v1718
        %v4362 = vunpack.c.h.b16 %v1718
        %v4363 = vunpack.c.l.b16 %v1719
        %v4364 = vunpack.c.h.b16 %v1719
        %v4365 = vunpack.c.l.b16 %v1720
        %v4366 = vunpack.c.h.b16 %v1720
        %v4367 = vunpack.c.l.b16 %v1721
        %v4368 = vunpack.c.h.b16 %v1721
        %v4369 = vunpack.c.l.b16 %v1722
        %v4370 = vunpack.c.h.b16 %v1722
        %v4371 = vunpack.c.l.b16 %v1723
        %v4372 = vunpack.c.h.b16 %v1723
        %v4373 = vunpack.c.l.b16 %v1724
        %v4374 = vunpack.c.h.b16 %v1724
        %v4375 = vunpack.c.l.b16 %v1725
        %v4376 = vunpack.c.h.b16 %v1725
        %v4377 = vunpack.c.l.b16 %v1726
        %v4378 = vunpack.c.h.b16 %v1726
        %v4379 = vunpack.c.l.b16 %v1727
        %v4380 = vunpack.c.h.b16 %v1727
        %v4381 = vunpack.c.l.b16 %v1728
        %v4382 = vunpack.c.h.b16 %v1728
        %v4383 = vunpack.c.l.b16 %v1729
        %v4384 = vunpack.c.h.b16 %v1729
        %v4385 = vunpack.c.l.b16 %v1730
        %v4386 = vunpack.c.h.b16 %v1730
        %v4387 = vunpack.c.l.b16 %v1731
        %v4388 = vunpack.c.h.b16 %v1731
        %v4389 = vunpack.c.l.b16 %v1732
        %v4390 = vunpack.c.h.b16 %v1732
        %v4391 = vunpack.c.l.b16 %v1733
        %v4392 = vunpack.c.h.b16 %v1733
        %v4393 = vunpack.c.l.b16 %v1734
        %v4394 = vunpack.c.h.b16 %v1734
        %v4395 = vunpack.c.l.b16 %v1735
        %v4396 = vunpack.c.h.b16 %v1735
        %v4397 = vunpack.c.l.b16 %v1736
        %v4398 = vunpack.c.h.b16 %v1736
        %v4399 = vunpack.c.l.b16 %v1737
        %v4400 = vunpack.c.h.b16 %v1737
        %v4401 = vunpack.c.l.b16 %v1738
        %v4402 = vunpack.c.h.b16 %v1738
        %v4403 = vunpack.c.l.b16 %v1739
        %v4404 = vunpack.c.h.b16 %v1739
        %v4405 = vunpack.c.l.b16 %v1740
        %v4406 = vunpack.c.h.b16 %v1740
        %v4407 = vunpack.c.l.b16 %v1741
        %v4408 = vunpack.c.h.b16 %v1741
        %v4409 = vunpack.c.l.b16 %v1742
        %v4410 = vunpack.c.h.b16 %v1742
        %v4411 = vunpack.c.l.b16 %v1743
        %v4412 = vunpack.c.h.b16 %v1743
        %v4413 = vunpack.c.l.b16 %v1744
        %v4414 = vunpack.c.h.b16 %v1744
        %v4415 = vunpack.c.l.b16 %v1745
        %v4416 = vunpack.c.h.b16 %v1745
        %v4417 = vunpack.c.l.b16 %v1746
        %v4418 = vunpack.c.h.b16 %v1746
        %v4419 = vunpack.c.l.b16 %v1747
        %v4420 = vunpack.c.h.b16 %v1747
        %v4421 = vunpack.c.l.b16 %v1748
        %v4422 = vunpack.c.h.b16 %v1748
        %v4423 = vunpack.c.l.b16 %v1749
        %v4424 = vunpack.c.h.b16 %v1749
        %v4425 = vunpack.c.l.b16 %v1750
        %v4426 = vunpack.c.h.b16 %v1750
        %v4427 = vunpack.c.l.b16 %v1751
        %v4428 = vunpack.c.h.b16 %v1751
        %v4429 = vunpack.c.l.b16 %v1752
        %v4430 = vunpack.c.h.b16 %v1752
        %v4431 = vunpack.c.l.b16 %v1753
        %v4432 = vunpack.c.h.b16 %v1753
        %v4433 = vunpack.c.l.b16 %v1754
        %v4434 = vunpack.c.h.b16 %v1754
        %v4435 = vunpack.c.l.b16 %v1755
        %v4436 = vunpack.c.h.b16 %v1755
        %v4437 = vunpack.c.l.b16 %v1756
        %v4438 = vunpack.c.h.b16 %v1756
        %v4439 = vunpack.c.l.b16 %v1757
        %v4440 = vunpack.c.h.b16 %v1757
        %v4441 = vunpack.c.l.b16 %v1758
        %v4442 = vunpack.c.h.b16 %v1758
        %v4443 = vunpack.c.l.b16 %v1759
        %v4444 = vunpack.c.h.b16 %v1759
        %v4445 = vunpack.c.l.b16 %v1760
        %v4446 = vunpack.c.h.b16 %v1760
        %v4447 = vunpack.c.l.b16 %v1761
        %v4448 = vunpack.c.h.b16 %v1761
        %v4449 = vunpack.c.l.b16 %v1762
        %v4450 = vunpack.c.h.b16 %v1762
        %v4451 = vunpack.c.l.b16 %v1763
        %v4452 = vunpack.c.h.b16 %v1763
        %v4453 = vunpack.c.l.b16 %v1764
        %v4454 = vunpack.c.h.b16 %v1764
        %v4455 = vunpack.c.l.b16 %v1765
        %v4456 = vunpack.c.h.b16 %v1765
        %v4457 = vunpack.c.l.b16 %v1766
        %v4458 = vunpack.c.h.b16 %v1766
        %v4459 = vunpack.c.l.b16 %v1767
        %v4460 = vunpack.c.h.b16 %v1767
        %v4461 = vunpack.c.l.b16 %v1768
        %v4462 = vunpack.c.h.b16 %v1768
        %v4463 = vunpack.c.l.b16 %v1769
        %v4464 = vunpack.c.h.b16 %v1769
        %v4465 = vunpack.c.l.b16 %v1770
        %v4466 = vunpack.c.h.b16 %v1770
        %v4467 = vunpack.c.l.b16 %v1771
        %v4468 = vunpack.c.h.b16 %v1771
        %v4469 = vunpack.c.l.b16 %v1772
        %v4470 = vunpack.c.h.b16 %v1772
        %v4471 = vunpack.c.l.b16 %v1773
        %v4472 = vunpack.c.h.b16 %v1773
        %v4473 = vunpack.c.l.b16 %v1774
        %v4474 = vunpack.c.h.b16 %v1774
        %v4475 = vunpack.c.l.b16 %v1775
        %v4476 = vunpack.c.h.b16 %v1775
        %v4477 = vunpack.c.l.b16 %v1776
        %v4478 = vunpack.c.h.b16 %v1776
        %v4479 = vunpack.c.l.b16 %v1777
        %v4480 = vunpack.c.h.b16 %v1777
        %v4481 = vunpack.c.l.b16 %v1778
        %v4482 = vunpack.c.h.b16 %v1778
        %v4483 = vunpack.c.l.b16 %v1779
        %v4484 = vunpack.c.h.b16 %v1779
        %v4485 = vunpack.c.l.b16 %v1780
        %v4486 = vunpack.c.h.b16 %v1780
        %v4487 = vunpack.c.l.b16 %v1781
        %v4488 = vunpack.c.h.b16 %v1781
        %v4489 = vunpack.c.l.b16 %v1782
        %v4490 = vunpack.c.h.b16 %v1782
        %v4491 = vunpack.c.l.b16 %v1783
        %v4492 = vunpack.c.h.b16 %v1783
        %v4493 = vunpack.c.l.b16 %v1784
        %v4494 = vunpack.c.h.b16 %v1784
        %v4495 = vunpack.c.l.b16 %v1785
        %v4496 = vunpack.c.h.b16 %v1785
        %v4497 = vunpack.c.l.b16 %v1786
        %v4498 = vunpack.c.h.b16 %v1786
        %v4499 = vunpack.c.l.b16 %v1787
        %v4500 = vunpack.c.h.b16 %v1787
        %v4501 = vunpack.c.l.b16 %v1788
        %v4502 = vunpack.c.h.b16 %v1788
        %v4503 = vunpack.c.l.b16 %v1789
        %v4504 = vunpack.c.h.b16 %v1789
        %v4505 = vunpack.c.l.b16 %v1790
        %v4506 = vunpack.c.h.b16 %v1790
        %v4507 = vunpack.c.l.b16 %v1791
        %v4508 = vunpack.c.h.b16 %v1791
        %v4509 = vunpack.c.l.b16 %v1792
        %v4510 = vunpack.c.h.b16 %v1792
        %v4511 = vunpack.c.l.b16 %v1793
        %v4512 = vunpack.c.h.b16 %v1793
        %v4513 = vunpack.c.l.b16 %v1794
        %v4514 = vunpack.c.h.b16 %v1794
        %v4515 = vunpack.c.l.b16 %v1795
        %v4516 = vunpack.c.h.b16 %v1795
        %v4517 = vunpack.c.l.b16 %v1796
        %v4518 = vunpack.c.h.b16 %v1796
        %v4519 = vunpack.c.l.b16 %v1797
        %v4520 = vunpack.c.h.b16 %v1797
        %v4521 = vunpack.c.l.b16 %v1798
        %v4522 = vunpack.c.h.b16 %v1798
        %v4523 = vunpack.c.l.b16 %v1799
        %v4524 = vunpack.c.h.b16 %v1799
        %v4525 = vunpack.c.l.b16 %v1800
        %v4526 = vunpack.c.h.b16 %v1800
        %v4527 = vunpack.c.l.b16 %v1801
        %v4528 = vunpack.c.h.b16 %v1801
        %v4529 = vunpack.c.l.b16 %v1802
        %v4530 = vunpack.c.h.b16 %v1802
        %v4531 = vunpack.c.l.b16 %v1803
        %v4532 = vunpack.c.h.b16 %v1803
        %v4533 = vunpack.c.l.b16 %v1804
        %v4534 = vunpack.c.h.b16 %v1804
        %v4535 = vunpack.c.l.b16 %v1805
        %v4536 = vunpack.c.h.b16 %v1805
        %v4537 = vunpack.c.l.b16 %v1806
        %v4538 = vunpack.c.h.b16 %v1806
        %v4539 = vunpack.c.l.b16 %v1807
        %v4540 = vunpack.c.h.b16 %v1807
        %v4541 = vunpack.c.l.b16 %v1808
        %v4542 = vunpack.c.h.b16 %v1808
        %v4543 = vunpack.c.l.b16 %v1809
        %v4544 = vunpack.c.h.b16 %v1809
        %v4545 = vunpack.c.l.b16 %v1810
        %v4546 = vunpack.c.h.b16 %v1810
        %v4547 = vunpack.c.l.b16 %v1811
        %v4548 = vunpack.c.h.b16 %v1811
        %v4549 = vunpack.c.l.b16 %v1812
        %v4550 = vunpack.c.h.b16 %v1812
        %v4551 = vunpack.c.l.b16 %v1813
        %v4552 = vunpack.c.h.b16 %v1813
        %v4553 = vunpack.c.l.b16 %v1814
        %v4554 = vunpack.c.h.b16 %v1814
        %v4555 = vunpack.c.l.b16 %v1815
        %v4556 = vunpack.c.h.b16 %v1815
        %v4557 = vunpack.c.l.b16 %v1816
        %v4558 = vunpack.c.h.b16 %v1816
        %v4559 = vunpack.c.l.b16 %v1817
        %v4560 = vunpack.c.h.b16 %v1817
        %v4561 = vunpack.c.l.b16 %v1818
        %v4562 = vunpack.c.h.b16 %v1818
        %v4563 = vunpack.c.l.b16 %v1819
        %v4564 = vunpack.c.h.b16 %v1819
        %v4565 = vunpack.c.l.b16 %v1820
        %v4566 = vunpack.c.h.b16 %v1820
        %v4567 = vunpack.c.l.b16 %v1821
        %v4568 = vunpack.c.h.b16 %v1821
        %v4569 = vunpack.c.l.b16 %v1822
        %v4570 = vunpack.c.h.b16 %v1822
        %v4571 = vunpack.c.l.b16 %v1823
        %v4572 = vunpack.c.h.b16 %v1823
        %v4573 = vunpack.c.l.b16 %v1824
        %v4574 = vunpack.c.h.b16 %v1824
        %v4575 = vunpack.c.l.b16 %v1825
        %v4576 = vunpack.c.h.b16 %v1825
        %v4577 = vunpack.c.l.b16 %v1826
        %v4578 = vunpack.c.h.b16 %v1826
        %v4579 = vunpack.c.l.b16 %v1827
        %v4580 = vunpack.c.h.b16 %v1827
        %v4581 = vunpack.c.l.b16 %v1828
        %v4582 = vunpack.c.h.b16 %v1828
        %v4583 = vunpack.c.l.b16 %v1829
        %v4584 = vunpack.c.h.b16 %v1829
        %v4585 = vunpack.c.l.b16 %v1830
        %v4586 = vunpack.c.h.b16 %v1830
        %v4587 = vunpack.c.l.b16 %v1831
        %v4588 = vunpack.c.h.b16 %v1831
        %v4589 = vunpack.c.l.b16 %v1832
        %v4590 = vunpack.c.h.b16 %v1832
        %v4591 = vunpack.c.l.b16 %v1833
        %v4592 = vunpack.c.h.b16 %v1833
        %v4593 = vunpack.c.l.b16 %v1834
        %v4594 = vunpack.c.h.b16 %v1834
        %v4595 = vunpack.c.l.b16 %v1835
        %v4596 = vunpack.c.h.b16 %v1835
        %v4597 = vunpack.c.l.b16 %v1836
        %v4598 = vunpack.c.h.b16 %v1836
        %v4599 = vunpack.c.l.b16 %v1837
        %v4600 = vunpack.c.h.b16 %v1837
        %v4601 = vunpack.c.l.b16 %v1838
        %v4602 = vunpack.c.h.b16 %v1838
        %v4603 = vunpack.c.l.b16 %v1839
        %v4604 = vunpack.c.h.b16 %v1839
        %v4605 = vunpack.c.l.b16 %v1840
        %v4606 = vunpack.c.h.b16 %v1840
        %v4607 = vunpack.c.l.b16 %v1841
        %v4608 = vunpack.c.h.b16 %v1841
        %v4609 = vunpack.c.l.b16 %v1842
        %v4610 = vunpack.c.h.b16 %v1842
        %v4611 = vunpack.c.l.b16 %v1843
        %v4612 = vunpack.c.h.b16 %v1843
        %v4613 = vunpack.c.l.b16 %v1844
        %v4614 = vunpack.c.h.b16 %v1844
        %v4615 = vunpack.c.l.b16 %v1845
        %v4616 = vunpack.c.h.b16 %v1845
        %v4617 = vunpack.c.l.b16 %v1846
        %v4618 = vunpack.c.h.b16 %v1846
        %v4619 = vunpack.c.l.b16 %v1847
        %v4620 = vunpack.c.h.b16 %v1847
        %v4621 = vunpack.c.l.b16 %v1848
        %v4622 = vunpack.c.h.b16 %v1848
        %v4623 = vunpack.c.l.b16 %v1849
        %v4624 = vunpack.c.h.b16 %v1849
        %v4625 = vunpack.c.l.b16 %v1850
        %v4626 = vunpack.c.h.b16 %v1850
        %v4627 = vunpack.c.l.b16 %v1851
        %v4628 = vunpack.c.h.b16 %v1851
        %v4629 = vunpack.c.l.b16 %v1852
        %v4630 = vunpack.c.h.b16 %v1852
        %v4631 = vunpack.c.l.b16 %v1853
        %v4632 = vunpack.c.h.b16 %v1853
        %v4633 = vunpack.c.l.b16 %v1854
        %v4634 = vunpack.c.h.b16 %v1854
        %v4635 = vunpack.c.l.b16 %v1855
        %v4636 = vunpack.c.h.b16 %v1855
        %v4637 = vunpack.c.l.b16 %v1856
        %v4638 = vunpack.c.h.b16 %v1856
        %v4639 = vunpack.c.l.b16 %v1857
        %v4640 = vunpack.c.h.b16 %v1857
        %v4641 = vunpack.c.l.b16 %v1858
        %v4642 = vunpack.c.h.b16 %v1858
        %v4643 = vunpack.c.l.b16 %v1859
        %v4644 = vunpack.c.h.b16 %v1859
        %v4645 = vunpack.c.l.b16 %v1860
        %v4646 = vunpack.c.h.b16 %v1860
        %v4647 = vunpack.c.l.b16 %v1861
        %v4648 = vunpack.c.h.b16 %v1861
        %v4649 = vunpack.c.l.b16 %v1862
        %v4650 = vunpack.c.h.b16 %v1862
        %v4651 = vunpack.c.l.b16 %v1863
        %v4652 = vunpack.c.h.b16 %v1863
        %v4653 = vunpack.c.l.b16 %v1864
        %v4654 = vunpack.c.h.b16 %v1864
        %v4655 = vunpack.c.l.b16 %v1865
        %v4656 = vunpack.c.h.b16 %v1865
        %v4657 = vunpack.c.l.b16 %v1866
        %v4658 = vunpack.c.h.b16 %v1866
        %v4659 = vunpack.c.l.b16 %v1867
        %v4660 = vunpack.c.h.b16 %v1867
        %v4661 = vunpack.c.l.b16 %v1868
        %v4662 = vunpack.c.h.b16 %v1868
        %v4663 = vunpack.c.l.b16 %v1869
        %v4664 = vunpack.c.h.b16 %v1869
        %v4665 = vunpack.c.l.b16 %v1870
        %v4666 = vunpack.c.h.b16 %v1870
        %v4667 = vunpack.c.l.b16 %v1871
        %v4668 = vunpack.c.h.b16 %v1871
        %v4669 = vunpack.c.l.b16 %v1872
        %v4670 = vunpack.c.h.b16 %v1872
        %v4671 = vunpack.c.l.b16 %v1873
        %v4672 = vunpack.c.h.b16 %v1873
        %v4673 = vunpack.c.l.b16 %v1874
        %v4674 = vunpack.c.h.b16 %v1874
        %v4675 = vunpack.c.l.b16 %v1875
        %v4676 = vunpack.c.h.b16 %v1875
        %v4677 = vunpack.c.l.b16 %v1876
        %v4678 = vunpack.c.h.b16 %v1876
        %v4679 = vunpack.c.l.b16 %v1877
        %v4680 = vunpack.c.h.b16 %v1877
        %v4681 = vunpack.c.l.b16 %v1878
        %v4682 = vunpack.c.h.b16 %v1878
        %v4683 = vunpack.c.l.b16 %v1879
        %v4684 = vunpack.c.h.b16 %v1879
        %v4685 = vunpack.c.l.b16 %v1880
        %v4686 = vunpack.c.h.b16 %v1880
        %v4687 = vunpack.c.l.b16 %v1881
        %v4688 = vunpack.c.h.b16 %v1881
        %v4689 = vunpack.c.l.b16 %v1882
        %v4690 = vunpack.c.h.b16 %v1882
        %v4691 = vunpack.c.l.b16 %v1883
        %v4692 = vunpack.c.h.b16 %v1883
        %v4693 = vunpack.c.l.b16 %v1884
        %v4694 = vunpack.c.h.b16 %v1884
        %v4695 = vunpack.c.l.b16 %v1885
        %v4696 = vunpack.c.h.b16 %v1885
        %v4697 = vunpack.c.l.b16 %v1886
        %v4698 = vunpack.c.h.b16 %v1886
        %v4699 = vunpack.c.l.b16 %v1887
        %v4700 = vunpack.c.h.b16 %v1887
        %v4701 = vunpack.c.l.b16 %v1888
        %v4702 = vunpack.c.h.b16 %v1888
        %v4703 = vunpack.c.l.b16 %v1889
        %v4704 = vunpack.c.h.b16 %v1889
        %v4705 = vunpack.c.l.b16 %v1890
        %v4706 = vunpack.c.h.b16 %v1890
        %v4707 = vunpack.c.l.b16 %v1891
        %v4708 = vunpack.c.h.b16 %v1891
        %v4709 = vunpack.c.l.b16 %v1892
        %v4710 = vunpack.c.h.b16 %v1892
        %v4711 = vunpack.c.l.b16 %v1893
        %v4712 = vunpack.c.h.b16 %v1893
        %v4713 = vunpack.c.l.b16 %v1894
        %v4714 = vunpack.c.h.b16 %v1894
        %v4715 = vunpack.c.l.b16 %v1895
        %v4716 = vunpack.c.h.b16 %v1895
        %v4717 = vunpack.c.l.b16 %v1896
        %v4718 = vunpack.c.h.b16 %v1896
        %v4719 = vunpack.c.l.b16 %v1897
        %v4720 = vunpack.c.h.b16 %v1897
        %v4721 = vunpack.c.l.b16 %v1898
        %v4722 = vunpack.c.h.b16 %v1898
        %v4723 = vunpack.c.l.b16 %v1899
        %v4724 = vunpack.c.h.b16 %v1899
        %v4725 = vunpack.c.l.b16 %v1900
        %v4726 = vunpack.c.h.b16 %v1900
        %v4727 = vunpack.c.l.b16 %v1901
        %v4728 = vunpack.c.h.b16 %v1901
        %v4729 = vunpack.c.l.b16 %v1902
        %v4730 = vunpack.c.h.b16 %v1902
        %v4731 = vunpack.c.l.b16 %v1903
        %v4732 = vunpack.c.h.b16 %v1903
        %v4733 = vunpack.c.l.b16 %v1904
        %v4734 = vunpack.c.h.b16 %v1904
        %v4735 = vunpack.c.l.b16 %v1905
        %v4736 = vunpack.c.h.b16 %v1905
        %v4737 = vunpack.c.l.b16 %v1906
        %v4738 = vunpack.c.h.b16 %v1906
        %v4739 = vunpack.c.l.b16 %v1907
        %v4740 = vunpack.c.h.b16 %v1907
        %v4741 = vunpack.c.l.b16 %v1908
        %v4742 = vunpack.c.h.b16 %v1908
        %v4743 = vunpack.c.l.b16 %v1909
        %v4744 = vunpack.c.h.b16 %v1909
        %v4745 = vunpack.c.l.b16 %v1910
        %v4746 = vunpack.c.h.b16 %v1910
        %v4747 = vunpack.c.l.b16 %v1911
        %v4748 = vunpack.c.h.b16 %v1911
        %v4749 = vunpack.c.l.b16 %v1912
        %v4750 = vunpack.c.h.b16 %v1912
        %v4751 = vunpack.c.l.b16 %v1913
        %v4752 = vunpack.c.h.b16 %v1913
        %v4753 = vunpack.c.l.b16 %v1914
        %v4754 = vunpack.c.h.b16 %v1914
        %v4755 = vunpack.c.l.b16 %v1915
        %v4756 = vunpack.c.h.b16 %v1915
        %v4757 = vunpack.c.l.b16 %v1916
        %v4758 = vunpack.c.h.b16 %v1916
        %v4759 = vunpack.c.l.b16 %v1917
        %v4760 = vunpack.c.h.b16 %v1917
        %v4761 = vunpack.c.l.b16 %v1918
        %v4762 = vunpack.c.h.b16 %v1918
        %v4763 = vunpack.c.l.b16 %v1919
        %v4764 = vunpack.c.h.b16 %v1919
        %v4765 = vunpack.c.l.b16 %v1920
        %v4766 = vunpack.c.h.b16 %v1920
        %v4767 = vunpack.c.l.b16 %v1921
        %v4768 = vunpack.c.h.b16 %v1921
        %v4769 = vunpack.c.l.b16 %v1922
        %v4770 = vunpack.c.h.b16 %v1922
        %v4771 = vunpack.c.l.b16 %v1923
        %v4772 = vunpack.c.h.b16 %v1923
        %v4773 = vunpack.c.l.b16 %v1924
        %v4774 = vunpack.c.h.b16 %v1924
        %v4775 = vunpack.c.l.b16 %v1925
        %v4776 = vunpack.c.h.b16 %v1925
        %v4777 = vunpack.c.l.b16 %v1926
        %v4778 = vunpack.c.h.b16 %v1926
        %v4779 = vunpack.c.l.b16 %v1927
        %v4780 = vunpack.c.h.b16 %v1927
        %v4781 = vunpack.c.l.b16 %v1928
        %v4782 = vunpack.c.h.b16 %v1928
        %v4783 = vunpack.c.l.b16 %v1929
        %v4784 = vunpack.c.h.b16 %v1929
        %v4785 = vunpack.c.l.b16 %v1930
        %v4786 = vunpack.c.h.b16 %v1930
        %v4787 = vunpack.c.l.b16 %v1931
        %v4788 = vunpack.c.h.b16 %v1931
        %v4789 = vunpack.c.l.b16 %v1932
        %v4790 = vunpack.c.h.b16 %v1932
        %v4791 = vunpack.c.l.b16 %v1933
        %v4792 = vunpack.c.h.b16 %v1933
        %v4793 = vunpack.c.l.b16 %v1934
        %v4794 = vunpack.c.h.b16 %v1934
        %v4795 = vunpack.c.l.b16 %v1935
        %v4796 = vunpack.c.h.b16 %v1935
        %v4797 = vunpack.c.l.b16 %v1936
        %v4798 = vunpack.c.h.b16 %v1936
        %v4799 = vunpack.c.l.b16 %v1937
        %v4800 = vunpack.c.h.b16 %v1937
        %v4801 = vunpack.c.l.b16 %v1938
        %v4802 = vunpack.c.h.b16 %v1938
        %v4803 = vunpack.c.l.b16 %v1939
        %v4804 = vunpack.c.h.b16 %v1939
        %v4805 = vunpack.c.l.b16 %v1940
        %v4806 = vunpack.c.h.b16 %v1940
        %v4807 = vunpack.c.l.b16 %v1941
        %v4808 = vunpack.c.h.b16 %v1941
        %v4809 = vunpack.c.l.b16 %v1942
        %v4810 = vunpack.c.h.b16 %v1942
        %v4811 = vunpack.c.l.b16 %v1943
        %v4812 = vunpack.c.h.b16 %v1943
        %v4813 = vunpack.c.l.b16 %v1944
        %v4814 = vunpack.c.h.b16 %v1944
        %v4815 = vunpack.c.l.b16 %v1945
        %v4816 = vunpack.c.h.b16 %v1945
        %v4817 = vunpack.c.l.b16 %v1946
        %v4818 = vunpack.c.h.b16 %v1946
        %v4819 = vunpack.c.l.b16 %v1947
        %v4820 = vunpack.c.h.b16 %v1947
        %v4821 = vunpack.c.l.b16 %v1948
        %v4822 = vunpack.c.h.b16 %v1948
        %v4823 = vunpack.c.l.b16 %v1949
        %v4824 = vunpack.c.h.b16 %v1949
        %v4825 = vunpack.c.l.b16 %v1950
        %v4826 = vunpack.c.h.b16 %v1950
        %v4827 = vunpack.c.l.b16 %v1951
        %v4828 = vunpack.c.h.b16 %v1951
        %v4829 = vunpack.c.l.b16 %v1952
        %v4830 = vunpack.c.h.b16 %v1952
        %v4831 = vunpack.c.l.b16 %v1953
        %v4832 = vunpack.c.h.b16 %v1953
        %v4833 = vunpack.c.l.b16 %v1954
        %v4834 = vunpack.c.h.b16 %v1954
        %v4835 = vunpack.c.l.b16 %v1955
        %v4836 = vunpack.c.h.b16 %v1955
        %v4837 = vunpack.c.l.b16 %v1956
        %v4838 = vunpack.c.h.b16 %v1956
        %v4839 = vunpack.c.l.b16 %v1957
        %v4840 = vunpack.c.h.b16 %v1957
        %v4841 = vunpack.c.l.b16 %v1958
        %v4842 = vunpack.c.h.b16 %v1958
        %v4843 = vunpack.c.l.b16 %v1959
        %v4844 = vunpack.c.h.b16 %v1959
        %v4845 = vunpack.c.l.b16 %v1960
        %v4846 = vunpack.c.h.b16 %v1960
        %v4847 = vunpack.c.l.b16 %v1961
        %v4848 = vunpack.c.h.b16 %v1961
        %v4849 = vunpack.c.l.b16 %v1962
        %v4850 = vunpack.c.h.b16 %v1962
        %v4851 = vunpack.c.l.b16 %v1963
        %v4852 = vunpack.c.h.b16 %v1963
        %v4853 = vunpack.c.l.b16 %v1964
        %v4854 = vunpack.c.h.b16 %v1964
        %v4855 = vunpack.c.l.b16 %v1965
        %v4856 = vunpack.c.h.b16 %v1965
        %v4857 = vunpack.c.l.b16 %v1966
        %v4858 = vunpack.c.h.b16 %v1966
        %v4859 = vunpack.c.l.b16 %v1967
        %v4860 = vunpack.c.h.b16 %v1967
        %v4861 = vunpack.c.l.b16 %v1968
        %v4862 = vunpack.c.h.b16 %v1968
        %v4863 = vunpack.c.l.b16 %v1969
        %v4864 = vunpack.c.h.b16 %v1969
        %v4865 = vunpack.c.l.b16 %v1970
        %v4866 = vunpack.c.h.b16 %v1970
        %v4867 = vunpack.c.l.b16 %v1971
        %v4868 = vunpack.c.h.b16 %v1971
        %v4869 = vunpack.c.l.b16 %v1972
        %v4870 = vunpack.c.h.b16 %v1972
        %v4871 = vunpack.c.l.b16 %v1973
        %v4872 = vunpack.c.h.b16 %v1973
        %v4873 = vunpack.c.l.b16 %v1974
        %v4874 = vunpack.c.h.b16 %v1974
        %v4875 = vunpack.c.l.b16 %v1975
        %v4876 = vunpack.c.h.b16 %v1975
        %v4877 = vunpack.c.l.b16 %v1976
        %v4878 = vunpack.c.h.b16 %v1976
        %v4879 = vunpack.c.l.b16 %v1977
        %v4880 = vunpack.c.h.b16 %v1977
        %v4881 = vunpack.c.l.b16 %v1978
        %v4882 = vunpack.c.h.b16 %v1978
        %v4883 = vunpack.c.l.b16 %v1979
        %v4884 = vunpack.c.h.b16 %v1979
        %v4885 = vunpack.c.l.b16 %v1980
        %v4886 = vunpack.c.h.b16 %v1980
        %v4887 = vunpack.c.l.b16 %v1981
        %v4888 = vunpack.c.h.b16 %v1981
        %v4889 = vunpack.c.l.b16 %v1982
        %v4890 = vunpack.c.h.b16 %v1982
        %v4891 = vunpack.c.l.b16 %v1983
        %v4892 = vunpack.c.h.b16 %v1983
        %v4893 = vunpack.c.l.b16 %v1984
        %v4894 = vunpack.c.h.b16 %v1984
        %v4895 = vunpack.c.l.b16 %v1985
        %v4896 = vunpack.c.h.b16 %v1985
        %v4897 = vunpack.c.l.b16 %v1986
        %v4898 = vunpack.c.h.b16 %v1986
        %v4899 = vunpack.c.l.b16 %v1987
        %v4900 = vunpack.c.h.b16 %v1987
        %v4901 = vunpack.c.l.b16 %v1988
        %v4902 = vunpack.c.h.b16 %v1988
        %v4903 = vunpack.c.l.b16 %v1989
        %v4904 = vunpack.c.h.b16 %v1989
        %v4905 = vunpack.c.l.b16 %v1990
        %v4906 = vunpack.c.h.b16 %v1990
        %v4907 = vunpack.c.l.b16 %v1991
        %v4908 = vunpack.c.h.b16 %v1991
        %v4909 = vunpack.c.l.b16 %v1992
        %v4910 = vunpack.c.h.b16 %v1992
        %v4911 = vunpack.c.l.b16 %v1993
        %v4912 = vunpack.c.h.b16 %v1993
        %v4913 = vunpack.c.l.b16 %v1994
        %v4914 = vunpack.c.h.b16 %v1994
        %v4915 = vunpack.c.l.b16 %v1995
        %v4916 = vunpack.c.h.b16 %v1995
        %v4917 = vunpack.c.l.b16 %v1996
        %v4918 = vunpack.c.h.b16 %v1996
        %v4919 = vunpack.c.l.b16 %v1997
        %v4920 = vunpack.c.h.b16 %v1997
        %v4921 = vunpack.c.l.b16 %v1998
        %v4922 = vunpack.c.h.b16 %v1998
        %v4923 = vunpack.c.l.b16 %v1999
        %v4924 = vunpack.c.h.b16 %v1999
        %v4925 = vunpack.c.l.b16 %v2000
        %v4926 = vunpack.c.h.b16 %v2000
        %v4927 = vunpack.c.l.b16 %v2001
        %v4928 = vunpack.c.h.b16 %v2001
        %v4929 = vunpack.c.l.b16 %v2002
        %v4930 = vunpack.c.h.b16 %v2002
        %v4931 = vunpack.c.l.b16 %v2003
        %v4932 = vunpack.c.h.b16 %v2003
        %v4933 = vunpack.c.l.b16 %v2004
        %v4934 = vunpack.c.h.b16 %v2004
        %v4935 = vunpack.c.l.b16 %v2005
        %v4936 = vunpack.c.h.b16 %v2005
        %v4937 = vunpack.c.l.b16 %v2006
        %v4938 = vunpack.c.h.b16 %v2006
        %v4939 = vunpack.c.l.b16 %v2007
        %v4940 = vunpack.c.h.b16 %v2007
        %v4941 = vunpack.c.l.b16 %v2008
        %v4942 = vunpack.c.h.b16 %v2008
        %v4943 = vunpack.c.l.b16 %v2009
        %v4944 = vunpack.c.h.b16 %v2009
        %v4945 = vunpack.c.l.b16 %v2010
        %v4946 = vunpack.c.h.b16 %v2010
        %v4947 = vunpack.c.l.b16 %v2011
        %v4948 = vunpack.c.h.b16 %v2011
        %v4949 = vunpack.c.l.b16 %v2012
        %v4950 = vunpack.c.h.b16 %v2012
        %v4951 = vunpack.c.l.b16 %v2013
        %v4952 = vunpack.c.h.b16 %v2013
        %v4953 = vunpack.c.l.b16 %v2014
        %v4954 = vunpack.c.h.b16 %v2014
        %v4955 = vunpack.c.l.b16 %v2015
        %v4956 = vunpack.c.h.b16 %v2015
        %v4957 = vunpack.c.l.b16 %v2016
        %v4958 = vunpack.c.h.b16 %v2016
        %v4959 = vunpack.c.l.b16 %v2017
        %v4960 = vunpack.c.h.b16 %v2017
        %v4961 = vunpack.c.l.b16 %v2018
        %v4962 = vunpack.c.h.b16 %v2018
        %v4963 = vunpack.c.l.b16 %v2019
        %v4964 = vunpack.c.h.b16 %v2019
        %v4965 = vunpack.c.l.b16 %v2020
        %v4966 = vunpack.c.h.b16 %v2020
        %v4967 = vunpack.c.l.b16 %v2021
        %v4968 = vunpack.c.h.b16 %v2021
        %v4969 = vunpack.c.l.b16 %v2022
        %v4970 = vunpack.c.h.b16 %v2022
        %v4971 = vunpack.c.l.b16 %v2023
        %v4972 = vunpack.c.h.b16 %v2023
        %v4973 = vunpack.c.l.b16 %v2024
        %v4974 = vunpack.c.h.b16 %v2024
        %v4975 = vunpack.c.l.b16 %v2025
        %v4976 = vunpack.c.h.b16 %v2025
        %v4977 = vunpack.c.l.b16 %v2026
        %v4978 = vunpack.c.h.b16 %v2026
        %v4979 = vunpack.c.l.b16 %v2027
        %v4980 = vunpack.c.h.b16 %v2027
        %v4981 = vunpack.c.l.b16 %v2028
        %v4982 = vunpack.c.h.b16 %v2028
        %v4983 = vunpack.c.l.b16 %v2029
        %v4984 = vunpack.c.h.b16 %v2029
        %v4985 = vunpack.c.l.b16 %v2030
        %v4986 = vunpack.c.h.b16 %v2030
        %v4987 = vunpack.c.l.b16 %v2031
        %v4988 = vunpack.c.h.b16 %v2031
        %v4989 = vunpack.c.l.b16 %v2032
        %v4990 = vunpack.c.h.b16 %v2032
        %v4991 = vunpack.c.l.b16 %v2033
        %v4992 = vunpack.c.h.b16 %v2033
        %v4993 = vunpack.c.l.b16 %v2034
        %v4994 = vunpack.c.h.b16 %v2034
        %v4995 = vunpack.c.l.b16 %v2035
        %v4996 = vunpack.c.h.b16 %v2035
        %v4997 = vunpack.c.l.b16 %v2036
        %v4998 = vunpack.c.h.b16 %v2036
        %v4999 = vunpack.c.l.b16 %v2037
        %v5000 = vunpack.c.h.b16 %v2037
        %v5001 = vunpack.c.l.b16 %v2038
        %v5002 = vunpack.c.h.b16 %v2038
        %v5003 = vunpack.c.l.b16 %v2039
        %v5004 = vunpack.c.h.b16 %v2039
        %v5005 = vunpack.c.l.b16 %v2040
        %v5006 = vunpack.c.h.b16 %v2040
        %v5007 = vunpack.c.l.b16 %v2041
        %v5008 = vunpack.c.h.b16 %v2041
        %v5009 = vunpack.c.l.b16 %v2042
        %v5010 = vunpack.c.h.b16 %v2042
        %v5011 = vunpack.c.l.b16 %v2043
        %v5012 = vunpack.c.h.b16 %v2043
        %v5013 = vunpack.c.l.b16 %v2044
        %v5014 = vunpack.c.h.b16 %v2044
        %v5015 = vunpack.c.l.b16 %v2045
        %v5016 = vunpack.c.h.b16 %v2045
        %v5017 = vunpack.c.l.b16 %v2046
        %v5018 = vunpack.c.h.b16 %v2046
        %v5019 = vunpack.c.l.b16 %v2047
        %v5020 = vunpack.c.h.b16 %v2047
        %v5021 = vunpack.c.l.b16 %v2048
        %v5022 = vunpack.c.h.b16 %v2048
        %v5023 = vunpack.c.l.b16 %v2049
        %v5024 = vunpack.c.h.b16 %v2049
        %v5025 = vunpack.c.l.b16 %v2050
        %v5026 = vunpack.c.h.b16 %v2050
        %v5027 = vunpack.c.l.b16 %v2051
        %v5028 = vunpack.c.h.b16 %v2051
        %v5029 = vunpack.c.l.b16 %v2052
        %v5030 = vunpack.c.h.b16 %v2052
        %v5031 = vunpack.c.l.b16 %v2053
        %v5032 = vunpack.c.h.b16 %v2053
        %v5033 = vunpack.c.l.b16 %v2054
        %v5034 = vunpack.c.h.b16 %v2054
        %v5035 = vunpack.c.l.b16 %v2055
        %v5036 = vunpack.c.h.b16 %v2055
        %v5037 = vunpack.c.l.b16 %v2056
        %v5038 = vunpack.c.h.b16 %v2056
        %v5039 = vunpack.c.l.b16 %v2057
        %v5040 = vunpack.c.h.b16 %v2057
        %v5041 = vunpack.c.l.b16 %v2058
        %v5042 = vunpack.c.h.b16 %v2058
        %v5043 = vunpack.c.l.b16 %v2059
        %v5044 = vunpack.c.h.b16 %v2059
        %v5045 = vunpack.c.l.b16 %v2060
        %v5046 = vunpack.c.h.b16 %v2060
        %v5047 = vunpack.c.l.b16 %v2061
        %v5048 = vunpack.c.h.b16 %v2061
        %v5049 = vunpack.c.l.b16 %v2062
        %v5050 = vunpack.c.h.b16 %v2062
        %v5051 = vunpack.c.l.b16 %v2063
        %v5052 = vunpack.c.h.b16 %v2063
        %v5053 = vunpack.c.l.b16 %v2064
        %v5054 = vunpack.c.h.b16 %v2064
        %v5055 = vunpack.c.l.b16 %v2065
        %v5056 = vunpack.c.h.b16 %v2065
        %v5057 = vunpack.c.l.b16 %v2066
        %v5058 = vunpack.c.h.b16 %v2066
        %v5059 = vunpack.c.l.b16 %v2067
        %v5060 = vunpack.c.h.b16 %v2067
        %v5061 = vunpack.c.l.b16 %v2068
        %v5062 = vunpack.c.h.b16 %v2068
        %v5063 = vunpack.c.l.b16 %v2069
        %v5064 = vunpack.c.h.b16 %v2069
        %v5065 = vunpack.c.l.b16 %v2070
        %v5066 = vunpack.c.h.b16 %v2070
        %v5067 = vunpack.c.l.b16 %v2071
        %v5068 = vunpack.c.h.b16 %v2071
        %v5069 = vunpack.c.l.b16 %v2072
        %v5070 = vunpack.c.h.b16 %v2072
        %v5071 = vunpack.c.l.b16 %v2073
        %v5072 = vunpack.c.h.b16 %v2073
        %v5073 = vunpack.c.l.b16 %v2074
        %v5074 = vunpack.c.h.b16 %v2074
        %v5075 = vunpack.c.l.b16 %v2075
        %v5076 = vunpack.c.h.b16 %v2075
        %v5077 = vunpack.c.l.b16 %v2076
        %v5078 = vunpack.c.h.b16 %v2076
        %v5079 = vunpack.c.l.b16 %v2077
        %v5080 = vunpack.c.h.b16 %v2077
        %v5081 = vunpack.c.l.b16 %v2078
        %v5082 = vunpack.c.h.b16 %v2078
        %v5083 = vunpack.c.l.b16 %v2079
        %v5084 = vunpack.c.h.b16 %v2079
        %v5085 = vunpack.c.l.b16 %v2080
        %v5086 = vunpack.c.h.b16 %v2080
        %v5087 = vunpack.c.l.b16 %v2081
        %v5088 = vunpack.c.h.b16 %v2081
        %v5089 = vunpack.c.l.b16 %v2082
        %v5090 = vunpack.c.h.b16 %v2082
        %v5091 = vunpack.c.l.b16 %v2083
        %v5092 = vunpack.c.h.b16 %v2083
        %v5093 = vunpack.c.l.b16 %v2084
        %v5094 = vunpack.c.h.b16 %v2084
        %v5095 = vunpack.c.l.b16 %v2085
        %v5096 = vunpack.c.h.b16 %v2085
        %v5097 = vunpack.c.l.b16 %v2086
        %v5098 = vunpack.c.h.b16 %v2086
        %v5099 = vunpack.c.l.b16 %v2087
        %v5100 = vunpack.c.h.b16 %v2087
        %v5101 = vunpack.c.l.b16 %v2088
        %v5102 = vunpack.c.h.b16 %v2088
        %v5103 = vunpack.c.l.b16 %v2089
        %v5104 = vunpack.c.h.b16 %v2089
        %v5105 = vunpack.c.l.b16 %v2090
        %v5106 = vunpack.c.h.b16 %v2090
        %v5107 = vunpack.c.l.b16 %v2091
        %v5108 = vunpack.c.h.b16 %v2091
        %v5109 = vunpack.c.l.b16 %v2092
        %v5110 = vunpack.c.h.b16 %v2092
        %v5111 = vunpack.c.l.b16 %v2093
        %v5112 = vunpack.c.h.b16 %v2093
        %v5113 = vunpack.c.l.b16 %v2094
        %v5114 = vunpack.c.h.b16 %v2094
        %v5115 = vunpack.c.l.b16 %v2095
        %v5116 = vunpack.c.h.b16 %v2095
        %v5117 = vunpack.c.l.b16 %v2096
        %v5118 = vunpack.c.h.b16 %v2096
        %v5119 = vunpack.c.l.b16 %v2097
        %v5120 = vunpack.c.h.b16 %v2097
        %v5121 = vunpack.c.l.b16 %v2098
        %v5122 = vunpack.c.h.b16 %v2098
        %v5123 = vunpack.c.l.b16 %v2099
        %v5124 = vunpack.c.h.b16 %v2099
        %v5125 = vunpack.c.l.b16 %v2100
        %v5126 = vunpack.c.h.b16 %v2100
        %v5127 = vunpack.c.l.b16 %v2101
        %v5128 = vunpack.c.h.b16 %v2101
        %v5129 = vunpack.c.l.b16 %v2102
        %v5130 = vunpack.c.h.b16 %v2102
        %v5131 = vunpack.c.l.b16 %v2103
        %v5132 = vunpack.c.h.b16 %v2103
        %v5133 = vunpack.c.l.b16 %v2104
        %v5134 = vunpack.c.h.b16 %v2104
        %v5135 = vunpack.c.l.b16 %v2105
        %v5136 = vunpack.c.h.b16 %v2105
        %v5137 = vunpack.c.l.b16 %v2106
        %v5138 = vunpack.c.h.b16 %v2106
        %v5139 = vunpack.c.l.b16 %v2107
        %v5140 = vunpack.c.h.b16 %v2107
        %v5141 = vunpack.c.l.b16 %v2108
        %v5142 = vunpack.c.h.b16 %v2108
        %v5143 = vunpack.c.l.b16 %v2109
        %v5144 = vunpack.c.h.b16 %v2109
        %v5145 = vunpack.c.l.b16 %v2110
        %v5146 = vunpack.c.h.b16 %v2110
        %v5147 = vunpack.c.l.b16 %v2111
        %v5148 = vunpack.c.h.b16 %v2111
        %v5149 = vunpack.c.l.b16 %v2112
        %v5150 = vunpack.c.h.b16 %v2112
        %v5151 = vunpack.c.l.b16 %v2113
        %v5152 = vunpack.c.h.b16 %v2113
        %v5153 = vunpack.c.l.b16 %v2114
        %v5154 = vunpack.c.h.b16 %v2114
        %v5155 = vunpack.c.l.b16 %v2115
        %v5156 = vunpack.c.h.b16 %v2115
        %v5157 = vunpack.c.l.b16 %v2116
        %v5158 = vunpack.c.h.b16 %v2116
        %v5159 = vunpack.c.l.b16 %v2117
        %v5160 = vunpack.c.h.b16 %v2117
        %v5161 = vunpack.c.l.b16 %v2118
        %v5162 = vunpack.c.h.b16 %v2118
        %v5163 = vunpack.c.l.b16 %v2119
        %v5164 = vunpack.c.h.b16 %v2119
        %v5165 = vunpack.c.l.b16 %v2120
        %v5166 = vunpack.c.h.b16 %v2120
        %v5167 = vunpack.c.l.b16 %v2121
        %v5168 = vunpack.c.h.b16 %v2121
        %v5169 = vunpack.c.l.b16 %v2122
        %v5170 = vunpack.c.h.b16 %v2122
        %v5171 = vunpack.c.l.b16 %v2123
        %v5172 = vunpack.c.h.b16 %v2123
        %v5173 = vunpack.c.l.b16 %v2124
        %v5174 = vunpack.c.h.b16 %v2124
        %v5175 = vunpack.c.l.b16 %v2125
        %v5176 = vunpack.c.h.b16 %v2125
        %v5177 = vunpack.c.l.b16 %v2126
        %v5178 = vunpack.c.h.b16 %v2126
        %v5179 = vunpack.c.l.b16 %v2127
        %v5180 = vunpack.c.h.b16 %v2127
        %v5181 = vunpack.c.l.b16 %v2128
        %v5182 = vunpack.c.h.b16 %v2128
        %v5183 = vunpack.c.l.b16 %v2129
        %v5184 = vunpack.c.h.b16 %v2129
        %v5185 = vunpack.c.l.b16 %v2130
        %v5186 = vunpack.c.h.b16 %v2130
        %v5187 = vunpack.c.l.b16 %v2131
        %v5188 = vunpack.c.h.b16 %v2131
        %v5189 = vunpack.c.l.b16 %v2132
        %v5190 = vunpack.c.h.b16 %v2132
        %v5191 = vunpack.c.l.b16 %v2133
        %v5192 = vunpack.c.h.b16 %v2133
        %v5193 = vunpack.c.l.b16 %v2134
        %v5194 = vunpack.c.h.b16 %v2134
        %v5195 = vunpack.c.l.b16 %v2135
        %v5196 = vunpack.c.h.b16 %v2135
        %v5197 = vunpack.c.l.b16 %v2136
        %v5198 = vunpack.c.h.b16 %v2136
        %v5199 = vunpack.c.l.b16 %v2137
        %v5200 = vunpack.c.h.b16 %v2137
        %v5201 = vunpack.c.l.b16 %v2138
        %v5202 = vunpack.c.h.b16 %v2138
        %v5203 = vunpack.c.l.b16 %v2139
        %v5204 = vunpack.c.h.b16 %v2139
        %v5205 = vunpack.c.l.b16 %v2140
        %v5206 = vunpack.c.h.b16 %v2140
        %v5207 = vunpack.c.l.b16 %v2141
        %v5208 = vunpack.c.h.b16 %v2141
        %v5209 = vunpack.c.l.b16 %v2142
        %v5210 = vunpack.c.h.b16 %v2142
        %v5211 = vunpack.c.l.b16 %v2143
        %v5212 = vunpack.c.h.b16 %v2143
        %v5213 = vunpack.c.l.b16 %v2144
        %v5214 = vunpack.c.h.b16 %v2144
        %v5215 = vunpack.c.l.b16 %v2145
        %v5216 = vunpack.c.h.b16 %v2145
        %v5217 = vunpack.c.l.b16 %v2146
        %v5218 = vunpack.c.h.b16 %v2146
        %v5219 = vpack.c.b16 %v3187, %v3171
        %v5220 = vpack.c.b16 %v3188, %v3172
        %v5221 = vpack.c.b16 %v3189, %v3173
        %v5222 = vpack.c.b16 %v3190, %v3174
        %v5223 = vpack.c.b16 %v3191, %v3175
        %v5224 = vpack.c.b16 %v3192, %v3176
        %v5225 = vpack.c.b16 %v3193, %v3177
        %v5226 = vpack.c.b16 %v3194, %v3178
        %v5227 = vpack.c.b16 %v3195, %v3179
        %v5228 = vpack.c.b16 %v3196, %v3180
        %v5229 = vpack.c.b16 %v3197, %v3181
        %v5230 = vpack.c.b16 %v3198, %v3182
        %v5231 = vpack.c.b16 %v3199, %v3183
        %v5232 = vpack.c.b16 %v3200, %v3184
        %v5233 = vpack.c.b16 %v3201, %v3185
        %v5234 = vpack.c.b16 %v3202, %v3186
        %v5235 = vpack.c.b16 %v3219, %v3203
        %v5236 = vpack.c.b16 %v3220, %v3204
        %v5237 = vpack.c.b16 %v3221, %v3205
        %v5238 = vpack.c.b16 %v3222, %v3206
        %v5239 = vpack.c.b16 %v3223, %v3207
        %v5240 = vpack.c.b16 %v3224, %v3208
        %v5241 = vpack.c.b16 %v3225, %v3209
        %v5242 = vpack.c.b16 %v3226, %v3210
        %v5243 = vpack.c.b16 %v3227, %v3211
        %v5244 = vpack.c.b16 %v3228, %v3212
        %v5245 = vpack.c.b16 %v3229, %v3213
        %v5246 = vpack.c.b16 %v3230, %v3214
        %v5247 = vpack.c.b16 %v3231, %v3215
        %v5248 = vpack.c.b16 %v3232, %v3216
        %v5249 = vpack.c.b16 %v3233, %v3217
        %v5250 = vpack.c.b16 %v3234, %v3218
        %v5251 = vpack.c.b16 %v3251, %v3235
        %v5252 = vpack.c.b16 %v3252, %v3236
        %v5253 = vpack.c.b16 %v3253, %v3237
        %v5254 = vpack.c.b16 %v3254, %v3238
        %v5255 = vpack.c.b16 %v3255, %v3239
        %v5256 = vpack.c.b16 %v3256, %v3240
        %v5257 = vpack.c.b16 %v3257, %v3241
        %v5258 = vpack.c.b16 %v3258, %v3242
        %v5259 = vpack.c.b16 %v3259, %v3243
        %v5260 = vpack.c.b16 %v3260, %v3244
        %v5261 = vpack.c.b16 %v3261, %v3245
        %v5262 = vpack.c.b16 %v3262, %v3246
        %v5263 = vpack.c.b16 %v3263, %v3247
        %v5264 = vpack.c.b16 %v3264, %v3248
        %v5265 = vpack.c.b16 %v3265, %v3249
        %v5266 = vpack.c.b16 %v3266, %v3250
        %v5267 = vpack.c.b16 %v3283, %v3267
        %v5268 = vpack.c.b16 %v3284, %v3268
        %v5269 = vpack.c.b16 %v3285, %v3269
        %v5270 = vpack.c.b16 %v3286, %v3270
        %v5271 = vpack.c.b16 %v3287, %v3271
        %v5272 = vpack.c.b16 %v3288, %v3272
        %v5273 = vpack.c.b16 %v3289, %v3273
        %v5274 = vpack.c.b16 %v3290, %v3274
        %v5275 = vpack.c.b16 %v3291, %v3275
        %v5276 = vpack.c.b16 %v3292, %v3276
        %v5277 = vpack.c.b16 %v3293, %v3277
        %v5278 = vpack.c.b16 %v3294, %v3278
        %v5279 = vpack.c.b16 %v3295, %v3279
        %v5280 = vpack.c.b16 %v3296, %v3280
        %v5281 = vpack.c.b16 %v3297, %v3281
        %v5282 = vpack.c.b16 %v3298, %v3282
        %v5283 = vpack.c.b16 %v3315, %v3299
        %v5284 = vpack.c.b16 %v3316, %v3300
        %v5285 = vpack.c.b16 %v3317, %v3301
        %v5286 = vpack.c.b16 %v3318, %v3302
        %v5287 = vpack.c.b16 %v3319, %v3303
        %v5288 = vpack.c.b16 %v3320, %v3304
        %v5289 = vpack.c.b16 %v3321, %v3305
        %v5290 = vpack.c.b16 %v3322, %v3306
        %v5291 = vpack.c.b16 %v3323, %v3307
        %v5292 = vpack.c.b16 %v3324, %v3308
        %v5293 = vpack.c.b16 %v3325, %v3309
        %v5294 = vpack.c.b16 %v3326, %v3310
        %v5295 = vpack.c.b16 %v3327, %v3311
        %v5296 = vpack.c.b16 %v3328, %v3312
        %v5297 = vpack.c.b16 %v3329, %v3313
        %v5298 = vpack.c.b16 %v3330, %v3314
        %v5299 = vpack.c.b16 %v3347, %v3331
        %v5300 = vpack.c.b16 %v3348, %v3332
        %v5301 = vpack.c.b16 %v3349, %v3333
        %v5302 = vpack.c.b16 %v3350, %v3334
        %v5303 = vpack.c.b16 %v3351, %v3335
        %v5304 = vpack.c.b16 %v3352, %v3336
        %v5305 = vpack.c.b16 %v3353, %v3337
        %v5306 = vpack.c.b16 %v3354, %v3338
        %v5307 = vpack.c.b16 %v3355, %v3339
        %v5308 = vpack.c.b16 %v3356, %v3340
        %v5309 = vpack.c.b16 %v3357, %v3341
        %v5310 = vpack.c.b16 %v3358, %v3342
        %v5311 = vpack.c.b16 %v3359, %v3343
        %v5312 = vpack.c.b16 %v3360, %v3344
        %v5313 = vpack.c.b16 %v3361, %v3345
        %v5314 = vpack.c.b16 %v3362, %v3346
        %v5315 = vpack.c.b16 %v3379, %v3363
        %v5316 = vpack.c.b16 %v3380, %v3364
        %v5317 = vpack.c.b16 %v3381, %v3365
        %v5318 = vpack.c.b16 %v3382, %v3366
        %v5319 = vpack.c.b16 %v3383, %v3367
        %v5320 = vpack.c.b16 %v3384, %v3368
        %v5321 = vpack.c.b16 %v3385, %v3369
        %v5322 = vpack.c.b16 %v3386, %v3370
        %v5323 = vpack.c.b16 %v3387, %v3371
        %v5324 = vpack.c.b16 %v3388, %v3372
        %v5325 = vpack.c.b16 %v3389, %v3373
        %v5326 = vpack.c.b16 %v3390, %v3374
        %v5327 = vpack.c.b16 %v3391, %v3375
        %v5328 = vpack.c.b16 %v3392, %v3376
        %v5329 = vpack.c.b16 %v3393, %v3377
        %v5330 = vpack.c.b16 %v3394, %v3378
        %v5331 = vpack.c.b16 %v3411, %v3395
        %v5332 = vpack.c.b16 %v3412, %v3396
        %v5333 = vpack.c.b16 %v3413, %v3397
        %v5334 = vpack.c.b16 %v3414, %v3398
        %v5335 = vpack.c.b16 %v3415, %v3399
        %v5336 = vpack.c.b16 %v3416, %v3400
        %v5337 = vpack.c.b16 %v3417, %v3401
        %v5338 = vpack.c.b16 %v3418, %v3402
        %v5339 = vpack.c.b16 %v3419, %v3403
        %v5340 = vpack.c.b16 %v3420, %v3404
        %v5341 = vpack.c.b16 %v3421, %v3405
        %v5342 = vpack.c.b16 %v3422, %v3406
        %v5343 = vpack.c.b16 %v3423, %v3407
        %v5344 = vpack.c.b16 %v3424, %v3408
        %v5345 = vpack.c.b16 %v3425, %v3409
        %v5346 = vpack.c.b16 %v3426, %v3410
        %v5347 = vpack.c.b16 %v3443, %v3427
        %v5348 = vpack.c.b16 %v3444, %v3428
        %v5349 = vpack.c.b16 %v3445, %v3429
        %v5350 = vpack.c.b16 %v3446, %v3430
        %v5351 = vpack.c.b16 %v3447, %v3431
        %v5352 = vpack.c.b16 %v3448, %v3432
        %v5353 = vpack.c.b16 %v3449, %v3433
        %v5354 = vpack.c.b16 %v3450, %v3434
        %v5355 = vpack.c.b16 %v3451, %v3435
        %v5356 = vpack.c.b16 %v3452, %v3436
        %v5357 = vpack.c.b16 %v3453, %v3437
        %v5358 = vpack.c.b16 %v3454, %v3438
        %v5359 = vpack.c.b16 %v3455, %v3439
        %v5360 = vpack.c.b16 %v3456, %v3440
        %v5361 = vpack.c.b16 %v3457, %v3441
        %v5362 = vpack.c.b16 %v3458, %v3442
        %v5363 = vpack.c.b16 %v3475, %v3459
        %v5364 = vpack.c.b16 %v3476, %v3460
        %v5365 = vpack.c.b16 %v3477, %v3461
        %v5366 = vpack.c.b16 %v3478, %v3462
        %v5367 = vpack.c.b16 %v3479, %v3463
        %v5368 = vpack.c.b16 %v3480, %v3464
        %v5369 = vpack.c.b16 %v3481, %v3465
        %v5370 = vpack.c.b16 %v3482, %v3466
        %v5371 = vpack.c.b16 %v3483, %v3467
        %v5372 = vpack.c.b16 %v3484, %v3468
        %v5373 = vpack.c.b16 %v3485, %v3469
        %v5374 = vpack.c.b16 %v3486, %v3470
        %v5375 = vpack.c.b16 %v3487, %v3471
        %v5376 = vpack.c.b16 %v3488, %v3472
        %v5377 = vpack.c.b16 %v3489, %v3473
        %v5378 = vpack.c.b16 %v3490, %v3474
        %v5379 = vpack.c.b16 %v3507, %v3491
        %v5380 = vpack.c.b16 %v3508, %v3492
        %v5381 = vpack.c.b16 %v3509, %v3493
        %v5382 = vpack.c.b16 %v3510, %v3494
        %v5383 = vpack.c.b16 %v3511, %v3495
        %v5384 = vpack.c.b16 %v3512, %v3496
        %v5385 = vpack.c.b16 %v3513, %v3497
        %v5386 = vpack.c.b16 %v3514, %v3498
        %v5387 = vpack.c.b16 %v3515, %v3499
        %v5388 = vpack.c.b16 %v3516, %v3500
        %v5389 = vpack.c.b16 %v3517, %v3501
        %v5390 = vpack.c.b16 %v3518, %v3502
        %v5391 = vpack.c.b16 %v3519, %v3503
        %v5392 = vpack.c.b16 %v3520, %v3504
        %v5393 = vpack.c.b16 %v3521, %v3505
        %v5394 = vpack.c.b16 %v3522, %v3506
        %v5395 = vpack.c.b16 %v3539, %v3523
        %v5396 = vpack.c.b16 %v3540, %v3524
        %v5397 = vpack.c.b16 %v3541, %v3525
        %v5398 = vpack.c.b16 %v3542, %v3526
        %v5399 = vpack.c.b16 %v3543, %v3527
        %v5400 = vpack.c.b16 %v3544, %v3528
        %v5401 = vpack.c.b16 %v3545, %v3529
        %v5402 = vpack.c.b16 %v3546, %v3530
        %v5403 = vpack.c.b16 %v3547, %v3531
        %v5404 = vpack.c.b16 %v3548, %v3532
        %v5405 = vpack.c.b16 %v3549, %v3533
        %v5406 = vpack.c.b16 %v3550, %v3534
        %v5407 = vpack.c.b16 %v3551, %v3535
        %v5408 = vpack.c.b16 %v3552, %v3536
        %v5409 = vpack.c.b16 %v3553, %v3537
        %v5410 = vpack.c.b16 %v3554, %v3538
        %v5411 = vpack.c.b16 %v3571, %v3555
        %v5412 = vpack.c.b16 %v3572, %v3556
        %v5413 = vpack.c.b16 %v3573, %v3557
        %v5414 = vpack.c.b16 %v3574, %v3558
        %v5415 = vpack.c.b16 %v3575, %v3559
        %v5416 = vpack.c.b16 %v3576, %v3560
        %v5417 = vpack.c.b16 %v3577, %v3561
        %v5418 = vpack.c.b16 %v3578, %v3562
        %v5419 = vpack.c.b16 %v3579, %v3563
        %v5420 = vpack.c.b16 %v3580, %v3564
        %v5421 = vpack.c.b16 %v3581, %v3565
        %v5422 = vpack.c.b16 %v3582, %v3566
        %v5423 = vpack.c.b16 %v3583, %v3567
        %v5424 = vpack.c.b16 %v3584, %v3568
        %v5425 = vpack.c.b16 %v3585, %v3569
        %v5426 = vpack.c.b16 %v3586, %v3570
        %v5427 = vpack.c.b16 %v3603, %v3587
        %v5428 = vpack.c.b16 %v3604, %v3588
        %v5429 = vpack.c.b16 %v3605, %v3589
        %v5430 = vpack.c.b16 %v3606, %v3590
        %v5431 = vpack.c.b16 %v3607, %v3591
        %v5432 = vpack.c.b16 %v3608, %v3592
        %v5433 = vpack.c.b16 %v3609, %v3593
        %v5434 = vpack.c.b16 %v3610, %v3594
        %v5435 = vpack.c.b16 %v3611, %v3595
        %v5436 = vpack.c.b16 %v3612, %v3596
        %v5437 = vpack.c.b16 %v3613, %v3597
        %v5438 = vpack.c.b16 %v3614, %v3598
        %v5439 = vpack.c.b16 %v3615, %v3599
        %v5440 = vpack.c.b16 %v3616, %v3600
        %v5441 = vpack.c.b16 %v3617, %v3601
        %v5442 = vpack.c.b16 %v3618, %v3602
        %v5443 = vpack.c.b16 %v3635, %v3619
        %v5444 = vpack.c.b16 %v3636, %v3620
        %v5445 = vpack.c.b16 %v3637, %v3621
        %v5446 = vpack.c.b16 %v3638, %v3622
        %v5447 = vpack.c.b16 %v3639, %v3623
        %v5448 = vpack.c.b16 %v3640, %v3624
        %v5449 = vpack.c.b16 %v3641, %v3625
        %v5450 = vpack.c.b16 %v3642, %v3626
        %v5451 = vpack.c.b16 %v3643, %v3627
        %v5452 = vpack.c.b16 %v3644, %v3628
        %v5453 = vpack.c.b16 %v3645, %v3629
        %v5454 = vpack.c.b16 %v3646, %v3630
        %v5455 = vpack.c.b16 %v3647, %v3631
        %v5456 = vpack.c.b16 %v3648, %v3632
        %v5457 = vpack.c.b16 %v3649, %v3633
        %v5458 = vpack.c.b16 %v3650, %v3634
        %v5459 = vpack.c.b16 %v3667, %v3651
        %v5460 = vpack.c.b16 %v3668, %v3652
        %v5461 = vpack.c.b16 %v3669, %v3653
        %v5462 = vpack.c.b16 %v3670, %v3654
        %v5463 = vpack.c.b16 %v3671, %v3655
        %v5464 = vpack.c.b16 %v3672, %v3656
        %v5465 = vpack.c.b16 %v3673, %v3657
        %v5466 = vpack.c.b16 %v3674, %v3658
        %v5467 = vpack.c.b16 %v3675, %v3659
        %v5468 = vpack.c.b16 %v3676, %v3660
        %v5469 = vpack.c.b16 %v3677, %v3661
        %v5470 = vpack.c.b16 %v3678, %v3662
        %v5471 = vpack.c.b16 %v3679, %v3663
        %v5472 = vpack.c.b16 %v3680, %v3664
        %v5473 = vpack.c.b16 %v3681, %v3665
        %v5474 = vpack.c.b16 %v3682, %v3666
        %v5475 = vpack.c.b16 %v3699, %v3683
        %v5476 = vpack.c.b16 %v3700, %v3684
        %v5477 = vpack.c.b16 %v3701, %v3685
        %v5478 = vpack.c.b16 %v3702, %v3686
        %v5479 = vpack.c.b16 %v3703, %v3687
        %v5480 = vpack.c.b16 %v3704, %v3688
        %v5481 = vpack.c.b16 %v3705, %v3689
        %v5482 = vpack.c.b16 %v3706, %v3690
        %v5483 = vpack.c.b16 %v3707, %v3691
        %v5484 = vpack.c.b16 %v3708, %v3692
        %v5485 = vpack.c.b16 %v3709, %v3693
        %v5486 = vpack.c.b16 %v3710, %v3694
        %v5487 = vpack.c.b16 %v3711, %v3695
        %v5488 = vpack.c.b16 %v3712, %v3696
        %v5489 = vpack.c.b16 %v3713, %v3697
        %v5490 = vpack.c.b16 %v3714, %v3698
        %v5491 = vpack.c.b16 %v3731, %v3715
        %v5492 = vpack.c.b16 %v3732, %v3716
        %v5493 = vpack.c.b16 %v3733, %v3717
        %v5494 = vpack.c.b16 %v3734, %v3718
        %v5495 = vpack.c.b16 %v3735, %v3719
        %v5496 = vpack.c.b16 %v3736, %v3720
        %v5497 = vpack.c.b16 %v3737, %v3721
        %v5498 = vpack.c.b16 %v3738, %v3722
        %v5499 = vpack.c.b16 %v3739, %v3723
        %v5500 = vpack.c.b16 %v3740, %v3724
        %v5501 = vpack.c.b16 %v3741, %v3725
        %v5502 = vpack.c.b16 %v3742, %v3726
        %v5503 = vpack.c.b16 %v3743, %v3727
        %v5504 = vpack.c.b16 %v3744, %v3728
        %v5505 = vpack.c.b16 %v3745, %v3729
        %v5506 = vpack.c.b16 %v3746, %v3730
        %v5507 = vpack.c.b16 %v3763, %v3747
        %v5508 = vpack.c.b16 %v3764, %v3748
        %v5509 = vpack.c.b16 %v3765, %v3749
        %v5510 = vpack.c.b16 %v3766, %v3750
        %v5511 = vpack.c.b16 %v3767, %v3751
        %v5512 = vpack.c.b16 %v3768, %v3752
        %v5513 = vpack.c.b16 %v3769, %v3753
        %v5514 = vpack.c.b16 %v3770, %v3754
        %v5515 = vpack.c.b16 %v3771, %v3755
        %v5516 = vpack.c.b16 %v3772, %v3756
        %v5517 = vpack.c.b16 %v3773, %v3757
        %v5518 = vpack.c.b16 %v3774, %v3758
        %v5519 = vpack.c.b16 %v3775, %v3759
        %v5520 = vpack.c.b16 %v3776, %v3760
        %v5521 = vpack.c.b16 %v3777, %v3761
        %v5522 = vpack.c.b16 %v3778, %v3762
        %v5523 = vpack.c.b16 %v3795, %v3779
        %v5524 = vpack.c.b16 %v3796, %v3780
        %v5525 = vpack.c.b16 %v3797, %v3781
        %v5526 = vpack.c.b16 %v3798, %v3782
        %v5527 = vpack.c.b16 %v3799, %v3783
        %v5528 = vpack.c.b16 %v3800, %v3784
        %v5529 = vpack.c.b16 %v3801, %v3785
        %v5530 = vpack.c.b16 %v3802, %v3786
        %v5531 = vpack.c.b16 %v3803, %v3787
        %v5532 = vpack.c.b16 %v3804, %v3788
        %v5533 = vpack.c.b16 %v3805, %v3789
        %v5534 = vpack.c.b16 %v3806, %v3790
        %v5535 = vpack.c.b16 %v3807, %v3791
        %v5536 = vpack.c.b16 %v3808, %v3792
        %v5537 = vpack.c.b16 %v3809, %v3793
        %v5538 = vpack.c.b16 %v3810, %v3794
        %v5539 = vpack.c.b16 %v3827, %v3811
        %v5540 = vpack.c.b16 %v3828, %v3812
        %v5541 = vpack.c.b16 %v3829, %v3813
        %v5542 = vpack.c.b16 %v3830, %v3814
        %v5543 = vpack.c.b16 %v3831, %v3815
        %v5544 = vpack.c.b16 %v3832, %v3816
        %v5545 = vpack.c.b16 %v3833, %v3817
        %v5546 = vpack.c.b16 %v3834, %v3818
        %v5547 = vpack.c.b16 %v3835, %v3819
        %v5548 = vpack.c.b16 %v3836, %v3820
        %v5549 = vpack.c.b16 %v3837, %v3821
        %v5550 = vpack.c.b16 %v3838, %v3822
        %v5551 = vpack.c.b16 %v3839, %v3823
        %v5552 = vpack.c.b16 %v3840, %v3824
        %v5553 = vpack.c.b16 %v3841, %v3825
        %v5554 = vpack.c.b16 %v3842, %v3826
        %v5555 = vpack.c.b16 %v3859, %v3843
        %v5556 = vpack.c.b16 %v3860, %v3844
        %v5557 = vpack.c.b16 %v3861, %v3845
        %v5558 = vpack.c.b16 %v3862, %v3846
        %v5559 = vpack.c.b16 %v3863, %v3847
        %v5560 = vpack.c.b16 %v3864, %v3848
        %v5561 = vpack.c.b16 %v3865, %v3849
        %v5562 = vpack.c.b16 %v3866, %v3850
        %v5563 = vpack.c.b16 %v3867, %v3851
        %v5564 = vpack.c.b16 %v3868, %v3852
        %v5565 = vpack.c.b16 %v3869, %v3853
        %v5566 = vpack.c.b16 %v3870, %v3854
        %v5567 = vpack.c.b16 %v3871, %v3855
        %v5568 = vpack.c.b16 %v3872, %v3856
        %v5569 = vpack.c.b16 %v3873, %v3857
        %v5570 = vpack.c.b16 %v3874, %v3858
        %v5571 = vpack.c.b16 %v3891, %v3875
        %v5572 = vpack.c.b16 %v3892, %v3876
        %v5573 = vpack.c.b16 %v3893, %v3877
        %v5574 = vpack.c.b16 %v3894, %v3878
        %v5575 = vpack.c.b16 %v3895, %v3879
        %v5576 = vpack.c.b16 %v3896, %v3880
        %v5577 = vpack.c.b16 %v3897, %v3881
        %v5578 = vpack.c.b16 %v3898, %v3882
        %v5579 = vpack.c.b16 %v3899, %v3883
        %v5580 = vpack.c.b16 %v3900, %v3884
        %v5581 = vpack.c.b16 %v3901, %v3885
        %v5582 = vpack.c.b16 %v3902, %v3886
        %v5583 = vpack.c.b16 %v3903, %v3887
        %v5584 = vpack.c.b16 %v3904, %v3888
        %v5585 = vpack.c.b16 %v3905, %v3889
        %v5586 = vpack.c.b16 %v3906, %v3890
        %v5587 = vpack.c.b16 %v3923, %v3907
        %v5588 = vpack.c.b16 %v3924, %v3908
        %v5589 = vpack.c.b16 %v3925, %v3909
        %v5590 = vpack.c.b16 %v3926, %v3910
        %v5591 = vpack.c.b16 %v3927, %v3911
        %v5592 = vpack.c.b16 %v3928, %v3912
        %v5593 = vpack.c.b16 %v3929, %v3913
        %v5594 = vpack.c.b16 %v3930, %v3914
        %v5595 = vpack.c.b16 %v3931, %v3915
        %v5596 = vpack.c.b16 %v3932, %v3916
        %v5597 = vpack.c.b16 %v3933, %v3917
        %v5598 = vpack.c.b16 %v3934, %v3918
        %v5599 = vpack.c.b16 %v3935, %v3919
        %v5600 = vpack.c.b16 %v3936, %v3920
        %v5601 = vpack.c.b16 %v3937, %v3921
        %v5602 = vpack.c.b16 %v3938, %v3922
        %v5603 = vpack.c.b16 %v3955, %v3939
        %v5604 = vpack.c.b16 %v3956, %v3940
        %v5605 = vpack.c.b16 %v3957, %v3941
        %v5606 = vpack.c.b16 %v3958, %v3942
        %v5607 = vpack.c.b16 %v3959, %v3943
        %v5608 = vpack.c.b16 %v3960, %v3944
        %v5609 = vpack.c.b16 %v3961, %v3945
        %v5610 = vpack.c.b16 %v3962, %v3946
        %v5611 = vpack.c.b16 %v3963, %v3947
        %v5612 = vpack.c.b16 %v3964, %v3948
        %v5613 = vpack.c.b16 %v3965, %v3949
        %v5614 = vpack.c.b16 %v3966, %v3950
        %v5615 = vpack.c.b16 %v3967, %v3951
        %v5616 = vpack.c.b16 %v3968, %v3952
        %v5617 = vpack.c.b16 %v3969, %v3953
        %v5618 = vpack.c.b16 %v3970, %v3954
        %v5619 = vpack.c.b16 %v3987, %v3971
        %v5620 = vpack.c.b16 %v3988, %v3972
        %v5621 = vpack.c.b16 %v3989, %v3973
        %v5622 = vpack.c.b16 %v3990, %v3974
        %v5623 = vpack.c.b16 %v3991, %v3975
        %v5624 = vpack.c.b16 %v3992, %v3976
        %v5625 = vpack.c.b16 %v3993, %v3977
        %v5626 = vpack.c.b16 %v3994, %v3978
        %v5627 = vpack.c.b16 %v3995, %v3979
        %v5628 = vpack.c.b16 %v3996, %v3980
        %v5629 = vpack.c.b16 %v3997, %v3981
        %v5630 = vpack.c.b16 %v3998, %v3982
        %v5631 = vpack.c.b16 %v3999, %v3983
        %v5632 = vpack.c.b16 %v4000, %v3984
        %v5633 = vpack.c.b16 %v4001, %v3985
        %v5634 = vpack.c.b16 %v4002, %v3986
        %v5635 = vpack.c.b16 %v4019, %v4003
        %v5636 = vpack.c.b16 %v4020, %v4004
        %v5637 = vpack.c.b16 %v4021, %v4005
        %v5638 = vpack.c.b16 %v4022, %v4006
        %v5639 = vpack.c.b16 %v4023, %v4007
        %v5640 = vpack.c.b16 %v4024, %v4008
        %v5641 = vpack.c.b16 %v4025, %v4009
        %v5642 = vpack.c.b16 %v4026, %v4010
        %v5643 = vpack.c.b16 %v4027, %v4011
        %v5644 = vpack.c.b16 %v4028, %v4012
        %v5645 = vpack.c.b16 %v4029, %v4013
        %v5646 = vpack.c.b16 %v4030, %v4014
        %v5647 = vpack.c.b16 %v4031, %v4015
        %v5648 = vpack.c.b16 %v4032, %v4016
        %v5649 = vpack.c.b16 %v4033, %v4017
        %v5650 = vpack.c.b16 %v4034, %v4018
        %v5651 = vpack.c.b16 %v4051, %v4035
        %v5652 = vpack.c.b16 %v4052, %v4036
        %v5653 = vpack.c.b16 %v4053, %v4037
        %v5654 = vpack.c.b16 %v4054, %v4038
        %v5655 = vpack.c.b16 %v4055, %v4039
        %v5656 = vpack.c.b16 %v4056, %v4040
        %v5657 = vpack.c.b16 %v4057, %v4041
        %v5658 = vpack.c.b16 %v4058, %v4042
        %v5659 = vpack.c.b16 %v4059, %v4043
        %v5660 = vpack.c.b16 %v4060, %v4044
        %v5661 = vpack.c.b16 %v4061, %v4045
        %v5662 = vpack.c.b16 %v4062, %v4046
        %v5663 = vpack.c.b16 %v4063, %v4047
        %v5664 = vpack.c.b16 %v4064, %v4048
        %v5665 = vpack.c.b16 %v4065, %v4049
        %v5666 = vpack.c.b16 %v4066, %v4050
        %v5667 = vpack.c.b16 %v4083, %v4067
        %v5668 = vpack.c.b16 %v4084, %v4068
        %v5669 = vpack.c.b16 %v4085, %v4069
        %v5670 = vpack.c.b16 %v4086, %v4070
        %v5671 = vpack.c.b16 %v4087, %v4071
        %v5672 = vpack.c.b16 %v4088, %v4072
        %v5673 = vpack.c.b16 %v4089, %v4073
        %v5674 = vpack.c.b16 %v4090, %v4074
        %v5675 = vpack.c.b16 %v4091, %v4075
        %v5676 = vpack.c.b16 %v4092, %v4076
        %v5677 = vpack.c.b16 %v4093, %v4077
        %v5678 = vpack.c.b16 %v4094, %v4078
        %v5679 = vpack.c.b16 %v4095, %v4079
        %v5680 = vpack.c.b16 %v4096, %v4080
        %v5681 = vpack.c.b16 %v4097, %v4081
        %v5682 = vpack.c.b16 %v4098, %v4082
        %v5683 = vpack.c.b16 %v4115, %v4099
        %v5684 = vpack.c.b16 %v4116, %v4100
        %v5685 = vpack.c.b16 %v4117, %v4101
        %v5686 = vpack.c.b16 %v4118, %v4102
        %v5687 = vpack.c.b16 %v4119, %v4103
        %v5688 = vpack.c.b16 %v4120, %v4104
        %v5689 = vpack.c.b16 %v4121, %v4105
        %v5690 = vpack.c.b16 %v4122, %v4106
        %v5691 = vpack.c.b16 %v4123, %v4107
        %v5692 = vpack.c.b16 %v4124, %v4108
        %v5693 = vpack.c.b16 %v4125, %v4109
        %v5694 = vpack.c.b16 %v4126, %v4110
        %v5695 = vpack.c.b16 %v4127, %v4111
        %v5696 = vpack.c.b16 %v4128, %v4112
        %v5697 = vpack.c.b16 %v4129, %v4113
        %v5698 = vpack.c.b16 %v4130, %v4114
        %v5699 = vpack.c.b16 %v4147, %v4131
        %v5700 = vpack.c.b16 %v4148, %v4132
        %v5701 = vpack.c.b16 %v4149, %v4133
        %v5702 = vpack.c.b16 %v4150, %v4134
        %v5703 = vpack.c.b16 %v4151, %v4135
        %v5704 = vpack.c.b16 %v4152, %v4136
        %v5705 = vpack.c.b16 %v4153, %v4137
        %v5706 = vpack.c.b16 %v4154, %v4138
        %v5707 = vpack.c.b16 %v4155, %v4139
        %v5708 = vpack.c.b16 %v4156, %v4140
        %v5709 = vpack.c.b16 %v4157, %v4141
        %v5710 = vpack.c.b16 %v4158, %v4142
        %v5711 = vpack.c.b16 %v4159, %v4143
        %v5712 = vpack.c.b16 %v4160, %v4144
        %v5713 = vpack.c.b16 %v4161, %v4145
        %v5714 = vpack.c.b16 %v4162, %v4146
        %v5715 = vpack.c.b16 %v4179, %v4163
        %v5716 = vpack.c.b16 %v4180, %v4164
        %v5717 = vpack.c.b16 %v4181, %v4165
        %v5718 = vpack.c.b16 %v4182, %v4166
        %v5719 = vpack.c.b16 %v4183, %v4167
        %v5720 = vpack.c.b16 %v4184, %v4168
        %v5721 = vpack.c.b16 %v4185, %v4169
        %v5722 = vpack.c.b16 %v4186, %v4170
        %v5723 = vpack.c.b16 %v4187, %v4171
        %v5724 = vpack.c.b16 %v4188, %v4172
        %v5725 = vpack.c.b16 %v4189, %v4173
        %v5726 = vpack.c.b16 %v4190, %v4174
        %v5727 = vpack.c.b16 %v4191, %v4175
        %v5728 = vpack.c.b16 %v4192, %v4176
        %v5729 = vpack.c.b16 %v4193, %v4177
        %v5730 = vpack.c.b16 %v4194, %v4178
        %v5731 = vpack.c.b16 %v4211, %v4195
        %v5732 = vpack.c.b16 %v4212, %v4196
        %v5733 = vpack.c.b16 %v4213, %v4197
        %v5734 = vpack.c.b16 %v4214, %v4198
        %v5735 = vpack.c.b16 %v4215, %v4199
        %v5736 = vpack.c.b16 %v4216, %v4200
        %v5737 = vpack.c.b16 %v4217, %v4201
        %v5738 = vpack.c.b16 %v4218, %v4202
        %v5739 = vpack.c.b16 %v4219, %v4203
        %v5740 = vpack.c.b16 %v4220, %v4204
        %v5741 = vpack.c.b16 %v4221, %v4205
        %v5742 = vpack.c.b16 %v4222, %v4206
        %v5743 = vpack.c.b16 %v4223, %v4207
        %v5744 = vpack.c.b16 %v4224, %v4208
        %v5745 = vpack.c.b16 %v4225, %v4209
        %v5746 = vpack.c.b16 %v4226, %v4210
        %v5747 = vpack.c.b16 %v4243, %v4227
        %v5748 = vpack.c.b16 %v4244, %v4228
        %v5749 = vpack.c.b16 %v4245, %v4229
        %v5750 = vpack.c.b16 %v4246, %v4230
        %v5751 = vpack.c.b16 %v4247, %v4231
        %v5752 = vpack.c.b16 %v4248, %v4232
        %v5753 = vpack.c.b16 %v4249, %v4233
        %v5754 = vpack.c.b16 %v4250, %v4234
        %v5755 = vpack.c.b16 %v4251, %v4235
        %v5756 = vpack.c.b16 %v4252, %v4236
        %v5757 = vpack.c.b16 %v4253, %v4237
        %v5758 = vpack.c.b16 %v4254, %v4238
        %v5759 = vpack.c.b16 %v4255, %v4239
        %v5760 = vpack.c.b16 %v4256, %v4240
        %v5761 = vpack.c.b16 %v4257, %v4241
        %v5762 = vpack.c.b16 %v4258, %v4242
        %v5763 = vpack.c.b16 %v4275, %v4259
        %v5764 = vpack.c.b16 %v4276, %v4260
        %v5765 = vpack.c.b16 %v4277, %v4261
        %v5766 = vpack.c.b16 %v4278, %v4262
        %v5767 = vpack.c.b16 %v4279, %v4263
        %v5768 = vpack.c.b16 %v4280, %v4264
        %v5769 = vpack.c.b16 %v4281, %v4265
        %v5770 = vpack.c.b16 %v4282, %v4266
        %v5771 = vpack.c.b16 %v4283, %v4267
        %v5772 = vpack.c.b16 %v4284, %v4268
        %v5773 = vpack.c.b16 %v4285, %v4269
        %v5774 = vpack.c.b16 %v4286, %v4270
        %v5775 = vpack.c.b16 %v4287, %v4271
        %v5776 = vpack.c.b16 %v4288, %v4272
        %v5777 = vpack.c.b16 %v4289, %v4273
        %v5778 = vpack.c.b16 %v4290, %v4274
        %v5779 = vpack.c.b16 %v4307, %v4291
        %v5780 = vpack.c.b16 %v4308, %v4292
        %v5781 = vpack.c.b16 %v4309, %v4293
        %v5782 = vpack.c.b16 %v4310, %v4294
        %v5783 = vpack.c.b16 %v4311, %v4295
        %v5784 = vpack.c.b16 %v4312, %v4296
        %v5785 = vpack.c.b16 %v4313, %v4297
        %v5786 = vpack.c.b16 %v4314, %v4298
        %v5787 = vpack.c.b16 %v4315, %v4299
        %v5788 = vpack.c.b16 %v4316, %v4300
        %v5789 = vpack.c.b16 %v4317, %v4301
        %v5790 = vpack.c.b16 %v4318, %v4302
        %v5791 = vpack.c.b16 %v4319, %v4303
        %v5792 = vpack.c.b16 %v4320, %v4304
        %v5793 = vpack.c.b16 %v4321, %v4305
        %v5794 = vpack.c.b16 %v4322, %v4306
        %v5795 = vpack.c.b16 %v4339, %v4323
        %v5796 = vpack.c.b16 %v4340, %v4324
        %v5797 = vpack.c.b16 %v4341, %v4325
        %v5798 = vpack.c.b16 %v4342, %v4326
        %v5799 = vpack.c.b16 %v4343, %v4327
        %v5800 = vpack.c.b16 %v4344, %v4328
        %v5801 = vpack.c.b16 %v4345, %v4329
        %v5802 = vpack.c.b16 %v4346, %v4330
        %v5803 = vpack.c.b16 %v4347, %v4331
        %v5804 = vpack.c.b16 %v4348, %v4332
        %v5805 = vpack.c.b16 %v4349, %v4333
        %v5806 = vpack.c.b16 %v4350, %v4334
        %v5807 = vpack.c.b16 %v4351, %v4335
        %v5808 = vpack.c.b16 %v4352, %v4336
        %v5809 = vpack.c.b16 %v4353, %v4337
        %v5810 = vpack.c.b16 %v4354, %v4338
        %v5811 = vpack.c.b16 %v4371, %v4355
        %v5812 = vpack.c.b16 %v4372, %v4356
        %v5813 = vpack.c.b16 %v4373, %v4357
        %v5814 = vpack.c.b16 %v4374, %v4358
        %v5815 = vpack.c.b16 %v4375, %v4359
        %v5816 = vpack.c.b16 %v4376, %v4360
        %v5817 = vpack.c.b16 %v4377, %v4361
        %v5818 = vpack.c.b16 %v4378, %v4362
        %v5819 = vpack.c.b16 %v4379, %v4363
        %v5820 = vpack.c.b16 %v4380, %v4364
        %v5821 = vpack.c.b16 %v4381, %v4365
        %v5822 = vpack.c.b16 %v4382, %v4366
        %v5823 = vpack.c.b16 %v4383, %v4367
        %v5824 = vpack.c.b16 %v4384, %v4368
        %v5825 = vpack.c.b16 %v4385, %v4369
        %v5826 = vpack.c.b16 %v4386, %v4370
        %v5827 = vpack.c.b16 %v4403, %v4387
        %v5828 = vpack.c.b16 %v4404, %v4388
        %v5829 = vpack.c.b16 %v4405, %v4389
        %v5830 = vpack.c.b16 %v4406, %v4390
        %v5831 = vpack.c.b16 %v4407, %v4391
        %v5832 = vpack.c.b16 %v4408, %v4392
        %v5833 = vpack.c.b16 %v4409, %v4393
        %v5834 = vpack.c.b16 %v4410, %v4394
        %v5835 = vpack.c.b16 %v4411, %v4395
        %v5836 = vpack.c.b16 %v4412, %v4396
        %v5837 = vpack.c.b16 %v4413, %v4397
        %v5838 = vpack.c.b16 %v4414, %v4398
        %v5839 = vpack.c.b16 %v4415, %v4399
        %v5840 = vpack.c.b16 %v4416, %v4400
        %v5841 = vpack.c.b16 %v4417, %v4401
        %v5842 = vpack.c.b16 %v4418, %v4402
        %v5843 = vpack.c.b16 %v4435, %v4419
        %v5844 = vpack.c.b16 %v4436, %v4420
        %v5845 = vpack.c.b16 %v4437, %v4421
        %v5846 = vpack.c.b16 %v4438, %v4422
        %v5847 = vpack.c.b16 %v4439, %v4423
        %v5848 = vpack.c.b16 %v4440, %v4424
        %v5849 = vpack.c.b16 %v4441, %v4425
        %v5850 = vpack.c.b16 %v4442, %v4426
        %v5851 = vpack.c.b16 %v4443, %v4427
        %v5852 = vpack.c.b16 %v4444, %v4428
        %v5853 = vpack.c.b16 %v4445, %v4429
        %v5854 = vpack.c.b16 %v4446, %v4430
        %v5855 = vpack.c.b16 %v4447, %v4431
        %v5856 = vpack.c.b16 %v4448, %v4432
        %v5857 = vpack.c.b16 %v4449, %v4433
        %v5858 = vpack.c.b16 %v4450, %v4434
        %v5859 = vpack.c.b16 %v4467, %v4451
        %v5860 = vpack.c.b16 %v4468, %v4452
        %v5861 = vpack.c.b16 %v4469, %v4453
        %v5862 = vpack.c.b16 %v4470, %v4454
        %v5863 = vpack.c.b16 %v4471, %v4455
        %v5864 = vpack.c.b16 %v4472, %v4456
        %v5865 = vpack.c.b16 %v4473, %v4457
        %v5866 = vpack.c.b16 %v4474, %v4458
        %v5867 = vpack.c.b16 %v4475, %v4459
        %v5868 = vpack.c.b16 %v4476, %v4460
        %v5869 = vpack.c.b16 %v4477, %v4461
        %v5870 = vpack.c.b16 %v4478, %v4462
        %v5871 = vpack.c.b16 %v4479, %v4463
        %v5872 = vpack.c.b16 %v4480, %v4464
        %v5873 = vpack.c.b16 %v4481, %v4465
        %v5874 = vpack.c.b16 %v4482, %v4466
        %v5875 = vpack.c.b16 %v4499, %v4483
        %v5876 = vpack.c.b16 %v4500, %v4484
        %v5877 = vpack.c.b16 %v4501, %v4485
        %v5878 = vpack.c.b16 %v4502, %v4486
        %v5879 = vpack.c.b16 %v4503, %v4487
        %v5880 = vpack.c.b16 %v4504, %v4488
        %v5881 = vpack.c.b16 %v4505, %v4489
        %v5882 = vpack.c.b16 %v4506, %v4490
        %v5883 = vpack.c.b16 %v4507, %v4491
        %v5884 = vpack.c.b16 %v4508, %v4492
        %v5885 = vpack.c.b16 %v4509, %v4493
        %v5886 = vpack.c.b16 %v4510, %v4494
        %v5887 = vpack.c.b16 %v4511, %v4495
        %v5888 = vpack.c.b16 %v4512, %v4496
        %v5889 = vpack.c.b16 %v4513, %v4497
        %v5890 = vpack.c.b16 %v4514, %v4498
        %v5891 = vpack.c.b16 %v4531, %v4515
        %v5892 = vpack.c.b16 %v4532, %v4516
        %v5893 = vpack.c.b16 %v4533, %v4517
        %v5894 = vpack.c.b16 %v4534, %v4518
        %v5895 = vpack.c.b16 %v4535, %v4519
        %v5896 = vpack.c.b16 %v4536, %v4520
        %v5897 = vpack.c.b16 %v4537, %v4521
        %v5898 = vpack.c.b16 %v4538, %v4522
        %v5899 = vpack.c.b16 %v4539, %v4523
        %v5900 = vpack.c.b16 %v4540, %v4524
        %v5901 = vpack.c.b16 %v4541, %v4525
        %v5902 = vpack.c.b16 %v4542, %v4526
        %v5903 = vpack.c.b16 %v4543, %v4527
        %v5904 = vpack.c.b16 %v4544, %v4528
        %v5905 = vpack.c.b16 %v4545, %v4529
        %v5906 = vpack.c.b16 %v4546, %v4530
        %v5907 = vpack.c.b16 %v4563, %v4547
        %v5908 = vpack.c.b16 %v4564, %v4548
        %v5909 = vpack.c.b16 %v4565, %v4549
        %v5910 = vpack.c.b16 %v4566, %v4550
        %v5911 = vpack.c.b16 %v4567, %v4551
        %v5912 = vpack.c.b16 %v4568, %v4552
        %v5913 = vpack.c.b16 %v4569, %v4553
        %v5914 = vpack.c.b16 %v4570, %v4554
        %v5915 = vpack.c.b16 %v4571, %v4555
        %v5916 = vpack.c.b16 %v4572, %v4556
        %v5917 = vpack.c.b16 %v4573, %v4557
        %v5918 = vpack.c.b16 %v4574, %v4558
        %v5919 = vpack.c.b16 %v4575, %v4559
        %v5920 = vpack.c.b16 %v4576, %v4560
        %v5921 = vpack.c.b16 %v4577, %v4561
        %v5922 = vpack.c.b16 %v4578, %v4562
        %v5923 = vpack.c.b16 %v4595, %v4579
        %v5924 = vpack.c.b16 %v4596, %v4580
        %v5925 = vpack.c.b16 %v4597, %v4581
        %v5926 = vpack.c.b16 %v4598, %v4582
        %v5927 = vpack.c.b16 %v4599, %v4583
        %v5928 = vpack.c.b16 %v4600, %v4584
        %v5929 = vpack.c.b16 %v4601, %v4585
        %v5930 = vpack.c.b16 %v4602, %v4586
        %v5931 = vpack.c.b16 %v4603, %v4587
        %v5932 = vpack.c.b16 %v4604, %v4588
        %v5933 = vpack.c.b16 %v4605, %v4589
        %v5934 = vpack.c.b16 %v4606, %v4590
        %v5935 = vpack.c.b16 %v4607, %v4591
        %v5936 = vpack.c.b16 %v4608, %v4592
        %v5937 = vpack.c.b16 %v4609, %v4593
        %v5938 = vpack.c.b16 %v4610, %v4594
        %v5939 = vpack.c.b16 %v4627, %v4611
        %v5940 = vpack.c.b16 %v4628, %v4612
        %v5941 = vpack.c.b16 %v4629, %v4613
        %v5942 = vpack.c.b16 %v4630, %v4614
        %v5943 = vpack.c.b16 %v4631, %v4615
        %v5944 = vpack.c.b16 %v4632, %v4616
        %v5945 = vpack.c.b16 %v4633, %v4617
        %v5946 = vpack.c.b16 %v4634, %v4618
        %v5947 = vpack.c.b16 %v4635, %v4619
        %v5948 = vpack.c.b16 %v4636, %v4620
        %v5949 = vpack.c.b16 %v4637, %v4621
        %v5950 = vpack.c.b16 %v4638, %v4622
        %v5951 = vpack.c.b16 %v4639, %v4623
        %v5952 = vpack.c.b16 %v4640, %v4624
        %v5953 = vpack.c.b16 %v4641, %v4625
        %v5954 = vpack.c.b16 %v4642, %v4626
        %v5955 = vpack.c.b16 %v4659, %v4643
        %v5956 = vpack.c.b16 %v4660, %v4644
        %v5957 = vpack.c.b16 %v4661, %v4645
        %v5958 = vpack.c.b16 %v4662, %v4646
        %v5959 = vpack.c.b16 %v4663, %v4647
        %v5960 = vpack.c.b16 %v4664, %v4648
        %v5961 = vpack.c.b16 %v4665, %v4649
        %v5962 = vpack.c.b16 %v4666, %v4650
        %v5963 = vpack.c.b16 %v4667, %v4651
        %v5964 = vpack.c.b16 %v4668, %v4652
        %v5965 = vpack.c.b16 %v4669, %v4653
        %v5966 = vpack.c.b16 %v4670, %v4654
        %v5967 = vpack.c.b16 %v4671, %v4655
        %v5968 = vpack.c.b16 %v4672, %v4656
        %v5969 = vpack.c.b16 %v4673, %v4657
        %v5970 = vpack.c.b16 %v4674, %v4658
        %v5971 = vpack.c.b16 %v4691, %v4675
        %v5972 = vpack.c.b16 %v4692, %v4676
        %v5973 = vpack.c.b16 %v4693, %v4677
        %v5974 = vpack.c.b16 %v4694, %v4678
        %v5975 = vpack.c.b16 %v4695, %v4679
        %v5976 = vpack.c.b16 %v4696, %v4680
        %v5977 = vpack.c.b16 %v4697, %v4681
        %v5978 = vpack.c.b16 %v4698, %v4682
        %v5979 = vpack.c.b16 %v4699, %v4683
        %v5980 = vpack.c.b16 %v4700, %v4684
        %v5981 = vpack.c.b16 %v4701, %v4685
        %v5982 = vpack.c.b16 %v4702, %v4686
        %v5983 = vpack.c.b16 %v4703, %v4687
        %v5984 = vpack.c.b16 %v4704, %v4688
        %v5985 = vpack.c.b16 %v4705, %v4689
        %v5986 = vpack.c.b16 %v4706, %v4690
        %v5987 = vpack.c.b16 %v4723, %v4707
        %v5988 = vpack.c.b16 %v4724, %v4708
        %v5989 = vpack.c.b16 %v4725, %v4709
        %v5990 = vpack.c.b16 %v4726, %v4710
        %v5991 = vpack.c.b16 %v4727, %v4711
        %v5992 = vpack.c.b16 %v4728, %v4712
        %v5993 = vpack.c.b16 %v4729, %v4713
        %v5994 = vpack.c.b16 %v4730, %v4714
        %v5995 = vpack.c.b16 %v4731, %v4715
        %v5996 = vpack.c.b16 %v4732, %v4716
        %v5997 = vpack.c.b16 %v4733, %v4717
        %v5998 = vpack.c.b16 %v4734, %v4718
        %v5999 = vpack.c.b16 %v4735, %v4719
        %v6000 = vpack.c.b16 %v4736, %v4720
        %v6001 = vpack.c.b16 %v4737, %v4721
        %v6002 = vpack.c.b16 %v4738, %v4722
        %v6003 = vpack.c.b16 %v4755, %v4739
        %v6004 = vpack.c.b16 %v4756, %v4740
        %v6005 = vpack.c.b16 %v4757, %v4741
        %v6006 = vpack.c.b16 %v4758, %v4742
        %v6007 = vpack.c.b16 %v4759, %v4743
        %v6008 = vpack.c.b16 %v4760, %v4744
        %v6009 = vpack.c.b16 %v4761, %v4745
        %v6010 = vpack.c.b16 %v4762, %v4746
        %v6011 = vpack.c.b16 %v4763, %v4747
        %v6012 = vpack.c.b16 %v4764, %v4748
        %v6013 = vpack.c.b16 %v4765, %v4749
        %v6014 = vpack.c.b16 %v4766, %v4750
        %v6015 = vpack.c.b16 %v4767, %v4751
        %v6016 = vpack.c.b16 %v4768, %v4752
        %v6017 = vpack.c.b16 %v4769, %v4753
        %v6018 = vpack.c.b16 %v4770, %v4754
        %v6019 = vpack.c.b16 %v4787, %v4771
        %v6020 = vpack.c.b16 %v4788, %v4772
        %v6021 = vpack.c.b16 %v4789, %v4773
        %v6022 = vpack.c.b16 %v4790, %v4774
        %v6023 = vpack.c.b16 %v4791, %v4775
        %v6024 = vpack.c.b16 %v4792, %v4776
        %v6025 = vpack.c.b16 %v4793, %v4777
        %v6026 = vpack.c.b16 %v4794, %v4778
        %v6027 = vpack.c.b16 %v4795, %v4779
        %v6028 = vpack.c.b16 %v4796, %v4780
        %v6029 = vpack.c.b16 %v4797, %v4781
        %v6030 = vpack.c.b16 %v4798, %v4782
        %v6031 = vpack.c.b16 %v4799, %v4783
        %v6032 = vpack.c.b16 %v4800, %v4784
        %v6033 = vpack.c.b16 %v4801, %v4785
        %v6034 = vpack.c.b16 %v4802, %v4786
        %v6035 = vpack.c.b16 %v4819, %v4803
        %v6036 = vpack.c.b16 %v4820, %v4804
        %v6037 = vpack.c.b16 %v4821, %v4805
        %v6038 = vpack.c.b16 %v4822, %v4806
        %v6039 = vpack.c.b16 %v4823, %v4807
        %v6040 = vpack.c.b16 %v4824, %v4808
        %v6041 = vpack.c.b16 %v4825, %v4809
        %v6042 = vpack.c.b16 %v4826, %v4810
        %v6043 = vpack.c.b16 %v4827, %v4811
        %v6044 = vpack.c.b16 %v4828, %v4812
        %v6045 = vpack.c.b16 %v4829, %v4813
        %v6046 = vpack.c.b16 %v4830, %v4814
        %v6047 = vpack.c.b16 %v4831, %v4815
        %v6048 = vpack.c.b16 %v4832, %v4816
        %v6049 = vpack.c.b16 %v4833, %v4817
        %v6050 = vpack.c.b16 %v4834, %v4818
        %v6051 = vpack.c.b16 %v4851, %v4835
        %v6052 = vpack.c.b16 %v4852, %v4836
        %v6053 = vpack.c.b16 %v4853, %v4837
        %v6054 = vpack.c.b16 %v4854, %v4838
        %v6055 = vpack.c.b16 %v4855, %v4839
        %v6056 = vpack.c.b16 %v4856, %v4840
        %v6057 = vpack.c.b16 %v4857, %v4841
        %v6058 = vpack.c.b16 %v4858, %v4842
        %v6059 = vpack.c.b16 %v4859, %v4843
        %v6060 = vpack.c.b16 %v4860, %v4844
        %v6061 = vpack.c.b16 %v4861, %v4845
        %v6062 = vpack.c.b16 %v4862, %v4846
        %v6063 = vpack.c.b16 %v4863, %v4847
        %v6064 = vpack.c.b16 %v4864, %v4848
        %v6065 = vpack.c.b16 %v4865, %v4849
        %v6066 = vpack.c.b16 %v4866, %v4850
        %v6067 = vpack.c.b16 %v4883, %v4867
        %v6068 = vpack.c.b16 %v4884, %v4868
        %v6069 = vpack.c.b16 %v4885, %v4869
        %v6070 = vpack.c.b16 %v4886, %v4870
        %v6071 = vpack.c.b16 %v4887, %v4871
        %v6072 = vpack.c.b16 %v4888, %v4872
        %v6073 = vpack.c.b16 %v4889, %v4873
        %v6074 = vpack.c.b16 %v4890, %v4874
        %v6075 = vpack.c.b16 %v4891, %v4875
        %v6076 = vpack.c.b16 %v4892, %v4876
        %v6077 = vpack.c.b16 %v4893, %v4877
        %v6078 = vpack.c.b16 %v4894, %v4878
        %v6079 = vpack.c.b16 %v4895, %v4879
        %v6080 = vpack.c.b16 %v4896, %v4880
        %v6081 = vpack.c.b16 %v4897, %v4881
        %v6082 = vpack.c.b16 %v4898, %v4882
        %v6083 = vpack.c.b16 %v4915, %v4899
        %v6084 = vpack.c.b16 %v4916, %v4900
        %v6085 = vpack.c.b16 %v4917, %v4901
        %v6086 = vpack.c.b16 %v4918, %v4902
        %v6087 = vpack.c.b16 %v4919, %v4903
        %v6088 = vpack.c.b16 %v4920, %v4904
        %v6089 = vpack.c.b16 %v4921, %v4905
        %v6090 = vpack.c.b16 %v4922, %v4906
        %v6091 = vpack.c.b16 %v4923, %v4907
        %v6092 = vpack.c.b16 %v4924, %v4908
        %v6093 = vpack.c.b16 %v4925, %v4909
        %v6094 = vpack.c.b16 %v4926, %v4910
        %v6095 = vpack.c.b16 %v4927, %v4911
        %v6096 = vpack.c.b16 %v4928, %v4912
        %v6097 = vpack.c.b16 %v4929, %v4913
        %v6098 = vpack.c.b16 %v4930, %v4914
        %v6099 = vpack.c.b16 %v4947, %v4931
        %v6100 = vpack.c.b16 %v4948, %v4932
        %v6101 = vpack.c.b16 %v4949, %v4933
        %v6102 = vpack.c.b16 %v4950, %v4934
        %v6103 = vpack.c.b16 %v4951, %v4935
        %v6104 = vpack.c.b16 %v4952, %v4936
        %v6105 = vpack.c.b16 %v4953, %v4937
        %v6106 = vpack.c.b16 %v4954, %v4938
        %v6107 = vpack.c.b16 %v4955, %v4939
        %v6108 = vpack.c.b16 %v4956, %v4940
        %v6109 = vpack.c.b16 %v4957, %v4941
        %v6110 = vpack.c.b16 %v4958, %v4942
        %v6111 = vpack.c.b16 %v4959, %v4943
        %v6112 = vpack.c.b16 %v4960, %v4944
        %v6113 = vpack.c.b16 %v4961, %v4945
        %v6114 = vpack.c.b16 %v4962, %v4946
        %v6115 = vpack.c.b16 %v4979, %v4963
        %v6116 = vpack.c.b16 %v4980, %v4964
        %v6117 = vpack.c.b16 %v4981, %v4965
        %v6118 = vpack.c.b16 %v4982, %v4966
        %v6119 = vpack.c.b16 %v4983, %v4967
        %v6120 = vpack.c.b16 %v4984, %v4968
        %v6121 = vpack.c.b16 %v4985, %v4969
        %v6122 = vpack.c.b16 %v4986, %v4970
        %v6123 = vpack.c.b16 %v4987, %v4971
        %v6124 = vpack.c.b16 %v4988, %v4972
        %v6125 = vpack.c.b16 %v4989, %v4973
        %v6126 = vpack.c.b16 %v4990, %v4974
        %v6127 = vpack.c.b16 %v4991, %v4975
        %v6128 = vpack.c.b16 %v4992, %v4976
        %v6129 = vpack.c.b16 %v4993, %v4977
        %v6130 = vpack.c.b16 %v4994, %v4978
        %v6131 = vpack.c.b16 %v5011, %v4995
        %v6132 = vpack.c.b16 %v5012, %v4996
        %v6133 = vpack.c.b16 %v5013, %v4997
        %v6134 = vpack.c.b16 %v5014, %v4998
        %v6135 = vpack.c.b16 %v5015, %v4999
        %v6136 = vpack.c.b16 %v5016, %v5000
        %v6137 = vpack.c.b16 %v5017, %v5001
        %v6138 = vpack.c.b16 %v5018, %v5002
        %v6139 = vpack.c.b16 %v5019, %v5003
        %v6140 = vpack.c.b16 %v5020, %v5004
        %v6141 = vpack.c.b16 %v5021, %v5005
        %v6142 = vpack.c.b16 %v5022, %v5006
        %v6143 = vpack.c.b16 %v5023, %v5007
        %v6144 = vpack.c.b16 %v5024, %v5008
        %v6145 = vpack.c.b16 %v5025, %v5009
        %v6146 = vpack.c.b16 %v5026, %v5010
        %v6147 = vpack.c.b16 %v5043, %v5027
        %v6148 = vpack.c.b16 %v5044, %v5028
        %v6149 = vpack.c.b16 %v5045, %v5029
        %v6150 = vpack.c.b16 %v5046, %v5030
        %v6151 = vpack.c.b16 %v5047, %v5031
        %v6152 = vpack.c.b16 %v5048, %v5032
        %v6153 = vpack.c.b16 %v5049, %v5033
        %v6154 = vpack.c.b16 %v5050, %v5034
        %v6155 = vpack.c.b16 %v5051, %v5035
        %v6156 = vpack.c.b16 %v5052, %v5036
        %v6157 = vpack.c.b16 %v5053, %v5037
        %v6158 = vpack.c.b16 %v5054, %v5038
        %v6159 = vpack.c.b16 %v5055, %v5039
        %v6160 = vpack.c.b16 %v5056, %v5040
        %v6161 = vpack.c.b16 %v5057, %v5041
        %v6162 = vpack.c.b16 %v5058, %v5042
        %v6163 = vpack.c.b16 %v5075, %v5059
        %v6164 = vpack.c.b16 %v5076, %v5060
        %v6165 = vpack.c.b16 %v5077, %v5061
        %v6166 = vpack.c.b16 %v5078, %v5062
        %v6167 = vpack.c.b16 %v5079, %v5063
        %v6168 = vpack.c.b16 %v5080, %v5064
        %v6169 = vpack.c.b16 %v5081, %v5065
        %v6170 = vpack.c.b16 %v5082, %v5066
        %v6171 = vpack.c.b16 %v5083, %v5067
        %v6172 = vpack.c.b16 %v5084, %v5068
        %v6173 = vpack.c.b16 %v5085, %v5069
        %v6174 = vpack.c.b16 %v5086, %v5070
        %v6175 = vpack.c.b16 %v5087, %v5071
        %v6176 = vpack.c.b16 %v5088, %v5072
        %v6177 = vpack.c.b16 %v5089, %v5073
        %v6178 = vpack.c.b16 %v5090, %v5074
        %v6179 = vpack.c.b16 %v5107, %v5091
        %v6180 = vpack.c.b16 %v5108, %v5092
        %v6181 = vpack.c.b16 %v5109, %v5093
        %v6182 = vpack.c.b16 %v5110, %v5094
        %v6183 = vpack.c.b16 %v5111, %v5095
        %v6184 = vpack.c.b16 %v5112, %v5096
        %v6185 = vpack.c.b16 %v5113, %v5097
        %v6186 = vpack.c.b16 %v5114, %v5098
        %v6187 = vpack.c.b16 %v5115, %v5099
        %v6188 = vpack.c.b16 %v5116, %v5100
        %v6189 = vpack.c.b16 %v5117, %v5101
        %v6190 = vpack.c.b16 %v5118, %v5102
        %v6191 = vpack.c.b16 %v5119, %v5103
        %v6192 = vpack.c.b16 %v5120, %v5104
        %v6193 = vpack.c.b16 %v5121, %v5105
        %v6194 = vpack.c.b16 %v5122, %v5106
        %v6195 = vpack.c.b16 %v5139, %v5123
        %v6196 = vpack.c.b16 %v5140, %v5124
        %v6197 = vpack.c.b16 %v5141, %v5125
        %v6198 = vpack.c.b16 %v5142, %v5126
        %v6199 = vpack.c.b16 %v5143, %v5127
        %v6200 = vpack.c.b16 %v5144, %v5128
        %v6201 = vpack.c.b16 %v5145, %v5129
        %v6202 = vpack.c.b16 %v5146, %v5130
        %v6203 = vpack.c.b16 %v5147, %v5131
        %v6204 = vpack.c.b16 %v5148, %v5132
        %v6205 = vpack.c.b16 %v5149, %v5133
        %v6206 = vpack.c.b16 %v5150, %v5134
        %v6207 = vpack.c.b16 %v5151, %v5135
        %v6208 = vpack.c.b16 %v5152, %v5136
        %v6209 = vpack.c.b16 %v5153, %v5137
        %v6210 = vpack.c.b16 %v5154, %v5138
        %v6211 = vpack.c.b16 %v5171, %v5155
        %v6212 = vpack.c.b16 %v5172, %v5156
        %v6213 = vpack.c.b16 %v5173, %v5157
        %v6214 = vpack.c.b16 %v5174, %v5158
        %v6215 = vpack.c.b16 %v5175, %v5159
        %v6216 = vpack.c.b16 %v5176, %v5160
        %v6217 = vpack.c.b16 %v5177, %v5161
        %v6218 = vpack.c.b16 %v5178, %v5162
        %v6219 = vpack.c.b16 %v5179, %v5163
        %v6220 = vpack.c.b16 %v5180, %v5164
        %v6221 = vpack.c.b16 %v5181, %v5165
        %v6222 = vpack.c.b16 %v5182, %v5166
        %v6223 = vpack.c.b16 %v5183, %v5167
        %v6224 = vpack.c.b16 %v5184, %v5168
        %v6225 = vpack.c.b16 %v5185, %v5169
        %v6226 = vpack.c.b16 %v5186, %v5170
        %v6227 = vpack.c.b16 %v5203, %v5187
        %v6228 = vpack.c.b16 %v5204, %v5188
        %v6229 = vpack.c.b16 %v5205, %v5189
        %v6230 = vpack.c.b16 %v5206, %v5190
        %v6231 = vpack.c.b16 %v5207, %v5191
        %v6232 = vpack.c.b16 %v5208, %v5192
        %v6233 = vpack.c.b16 %v5209, %v5193
        %v6234 = vpack.c.b16 %v5210, %v5194
        %v6235 = vpack.c.b16 %v5211, %v5195
        %v6236 = vpack.c.b16 %v5212, %v5196
        %v6237 = vpack.c.b16 %v5213, %v5197
        %v6238 = vpack.c.b16 %v5214, %v5198
        %v6239 = vpack.c.b16 %v5215, %v5199
        %v6240 = vpack.c.b16 %v5216, %v5200
        %v6241 = vpack.c.b16 %v5217, %v5201
        %v6242 = vpack.c.b16 %v5218, %v5202
        %7267 = vmatpush.bf16.msra.mxu0 %v5331
        %7268 = vmatpush.bf16.msra.mxu0 %v5315
        %7269 = vmatpush.bf16.msra.mxu0 %v5299
        %7270 = vmatpush.bf16.msra.mxu0 %v5283
        %7271 = vmatpush.bf16.msra.mxu0 %v5267
        %7272 = vmatpush.bf16.msra.mxu0 %v5251
        %7273 = vmatpush.bf16.msra.mxu0 %v5235
        %7274 = vmatpush.bf16.msra.mxu0 %v5219
        %7275 = vmatmul.bf16.gmra.mxu0 %v1115
        %v7276 = vpop.f32.mrf.mxu0
        %v7277 = vadd.f32 0.0, %v7276
        %v7278 = vpop.f32.mrf.mxu0
        %7279 = vdwg.mxu0
        %7280 = vmatpush.bf16.msra.mxu0 %v5459
        %7281 = vmatpush.bf16.msra.mxu0 %v5443
        %7282 = vmatpush.bf16.msra.mxu0 %v5427
        %7283 = vmatpush.bf16.msra.mxu0 %v5411
        %7284 = vmatpush.bf16.msra.mxu0 %v5395
        %7285 = vmatpush.bf16.msra.mxu0 %v5379
        %7286 = vmatpush.bf16.msra.mxu0 %v5363
        %7287 = vmatpush.bf16.msra.mxu0 %v5347
        %7288 = vmatmul.bf16.gmra.mxu0 %v1116
        %v7289 = vpop.f32.mrf.mxu0
        %v7290 = vadd.f32 %v7277, %v7289
        %v7291 = vpop.f32.mrf.mxu0
        %7292 = vdwg.mxu0
        %7293 = vmatpush.bf16.msra.mxu0 %v5587
        %7294 = vmatpush.bf16.msra.mxu0 %v5571
        %7295 = vmatpush.bf16.msra.mxu0 %v5555
        %7296 = vmatpush.bf16.msra.mxu0 %v5539
        %7297 = vmatpush.bf16.msra.mxu0 %v5523
        %7298 = vmatpush.bf16.msra.mxu0 %v5507
        %7299 = vmatpush.bf16.msra.mxu0 %v5491
        %7300 = vmatpush.bf16.msra.mxu0 %v5475
        %7301 = vmatmul.bf16.gmra.mxu0 %v1117
        %v7302 = vpop.f32.mrf.mxu0
        %v7303 = vadd.f32 %v7290, %v7302
        %v7304 = vpop.f32.mrf.mxu0
        %7305 = vdwg.mxu0
        %7306 = vmatpush.bf16.msra.mxu0 %v5715
        %7307 = vmatpush.bf16.msra.mxu0 %v5699
        %7308 = vmatpush.bf16.msra.mxu0 %v5683
        %7309 = vmatpush.bf16.msra.mxu0 %v5667
        %7310 = vmatpush.bf16.msra.mxu0 %v5651
        %7311 = vmatpush.bf16.msra.mxu0 %v5635
        %7312 = vmatpush.bf16.msra.mxu0 %v5619
        %7313 = vmatpush.bf16.msra.mxu0 %v5603
        %7314 = vmatmul.bf16.gmra.mxu0 %v1118
        %v7315 = vpop.f32.mrf.mxu0
        %v7316 = vadd.f32 %v7303, %v7315
        %v7317 = vpop.f32.mrf.mxu0
        %7318 = vdwg.mxu0
        %7319 = vmatpush.bf16.msra.mxu0 %v5843
        %7320 = vmatpush.bf16.msra.mxu0 %v5827
        %7321 = vmatpush.bf16.msra.mxu0 %v5811
        %7322 = vmatpush.bf16.msra.mxu0 %v5795
        %7323 = vmatpush.bf16.msra.mxu0 %v5779
        %7324 = vmatpush.bf16.msra.mxu0 %v5763
        %7325 = vmatpush.bf16.msra.mxu0 %v5747
        %7326 = vmatpush.bf16.msra.mxu0 %v5731
        %7327 = vmatmul.bf16.gmra.mxu0 %v1119
        %v7328 = vpop.f32.mrf.mxu0
        %v7329 = vadd.f32 %v7316, %v7328
        %v7330 = vpop.f32.mrf.mxu0
        %7331 = vdwg.mxu0
        %7332 = vmatpush.bf16.msra.mxu0 %v5971
        %7333 = vmatpush.bf16.msra.mxu0 %v5955
        %7334 = vmatpush.bf16.msra.mxu0 %v5939
        %7335 = vmatpush.bf16.msra.mxu0 %v5923
        %7336 = vmatpush.bf16.msra.mxu0 %v5907
        %7337 = vmatpush.bf16.msra.mxu0 %v5891
        %7338 = vmatpush.bf16.msra.mxu0 %v5875
        %7339 = vmatpush.bf16.msra.mxu0 %v5859
        %7340 = vmatmul.bf16.gmra.mxu0 %v1120
        %v7341 = vpop.f32.mrf.mxu0
        %v7342 = vadd.f32 %v7329, %v7341
        %v7343 = vpop.f32.mrf.mxu0
        %7344 = vdwg.mxu0
        %7345 = vmatpush.bf16.msra.mxu0 %v6099
        %7346 = vmatpush.bf16.msra.mxu0 %v6083
        %7347 = vmatpush.bf16.msra.mxu0 %v6067
        %7348 = vmatpush.bf16.msra.mxu0 %v6051
        %7349 = vmatpush.bf16.msra.mxu0 %v6035
        %7350 = vmatpush.bf16.msra.mxu0 %v6019
        %7351 = vmatpush.bf16.msra.mxu0 %v6003
        %7352 = vmatpush.bf16.msra.mxu0 %v5987
        %7353 = vmatmul.bf16.gmra.mxu0 %v1121
        %v7354 = vpop.f32.mrf.mxu0
        %v7355 = vadd.f32 %v7342, %v7354
        %v7356 = vpop.f32.mrf.mxu0
        %7357 = vdwg.mxu0
        %7358 = vmatpush.bf16.msra.mxu0 %v6227
        %7359 = vmatpush.bf16.msra.mxu0 %v6211
        %7360 = vmatpush.bf16.msra.mxu0 %v6195
        %7361 = vmatpush.bf16.msra.mxu0 %v6179
        %7362 = vmatpush.bf16.msra.mxu0 %v6163
        %7363 = vmatpush.bf16.msra.mxu0 %v6147
        %7364 = vmatpush.bf16.msra.mxu0 %v6131
        %7365 = vmatpush.bf16.msra.mxu0 %v6115
        %7366 = vmatmul.bf16.gmra.mxu0 %v1122
        %v7367 = vpop.f32.mrf.mxu0
        %v7368 = vadd.f32 %v7355, %v7367
        %v7369 = vpop.f32.mrf.mxu0
        %7370 = vdwg.mxu0
        %7371 = vmatpush.bf16.msra.mxu0 %v5332
        %7372 = vmatpush.bf16.msra.mxu0 %v5316
        %7373 = vmatpush.bf16.msra.mxu0 %v5300
        %7374 = vmatpush.bf16.msra.mxu0 %v5284
        %7375 = vmatpush.bf16.msra.mxu0 %v5268
        %7376 = vmatpush.bf16.msra.mxu0 %v5252
        %7377 = vmatpush.bf16.msra.mxu0 %v5236
        %7378 = vmatpush.bf16.msra.mxu0 %v5220
        %7379 = vmatmul.bf16.gmra.mxu0 %v1115
        %v7380 = vpop.f32.mrf.mxu0
        %v7381 = vadd.f32 0.0, %v7380
        %v7382 = vpop.f32.mrf.mxu0
        %7383 = vdwg.mxu0
        %7384 = vmatpush.bf16.msra.mxu0 %v5460
        %7385 = vmatpush.bf16.msra.mxu0 %v5444
        %7386 = vmatpush.bf16.msra.mxu0 %v5428
        %7387 = vmatpush.bf16.msra.mxu0 %v5412
        %7388 = vmatpush.bf16.msra.mxu0 %v5396
        %7389 = vmatpush.bf16.msra.mxu0 %v5380
        %7390 = vmatpush.bf16.msra.mxu0 %v5364
        %7391 = vmatpush.bf16.msra.mxu0 %v5348
        %7392 = vmatmul.bf16.gmra.mxu0 %v1116
        %v7393 = vpop.f32.mrf.mxu0
        %v7394 = vadd.f32 %v7381, %v7393
        %v7395 = vpop.f32.mrf.mxu0
        %7396 = vdwg.mxu0
        %7397 = vmatpush.bf16.msra.mxu0 %v5588
        %7398 = vmatpush.bf16.msra.mxu0 %v5572
        %7399 = vmatpush.bf16.msra.mxu0 %v5556
        %7400 = vmatpush.bf16.msra.mxu0 %v5540
        %7401 = vmatpush.bf16.msra.mxu0 %v5524
        %7402 = vmatpush.bf16.msra.mxu0 %v5508
        %7403 = vmatpush.bf16.msra.mxu0 %v5492
        %7404 = vmatpush.bf16.msra.mxu0 %v5476
        %7405 = vmatmul.bf16.gmra.mxu0 %v1117
        %v7406 = vpop.f32.mrf.mxu0
        %v7407 = vadd.f32 %v7394, %v7406
        %v7408 = vpop.f32.mrf.mxu0
        %7409 = vdwg.mxu0
        %7410 = vmatpush.bf16.msra.mxu0 %v5716
        %7411 = vmatpush.bf16.msra.mxu0 %v5700
        %7412 = vmatpush.bf16.msra.mxu0 %v5684
        %7413 = vmatpush.bf16.msra.mxu0 %v5668
        %7414 = vmatpush.bf16.msra.mxu0 %v5652
        %7415 = vmatpush.bf16.msra.mxu0 %v5636
        %7416 = vmatpush.bf16.msra.mxu0 %v5620
        %7417 = vmatpush.bf16.msra.mxu0 %v5604
        %7418 = vmatmul.bf16.gmra.mxu0 %v1118
        %v7419 = vpop.f32.mrf.mxu0
        %v7420 = vadd.f32 %v7407, %v7419
        %v7421 = vpop.f32.mrf.mxu0
        %7422 = vdwg.mxu0
        %7423 = vmatpush.bf16.msra.mxu0 %v5844
        %7424 = vmatpush.bf16.msra.mxu0 %v5828
        %7425 = vmatpush.bf16.msra.mxu0 %v5812
        %7426 = vmatpush.bf16.msra.mxu0 %v5796
        %7427 = vmatpush.bf16.msra.mxu0 %v5780
        %7428 = vmatpush.bf16.msra.mxu0 %v5764
        %7429 = vmatpush.bf16.msra.mxu0 %v5748
        %7430 = vmatpush.bf16.msra.mxu0 %v5732
        %7431 = vmatmul.bf16.gmra.mxu0 %v1119
        %v7432 = vpop.f32.mrf.mxu0
        %v7433 = vadd.f32 %v7420, %v7432
        %v7434 = vpop.f32.mrf.mxu0
        %7435 = vdwg.mxu0
        %7436 = vmatpush.bf16.msra.mxu0 %v5972
        %7437 = vmatpush.bf16.msra.mxu0 %v5956
        %7438 = vmatpush.bf16.msra.mxu0 %v5940
        %7439 = vmatpush.bf16.msra.mxu0 %v5924
        %7440 = vmatpush.bf16.msra.mxu0 %v5908
        %7441 = vmatpush.bf16.msra.mxu0 %v5892
        %7442 = vmatpush.bf16.msra.mxu0 %v5876
        %7443 = vmatpush.bf16.msra.mxu0 %v5860
        %7444 = vmatmul.bf16.gmra.mxu0 %v1120
        %v7445 = vpop.f32.mrf.mxu0
        %v7446 = vadd.f32 %v7433, %v7445
        %v7447 = vpop.f32.mrf.mxu0
        %7448 = vdwg.mxu0
        %7449 = vmatpush.bf16.msra.mxu0 %v6100
        %7450 = vmatpush.bf16.msra.mxu0 %v6084
        %7451 = vmatpush.bf16.msra.mxu0 %v6068
        %7452 = vmatpush.bf16.msra.mxu0 %v6052
        %7453 = vmatpush.bf16.msra.mxu0 %v6036
        %7454 = vmatpush.bf16.msra.mxu0 %v6020
        %7455 = vmatpush.bf16.msra.mxu0 %v6004
        %7456 = vmatpush.bf16.msra.mxu0 %v5988
        %7457 = vmatmul.bf16.gmra.mxu0 %v1121
        %v7458 = vpop.f32.mrf.mxu0
        %v7459 = vadd.f32 %v7446, %v7458
        %v7460 = vpop.f32.mrf.mxu0
        %7461 = vdwg.mxu0
        %7462 = vmatpush.bf16.msra.mxu0 %v6228
        %7463 = vmatpush.bf16.msra.mxu0 %v6212
        %7464 = vmatpush.bf16.msra.mxu0 %v6196
        %7465 = vmatpush.bf16.msra.mxu0 %v6180
        %7466 = vmatpush.bf16.msra.mxu0 %v6164
        %7467 = vmatpush.bf16.msra.mxu0 %v6148
        %7468 = vmatpush.bf16.msra.mxu0 %v6132
        %7469 = vmatpush.bf16.msra.mxu0 %v6116
        %7470 = vmatmul.bf16.gmra.mxu0 %v1122
        %v7471 = vpop.f32.mrf.mxu0
        %v7472 = vadd.f32 %v7459, %v7471
        %v7473 = vpop.f32.mrf.mxu0
        %7474 = vdwg.mxu0
        %7475 = vmatpush.bf16.msra.mxu0 %v5333
        %7476 = vmatpush.bf16.msra.mxu0 %v5317
        %7477 = vmatpush.bf16.msra.mxu0 %v5301
        %7478 = vmatpush.bf16.msra.mxu0 %v5285
        %7479 = vmatpush.bf16.msra.mxu0 %v5269
        %7480 = vmatpush.bf16.msra.mxu0 %v5253
        %7481 = vmatpush.bf16.msra.mxu0 %v5237
        %7482 = vmatpush.bf16.msra.mxu0 %v5221
        %7483 = vmatmul.bf16.gmra.mxu0 %v1115
        %v7484 = vpop.f32.mrf.mxu0
        %v7485 = vadd.f32 0.0, %v7484
        %v7486 = vpop.f32.mrf.mxu0
        %7487 = vdwg.mxu0
        %7488 = vmatpush.bf16.msra.mxu0 %v5461
        %7489 = vmatpush.bf16.msra.mxu0 %v5445
        %7490 = vmatpush.bf16.msra.mxu0 %v5429
        %7491 = vmatpush.bf16.msra.mxu0 %v5413
        %7492 = vmatpush.bf16.msra.mxu0 %v5397
        %7493 = vmatpush.bf16.msra.mxu0 %v5381
        %7494 = vmatpush.bf16.msra.mxu0 %v5365
        %7495 = vmatpush.bf16.msra.mxu0 %v5349
        %7496 = vmatmul.bf16.gmra.mxu0 %v1116
        %v7497 = vpop.f32.mrf.mxu0
        %v7498 = vadd.f32 %v7485, %v7497
        %v7499 = vpop.f32.mrf.mxu0
        %7500 = vdwg.mxu0
        %7501 = vmatpush.bf16.msra.mxu0 %v5589
        %7502 = vmatpush.bf16.msra.mxu0 %v5573
        %7503 = vmatpush.bf16.msra.mxu0 %v5557
        %7504 = vmatpush.bf16.msra.mxu0 %v5541
        %7505 = vmatpush.bf16.msra.mxu0 %v5525
        %7506 = vmatpush.bf16.msra.mxu0 %v5509
        %7507 = vmatpush.bf16.msra.mxu0 %v5493
        %7508 = vmatpush.bf16.msra.mxu0 %v5477
        %7509 = vmatmul.bf16.gmra.mxu0 %v1117
        %v7510 = vpop.f32.mrf.mxu0
        %v7511 = vadd.f32 %v7498, %v7510
        %v7512 = vpop.f32.mrf.mxu0
        %7513 = vdwg.mxu0
        %7514 = vmatpush.bf16.msra.mxu0 %v5717
        %7515 = vmatpush.bf16.msra.mxu0 %v5701
        %7516 = vmatpush.bf16.msra.mxu0 %v5685
        %7517 = vmatpush.bf16.msra.mxu0 %v5669
        %7518 = vmatpush.bf16.msra.mxu0 %v5653
        %7519 = vmatpush.bf16.msra.mxu0 %v5637
        %7520 = vmatpush.bf16.msra.mxu0 %v5621
        %7521 = vmatpush.bf16.msra.mxu0 %v5605
        %7522 = vmatmul.bf16.gmra.mxu0 %v1118
        %v7523 = vpop.f32.mrf.mxu0
        %v7524 = vadd.f32 %v7511, %v7523
        %v7525 = vpop.f32.mrf.mxu0
        %7526 = vdwg.mxu0
        %7527 = vmatpush.bf16.msra.mxu0 %v5845
        %7528 = vmatpush.bf16.msra.mxu0 %v5829
        %7529 = vmatpush.bf16.msra.mxu0 %v5813
        %7530 = vmatpush.bf16.msra.mxu0 %v5797
        %7531 = vmatpush.bf16.msra.mxu0 %v5781
        %7532 = vmatpush.bf16.msra.mxu0 %v5765
        %7533 = vmatpush.bf16.msra.mxu0 %v5749
        %7534 = vmatpush.bf16.msra.mxu0 %v5733
        %7535 = vmatmul.bf16.gmra.mxu0 %v1119
        %v7536 = vpop.f32.mrf.mxu0
        %v7537 = vadd.f32 %v7524, %v7536
        %v7538 = vpop.f32.mrf.mxu0
        %7539 = vdwg.mxu0
        %7540 = vmatpush.bf16.msra.mxu0 %v5973
        %7541 = vmatpush.bf16.msra.mxu0 %v5957
        %7542 = vmatpush.bf16.msra.mxu0 %v5941
        %7543 = vmatpush.bf16.msra.mxu0 %v5925
        %7544 = vmatpush.bf16.msra.mxu0 %v5909
        %7545 = vmatpush.bf16.msra.mxu0 %v5893
        %7546 = vmatpush.bf16.msra.mxu0 %v5877
        %7547 = vmatpush.bf16.msra.mxu0 %v5861
        %7548 = vmatmul.bf16.gmra.mxu0 %v1120
        %v7549 = vpop.f32.mrf.mxu0
        %v7550 = vadd.f32 %v7537, %v7549
        %v7551 = vpop.f32.mrf.mxu0
        %7552 = vdwg.mxu0
        %7553 = vmatpush.bf16.msra.mxu0 %v6101
        %7554 = vmatpush.bf16.msra.mxu0 %v6085
        %7555 = vmatpush.bf16.msra.mxu0 %v6069
        %7556 = vmatpush.bf16.msra.mxu0 %v6053
        %7557 = vmatpush.bf16.msra.mxu0 %v6037
        %7558 = vmatpush.bf16.msra.mxu0 %v6021
        %7559 = vmatpush.bf16.msra.mxu0 %v6005
        %7560 = vmatpush.bf16.msra.mxu0 %v5989
        %7561 = vmatmul.bf16.gmra.mxu0 %v1121
        %v7562 = vpop.f32.mrf.mxu0
        %v7563 = vadd.f32 %v7550, %v7562
        %v7564 = vpop.f32.mrf.mxu0
        %7565 = vdwg.mxu0
        %7566 = vmatpush.bf16.msra.mxu0 %v6229
        %7567 = vmatpush.bf16.msra.mxu0 %v6213
        %7568 = vmatpush.bf16.msra.mxu0 %v6197
        %7569 = vmatpush.bf16.msra.mxu0 %v6181
        %7570 = vmatpush.bf16.msra.mxu0 %v6165
        %7571 = vmatpush.bf16.msra.mxu0 %v6149
        %7572 = vmatpush.bf16.msra.mxu0 %v6133
        %7573 = vmatpush.bf16.msra.mxu0 %v6117
        %7574 = vmatmul.bf16.gmra.mxu0 %v1122
        %v7575 = vpop.f32.mrf.mxu0
        %v7576 = vadd.f32 %v7563, %v7575
        %v7577 = vpop.f32.mrf.mxu0
        %7578 = vdwg.mxu0
        %7579 = vmatpush.bf16.msra.mxu0 %v5334
        %7580 = vmatpush.bf16.msra.mxu0 %v5318
        %7581 = vmatpush.bf16.msra.mxu0 %v5302
        %7582 = vmatpush.bf16.msra.mxu0 %v5286
        %7583 = vmatpush.bf16.msra.mxu0 %v5270
        %7584 = vmatpush.bf16.msra.mxu0 %v5254
        %7585 = vmatpush.bf16.msra.mxu0 %v5238
        %7586 = vmatpush.bf16.msra.mxu0 %v5222
        %7587 = vmatmul.bf16.gmra.mxu0 %v1115
        %v7588 = vpop.f32.mrf.mxu0
        %v7589 = vadd.f32 0.0, %v7588
        %v7590 = vpop.f32.mrf.mxu0
        %7591 = vdwg.mxu0
        %7592 = vmatpush.bf16.msra.mxu0 %v5462
        %7593 = vmatpush.bf16.msra.mxu0 %v5446
        %7594 = vmatpush.bf16.msra.mxu0 %v5430
        %7595 = vmatpush.bf16.msra.mxu0 %v5414
        %7596 = vmatpush.bf16.msra.mxu0 %v5398
        %7597 = vmatpush.bf16.msra.mxu0 %v5382
        %7598 = vmatpush.bf16.msra.mxu0 %v5366
        %7599 = vmatpush.bf16.msra.mxu0 %v5350
        %7600 = vmatmul.bf16.gmra.mxu0 %v1116
        %v7601 = vpop.f32.mrf.mxu0
        %v7602 = vadd.f32 %v7589, %v7601
        %v7603 = vpop.f32.mrf.mxu0
        %7604 = vdwg.mxu0
        %7605 = vmatpush.bf16.msra.mxu0 %v5590
        %7606 = vmatpush.bf16.msra.mxu0 %v5574
        %7607 = vmatpush.bf16.msra.mxu0 %v5558
        %7608 = vmatpush.bf16.msra.mxu0 %v5542
        %7609 = vmatpush.bf16.msra.mxu0 %v5526
        %7610 = vmatpush.bf16.msra.mxu0 %v5510
        %7611 = vmatpush.bf16.msra.mxu0 %v5494
        %7612 = vmatpush.bf16.msra.mxu0 %v5478
        %7613 = vmatmul.bf16.gmra.mxu0 %v1117
        %v7614 = vpop.f32.mrf.mxu0
        %v7615 = vadd.f32 %v7602, %v7614
        %v7616 = vpop.f32.mrf.mxu0
        %7617 = vdwg.mxu0
        %7618 = vmatpush.bf16.msra.mxu0 %v5718
        %7619 = vmatpush.bf16.msra.mxu0 %v5702
        %7620 = vmatpush.bf16.msra.mxu0 %v5686
        %7621 = vmatpush.bf16.msra.mxu0 %v5670
        %7622 = vmatpush.bf16.msra.mxu0 %v5654
        %7623 = vmatpush.bf16.msra.mxu0 %v5638
        %7624 = vmatpush.bf16.msra.mxu0 %v5622
        %7625 = vmatpush.bf16.msra.mxu0 %v5606
        %7626 = vmatmul.bf16.gmra.mxu0 %v1118
        %v7627 = vpop.f32.mrf.mxu0
        %v7628 = vadd.f32 %v7615, %v7627
        %v7629 = vpop.f32.mrf.mxu0
        %7630 = vdwg.mxu0
        %7631 = vmatpush.bf16.msra.mxu0 %v5846
        %7632 = vmatpush.bf16.msra.mxu0 %v5830
        %7633 = vmatpush.bf16.msra.mxu0 %v5814
        %7634 = vmatpush.bf16.msra.mxu0 %v5798
        %7635 = vmatpush.bf16.msra.mxu0 %v5782
        %7636 = vmatpush.bf16.msra.mxu0 %v5766
        %7637 = vmatpush.bf16.msra.mxu0 %v5750
        %7638 = vmatpush.bf16.msra.mxu0 %v5734
        %7639 = vmatmul.bf16.gmra.mxu0 %v1119
        %v7640 = vpop.f32.mrf.mxu0
        %v7641 = vadd.f32 %v7628, %v7640
        %v7642 = vpop.f32.mrf.mxu0
        %7643 = vdwg.mxu0
        %7644 = vmatpush.bf16.msra.mxu0 %v5974
        %7645 = vmatpush.bf16.msra.mxu0 %v5958
        %7646 = vmatpush.bf16.msra.mxu0 %v5942
        %7647 = vmatpush.bf16.msra.mxu0 %v5926
        %7648 = vmatpush.bf16.msra.mxu0 %v5910
        %7649 = vmatpush.bf16.msra.mxu0 %v5894
        %7650 = vmatpush.bf16.msra.mxu0 %v5878
        %7651 = vmatpush.bf16.msra.mxu0 %v5862
        %7652 = vmatmul.bf16.gmra.mxu0 %v1120
        %v7653 = vpop.f32.mrf.mxu0
        %v7654 = vadd.f32 %v7641, %v7653
        %v7655 = vpop.f32.mrf.mxu0
        %7656 = vdwg.mxu0
        %7657 = vmatpush.bf16.msra.mxu0 %v6102
        %7658 = vmatpush.bf16.msra.mxu0 %v6086
        %7659 = vmatpush.bf16.msra.mxu0 %v6070
        %7660 = vmatpush.bf16.msra.mxu0 %v6054
        %7661 = vmatpush.bf16.msra.mxu0 %v6038
        %7662 = vmatpush.bf16.msra.mxu0 %v6022
        %7663 = vmatpush.bf16.msra.mxu0 %v6006
        %7664 = vmatpush.bf16.msra.mxu0 %v5990
        %7665 = vmatmul.bf16.gmra.mxu0 %v1121
        %v7666 = vpop.f32.mrf.mxu0
        %v7667 = vadd.f32 %v7654, %v7666
        %v7668 = vpop.f32.mrf.mxu0
        %7669 = vdwg.mxu0
        %7670 = vmatpush.bf16.msra.mxu0 %v6230
        %7671 = vmatpush.bf16.msra.mxu0 %v6214
        %7672 = vmatpush.bf16.msra.mxu0 %v6198
        %7673 = vmatpush.bf16.msra.mxu0 %v6182
        %7674 = vmatpush.bf16.msra.mxu0 %v6166
        %7675 = vmatpush.bf16.msra.mxu0 %v6150
        %7676 = vmatpush.bf16.msra.mxu0 %v6134
        %7677 = vmatpush.bf16.msra.mxu0 %v6118
        %7678 = vmatmul.bf16.gmra.mxu0 %v1122
        %v7679 = vpop.f32.mrf.mxu0
        %v7680 = vadd.f32 %v7667, %v7679
        %v7681 = vpop.f32.mrf.mxu0
        %7682 = vdwg.mxu0
        %7683 = vmatpush.bf16.msra.mxu0 %v5335
        %7684 = vmatpush.bf16.msra.mxu0 %v5319
        %7685 = vmatpush.bf16.msra.mxu0 %v5303
        %7686 = vmatpush.bf16.msra.mxu0 %v5287
        %7687 = vmatpush.bf16.msra.mxu0 %v5271
        %7688 = vmatpush.bf16.msra.mxu0 %v5255
        %7689 = vmatpush.bf16.msra.mxu0 %v5239
        %7690 = vmatpush.bf16.msra.mxu0 %v5223
        %7691 = vmatmul.bf16.gmra.mxu0 %v1115
        %v7692 = vpop.f32.mrf.mxu0
        %v7693 = vadd.f32 0.0, %v7692
        %v7694 = vpop.f32.mrf.mxu0
        %7695 = vdwg.mxu0
        %7696 = vmatpush.bf16.msra.mxu0 %v5463
        %7697 = vmatpush.bf16.msra.mxu0 %v5447
        %7698 = vmatpush.bf16.msra.mxu0 %v5431
        %7699 = vmatpush.bf16.msra.mxu0 %v5415
        %7700 = vmatpush.bf16.msra.mxu0 %v5399
        %7701 = vmatpush.bf16.msra.mxu0 %v5383
        %7702 = vmatpush.bf16.msra.mxu0 %v5367
        %7703 = vmatpush.bf16.msra.mxu0 %v5351
        %7704 = vmatmul.bf16.gmra.mxu0 %v1116
        %v7705 = vpop.f32.mrf.mxu0
        %v7706 = vadd.f32 %v7693, %v7705
        %v7707 = vpop.f32.mrf.mxu0
        %7708 = vdwg.mxu0
        %7709 = vmatpush.bf16.msra.mxu0 %v5591
        %7710 = vmatpush.bf16.msra.mxu0 %v5575
        %7711 = vmatpush.bf16.msra.mxu0 %v5559
        %7712 = vmatpush.bf16.msra.mxu0 %v5543
        %7713 = vmatpush.bf16.msra.mxu0 %v5527
        %7714 = vmatpush.bf16.msra.mxu0 %v5511
        %7715 = vmatpush.bf16.msra.mxu0 %v5495
        %7716 = vmatpush.bf16.msra.mxu0 %v5479
        %7717 = vmatmul.bf16.gmra.mxu0 %v1117
        %v7718 = vpop.f32.mrf.mxu0
        %v7719 = vadd.f32 %v7706, %v7718
        %v7720 = vpop.f32.mrf.mxu0
        %7721 = vdwg.mxu0
        %7722 = vmatpush.bf16.msra.mxu0 %v5719
        %7723 = vmatpush.bf16.msra.mxu0 %v5703
        %7724 = vmatpush.bf16.msra.mxu0 %v5687
        %7725 = vmatpush.bf16.msra.mxu0 %v5671
        %7726 = vmatpush.bf16.msra.mxu0 %v5655
        %7727 = vmatpush.bf16.msra.mxu0 %v5639
        %7728 = vmatpush.bf16.msra.mxu0 %v5623
        %7729 = vmatpush.bf16.msra.mxu0 %v5607
        %7730 = vmatmul.bf16.gmra.mxu0 %v1118
        %v7731 = vpop.f32.mrf.mxu0
        %v7732 = vadd.f32 %v7719, %v7731
        %v7733 = vpop.f32.mrf.mxu0
        %7734 = vdwg.mxu0
        %7735 = vmatpush.bf16.msra.mxu0 %v5847
        %7736 = vmatpush.bf16.msra.mxu0 %v5831
        %7737 = vmatpush.bf16.msra.mxu0 %v5815
        %7738 = vmatpush.bf16.msra.mxu0 %v5799
        %7739 = vmatpush.bf16.msra.mxu0 %v5783
        %7740 = vmatpush.bf16.msra.mxu0 %v5767
        %7741 = vmatpush.bf16.msra.mxu0 %v5751
        %7742 = vmatpush.bf16.msra.mxu0 %v5735
        %7743 = vmatmul.bf16.gmra.mxu0 %v1119
        %v7744 = vpop.f32.mrf.mxu0
        %v7745 = vadd.f32 %v7732, %v7744
        %v7746 = vpop.f32.mrf.mxu0
        %7747 = vdwg.mxu0
        %7748 = vmatpush.bf16.msra.mxu0 %v5975
        %7749 = vmatpush.bf16.msra.mxu0 %v5959
        %7750 = vmatpush.bf16.msra.mxu0 %v5943
        %7751 = vmatpush.bf16.msra.mxu0 %v5927
        %7752 = vmatpush.bf16.msra.mxu0 %v5911
        %7753 = vmatpush.bf16.msra.mxu0 %v5895
        %7754 = vmatpush.bf16.msra.mxu0 %v5879
        %7755 = vmatpush.bf16.msra.mxu0 %v5863
        %7756 = vmatmul.bf16.gmra.mxu0 %v1120
        %v7757 = vpop.f32.mrf.mxu0
        %v7758 = vadd.f32 %v7745, %v7757
        %v7759 = vpop.f32.mrf.mxu0
        %7760 = vdwg.mxu0
        %7761 = vmatpush.bf16.msra.mxu0 %v6103
        %7762 = vmatpush.bf16.msra.mxu0 %v6087
        %7763 = vmatpush.bf16.msra.mxu0 %v6071
        %7764 = vmatpush.bf16.msra.mxu0 %v6055
        %7765 = vmatpush.bf16.msra.mxu0 %v6039
        %7766 = vmatpush.bf16.msra.mxu0 %v6023
        %7767 = vmatpush.bf16.msra.mxu0 %v6007
        %7768 = vmatpush.bf16.msra.mxu0 %v5991
        %7769 = vmatmul.bf16.gmra.mxu0 %v1121
        %v7770 = vpop.f32.mrf.mxu0
        %v7771 = vadd.f32 %v7758, %v7770
        %v7772 = vpop.f32.mrf.mxu0
        %7773 = vdwg.mxu0
        %7774 = vmatpush.bf16.msra.mxu0 %v6231
        %7775 = vmatpush.bf16.msra.mxu0 %v6215
        %7776 = vmatpush.bf16.msra.mxu0 %v6199
        %7777 = vmatpush.bf16.msra.mxu0 %v6183
        %7778 = vmatpush.bf16.msra.mxu0 %v6167
        %7779 = vmatpush.bf16.msra.mxu0 %v6151
        %7780 = vmatpush.bf16.msra.mxu0 %v6135
        %7781 = vmatpush.bf16.msra.mxu0 %v6119
        %7782 = vmatmul.bf16.gmra.mxu0 %v1122
        %v7783 = vpop.f32.mrf.mxu0
        %v7784 = vadd.f32 %v7771, %v7783
        %v7785 = vpop.f32.mrf.mxu0
        %7786 = vdwg.mxu0
        %7787 = vmatpush.bf16.msra.mxu0 %v5336
        %7788 = vmatpush.bf16.msra.mxu0 %v5320
        %7789 = vmatpush.bf16.msra.mxu0 %v5304
        %7790 = vmatpush.bf16.msra.mxu0 %v5288
        %7791 = vmatpush.bf16.msra.mxu0 %v5272
        %7792 = vmatpush.bf16.msra.mxu0 %v5256
        %7793 = vmatpush.bf16.msra.mxu0 %v5240
        %7794 = vmatpush.bf16.msra.mxu0 %v5224
        %7795 = vmatmul.bf16.gmra.mxu0 %v1115
        %v7796 = vpop.f32.mrf.mxu0
        %v7797 = vadd.f32 0.0, %v7796
        %v7798 = vpop.f32.mrf.mxu0
        %7799 = vdwg.mxu0
        %7800 = vmatpush.bf16.msra.mxu0 %v5464
        %7801 = vmatpush.bf16.msra.mxu0 %v5448
        %7802 = vmatpush.bf16.msra.mxu0 %v5432
        %7803 = vmatpush.bf16.msra.mxu0 %v5416
        %7804 = vmatpush.bf16.msra.mxu0 %v5400
        %7805 = vmatpush.bf16.msra.mxu0 %v5384
        %7806 = vmatpush.bf16.msra.mxu0 %v5368
        %7807 = vmatpush.bf16.msra.mxu0 %v5352
        %7808 = vmatmul.bf16.gmra.mxu0 %v1116
        %v7809 = vpop.f32.mrf.mxu0
        %v7810 = vadd.f32 %v7797, %v7809
        %v7811 = vpop.f32.mrf.mxu0
        %7812 = vdwg.mxu0
        %7813 = vmatpush.bf16.msra.mxu0 %v5592
        %7814 = vmatpush.bf16.msra.mxu0 %v5576
        %7815 = vmatpush.bf16.msra.mxu0 %v5560
        %7816 = vmatpush.bf16.msra.mxu0 %v5544
        %7817 = vmatpush.bf16.msra.mxu0 %v5528
        %7818 = vmatpush.bf16.msra.mxu0 %v5512
        %7819 = vmatpush.bf16.msra.mxu0 %v5496
        %7820 = vmatpush.bf16.msra.mxu0 %v5480
        %7821 = vmatmul.bf16.gmra.mxu0 %v1117
        %v7822 = vpop.f32.mrf.mxu0
        %v7823 = vadd.f32 %v7810, %v7822
        %v7824 = vpop.f32.mrf.mxu0
        %7825 = vdwg.mxu0
        %7826 = vmatpush.bf16.msra.mxu0 %v5720
        %7827 = vmatpush.bf16.msra.mxu0 %v5704
        %7828 = vmatpush.bf16.msra.mxu0 %v5688
        %7829 = vmatpush.bf16.msra.mxu0 %v5672
        %7830 = vmatpush.bf16.msra.mxu0 %v5656
        %7831 = vmatpush.bf16.msra.mxu0 %v5640
        %7832 = vmatpush.bf16.msra.mxu0 %v5624
        %7833 = vmatpush.bf16.msra.mxu0 %v5608
        %7834 = vmatmul.bf16.gmra.mxu0 %v1118
        %v7835 = vpop.f32.mrf.mxu0
        %v7836 = vadd.f32 %v7823, %v7835
        %v7837 = vpop.f32.mrf.mxu0
        %7838 = vdwg.mxu0
        %7839 = vmatpush.bf16.msra.mxu0 %v5848
        %7840 = vmatpush.bf16.msra.mxu0 %v5832
        %7841 = vmatpush.bf16.msra.mxu0 %v5816
        %7842 = vmatpush.bf16.msra.mxu0 %v5800
        %7843 = vmatpush.bf16.msra.mxu0 %v5784
        %7844 = vmatpush.bf16.msra.mxu0 %v5768
        %7845 = vmatpush.bf16.msra.mxu0 %v5752
        %7846 = vmatpush.bf16.msra.mxu0 %v5736
        %7847 = vmatmul.bf16.gmra.mxu0 %v1119
        %v7848 = vpop.f32.mrf.mxu0
        %v7849 = vadd.f32 %v7836, %v7848
        %v7850 = vpop.f32.mrf.mxu0
        %7851 = vdwg.mxu0
        %7852 = vmatpush.bf16.msra.mxu0 %v5976
        %7853 = vmatpush.bf16.msra.mxu0 %v5960
        %7854 = vmatpush.bf16.msra.mxu0 %v5944
        %7855 = vmatpush.bf16.msra.mxu0 %v5928
        %7856 = vmatpush.bf16.msra.mxu0 %v5912
        %7857 = vmatpush.bf16.msra.mxu0 %v5896
        %7858 = vmatpush.bf16.msra.mxu0 %v5880
        %7859 = vmatpush.bf16.msra.mxu0 %v5864
        %7860 = vmatmul.bf16.gmra.mxu0 %v1120
        %v7861 = vpop.f32.mrf.mxu0
        %v7862 = vadd.f32 %v7849, %v7861
        %v7863 = vpop.f32.mrf.mxu0
        %7864 = vdwg.mxu0
        %7865 = vmatpush.bf16.msra.mxu0 %v6104
        %7866 = vmatpush.bf16.msra.mxu0 %v6088
        %7867 = vmatpush.bf16.msra.mxu0 %v6072
        %7868 = vmatpush.bf16.msra.mxu0 %v6056
        %7869 = vmatpush.bf16.msra.mxu0 %v6040
        %7870 = vmatpush.bf16.msra.mxu0 %v6024
        %7871 = vmatpush.bf16.msra.mxu0 %v6008
        %7872 = vmatpush.bf16.msra.mxu0 %v5992
        %7873 = vmatmul.bf16.gmra.mxu0 %v1121
        %v7874 = vpop.f32.mrf.mxu0
        %v7875 = vadd.f32 %v7862, %v7874
        %v7876 = vpop.f32.mrf.mxu0
        %7877 = vdwg.mxu0
        %7878 = vmatpush.bf16.msra.mxu0 %v6232
        %7879 = vmatpush.bf16.msra.mxu0 %v6216
        %7880 = vmatpush.bf16.msra.mxu0 %v6200
        %7881 = vmatpush.bf16.msra.mxu0 %v6184
        %7882 = vmatpush.bf16.msra.mxu0 %v6168
        %7883 = vmatpush.bf16.msra.mxu0 %v6152
        %7884 = vmatpush.bf16.msra.mxu0 %v6136
        %7885 = vmatpush.bf16.msra.mxu0 %v6120
        %7886 = vmatmul.bf16.gmra.mxu0 %v1122
        %v7887 = vpop.f32.mrf.mxu0
        %v7888 = vadd.f32 %v7875, %v7887
        %v7889 = vpop.f32.mrf.mxu0
        %7890 = vdwg.mxu0
        %7891 = vmatpush.bf16.msra.mxu0 %v5337
        %7892 = vmatpush.bf16.msra.mxu0 %v5321
        %7893 = vmatpush.bf16.msra.mxu0 %v5305
        %7894 = vmatpush.bf16.msra.mxu0 %v5289
        %7895 = vmatpush.bf16.msra.mxu0 %v5273
        %7896 = vmatpush.bf16.msra.mxu0 %v5257
        %7897 = vmatpush.bf16.msra.mxu0 %v5241
        %7898 = vmatpush.bf16.msra.mxu0 %v5225
        %7899 = vmatmul.bf16.gmra.mxu0 %v1115
        %v7900 = vpop.f32.mrf.mxu0
        %v7901 = vadd.f32 0.0, %v7900
        %v7902 = vpop.f32.mrf.mxu0
        %7903 = vdwg.mxu0
        %7904 = vmatpush.bf16.msra.mxu0 %v5465
        %7905 = vmatpush.bf16.msra.mxu0 %v5449
        %7906 = vmatpush.bf16.msra.mxu0 %v5433
        %7907 = vmatpush.bf16.msra.mxu0 %v5417
        %7908 = vmatpush.bf16.msra.mxu0 %v5401
        %7909 = vmatpush.bf16.msra.mxu0 %v5385
        %7910 = vmatpush.bf16.msra.mxu0 %v5369
        %7911 = vmatpush.bf16.msra.mxu0 %v5353
        %7912 = vmatmul.bf16.gmra.mxu0 %v1116
        %v7913 = vpop.f32.mrf.mxu0
        %v7914 = vadd.f32 %v7901, %v7913
        %v7915 = vpop.f32.mrf.mxu0
        %7916 = vdwg.mxu0
        %7917 = vmatpush.bf16.msra.mxu0 %v5593
        %7918 = vmatpush.bf16.msra.mxu0 %v5577
        %7919 = vmatpush.bf16.msra.mxu0 %v5561
        %7920 = vmatpush.bf16.msra.mxu0 %v5545
        %7921 = vmatpush.bf16.msra.mxu0 %v5529
        %7922 = vmatpush.bf16.msra.mxu0 %v5513
        %7923 = vmatpush.bf16.msra.mxu0 %v5497
        %7924 = vmatpush.bf16.msra.mxu0 %v5481
        %7925 = vmatmul.bf16.gmra.mxu0 %v1117
        %v7926 = vpop.f32.mrf.mxu0
        %v7927 = vadd.f32 %v7914, %v7926
        %v7928 = vpop.f32.mrf.mxu0
        %7929 = vdwg.mxu0
        %7930 = vmatpush.bf16.msra.mxu0 %v5721
        %7931 = vmatpush.bf16.msra.mxu0 %v5705
        %7932 = vmatpush.bf16.msra.mxu0 %v5689
        %7933 = vmatpush.bf16.msra.mxu0 %v5673
        %7934 = vmatpush.bf16.msra.mxu0 %v5657
        %7935 = vmatpush.bf16.msra.mxu0 %v5641
        %7936 = vmatpush.bf16.msra.mxu0 %v5625
        %7937 = vmatpush.bf16.msra.mxu0 %v5609
        %7938 = vmatmul.bf16.gmra.mxu0 %v1118
        %v7939 = vpop.f32.mrf.mxu0
        %v7940 = vadd.f32 %v7927, %v7939
        %v7941 = vpop.f32.mrf.mxu0
        %7942 = vdwg.mxu0
        %7943 = vmatpush.bf16.msra.mxu0 %v5849
        %7944 = vmatpush.bf16.msra.mxu0 %v5833
        %7945 = vmatpush.bf16.msra.mxu0 %v5817
        %7946 = vmatpush.bf16.msra.mxu0 %v5801
        %7947 = vmatpush.bf16.msra.mxu0 %v5785
        %7948 = vmatpush.bf16.msra.mxu0 %v5769
        %7949 = vmatpush.bf16.msra.mxu0 %v5753
        %7950 = vmatpush.bf16.msra.mxu0 %v5737
        %7951 = vmatmul.bf16.gmra.mxu0 %v1119
        %v7952 = vpop.f32.mrf.mxu0
        %v7953 = vadd.f32 %v7940, %v7952
        %v7954 = vpop.f32.mrf.mxu0
        %7955 = vdwg.mxu0
        %7956 = vmatpush.bf16.msra.mxu0 %v5977
        %7957 = vmatpush.bf16.msra.mxu0 %v5961
        %7958 = vmatpush.bf16.msra.mxu0 %v5945
        %7959 = vmatpush.bf16.msra.mxu0 %v5929
        %7960 = vmatpush.bf16.msra.mxu0 %v5913
        %7961 = vmatpush.bf16.msra.mxu0 %v5897
        %7962 = vmatpush.bf16.msra.mxu0 %v5881
        %7963 = vmatpush.bf16.msra.mxu0 %v5865
        %7964 = vmatmul.bf16.gmra.mxu0 %v1120
        %v7965 = vpop.f32.mrf.mxu0
        %v7966 = vadd.f32 %v7953, %v7965
        %v7967 = vpop.f32.mrf.mxu0
        %7968 = vdwg.mxu0
        %7969 = vmatpush.bf16.msra.mxu0 %v6105
        %7970 = vmatpush.bf16.msra.mxu0 %v6089
        %7971 = vmatpush.bf16.msra.mxu0 %v6073
        %7972 = vmatpush.bf16.msra.mxu0 %v6057
        %7973 = vmatpush.bf16.msra.mxu0 %v6041
        %7974 = vmatpush.bf16.msra.mxu0 %v6025
        %7975 = vmatpush.bf16.msra.mxu0 %v6009
        %7976 = vmatpush.bf16.msra.mxu0 %v5993
        %7977 = vmatmul.bf16.gmra.mxu0 %v1121
        %v7978 = vpop.f32.mrf.mxu0
        %v7979 = vadd.f32 %v7966, %v7978
        %v7980 = vpop.f32.mrf.mxu0
        %7981 = vdwg.mxu0
        %7982 = vmatpush.bf16.msra.mxu0 %v6233
        %7983 = vmatpush.bf16.msra.mxu0 %v6217
        %7984 = vmatpush.bf16.msra.mxu0 %v6201
        %7985 = vmatpush.bf16.msra.mxu0 %v6185
        %7986 = vmatpush.bf16.msra.mxu0 %v6169
        %7987 = vmatpush.bf16.msra.mxu0 %v6153
        %7988 = vmatpush.bf16.msra.mxu0 %v6137
        %7989 = vmatpush.bf16.msra.mxu0 %v6121
        %7990 = vmatmul.bf16.gmra.mxu0 %v1122
        %v7991 = vpop.f32.mrf.mxu0
        %v7992 = vadd.f32 %v7979, %v7991
        %v7993 = vpop.f32.mrf.mxu0
        %7994 = vdwg.mxu0
        %7995 = vmatpush.bf16.msra.mxu0 %v5338
        %7996 = vmatpush.bf16.msra.mxu0 %v5322
        %7997 = vmatpush.bf16.msra.mxu0 %v5306
        %7998 = vmatpush.bf16.msra.mxu0 %v5290
        %7999 = vmatpush.bf16.msra.mxu0 %v5274
        %8000 = vmatpush.bf16.msra.mxu0 %v5258
        %8001 = vmatpush.bf16.msra.mxu0 %v5242
        %8002 = vmatpush.bf16.msra.mxu0 %v5226
        %8003 = vmatmul.bf16.gmra.mxu0 %v1115
        %v8004 = vpop.f32.mrf.mxu0
        %v8005 = vadd.f32 0.0, %v8004
        %v8006 = vpop.f32.mrf.mxu0
        %8007 = vdwg.mxu0
        %8008 = vmatpush.bf16.msra.mxu0 %v5466
        %8009 = vmatpush.bf16.msra.mxu0 %v5450
        %8010 = vmatpush.bf16.msra.mxu0 %v5434
        %8011 = vmatpush.bf16.msra.mxu0 %v5418
        %8012 = vmatpush.bf16.msra.mxu0 %v5402
        %8013 = vmatpush.bf16.msra.mxu0 %v5386
        %8014 = vmatpush.bf16.msra.mxu0 %v5370
        %8015 = vmatpush.bf16.msra.mxu0 %v5354
        %8016 = vmatmul.bf16.gmra.mxu0 %v1116
        %v8017 = vpop.f32.mrf.mxu0
        %v8018 = vadd.f32 %v8005, %v8017
        %v8019 = vpop.f32.mrf.mxu0
        %8020 = vdwg.mxu0
        %8021 = vmatpush.bf16.msra.mxu0 %v5594
        %8022 = vmatpush.bf16.msra.mxu0 %v5578
        %8023 = vmatpush.bf16.msra.mxu0 %v5562
        %8024 = vmatpush.bf16.msra.mxu0 %v5546
        %8025 = vmatpush.bf16.msra.mxu0 %v5530
        %8026 = vmatpush.bf16.msra.mxu0 %v5514
        %8027 = vmatpush.bf16.msra.mxu0 %v5498
        %8028 = vmatpush.bf16.msra.mxu0 %v5482
        %8029 = vmatmul.bf16.gmra.mxu0 %v1117
        %v8030 = vpop.f32.mrf.mxu0
        %v8031 = vadd.f32 %v8018, %v8030
        %v8032 = vpop.f32.mrf.mxu0
        %8033 = vdwg.mxu0
        %8034 = vmatpush.bf16.msra.mxu0 %v5722
        %8035 = vmatpush.bf16.msra.mxu0 %v5706
        %8036 = vmatpush.bf16.msra.mxu0 %v5690
        %8037 = vmatpush.bf16.msra.mxu0 %v5674
        %8038 = vmatpush.bf16.msra.mxu0 %v5658
        %8039 = vmatpush.bf16.msra.mxu0 %v5642
        %8040 = vmatpush.bf16.msra.mxu0 %v5626
        %8041 = vmatpush.bf16.msra.mxu0 %v5610
        %8042 = vmatmul.bf16.gmra.mxu0 %v1118
        %v8043 = vpop.f32.mrf.mxu0
        %v8044 = vadd.f32 %v8031, %v8043
        %v8045 = vpop.f32.mrf.mxu0
        %8046 = vdwg.mxu0
        %8047 = vmatpush.bf16.msra.mxu0 %v5850
        %8048 = vmatpush.bf16.msra.mxu0 %v5834
        %8049 = vmatpush.bf16.msra.mxu0 %v5818
        %8050 = vmatpush.bf16.msra.mxu0 %v5802
        %8051 = vmatpush.bf16.msra.mxu0 %v5786
        %8052 = vmatpush.bf16.msra.mxu0 %v5770
        %8053 = vmatpush.bf16.msra.mxu0 %v5754
        %8054 = vmatpush.bf16.msra.mxu0 %v5738
        %8055 = vmatmul.bf16.gmra.mxu0 %v1119
        %v8056 = vpop.f32.mrf.mxu0
        %v8057 = vadd.f32 %v8044, %v8056
        %v8058 = vpop.f32.mrf.mxu0
        %8059 = vdwg.mxu0
        %8060 = vmatpush.bf16.msra.mxu0 %v5978
        %8061 = vmatpush.bf16.msra.mxu0 %v5962
        %8062 = vmatpush.bf16.msra.mxu0 %v5946
        %8063 = vmatpush.bf16.msra.mxu0 %v5930
        %8064 = vmatpush.bf16.msra.mxu0 %v5914
        %8065 = vmatpush.bf16.msra.mxu0 %v5898
        %8066 = vmatpush.bf16.msra.mxu0 %v5882
        %8067 = vmatpush.bf16.msra.mxu0 %v5866
        %8068 = vmatmul.bf16.gmra.mxu0 %v1120
        %v8069 = vpop.f32.mrf.mxu0
        %v8070 = vadd.f32 %v8057, %v8069
        %v8071 = vpop.f32.mrf.mxu0
        %8072 = vdwg.mxu0
        %8073 = vmatpush.bf16.msra.mxu0 %v6106
        %8074 = vmatpush.bf16.msra.mxu0 %v6090
        %8075 = vmatpush.bf16.msra.mxu0 %v6074
        %8076 = vmatpush.bf16.msra.mxu0 %v6058
        %8077 = vmatpush.bf16.msra.mxu0 %v6042
        %8078 = vmatpush.bf16.msra.mxu0 %v6026
        %8079 = vmatpush.bf16.msra.mxu0 %v6010
        %8080 = vmatpush.bf16.msra.mxu0 %v5994
        %8081 = vmatmul.bf16.gmra.mxu0 %v1121
        %v8082 = vpop.f32.mrf.mxu0
        %v8083 = vadd.f32 %v8070, %v8082
        %v8084 = vpop.f32.mrf.mxu0
        %8085 = vdwg.mxu0
        %8086 = vmatpush.bf16.msra.mxu0 %v6234
        %8087 = vmatpush.bf16.msra.mxu0 %v6218
        %8088 = vmatpush.bf16.msra.mxu0 %v6202
        %8089 = vmatpush.bf16.msra.mxu0 %v6186
        %8090 = vmatpush.bf16.msra.mxu0 %v6170
        %8091 = vmatpush.bf16.msra.mxu0 %v6154
        %8092 = vmatpush.bf16.msra.mxu0 %v6138
        %8093 = vmatpush.bf16.msra.mxu0 %v6122
        %8094 = vmatmul.bf16.gmra.mxu0 %v1122
        %v8095 = vpop.f32.mrf.mxu0
        %v8096 = vadd.f32 %v8083, %v8095
        %v8097 = vpop.f32.mrf.mxu0
        %8098 = vdwg.mxu0
        %8099 = vmatpush.bf16.msra.mxu0 %v5339
        %8100 = vmatpush.bf16.msra.mxu0 %v5323
        %8101 = vmatpush.bf16.msra.mxu0 %v5307
        %8102 = vmatpush.bf16.msra.mxu0 %v5291
        %8103 = vmatpush.bf16.msra.mxu0 %v5275
        %8104 = vmatpush.bf16.msra.mxu0 %v5259
        %8105 = vmatpush.bf16.msra.mxu0 %v5243
        %8106 = vmatpush.bf16.msra.mxu0 %v5227
        %8107 = vmatmul.bf16.gmra.mxu0 %v1115
        %v8108 = vpop.f32.mrf.mxu0
        %v8109 = vadd.f32 0.0, %v8108
        %v8110 = vpop.f32.mrf.mxu0
        %8111 = vdwg.mxu0
        %8112 = vmatpush.bf16.msra.mxu0 %v5467
        %8113 = vmatpush.bf16.msra.mxu0 %v5451
        %8114 = vmatpush.bf16.msra.mxu0 %v5435
        %8115 = vmatpush.bf16.msra.mxu0 %v5419
        %8116 = vmatpush.bf16.msra.mxu0 %v5403
        %8117 = vmatpush.bf16.msra.mxu0 %v5387
        %8118 = vmatpush.bf16.msra.mxu0 %v5371
        %8119 = vmatpush.bf16.msra.mxu0 %v5355
        %8120 = vmatmul.bf16.gmra.mxu0 %v1116
        %v8121 = vpop.f32.mrf.mxu0
        %v8122 = vadd.f32 %v8109, %v8121
        %v8123 = vpop.f32.mrf.mxu0
        %8124 = vdwg.mxu0
        %8125 = vmatpush.bf16.msra.mxu0 %v5595
        %8126 = vmatpush.bf16.msra.mxu0 %v5579
        %8127 = vmatpush.bf16.msra.mxu0 %v5563
        %8128 = vmatpush.bf16.msra.mxu0 %v5547
        %8129 = vmatpush.bf16.msra.mxu0 %v5531
        %8130 = vmatpush.bf16.msra.mxu0 %v5515
        %8131 = vmatpush.bf16.msra.mxu0 %v5499
        %8132 = vmatpush.bf16.msra.mxu0 %v5483
        %8133 = vmatmul.bf16.gmra.mxu0 %v1117
        %v8134 = vpop.f32.mrf.mxu0
        %v8135 = vadd.f32 %v8122, %v8134
        %v8136 = vpop.f32.mrf.mxu0
        %8137 = vdwg.mxu0
        %8138 = vmatpush.bf16.msra.mxu0 %v5723
        %8139 = vmatpush.bf16.msra.mxu0 %v5707
        %8140 = vmatpush.bf16.msra.mxu0 %v5691
        %8141 = vmatpush.bf16.msra.mxu0 %v5675
        %8142 = vmatpush.bf16.msra.mxu0 %v5659
        %8143 = vmatpush.bf16.msra.mxu0 %v5643
        %8144 = vmatpush.bf16.msra.mxu0 %v5627
        %8145 = vmatpush.bf16.msra.mxu0 %v5611
        %8146 = vmatmul.bf16.gmra.mxu0 %v1118
        %v8147 = vpop.f32.mrf.mxu0
        %v8148 = vadd.f32 %v8135, %v8147
        %v8149 = vpop.f32.mrf.mxu0
        %8150 = vdwg.mxu0
        %8151 = vmatpush.bf16.msra.mxu0 %v5851
        %8152 = vmatpush.bf16.msra.mxu0 %v5835
        %8153 = vmatpush.bf16.msra.mxu0 %v5819
        %8154 = vmatpush.bf16.msra.mxu0 %v5803
        %8155 = vmatpush.bf16.msra.mxu0 %v5787
        %8156 = vmatpush.bf16.msra.mxu0 %v5771
        %8157 = vmatpush.bf16.msra.mxu0 %v5755
        %8158 = vmatpush.bf16.msra.mxu0 %v5739
        %8159 = vmatmul.bf16.gmra.mxu0 %v1119
        %v8160 = vpop.f32.mrf.mxu0
        %v8161 = vadd.f32 %v8148, %v8160
        %v8162 = vpop.f32.mrf.mxu0
        %8163 = vdwg.mxu0
        %8164 = vmatpush.bf16.msra.mxu0 %v5979
        %8165 = vmatpush.bf16.msra.mxu0 %v5963
        %8166 = vmatpush.bf16.msra.mxu0 %v5947
        %8167 = vmatpush.bf16.msra.mxu0 %v5931
        %8168 = vmatpush.bf16.msra.mxu0 %v5915
        %8169 = vmatpush.bf16.msra.mxu0 %v5899
        %8170 = vmatpush.bf16.msra.mxu0 %v5883
        %8171 = vmatpush.bf16.msra.mxu0 %v5867
        %8172 = vmatmul.bf16.gmra.mxu0 %v1120
        %v8173 = vpop.f32.mrf.mxu0
        %v8174 = vadd.f32 %v8161, %v8173
        %v8175 = vpop.f32.mrf.mxu0
        %8176 = vdwg.mxu0
        %8177 = vmatpush.bf16.msra.mxu0 %v6107
        %8178 = vmatpush.bf16.msra.mxu0 %v6091
        %8179 = vmatpush.bf16.msra.mxu0 %v6075
        %8180 = vmatpush.bf16.msra.mxu0 %v6059
        %8181 = vmatpush.bf16.msra.mxu0 %v6043
        %8182 = vmatpush.bf16.msra.mxu0 %v6027
        %8183 = vmatpush.bf16.msra.mxu0 %v6011
        %8184 = vmatpush.bf16.msra.mxu0 %v5995
        %8185 = vmatmul.bf16.gmra.mxu0 %v1121
        %v8186 = vpop.f32.mrf.mxu0
        %v8187 = vadd.f32 %v8174, %v8186
        %v8188 = vpop.f32.mrf.mxu0
        %8189 = vdwg.mxu0
        %8190 = vmatpush.bf16.msra.mxu0 %v6235
        %8191 = vmatpush.bf16.msra.mxu0 %v6219
        %8192 = vmatpush.bf16.msra.mxu0 %v6203
        %8193 = vmatpush.bf16.msra.mxu0 %v6187
        %8194 = vmatpush.bf16.msra.mxu0 %v6171
        %8195 = vmatpush.bf16.msra.mxu0 %v6155
        %8196 = vmatpush.bf16.msra.mxu0 %v6139
        %8197 = vmatpush.bf16.msra.mxu0 %v6123
        %8198 = vmatmul.bf16.gmra.mxu0 %v1122
        %v8199 = vpop.f32.mrf.mxu0
        %v8200 = vadd.f32 %v8187, %v8199
        %v8201 = vpop.f32.mrf.mxu0
        %8202 = vdwg.mxu0
        %8203 = vmatpush.bf16.msra.mxu0 %v5340
        %8204 = vmatpush.bf16.msra.mxu0 %v5324
        %8205 = vmatpush.bf16.msra.mxu0 %v5308
        %8206 = vmatpush.bf16.msra.mxu0 %v5292
        %8207 = vmatpush.bf16.msra.mxu0 %v5276
        %8208 = vmatpush.bf16.msra.mxu0 %v5260
        %8209 = vmatpush.bf16.msra.mxu0 %v5244
        %8210 = vmatpush.bf16.msra.mxu0 %v5228
        %8211 = vmatmul.bf16.gmra.mxu0 %v1115
        %v8212 = vpop.f32.mrf.mxu0
        %v8213 = vadd.f32 0.0, %v8212
        %v8214 = vpop.f32.mrf.mxu0
        %8215 = vdwg.mxu0
        %8216 = vmatpush.bf16.msra.mxu0 %v5468
        %8217 = vmatpush.bf16.msra.mxu0 %v5452
        %8218 = vmatpush.bf16.msra.mxu0 %v5436
        %8219 = vmatpush.bf16.msra.mxu0 %v5420
        %8220 = vmatpush.bf16.msra.mxu0 %v5404
        %8221 = vmatpush.bf16.msra.mxu0 %v5388
        %8222 = vmatpush.bf16.msra.mxu0 %v5372
        %8223 = vmatpush.bf16.msra.mxu0 %v5356
        %8224 = vmatmul.bf16.gmra.mxu0 %v1116
        %v8225 = vpop.f32.mrf.mxu0
        %v8226 = vadd.f32 %v8213, %v8225
        %v8227 = vpop.f32.mrf.mxu0
        %8228 = vdwg.mxu0
        %8229 = vmatpush.bf16.msra.mxu0 %v5596
        %8230 = vmatpush.bf16.msra.mxu0 %v5580
        %8231 = vmatpush.bf16.msra.mxu0 %v5564
        %8232 = vmatpush.bf16.msra.mxu0 %v5548
        %8233 = vmatpush.bf16.msra.mxu0 %v5532
        %8234 = vmatpush.bf16.msra.mxu0 %v5516
        %8235 = vmatpush.bf16.msra.mxu0 %v5500
        %8236 = vmatpush.bf16.msra.mxu0 %v5484
        %8237 = vmatmul.bf16.gmra.mxu0 %v1117
        %v8238 = vpop.f32.mrf.mxu0
        %v8239 = vadd.f32 %v8226, %v8238
        %v8240 = vpop.f32.mrf.mxu0
        %8241 = vdwg.mxu0
        %8242 = vmatpush.bf16.msra.mxu0 %v5724
        %8243 = vmatpush.bf16.msra.mxu0 %v5708
        %8244 = vmatpush.bf16.msra.mxu0 %v5692
        %8245 = vmatpush.bf16.msra.mxu0 %v5676
        %8246 = vmatpush.bf16.msra.mxu0 %v5660
        %8247 = vmatpush.bf16.msra.mxu0 %v5644
        %8248 = vmatpush.bf16.msra.mxu0 %v5628
        %8249 = vmatpush.bf16.msra.mxu0 %v5612
        %8250 = vmatmul.bf16.gmra.mxu0 %v1118
        %v8251 = vpop.f32.mrf.mxu0
        %v8252 = vadd.f32 %v8239, %v8251
        %v8253 = vpop.f32.mrf.mxu0
        %8254 = vdwg.mxu0
        %8255 = vmatpush.bf16.msra.mxu0 %v5852
        %8256 = vmatpush.bf16.msra.mxu0 %v5836
        %8257 = vmatpush.bf16.msra.mxu0 %v5820
        %8258 = vmatpush.bf16.msra.mxu0 %v5804
        %8259 = vmatpush.bf16.msra.mxu0 %v5788
        %8260 = vmatpush.bf16.msra.mxu0 %v5772
        %8261 = vmatpush.bf16.msra.mxu0 %v5756
        %8262 = vmatpush.bf16.msra.mxu0 %v5740
        %8263 = vmatmul.bf16.gmra.mxu0 %v1119
        %v8264 = vpop.f32.mrf.mxu0
        %v8265 = vadd.f32 %v8252, %v8264
        %v8266 = vpop.f32.mrf.mxu0
        %8267 = vdwg.mxu0
        %8268 = vmatpush.bf16.msra.mxu0 %v5980
        %8269 = vmatpush.bf16.msra.mxu0 %v5964
        %8270 = vmatpush.bf16.msra.mxu0 %v5948
        %8271 = vmatpush.bf16.msra.mxu0 %v5932
        %8272 = vmatpush.bf16.msra.mxu0 %v5916
        %8273 = vmatpush.bf16.msra.mxu0 %v5900
        %8274 = vmatpush.bf16.msra.mxu0 %v5884
        %8275 = vmatpush.bf16.msra.mxu0 %v5868
        %8276 = vmatmul.bf16.gmra.mxu0 %v1120
        %v8277 = vpop.f32.mrf.mxu0
        %v8278 = vadd.f32 %v8265, %v8277
        %v8279 = vpop.f32.mrf.mxu0
        %8280 = vdwg.mxu0
        %8281 = vmatpush.bf16.msra.mxu0 %v6108
        %8282 = vmatpush.bf16.msra.mxu0 %v6092
        %8283 = vmatpush.bf16.msra.mxu0 %v6076
        %8284 = vmatpush.bf16.msra.mxu0 %v6060
        %8285 = vmatpush.bf16.msra.mxu0 %v6044
        %8286 = vmatpush.bf16.msra.mxu0 %v6028
        %8287 = vmatpush.bf16.msra.mxu0 %v6012
        %8288 = vmatpush.bf16.msra.mxu0 %v5996
        %8289 = vmatmul.bf16.gmra.mxu0 %v1121
        %v8290 = vpop.f32.mrf.mxu0
        %v8291 = vadd.f32 %v8278, %v8290
        %v8292 = vpop.f32.mrf.mxu0
        %8293 = vdwg.mxu0
        %8294 = vmatpush.bf16.msra.mxu0 %v6236
        %8295 = vmatpush.bf16.msra.mxu0 %v6220
        %8296 = vmatpush.bf16.msra.mxu0 %v6204
        %8297 = vmatpush.bf16.msra.mxu0 %v6188
        %8298 = vmatpush.bf16.msra.mxu0 %v6172
        %8299 = vmatpush.bf16.msra.mxu0 %v6156
        %8300 = vmatpush.bf16.msra.mxu0 %v6140
        %8301 = vmatpush.bf16.msra.mxu0 %v6124
        %8302 = vmatmul.bf16.gmra.mxu0 %v1122
        %v8303 = vpop.f32.mrf.mxu0
        %v8304 = vadd.f32 %v8291, %v8303
        %v8305 = vpop.f32.mrf.mxu0
        %8306 = vdwg.mxu0
        %8307 = vmatpush.bf16.msra.mxu0 %v5341
        %8308 = vmatpush.bf16.msra.mxu0 %v5325
        %8309 = vmatpush.bf16.msra.mxu0 %v5309
        %8310 = vmatpush.bf16.msra.mxu0 %v5293
        %8311 = vmatpush.bf16.msra.mxu0 %v5277
        %8312 = vmatpush.bf16.msra.mxu0 %v5261
        %8313 = vmatpush.bf16.msra.mxu0 %v5245
        %8314 = vmatpush.bf16.msra.mxu0 %v5229
        %8315 = vmatmul.bf16.gmra.mxu0 %v1115
        %v8316 = vpop.f32.mrf.mxu0
        %v8317 = vadd.f32 0.0, %v8316
        %v8318 = vpop.f32.mrf.mxu0
        %8319 = vdwg.mxu0
        %8320 = vmatpush.bf16.msra.mxu0 %v5469
        %8321 = vmatpush.bf16.msra.mxu0 %v5453
        %8322 = vmatpush.bf16.msra.mxu0 %v5437
        %8323 = vmatpush.bf16.msra.mxu0 %v5421
        %8324 = vmatpush.bf16.msra.mxu0 %v5405
        %8325 = vmatpush.bf16.msra.mxu0 %v5389
        %8326 = vmatpush.bf16.msra.mxu0 %v5373
        %8327 = vmatpush.bf16.msra.mxu0 %v5357
        %8328 = vmatmul.bf16.gmra.mxu0 %v1116
        %v8329 = vpop.f32.mrf.mxu0
        %v8330 = vadd.f32 %v8317, %v8329
        %v8331 = vpop.f32.mrf.mxu0
        %8332 = vdwg.mxu0
        %8333 = vmatpush.bf16.msra.mxu0 %v5597
        %8334 = vmatpush.bf16.msra.mxu0 %v5581
        %8335 = vmatpush.bf16.msra.mxu0 %v5565
        %8336 = vmatpush.bf16.msra.mxu0 %v5549
        %8337 = vmatpush.bf16.msra.mxu0 %v5533
        %8338 = vmatpush.bf16.msra.mxu0 %v5517
        %8339 = vmatpush.bf16.msra.mxu0 %v5501
        %8340 = vmatpush.bf16.msra.mxu0 %v5485
        %8341 = vmatmul.bf16.gmra.mxu0 %v1117
        %v8342 = vpop.f32.mrf.mxu0
        %v8343 = vadd.f32 %v8330, %v8342
        %v8344 = vpop.f32.mrf.mxu0
        %8345 = vdwg.mxu0
        %8346 = vmatpush.bf16.msra.mxu0 %v5725
        %8347 = vmatpush.bf16.msra.mxu0 %v5709
        %8348 = vmatpush.bf16.msra.mxu0 %v5693
        %8349 = vmatpush.bf16.msra.mxu0 %v5677
        %8350 = vmatpush.bf16.msra.mxu0 %v5661
        %8351 = vmatpush.bf16.msra.mxu0 %v5645
        %8352 = vmatpush.bf16.msra.mxu0 %v5629
        %8353 = vmatpush.bf16.msra.mxu0 %v5613
        %8354 = vmatmul.bf16.gmra.mxu0 %v1118
        %v8355 = vpop.f32.mrf.mxu0
        %v8356 = vadd.f32 %v8343, %v8355
        %v8357 = vpop.f32.mrf.mxu0
        %8358 = vdwg.mxu0
        %8359 = vmatpush.bf16.msra.mxu0 %v5853
        %8360 = vmatpush.bf16.msra.mxu0 %v5837
        %8361 = vmatpush.bf16.msra.mxu0 %v5821
        %8362 = vmatpush.bf16.msra.mxu0 %v5805
        %8363 = vmatpush.bf16.msra.mxu0 %v5789
        %8364 = vmatpush.bf16.msra.mxu0 %v5773
        %8365 = vmatpush.bf16.msra.mxu0 %v5757
        %8366 = vmatpush.bf16.msra.mxu0 %v5741
        %8367 = vmatmul.bf16.gmra.mxu0 %v1119
        %v8368 = vpop.f32.mrf.mxu0
        %v8369 = vadd.f32 %v8356, %v8368
        %v8370 = vpop.f32.mrf.mxu0
        %8371 = vdwg.mxu0
        %8372 = vmatpush.bf16.msra.mxu0 %v5981
        %8373 = vmatpush.bf16.msra.mxu0 %v5965
        %8374 = vmatpush.bf16.msra.mxu0 %v5949
        %8375 = vmatpush.bf16.msra.mxu0 %v5933
        %8376 = vmatpush.bf16.msra.mxu0 %v5917
        %8377 = vmatpush.bf16.msra.mxu0 %v5901
        %8378 = vmatpush.bf16.msra.mxu0 %v5885
        %8379 = vmatpush.bf16.msra.mxu0 %v5869
        %8380 = vmatmul.bf16.gmra.mxu0 %v1120
        %v8381 = vpop.f32.mrf.mxu0
        %v8382 = vadd.f32 %v8369, %v8381
        %v8383 = vpop.f32.mrf.mxu0
        %8384 = vdwg.mxu0
        %8385 = vmatpush.bf16.msra.mxu0 %v6109
        %8386 = vmatpush.bf16.msra.mxu0 %v6093
        %8387 = vmatpush.bf16.msra.mxu0 %v6077
        %8388 = vmatpush.bf16.msra.mxu0 %v6061
        %8389 = vmatpush.bf16.msra.mxu0 %v6045
        %8390 = vmatpush.bf16.msra.mxu0 %v6029
        %8391 = vmatpush.bf16.msra.mxu0 %v6013
        %8392 = vmatpush.bf16.msra.mxu0 %v5997
        %8393 = vmatmul.bf16.gmra.mxu0 %v1121
        %v8394 = vpop.f32.mrf.mxu0
        %v8395 = vadd.f32 %v8382, %v8394
        %v8396 = vpop.f32.mrf.mxu0
        %8397 = vdwg.mxu0
        %8398 = vmatpush.bf16.msra.mxu0 %v6237
        %8399 = vmatpush.bf16.msra.mxu0 %v6221
        %8400 = vmatpush.bf16.msra.mxu0 %v6205
        %8401 = vmatpush.bf16.msra.mxu0 %v6189
        %8402 = vmatpush.bf16.msra.mxu0 %v6173
        %8403 = vmatpush.bf16.msra.mxu0 %v6157
        %8404 = vmatpush.bf16.msra.mxu0 %v6141
        %8405 = vmatpush.bf16.msra.mxu0 %v6125
        %8406 = vmatmul.bf16.gmra.mxu0 %v1122
        %v8407 = vpop.f32.mrf.mxu0
        %v8408 = vadd.f32 %v8395, %v8407
        %v8409 = vpop.f32.mrf.mxu0
        %8410 = vdwg.mxu0
        %8411 = vmatpush.bf16.msra.mxu0 %v5342
        %8412 = vmatpush.bf16.msra.mxu0 %v5326
        %8413 = vmatpush.bf16.msra.mxu0 %v5310
        %8414 = vmatpush.bf16.msra.mxu0 %v5294
        %8415 = vmatpush.bf16.msra.mxu0 %v5278
        %8416 = vmatpush.bf16.msra.mxu0 %v5262
        %8417 = vmatpush.bf16.msra.mxu0 %v5246
        %8418 = vmatpush.bf16.msra.mxu0 %v5230
        %8419 = vmatmul.bf16.gmra.mxu0 %v1115
        %v8420 = vpop.f32.mrf.mxu0
        %v8421 = vadd.f32 0.0, %v8420
        %v8422 = vpop.f32.mrf.mxu0
        %8423 = vdwg.mxu0
        %8424 = vmatpush.bf16.msra.mxu0 %v5470
        %8425 = vmatpush.bf16.msra.mxu0 %v5454
        %8426 = vmatpush.bf16.msra.mxu0 %v5438
        %8427 = vmatpush.bf16.msra.mxu0 %v5422
        %8428 = vmatpush.bf16.msra.mxu0 %v5406
        %8429 = vmatpush.bf16.msra.mxu0 %v5390
        %8430 = vmatpush.bf16.msra.mxu0 %v5374
        %8431 = vmatpush.bf16.msra.mxu0 %v5358
        %8432 = vmatmul.bf16.gmra.mxu0 %v1116
        %v8433 = vpop.f32.mrf.mxu0
        %v8434 = vadd.f32 %v8421, %v8433
        %v8435 = vpop.f32.mrf.mxu0
        %8436 = vdwg.mxu0
        %8437 = vmatpush.bf16.msra.mxu0 %v5598
        %8438 = vmatpush.bf16.msra.mxu0 %v5582
        %8439 = vmatpush.bf16.msra.mxu0 %v5566
        %8440 = vmatpush.bf16.msra.mxu0 %v5550
        %8441 = vmatpush.bf16.msra.mxu0 %v5534
        %8442 = vmatpush.bf16.msra.mxu0 %v5518
        %8443 = vmatpush.bf16.msra.mxu0 %v5502
        %8444 = vmatpush.bf16.msra.mxu0 %v5486
        %8445 = vmatmul.bf16.gmra.mxu0 %v1117
        %v8446 = vpop.f32.mrf.mxu0
        %v8447 = vadd.f32 %v8434, %v8446
        %v8448 = vpop.f32.mrf.mxu0
        %8449 = vdwg.mxu0
        %8450 = vmatpush.bf16.msra.mxu0 %v5726
        %8451 = vmatpush.bf16.msra.mxu0 %v5710
        %8452 = vmatpush.bf16.msra.mxu0 %v5694
        %8453 = vmatpush.bf16.msra.mxu0 %v5678
        %8454 = vmatpush.bf16.msra.mxu0 %v5662
        %8455 = vmatpush.bf16.msra.mxu0 %v5646
        %8456 = vmatpush.bf16.msra.mxu0 %v5630
        %8457 = vmatpush.bf16.msra.mxu0 %v5614
        %8458 = vmatmul.bf16.gmra.mxu0 %v1118
        %v8459 = vpop.f32.mrf.mxu0
        %v8460 = vadd.f32 %v8447, %v8459
        %v8461 = vpop.f32.mrf.mxu0
        %8462 = vdwg.mxu0
        %8463 = vmatpush.bf16.msra.mxu0 %v5854
        %8464 = vmatpush.bf16.msra.mxu0 %v5838
        %8465 = vmatpush.bf16.msra.mxu0 %v5822
        %8466 = vmatpush.bf16.msra.mxu0 %v5806
        %8467 = vmatpush.bf16.msra.mxu0 %v5790
        %8468 = vmatpush.bf16.msra.mxu0 %v5774
        %8469 = vmatpush.bf16.msra.mxu0 %v5758
        %8470 = vmatpush.bf16.msra.mxu0 %v5742
        %8471 = vmatmul.bf16.gmra.mxu0 %v1119
        %v8472 = vpop.f32.mrf.mxu0
        %v8473 = vadd.f32 %v8460, %v8472
        %v8474 = vpop.f32.mrf.mxu0
        %8475 = vdwg.mxu0
        %8476 = vmatpush.bf16.msra.mxu0 %v5982
        %8477 = vmatpush.bf16.msra.mxu0 %v5966
        %8478 = vmatpush.bf16.msra.mxu0 %v5950
        %8479 = vmatpush.bf16.msra.mxu0 %v5934
        %8480 = vmatpush.bf16.msra.mxu0 %v5918
        %8481 = vmatpush.bf16.msra.mxu0 %v5902
        %8482 = vmatpush.bf16.msra.mxu0 %v5886
        %8483 = vmatpush.bf16.msra.mxu0 %v5870
        %8484 = vmatmul.bf16.gmra.mxu0 %v1120
        %v8485 = vpop.f32.mrf.mxu0
        %v8486 = vadd.f32 %v8473, %v8485
        %v8487 = vpop.f32.mrf.mxu0
        %8488 = vdwg.mxu0
        %8489 = vmatpush.bf16.msra.mxu0 %v6110
        %8490 = vmatpush.bf16.msra.mxu0 %v6094
        %8491 = vmatpush.bf16.msra.mxu0 %v6078
        %8492 = vmatpush.bf16.msra.mxu0 %v6062
        %8493 = vmatpush.bf16.msra.mxu0 %v6046
        %8494 = vmatpush.bf16.msra.mxu0 %v6030
        %8495 = vmatpush.bf16.msra.mxu0 %v6014
        %8496 = vmatpush.bf16.msra.mxu0 %v5998
        %8497 = vmatmul.bf16.gmra.mxu0 %v1121
        %v8498 = vpop.f32.mrf.mxu0
        %v8499 = vadd.f32 %v8486, %v8498
        %v8500 = vpop.f32.mrf.mxu0
        %8501 = vdwg.mxu0
        %8502 = vmatpush.bf16.msra.mxu0 %v6238
        %8503 = vmatpush.bf16.msra.mxu0 %v6222
        %8504 = vmatpush.bf16.msra.mxu0 %v6206
        %8505 = vmatpush.bf16.msra.mxu0 %v6190
        %8506 = vmatpush.bf16.msra.mxu0 %v6174
        %8507 = vmatpush.bf16.msra.mxu0 %v6158
        %8508 = vmatpush.bf16.msra.mxu0 %v6142
        %8509 = vmatpush.bf16.msra.mxu0 %v6126
        %8510 = vmatmul.bf16.gmra.mxu0 %v1122
        %v8511 = vpop.f32.mrf.mxu0
        %v8512 = vadd.f32 %v8499, %v8511
        %v8513 = vpop.f32.mrf.mxu0
        %8514 = vdwg.mxu0
        %8515 = vmatpush.bf16.msra.mxu0 %v5343
        %8516 = vmatpush.bf16.msra.mxu0 %v5327
        %8517 = vmatpush.bf16.msra.mxu0 %v5311
        %8518 = vmatpush.bf16.msra.mxu0 %v5295
        %8519 = vmatpush.bf16.msra.mxu0 %v5279
        %8520 = vmatpush.bf16.msra.mxu0 %v5263
        %8521 = vmatpush.bf16.msra.mxu0 %v5247
        %8522 = vmatpush.bf16.msra.mxu0 %v5231
        %8523 = vmatmul.bf16.gmra.mxu0 %v1115
        %v8524 = vpop.f32.mrf.mxu0
        %v8525 = vadd.f32 0.0, %v8524
        %v8526 = vpop.f32.mrf.mxu0
        %8527 = vdwg.mxu0
        %8528 = vmatpush.bf16.msra.mxu0 %v5471
        %8529 = vmatpush.bf16.msra.mxu0 %v5455
        %8530 = vmatpush.bf16.msra.mxu0 %v5439
        %8531 = vmatpush.bf16.msra.mxu0 %v5423
        %8532 = vmatpush.bf16.msra.mxu0 %v5407
        %8533 = vmatpush.bf16.msra.mxu0 %v5391
        %8534 = vmatpush.bf16.msra.mxu0 %v5375
        %8535 = vmatpush.bf16.msra.mxu0 %v5359
        %8536 = vmatmul.bf16.gmra.mxu0 %v1116
        %v8537 = vpop.f32.mrf.mxu0
        %v8538 = vadd.f32 %v8525, %v8537
        %v8539 = vpop.f32.mrf.mxu0
        %8540 = vdwg.mxu0
        %8541 = vmatpush.bf16.msra.mxu0 %v5599
        %8542 = vmatpush.bf16.msra.mxu0 %v5583
        %8543 = vmatpush.bf16.msra.mxu0 %v5567
        %8544 = vmatpush.bf16.msra.mxu0 %v5551
        %8545 = vmatpush.bf16.msra.mxu0 %v5535
        %8546 = vmatpush.bf16.msra.mxu0 %v5519
        %8547 = vmatpush.bf16.msra.mxu0 %v5503
        %8548 = vmatpush.bf16.msra.mxu0 %v5487
        %8549 = vmatmul.bf16.gmra.mxu0 %v1117
        %v8550 = vpop.f32.mrf.mxu0
        %v8551 = vadd.f32 %v8538, %v8550
        %v8552 = vpop.f32.mrf.mxu0
        %8553 = vdwg.mxu0
        %8554 = vmatpush.bf16.msra.mxu0 %v5727
        %8555 = vmatpush.bf16.msra.mxu0 %v5711
        %8556 = vmatpush.bf16.msra.mxu0 %v5695
        %8557 = vmatpush.bf16.msra.mxu0 %v5679
        %8558 = vmatpush.bf16.msra.mxu0 %v5663
        %8559 = vmatpush.bf16.msra.mxu0 %v5647
        %8560 = vmatpush.bf16.msra.mxu0 %v5631
        %8561 = vmatpush.bf16.msra.mxu0 %v5615
        %8562 = vmatmul.bf16.gmra.mxu0 %v1118
        %v8563 = vpop.f32.mrf.mxu0
        %v8564 = vadd.f32 %v8551, %v8563
        %v8565 = vpop.f32.mrf.mxu0
        %8566 = vdwg.mxu0
        %8567 = vmatpush.bf16.msra.mxu0 %v5855
        %8568 = vmatpush.bf16.msra.mxu0 %v5839
        %8569 = vmatpush.bf16.msra.mxu0 %v5823
        %8570 = vmatpush.bf16.msra.mxu0 %v5807
        %8571 = vmatpush.bf16.msra.mxu0 %v5791
        %8572 = vmatpush.bf16.msra.mxu0 %v5775
        %8573 = vmatpush.bf16.msra.mxu0 %v5759
        %8574 = vmatpush.bf16.msra.mxu0 %v5743
        %8575 = vmatmul.bf16.gmra.mxu0 %v1119
        %v8576 = vpop.f32.mrf.mxu0
        %v8577 = vadd.f32 %v8564, %v8576
        %v8578 = vpop.f32.mrf.mxu0
        %8579 = vdwg.mxu0
        %8580 = vmatpush.bf16.msra.mxu0 %v5983
        %8581 = vmatpush.bf16.msra.mxu0 %v5967
        %8582 = vmatpush.bf16.msra.mxu0 %v5951
        %8583 = vmatpush.bf16.msra.mxu0 %v5935
        %8584 = vmatpush.bf16.msra.mxu0 %v5919
        %8585 = vmatpush.bf16.msra.mxu0 %v5903
        %8586 = vmatpush.bf16.msra.mxu0 %v5887
        %8587 = vmatpush.bf16.msra.mxu0 %v5871
        %8588 = vmatmul.bf16.gmra.mxu0 %v1120
        %v8589 = vpop.f32.mrf.mxu0
        %v8590 = vadd.f32 %v8577, %v8589
        %v8591 = vpop.f32.mrf.mxu0
        %8592 = vdwg.mxu0
        %8593 = vmatpush.bf16.msra.mxu0 %v6111
        %8594 = vmatpush.bf16.msra.mxu0 %v6095
        %8595 = vmatpush.bf16.msra.mxu0 %v6079
        %8596 = vmatpush.bf16.msra.mxu0 %v6063
        %8597 = vmatpush.bf16.msra.mxu0 %v6047
        %8598 = vmatpush.bf16.msra.mxu0 %v6031
        %8599 = vmatpush.bf16.msra.mxu0 %v6015
        %8600 = vmatpush.bf16.msra.mxu0 %v5999
        %8601 = vmatmul.bf16.gmra.mxu0 %v1121
        %v8602 = vpop.f32.mrf.mxu0
        %v8603 = vadd.f32 %v8590, %v8602
        %v8604 = vpop.f32.mrf.mxu0
        %8605 = vdwg.mxu0
        %8606 = vmatpush.bf16.msra.mxu0 %v6239
        %8607 = vmatpush.bf16.msra.mxu0 %v6223
        %8608 = vmatpush.bf16.msra.mxu0 %v6207
        %8609 = vmatpush.bf16.msra.mxu0 %v6191
        %8610 = vmatpush.bf16.msra.mxu0 %v6175
        %8611 = vmatpush.bf16.msra.mxu0 %v6159
        %8612 = vmatpush.bf16.msra.mxu0 %v6143
        %8613 = vmatpush.bf16.msra.mxu0 %v6127
        %8614 = vmatmul.bf16.gmra.mxu0 %v1122
        %v8615 = vpop.f32.mrf.mxu0
        %v8616 = vadd.f32 %v8603, %v8615
        %v8617 = vpop.f32.mrf.mxu0
        %8618 = vdwg.mxu0
        %8619 = vmatpush.bf16.msra.mxu0 %v5344
        %8620 = vmatpush.bf16.msra.mxu0 %v5328
        %8621 = vmatpush.bf16.msra.mxu0 %v5312
        %8622 = vmatpush.bf16.msra.mxu0 %v5296
        %8623 = vmatpush.bf16.msra.mxu0 %v5280
        %8624 = vmatpush.bf16.msra.mxu0 %v5264
        %8625 = vmatpush.bf16.msra.mxu0 %v5248
        %8626 = vmatpush.bf16.msra.mxu0 %v5232
        %8627 = vmatmul.bf16.gmra.mxu0 %v1115
        %v8628 = vpop.f32.mrf.mxu0
        %v8629 = vadd.f32 0.0, %v8628
        %v8630 = vpop.f32.mrf.mxu0
        %8631 = vdwg.mxu0
        %8632 = vmatpush.bf16.msra.mxu0 %v5472
        %8633 = vmatpush.bf16.msra.mxu0 %v5456
        %8634 = vmatpush.bf16.msra.mxu0 %v5440
        %8635 = vmatpush.bf16.msra.mxu0 %v5424
        %8636 = vmatpush.bf16.msra.mxu0 %v5408
        %8637 = vmatpush.bf16.msra.mxu0 %v5392
        %8638 = vmatpush.bf16.msra.mxu0 %v5376
        %8639 = vmatpush.bf16.msra.mxu0 %v5360
        %8640 = vmatmul.bf16.gmra.mxu0 %v1116
        %v8641 = vpop.f32.mrf.mxu0
        %v8642 = vadd.f32 %v8629, %v8641
        %v8643 = vpop.f32.mrf.mxu0
        %8644 = vdwg.mxu0
        %8645 = vmatpush.bf16.msra.mxu0 %v5600
        %8646 = vmatpush.bf16.msra.mxu0 %v5584
        %8647 = vmatpush.bf16.msra.mxu0 %v5568
        %8648 = vmatpush.bf16.msra.mxu0 %v5552
        %8649 = vmatpush.bf16.msra.mxu0 %v5536
        %8650 = vmatpush.bf16.msra.mxu0 %v5520
        %8651 = vmatpush.bf16.msra.mxu0 %v5504
        %8652 = vmatpush.bf16.msra.mxu0 %v5488
        %8653 = vmatmul.bf16.gmra.mxu0 %v1117
        %v8654 = vpop.f32.mrf.mxu0
        %v8655 = vadd.f32 %v8642, %v8654
        %v8656 = vpop.f32.mrf.mxu0
        %8657 = vdwg.mxu0
        %8658 = vmatpush.bf16.msra.mxu0 %v5728
        %8659 = vmatpush.bf16.msra.mxu0 %v5712
        %8660 = vmatpush.bf16.msra.mxu0 %v5696
        %8661 = vmatpush.bf16.msra.mxu0 %v5680
        %8662 = vmatpush.bf16.msra.mxu0 %v5664
        %8663 = vmatpush.bf16.msra.mxu0 %v5648
        %8664 = vmatpush.bf16.msra.mxu0 %v5632
        %8665 = vmatpush.bf16.msra.mxu0 %v5616
        %8666 = vmatmul.bf16.gmra.mxu0 %v1118
        %v8667 = vpop.f32.mrf.mxu0
        %v8668 = vadd.f32 %v8655, %v8667
        %v8669 = vpop.f32.mrf.mxu0
        %8670 = vdwg.mxu0
        %8671 = vmatpush.bf16.msra.mxu0 %v5856
        %8672 = vmatpush.bf16.msra.mxu0 %v5840
        %8673 = vmatpush.bf16.msra.mxu0 %v5824
        %8674 = vmatpush.bf16.msra.mxu0 %v5808
        %8675 = vmatpush.bf16.msra.mxu0 %v5792
        %8676 = vmatpush.bf16.msra.mxu0 %v5776
        %8677 = vmatpush.bf16.msra.mxu0 %v5760
        %8678 = vmatpush.bf16.msra.mxu0 %v5744
        %8679 = vmatmul.bf16.gmra.mxu0 %v1119
        %v8680 = vpop.f32.mrf.mxu0
        %v8681 = vadd.f32 %v8668, %v8680
        %v8682 = vpop.f32.mrf.mxu0
        %8683 = vdwg.mxu0
        %8684 = vmatpush.bf16.msra.mxu0 %v5984
        %8685 = vmatpush.bf16.msra.mxu0 %v5968
        %8686 = vmatpush.bf16.msra.mxu0 %v5952
        %8687 = vmatpush.bf16.msra.mxu0 %v5936
        %8688 = vmatpush.bf16.msra.mxu0 %v5920
        %8689 = vmatpush.bf16.msra.mxu0 %v5904
        %8690 = vmatpush.bf16.msra.mxu0 %v5888
        %8691 = vmatpush.bf16.msra.mxu0 %v5872
        %8692 = vmatmul.bf16.gmra.mxu0 %v1120
        %v8693 = vpop.f32.mrf.mxu0
        %v8694 = vadd.f32 %v8681, %v8693
        %v8695 = vpop.f32.mrf.mxu0
        %8696 = vdwg.mxu0
        %8697 = vmatpush.bf16.msra.mxu0 %v6112
        %8698 = vmatpush.bf16.msra.mxu0 %v6096
        %8699 = vmatpush.bf16.msra.mxu0 %v6080
        %8700 = vmatpush.bf16.msra.mxu0 %v6064
        %8701 = vmatpush.bf16.msra.mxu0 %v6048
        %8702 = vmatpush.bf16.msra.mxu0 %v6032
        %8703 = vmatpush.bf16.msra.mxu0 %v6016
        %8704 = vmatpush.bf16.msra.mxu0 %v6000
        %8705 = vmatmul.bf16.gmra.mxu0 %v1121
        %v8706 = vpop.f32.mrf.mxu0
        %v8707 = vadd.f32 %v8694, %v8706
        %v8708 = vpop.f32.mrf.mxu0
        %8709 = vdwg.mxu0
        %8710 = vmatpush.bf16.msra.mxu0 %v6240
        %8711 = vmatpush.bf16.msra.mxu0 %v6224
        %8712 = vmatpush.bf16.msra.mxu0 %v6208
        %8713 = vmatpush.bf16.msra.mxu0 %v6192
        %8714 = vmatpush.bf16.msra.mxu0 %v6176
        %8715 = vmatpush.bf16.msra.mxu0 %v6160
        %8716 = vmatpush.bf16.msra.mxu0 %v6144
        %8717 = vmatpush.bf16.msra.mxu0 %v6128
        %8718 = vmatmul.bf16.gmra.mxu0 %v1122
        %v8719 = vpop.f32.mrf.mxu0
        %v8720 = vadd.f32 %v8707, %v8719
        %v8721 = vpop.f32.mrf.mxu0
        %8722 = vdwg.mxu0
        %8723 = vmatpush.bf16.msra.mxu0 %v5345
        %8724 = vmatpush.bf16.msra.mxu0 %v5329
        %8725 = vmatpush.bf16.msra.mxu0 %v5313
        %8726 = vmatpush.bf16.msra.mxu0 %v5297
        %8727 = vmatpush.bf16.msra.mxu0 %v5281
        %8728 = vmatpush.bf16.msra.mxu0 %v5265
        %8729 = vmatpush.bf16.msra.mxu0 %v5249
        %8730 = vmatpush.bf16.msra.mxu0 %v5233
        %8731 = vmatmul.bf16.gmra.mxu0 %v1115
        %v8732 = vpop.f32.mrf.mxu0
        %v8733 = vadd.f32 0.0, %v8732
        %v8734 = vpop.f32.mrf.mxu0
        %8735 = vdwg.mxu0
        %8736 = vmatpush.bf16.msra.mxu0 %v5473
        %8737 = vmatpush.bf16.msra.mxu0 %v5457
        %8738 = vmatpush.bf16.msra.mxu0 %v5441
        %8739 = vmatpush.bf16.msra.mxu0 %v5425
        %8740 = vmatpush.bf16.msra.mxu0 %v5409
        %8741 = vmatpush.bf16.msra.mxu0 %v5393
        %8742 = vmatpush.bf16.msra.mxu0 %v5377
        %8743 = vmatpush.bf16.msra.mxu0 %v5361
        %8744 = vmatmul.bf16.gmra.mxu0 %v1116
        %v8745 = vpop.f32.mrf.mxu0
        %v8746 = vadd.f32 %v8733, %v8745
        %v8747 = vpop.f32.mrf.mxu0
        %8748 = vdwg.mxu0
        %8749 = vmatpush.bf16.msra.mxu0 %v5601
        %8750 = vmatpush.bf16.msra.mxu0 %v5585
        %8751 = vmatpush.bf16.msra.mxu0 %v5569
        %8752 = vmatpush.bf16.msra.mxu0 %v5553
        %8753 = vmatpush.bf16.msra.mxu0 %v5537
        %8754 = vmatpush.bf16.msra.mxu0 %v5521
        %8755 = vmatpush.bf16.msra.mxu0 %v5505
        %8756 = vmatpush.bf16.msra.mxu0 %v5489
        %8757 = vmatmul.bf16.gmra.mxu0 %v1117
        %v8758 = vpop.f32.mrf.mxu0
        %v8759 = vadd.f32 %v8746, %v8758
        %v8760 = vpop.f32.mrf.mxu0
        %8761 = vdwg.mxu0
        %8762 = vmatpush.bf16.msra.mxu0 %v5729
        %8763 = vmatpush.bf16.msra.mxu0 %v5713
        %8764 = vmatpush.bf16.msra.mxu0 %v5697
        %8765 = vmatpush.bf16.msra.mxu0 %v5681
        %8766 = vmatpush.bf16.msra.mxu0 %v5665
        %8767 = vmatpush.bf16.msra.mxu0 %v5649
        %8768 = vmatpush.bf16.msra.mxu0 %v5633
        %8769 = vmatpush.bf16.msra.mxu0 %v5617
        %8770 = vmatmul.bf16.gmra.mxu0 %v1118
        %v8771 = vpop.f32.mrf.mxu0
        %v8772 = vadd.f32 %v8759, %v8771
        %v8773 = vpop.f32.mrf.mxu0
        %8774 = vdwg.mxu0
        %8775 = vmatpush.bf16.msra.mxu0 %v5857
        %8776 = vmatpush.bf16.msra.mxu0 %v5841
        %8777 = vmatpush.bf16.msra.mxu0 %v5825
        %8778 = vmatpush.bf16.msra.mxu0 %v5809
        %8779 = vmatpush.bf16.msra.mxu0 %v5793
        %8780 = vmatpush.bf16.msra.mxu0 %v5777
        %8781 = vmatpush.bf16.msra.mxu0 %v5761
        %8782 = vmatpush.bf16.msra.mxu0 %v5745
        %8783 = vmatmul.bf16.gmra.mxu0 %v1119
        %v8784 = vpop.f32.mrf.mxu0
        %v8785 = vadd.f32 %v8772, %v8784
        %v8786 = vpop.f32.mrf.mxu0
        %8787 = vdwg.mxu0
        %8788 = vmatpush.bf16.msra.mxu0 %v5985
        %8789 = vmatpush.bf16.msra.mxu0 %v5969
        %8790 = vmatpush.bf16.msra.mxu0 %v5953
        %8791 = vmatpush.bf16.msra.mxu0 %v5937
        %8792 = vmatpush.bf16.msra.mxu0 %v5921
        %8793 = vmatpush.bf16.msra.mxu0 %v5905
        %8794 = vmatpush.bf16.msra.mxu0 %v5889
        %8795 = vmatpush.bf16.msra.mxu0 %v5873
        %8796 = vmatmul.bf16.gmra.mxu0 %v1120
        %v8797 = vpop.f32.mrf.mxu0
        %v8798 = vadd.f32 %v8785, %v8797
        %v8799 = vpop.f32.mrf.mxu0
        %8800 = vdwg.mxu0
        %8801 = vmatpush.bf16.msra.mxu0 %v6113
        %8802 = vmatpush.bf16.msra.mxu0 %v6097
        %8803 = vmatpush.bf16.msra.mxu0 %v6081
        %8804 = vmatpush.bf16.msra.mxu0 %v6065
        %8805 = vmatpush.bf16.msra.mxu0 %v6049
        %8806 = vmatpush.bf16.msra.mxu0 %v6033
        %8807 = vmatpush.bf16.msra.mxu0 %v6017
        %8808 = vmatpush.bf16.msra.mxu0 %v6001
        %8809 = vmatmul.bf16.gmra.mxu0 %v1121
        %v8810 = vpop.f32.mrf.mxu0
        %v8811 = vadd.f32 %v8798, %v8810
        %v8812 = vpop.f32.mrf.mxu0
        %8813 = vdwg.mxu0
        %8814 = vmatpush.bf16.msra.mxu0 %v6241
        %8815 = vmatpush.bf16.msra.mxu0 %v6225
        %8816 = vmatpush.bf16.msra.mxu0 %v6209
        %8817 = vmatpush.bf16.msra.mxu0 %v6193
        %8818 = vmatpush.bf16.msra.mxu0 %v6177
        %8819 = vmatpush.bf16.msra.mxu0 %v6161
        %8820 = vmatpush.bf16.msra.mxu0 %v6145
        %8821 = vmatpush.bf16.msra.mxu0 %v6129
        %8822 = vmatmul.bf16.gmra.mxu0 %v1122
        %v8823 = vpop.f32.mrf.mxu0
        %v8824 = vadd.f32 %v8811, %v8823
        %v8825 = vpop.f32.mrf.mxu0
        %8826 = vdwg.mxu0
        %8827 = vmatpush.bf16.msra.mxu0 %v5346
        %8828 = vmatpush.bf16.msra.mxu0 %v5330
        %8829 = vmatpush.bf16.msra.mxu0 %v5314
        %8830 = vmatpush.bf16.msra.mxu0 %v5298
        %8831 = vmatpush.bf16.msra.mxu0 %v5282
        %8832 = vmatpush.bf16.msra.mxu0 %v5266
        %8833 = vmatpush.bf16.msra.mxu0 %v5250
        %8834 = vmatpush.bf16.msra.mxu0 %v5234
        %8835 = vmatmul.bf16.gmra.mxu0 %v1115
        %v8836 = vpop.f32.mrf.mxu0
        %v8837 = vadd.f32 0.0, %v8836
        %v8838 = vpop.f32.mrf.mxu0
        %8839 = vdwg.mxu0
        %8840 = vmatpush.bf16.msra.mxu0 %v5474
        %8841 = vmatpush.bf16.msra.mxu0 %v5458
        %8842 = vmatpush.bf16.msra.mxu0 %v5442
        %8843 = vmatpush.bf16.msra.mxu0 %v5426
        %8844 = vmatpush.bf16.msra.mxu0 %v5410
        %8845 = vmatpush.bf16.msra.mxu0 %v5394
        %8846 = vmatpush.bf16.msra.mxu0 %v5378
        %8847 = vmatpush.bf16.msra.mxu0 %v5362
        %8848 = vmatmul.bf16.gmra.mxu0 %v1116
        %v8849 = vpop.f32.mrf.mxu0
        %v8850 = vadd.f32 %v8837, %v8849
        %v8851 = vpop.f32.mrf.mxu0
        %8852 = vdwg.mxu0
        %8853 = vmatpush.bf16.msra.mxu0 %v5602
        %8854 = vmatpush.bf16.msra.mxu0 %v5586
        %8855 = vmatpush.bf16.msra.mxu0 %v5570
        %8856 = vmatpush.bf16.msra.mxu0 %v5554
        %8857 = vmatpush.bf16.msra.mxu0 %v5538
        %8858 = vmatpush.bf16.msra.mxu0 %v5522
        %8859 = vmatpush.bf16.msra.mxu0 %v5506
        %8860 = vmatpush.bf16.msra.mxu0 %v5490
        %8861 = vmatmul.bf16.gmra.mxu0 %v1117
        %v8862 = vpop.f32.mrf.mxu0
        %v8863 = vadd.f32 %v8850, %v8862
        %v8864 = vpop.f32.mrf.mxu0
        %8865 = vdwg.mxu0
        %8866 = vmatpush.bf16.msra.mxu0 %v5730
        %8867 = vmatpush.bf16.msra.mxu0 %v5714
        %8868 = vmatpush.bf16.msra.mxu0 %v5698
        %8869 = vmatpush.bf16.msra.mxu0 %v5682
        %8870 = vmatpush.bf16.msra.mxu0 %v5666
        %8871 = vmatpush.bf16.msra.mxu0 %v5650
        %8872 = vmatpush.bf16.msra.mxu0 %v5634
        %8873 = vmatpush.bf16.msra.mxu0 %v5618
        %8874 = vmatmul.bf16.gmra.mxu0 %v1118
        %v8875 = vpop.f32.mrf.mxu0
        %v8876 = vadd.f32 %v8863, %v8875
        %v8877 = vpop.f32.mrf.mxu0
        %8878 = vdwg.mxu0
        %8879 = vmatpush.bf16.msra.mxu0 %v5858
        %8880 = vmatpush.bf16.msra.mxu0 %v5842
        %8881 = vmatpush.bf16.msra.mxu0 %v5826
        %8882 = vmatpush.bf16.msra.mxu0 %v5810
        %8883 = vmatpush.bf16.msra.mxu0 %v5794
        %8884 = vmatpush.bf16.msra.mxu0 %v5778
        %8885 = vmatpush.bf16.msra.mxu0 %v5762
        %8886 = vmatpush.bf16.msra.mxu0 %v5746
        %8887 = vmatmul.bf16.gmra.mxu0 %v1119
        %v8888 = vpop.f32.mrf.mxu0
        %v8889 = vadd.f32 %v8876, %v8888
        %v8890 = vpop.f32.mrf.mxu0
        %8891 = vdwg.mxu0
        %8892 = vmatpush.bf16.msra.mxu0 %v5986
        %8893 = vmatpush.bf16.msra.mxu0 %v5970
        %8894 = vmatpush.bf16.msra.mxu0 %v5954
        %8895 = vmatpush.bf16.msra.mxu0 %v5938
        %8896 = vmatpush.bf16.msra.mxu0 %v5922
        %8897 = vmatpush.bf16.msra.mxu0 %v5906
        %8898 = vmatpush.bf16.msra.mxu0 %v5890
        %8899 = vmatpush.bf16.msra.mxu0 %v5874
        %8900 = vmatmul.bf16.gmra.mxu0 %v1120
        %v8901 = vpop.f32.mrf.mxu0
        %v8902 = vadd.f32 %v8889, %v8901
        %v8903 = vpop.f32.mrf.mxu0
        %8904 = vdwg.mxu0
        %8905 = vmatpush.bf16.msra.mxu0 %v6114
        %8906 = vmatpush.bf16.msra.mxu0 %v6098
        %8907 = vmatpush.bf16.msra.mxu0 %v6082
        %8908 = vmatpush.bf16.msra.mxu0 %v6066
        %8909 = vmatpush.bf16.msra.mxu0 %v6050
        %8910 = vmatpush.bf16.msra.mxu0 %v6034
        %8911 = vmatpush.bf16.msra.mxu0 %v6018
        %8912 = vmatpush.bf16.msra.mxu0 %v6002
        %8913 = vmatmul.bf16.gmra.mxu0 %v1121
        %v8914 = vpop.f32.mrf.mxu0
        %v8915 = vadd.f32 %v8902, %v8914
        %v8916 = vpop.f32.mrf.mxu0
        %8917 = vdwg.mxu0
        %8918 = vmatpush.bf16.msra.mxu0 %v6242
        %8919 = vmatpush.bf16.msra.mxu0 %v6226
        %8920 = vmatpush.bf16.msra.mxu0 %v6210
        %8921 = vmatpush.bf16.msra.mxu0 %v6194
        %8922 = vmatpush.bf16.msra.mxu0 %v6178
        %8923 = vmatpush.bf16.msra.mxu0 %v6162
        %8924 = vmatpush.bf16.msra.mxu0 %v6146
        %8925 = vmatpush.bf16.msra.mxu0 %v6130
        %8926 = vmatmul.bf16.gmra.mxu0 %v1122
        %v8927 = vpop.f32.mrf.mxu0
        %v8928 = vadd.f32 %v8915, %v8927
        %v8929 = vpop.f32.mrf.mxu0
        %8930 = vdwg.mxu0
        %v8947 = vrot.slane %v7472, 6
        %v8948 = vrot.slane %v7576, 4
        %v8949 = vrot.slane %v7680, 2
        %v8950 = vrot.slane %v7888, 6
        %v8951 = vrot.slane %v7992, 4
        %v8952 = vrot.slane %v8096, 2
        %v8953 = vrot.slane %v8304, 6
        %v8954 = vrot.slane %v8408, 4
        %v8955 = vrot.slane %v8512, 2
        %v8956 = vrot.slane %v8720, 6
        %v8957 = vrot.slane %v8824, 4
        %v8958 = vrot.slane %v8928, 2
        %vm8959 = vcmask 1041408
        %v8960 = vsel %vm8959, %v7368, %v8947
        %vm8961 = vcmask 1045508
        %v8962 = vsel %vm8961, %v8948, %v8949
        %vm8963 = vcmask 1043456
        %v8964 = vsel %vm8963, %v8960, %v8962
        %v8965 = vsel %vm8959, %v7784, %v8950
        %v8966 = vsel %vm8961, %v8951, %v8952
        %v8967 = vsel %vm8963, %v8965, %v8966
        %v8968 = vsel %vm8959, %v8200, %v8953
        %v8969 = vsel %vm8961, %v8954, %v8955
        %v8970 = vsel %vm8963, %v8968, %v8969
        %v8971 = vsel %vm8959, %v8616, %v8956
        %v8972 = vsel %vm8961, %v8957, %v8958
        %v8973 = vsel %vm8963, %v8971, %v8972
        %v8978 = vadd.f32 %v1111, %v8964
        %v8979 = vadd.f32 %v1112, %v8967
        %v8980 = vadd.f32 %v1113, %v8970
        %v8981 = vadd.f32 %v1114, %v8973
        %8982 = vst [vmem:[#allocation2] sm:$0xff] %v8978
        %8983 = vst [vmem:[#allocation2 + $0x8] sm:$0xff] %v8979
        %8984 = vst [vmem:[#allocation2 + $0x10] sm:$0xff] %v8980
        %8985 = vst [vmem:[#allocation2 + $0x18] sm:$0xff] %v8981
        %p8986 = scmp.eq.s32.totalorder %s41, 3
        // Predicated region
        $region157: #{critic_net_forward.1} parent=91 // pred_check
          %p8987 = pneg %p8986
        $region158: #{critic_net_forward.1} parent=91 // pred_check_branch
          %8989 = sbr.rel (%p8987) target = $region160
        $region159: #{critic_net_forward.1} parent=91 // pred_region
          %v8990 = vld [vmem:[#allocation7] sm:$0xf]
          %v8991 = vld [vmem:[#allocation2] sm:$0xff]
          %v8992 = vld [vmem:[#allocation2 + $0x8] sm:$0xff]
          %v8993 = vld [vmem:[#allocation2 + $0x10] sm:$0xff]
          %v8994 = vld [vmem:[#allocation2 + $0x18] sm:$0xff]
          %v8995 = vld [vmem:[#allocation12] sm:$0xff]
          %v8996 = vld [vmem:[#allocation12 + $0x8] sm:$0xff]
          %v8999 = vperm.slane %v8995, 0
          %v9000 = vperm.slane %v8995, 1
          %v9001 = vperm.slane %v8995, 2
          %v9002 = vperm.slane %v8995, 3
          %v9003 = vperm.slane %v8995, 4
          %v9004 = vperm.slane %v8995, 5
          %v9005 = vperm.slane %v8995, 6
          %v9006 = vperm.slane %v8995, 7
          %v9007 = vperm.slane %v8996, 0
          %v9008 = vperm.slane %v8996, 1
          %v9009 = vperm.slane %v8996, 2
          %v9010 = vperm.slane %v8996, 3
          %v9011 = vperm.slane %v8996, 4
          %v9012 = vperm.slane %v8996, 5
          %v9013 = vperm.slane %v8996, 6
          %v9014 = vperm.slane %v8996, 7
          %v9015 = vrot.slane %v9000, 6
          %v9016 = vrot.slane %v9001, 4
          %v9017 = vrot.slane %v9002, 2
          %v9018 = vrot.slane %v9004, 6
          %v9019 = vrot.slane %v9005, 4
          %v9020 = vrot.slane %v9006, 2
          %v9021 = vrot.slane %v9008, 6
          %v9022 = vrot.slane %v9009, 4
          %v9023 = vrot.slane %v9010, 2
          %v9024 = vrot.slane %v9012, 6
          %v9025 = vrot.slane %v9013, 4
          %v9026 = vrot.slane %v9014, 2
          %v9027 = vsel %vm8959, %v8999, %v9015
          %v9028 = vsel %vm8961, %v9016, %v9017
          %v9029 = vsel %vm8963, %v9027, %v9028
          %v9030 = vsel %vm8959, %v9003, %v9018
          %v9031 = vsel %vm8961, %v9019, %v9020
          %v9032 = vsel %vm8963, %v9030, %v9031
          %v9033 = vsel %vm8959, %v9007, %v9021
          %v9034 = vsel %vm8961, %v9022, %v9023
          %v9035 = vsel %vm8963, %v9033, %v9034
          %v9036 = vsel %vm8959, %v9011, %v9024
          %v9037 = vsel %vm8961, %v9025, %v9026
          %v9038 = vsel %vm8963, %v9036, %v9037
          %v9043 = vadd.f32 %v8991, %v9029
          %v9044 = vadd.f32 %v8992, %v9032
          %v9045 = vadd.f32 %v8993, %v9035
          %v9046 = vadd.f32 %v8994, %v9038
          %v9047 = vmax.f32 %v9043, 0.0
          %v9048 = vmax.f32 %v9044, 0.0
          %v9049 = vmax.f32 %v9045, 0.0
          %v9050 = vmax.f32 %v9046, 0.0
          %9055 = vst [vmem:[#allocation1] ss:$4 sm:$0xff] %v9047
          %s9056 = scalar_lea.vmem [#allocation1], 32
          %9057 = vst [vmem:[%s9056] ss:$4 sm:$0xff] %v9048
          %v9058 = vld.sshfl [vmem:[#allocation1] sm:$0xff pattern:$0x73625140]
          %v9059 = vld.sshfl [vmem:[#allocation1 + $0x8] sm:$0xff pattern:$0x73625140]
          %v9060 = vld.sshfl [vmem:[#allocation1 + $0x10] sm:$0xff pattern:$0x73625140]
          %v9061 = vld.sshfl [vmem:[#allocation1 + $0x18] sm:$0xff pattern:$0x73625140]
          %v9062 = vld.sshfl [vmem:[#allocation1 + $0x20] sm:$0xff pattern:$0x73625140]
          %v9063 = vld.sshfl [vmem:[#allocation1 + $0x28] sm:$0xff pattern:$0x73625140]
          %v9064 = vld.sshfl [vmem:[#allocation1 + $0x30] sm:$0xff pattern:$0x73625140]
          %v9065 = vld.sshfl [vmem:[#allocation1 + $0x38] sm:$0xff pattern:$0x73625140]
          %9066 = vst [vmem:[#allocation1] ss:$4 sm:$0xff] %v9049
          %9067 = vst [vmem:[%s9056] ss:$4 sm:$0xff] %v9050
          %v9068 = vld.sshfl [vmem:[#allocation1] sm:$0xff pattern:$0x73625140]
          %v9069 = vld.sshfl [vmem:[#allocation1 + $0x8] sm:$0xff pattern:$0x73625140]
          %v9070 = vld.sshfl [vmem:[#allocation1 + $0x10] sm:$0xff pattern:$0x73625140]
          %v9071 = vld.sshfl [vmem:[#allocation1 + $0x18] sm:$0xff pattern:$0x73625140]
          %v9072 = vld.sshfl [vmem:[#allocation1 + $0x20] sm:$0xff pattern:$0x73625140]
          %v9073 = vld.sshfl [vmem:[#allocation1 + $0x28] sm:$0xff pattern:$0x73625140]
          %v9074 = vld.sshfl [vmem:[#allocation1 + $0x30] sm:$0xff pattern:$0x73625140]
          %v9075 = vld.sshfl [vmem:[#allocation1 + $0x38] sm:$0xff pattern:$0x73625140]
          %v9092 = vpack.c.bf16 %v9058, %v9058
          %v9093 = vpack.c.bf16 %v9059, %v9059
          %v9094 = vpack.c.bf16 %v9060, %v9060
          %v9095 = vpack.c.bf16 %v9061, %v9061
          %v9096 = vpack.c.bf16 %v9062, %v9062
          %v9097 = vpack.c.bf16 %v9063, %v9063
          %v9098 = vpack.c.bf16 %v9064, %v9064
          %v9099 = vpack.c.bf16 %v9065, %v9065
          %v9100 = vpack.c.bf16 %v9068, %v9068
          %v9101 = vpack.c.bf16 %v9069, %v9069
          %v9102 = vpack.c.bf16 %v9070, %v9070
          %v9103 = vpack.c.bf16 %v9071, %v9071
          %v9104 = vpack.c.bf16 %v9072, %v9072
          %v9105 = vpack.c.bf16 %v9073, %v9073
          %v9106 = vpack.c.bf16 %v9074, %v9074
          %v9107 = vpack.c.bf16 %v9075, %v9075
          %v9108 = vld [vmem:[#allocation13] sm:$0xff]
          %v9109 = vld [vmem:[#allocation13 + $0x8] sm:$0xff]
          %v9110 = vld [vmem:[#allocation13 + $0x10] sm:$0xff]
          %v9111 = vld [vmem:[#allocation13 + $0x18] sm:$0xff]
          %v9112 = vld [vmem:[#allocation13 + $0x20] sm:$0xff]
          %v9113 = vld [vmem:[#allocation13 + $0x28] sm:$0xff]
          %v9114 = vld [vmem:[#allocation13 + $0x30] sm:$0xff]
          %v9115 = vld [vmem:[#allocation13 + $0x38] sm:$0xff]
          %v9116 = vld [vmem:[#allocation13 + $0x40] sm:$0xff]
          %v9117 = vld [vmem:[#allocation13 + $0x48] sm:$0xff]
          %v9118 = vld [vmem:[#allocation13 + $0x50] sm:$0xff]
          %v9119 = vld [vmem:[#allocation13 + $0x58] sm:$0xff]
          %v9120 = vld [vmem:[#allocation13 + $0x60] sm:$0xff]
          %v9121 = vld [vmem:[#allocation13 + $0x68] sm:$0xff]
          %v9122 = vld [vmem:[#allocation13 + $0x70] sm:$0xff]
          %v9123 = vld [vmem:[#allocation13 + $0x78] sm:$0xff]
          %v9124 = vld [vmem:[#allocation13 + $0x80] sm:$0xff]
          %v9125 = vld [vmem:[#allocation13 + $0x88] sm:$0xff]
          %v9126 = vld [vmem:[#allocation13 + $0x90] sm:$0xff]
          %v9127 = vld [vmem:[#allocation13 + $0x98] sm:$0xff]
          %v9128 = vld [vmem:[#allocation13 + $0xa0] sm:$0xff]
          %v9129 = vld [vmem:[#allocation13 + $0xa8] sm:$0xff]
          %v9130 = vld [vmem:[#allocation13 + $0xb0] sm:$0xff]
          %v9131 = vld [vmem:[#allocation13 + $0xb8] sm:$0xff]
          %v9132 = vld [vmem:[#allocation13 + $0xc0] sm:$0xff]
          %v9133 = vld [vmem:[#allocation13 + $0xc8] sm:$0xff]
          %v9134 = vld [vmem:[#allocation13 + $0xd0] sm:$0xff]
          %v9135 = vld [vmem:[#allocation13 + $0xd8] sm:$0xff]
          %v9136 = vld [vmem:[#allocation13 + $0xe0] sm:$0xff]
          %v9137 = vld [vmem:[#allocation13 + $0xe8] sm:$0xff]
          %v9138 = vld [vmem:[#allocation13 + $0xf0] sm:$0xff]
          %v9139 = vld [vmem:[#allocation13 + $0xf8] sm:$0xff]
          %v9140 = vld [vmem:[#allocation13 + $0x100] sm:$0xff]
          %v9141 = vld [vmem:[#allocation13 + $0x108] sm:$0xff]
          %v9142 = vld [vmem:[#allocation13 + $0x110] sm:$0xff]
          %v9143 = vld [vmem:[#allocation13 + $0x118] sm:$0xff]
          %v9144 = vld [vmem:[#allocation13 + $0x120] sm:$0xff]
          %v9145 = vld [vmem:[#allocation13 + $0x128] sm:$0xff]
          %v9146 = vld [vmem:[#allocation13 + $0x130] sm:$0xff]
          %v9147 = vld [vmem:[#allocation13 + $0x138] sm:$0xff]
          %v9148 = vld [vmem:[#allocation13 + $0x140] sm:$0xff]
          %v9149 = vld [vmem:[#allocation13 + $0x148] sm:$0xff]
          %v9150 = vld [vmem:[#allocation13 + $0x150] sm:$0xff]
          %v9151 = vld [vmem:[#allocation13 + $0x158] sm:$0xff]
          %v9152 = vld [vmem:[#allocation13 + $0x160] sm:$0xff]
          %v9153 = vld [vmem:[#allocation13 + $0x168] sm:$0xff]
          %v9154 = vld [vmem:[#allocation13 + $0x170] sm:$0xff]
          %v9155 = vld [vmem:[#allocation13 + $0x178] sm:$0xff]
          %v9156 = vld [vmem:[#allocation13 + $0x180] sm:$0xff]
          %v9157 = vld [vmem:[#allocation13 + $0x188] sm:$0xff]
          %v9158 = vld [vmem:[#allocation13 + $0x190] sm:$0xff]
          %v9159 = vld [vmem:[#allocation13 + $0x198] sm:$0xff]
          %v9160 = vld [vmem:[#allocation13 + $0x1a0] sm:$0xff]
          %v9161 = vld [vmem:[#allocation13 + $0x1a8] sm:$0xff]
          %v9162 = vld [vmem:[#allocation13 + $0x1b0] sm:$0xff]
          %v9163 = vld [vmem:[#allocation13 + $0x1b8] sm:$0xff]
          %v9164 = vld [vmem:[#allocation13 + $0x1c0] sm:$0xff]
          %v9165 = vld [vmem:[#allocation13 + $0x1c8] sm:$0xff]
          %v9166 = vld [vmem:[#allocation13 + $0x1d0] sm:$0xff]
          %v9167 = vld [vmem:[#allocation13 + $0x1d8] sm:$0xff]
          %v9168 = vld [vmem:[#allocation13 + $0x1e0] sm:$0xff]
          %v9169 = vld [vmem:[#allocation13 + $0x1e8] sm:$0xff]
          %v9170 = vld [vmem:[#allocation13 + $0x1f0] sm:$0xff]
          %v9171 = vld [vmem:[#allocation13 + $0x1f8] sm:$0xff]
          %v9172 = vld [vmem:[#allocation13 + $0x200] sm:$0xff]
          %v9173 = vld [vmem:[#allocation13 + $0x208] sm:$0xff]
          %v9174 = vld [vmem:[#allocation13 + $0x210] sm:$0xff]
          %v9175 = vld [vmem:[#allocation13 + $0x218] sm:$0xff]
          %v9176 = vld [vmem:[#allocation13 + $0x220] sm:$0xff]
          %v9177 = vld [vmem:[#allocation13 + $0x228] sm:$0xff]
          %v9178 = vld [vmem:[#allocation13 + $0x230] sm:$0xff]
          %v9179 = vld [vmem:[#allocation13 + $0x238] sm:$0xff]
          %v9180 = vld [vmem:[#allocation13 + $0x240] sm:$0xff]
          %v9181 = vld [vmem:[#allocation13 + $0x248] sm:$0xff]
          %v9182 = vld [vmem:[#allocation13 + $0x250] sm:$0xff]
          %v9183 = vld [vmem:[#allocation13 + $0x258] sm:$0xff]
          %v9184 = vld [vmem:[#allocation13 + $0x260] sm:$0xff]
          %v9185 = vld [vmem:[#allocation13 + $0x268] sm:$0xff]
          %v9186 = vld [vmem:[#allocation13 + $0x270] sm:$0xff]
          %v9187 = vld [vmem:[#allocation13 + $0x278] sm:$0xff]
          %v9188 = vld [vmem:[#allocation13 + $0x280] sm:$0xff]
          %v9189 = vld [vmem:[#allocation13 + $0x288] sm:$0xff]
          %v9190 = vld [vmem:[#allocation13 + $0x290] sm:$0xff]
          %v9191 = vld [vmem:[#allocation13 + $0x298] sm:$0xff]
          %v9192 = vld [vmem:[#allocation13 + $0x2a0] sm:$0xff]
          %v9193 = vld [vmem:[#allocation13 + $0x2a8] sm:$0xff]
          %v9194 = vld [vmem:[#allocation13 + $0x2b0] sm:$0xff]
          %v9195 = vld [vmem:[#allocation13 + $0x2b8] sm:$0xff]
          %v9196 = vld [vmem:[#allocation13 + $0x2c0] sm:$0xff]
          %v9197 = vld [vmem:[#allocation13 + $0x2c8] sm:$0xff]
          %v9198 = vld [vmem:[#allocation13 + $0x2d0] sm:$0xff]
          %v9199 = vld [vmem:[#allocation13 + $0x2d8] sm:$0xff]
          %v9200 = vld [vmem:[#allocation13 + $0x2e0] sm:$0xff]
          %v9201 = vld [vmem:[#allocation13 + $0x2e8] sm:$0xff]
          %v9202 = vld [vmem:[#allocation13 + $0x2f0] sm:$0xff]
          %v9203 = vld [vmem:[#allocation13 + $0x2f8] sm:$0xff]
          %v9204 = vld [vmem:[#allocation13 + $0x300] sm:$0xff]
          %v9205 = vld [vmem:[#allocation13 + $0x308] sm:$0xff]
          %v9206 = vld [vmem:[#allocation13 + $0x310] sm:$0xff]
          %v9207 = vld [vmem:[#allocation13 + $0x318] sm:$0xff]
          %v9208 = vld [vmem:[#allocation13 + $0x320] sm:$0xff]
          %v9209 = vld [vmem:[#allocation13 + $0x328] sm:$0xff]
          %v9210 = vld [vmem:[#allocation13 + $0x330] sm:$0xff]
          %v9211 = vld [vmem:[#allocation13 + $0x338] sm:$0xff]
          %v9212 = vld [vmem:[#allocation13 + $0x340] sm:$0xff]
          %v9213 = vld [vmem:[#allocation13 + $0x348] sm:$0xff]
          %v9214 = vld [vmem:[#allocation13 + $0x350] sm:$0xff]
          %v9215 = vld [vmem:[#allocation13 + $0x358] sm:$0xff]
          %v9216 = vld [vmem:[#allocation13 + $0x360] sm:$0xff]
          %v9217 = vld [vmem:[#allocation13 + $0x368] sm:$0xff]
          %v9218 = vld [vmem:[#allocation13 + $0x370] sm:$0xff]
          %v9219 = vld [vmem:[#allocation13 + $0x378] sm:$0xff]
          %v9220 = vld [vmem:[#allocation13 + $0x380] sm:$0xff]
          %v9221 = vld [vmem:[#allocation13 + $0x388] sm:$0xff]
          %v9222 = vld [vmem:[#allocation13 + $0x390] sm:$0xff]
          %v9223 = vld [vmem:[#allocation13 + $0x398] sm:$0xff]
          %v9224 = vld [vmem:[#allocation13 + $0x3a0] sm:$0xff]
          %v9225 = vld [vmem:[#allocation13 + $0x3a8] sm:$0xff]
          %v9226 = vld [vmem:[#allocation13 + $0x3b0] sm:$0xff]
          %v9227 = vld [vmem:[#allocation13 + $0x3b8] sm:$0xff]
          %v9228 = vld [vmem:[#allocation13 + $0x3c0] sm:$0xff]
          %v9229 = vld [vmem:[#allocation13 + $0x3c8] sm:$0xff]
          %v9230 = vld [vmem:[#allocation13 + $0x3d0] sm:$0xff]
          %v9231 = vld [vmem:[#allocation13 + $0x3d8] sm:$0xff]
          %v9232 = vld [vmem:[#allocation13 + $0x3e0] sm:$0xff]
          %v9233 = vld [vmem:[#allocation13 + $0x3e8] sm:$0xff]
          %v9234 = vld [vmem:[#allocation13 + $0x3f0] sm:$0xff]
          %v9235 = vld [vmem:[#allocation13 + $0x3f8] sm:$0xff]
          %v9236 = vld [vmem:[#allocation13 + $0x400] sm:$0xff]
          %v9237 = vld [vmem:[#allocation13 + $0x408] sm:$0xff]
          %v9238 = vld [vmem:[#allocation13 + $0x410] sm:$0xff]
          %v9239 = vld [vmem:[#allocation13 + $0x418] sm:$0xff]
          %v9240 = vld [vmem:[#allocation13 + $0x420] sm:$0xff]
          %v9241 = vld [vmem:[#allocation13 + $0x428] sm:$0xff]
          %v9242 = vld [vmem:[#allocation13 + $0x430] sm:$0xff]
          %v9243 = vld [vmem:[#allocation13 + $0x438] sm:$0xff]
          %v9244 = vld [vmem:[#allocation13 + $0x440] sm:$0xff]
          %v9245 = vld [vmem:[#allocation13 + $0x448] sm:$0xff]
          %v9246 = vld [vmem:[#allocation13 + $0x450] sm:$0xff]
          %v9247 = vld [vmem:[#allocation13 + $0x458] sm:$0xff]
          %v9248 = vld [vmem:[#allocation13 + $0x460] sm:$0xff]
          %v9249 = vld [vmem:[#allocation13 + $0x468] sm:$0xff]
          %v9250 = vld [vmem:[#allocation13 + $0x470] sm:$0xff]
          %v9251 = vld [vmem:[#allocation13 + $0x478] sm:$0xff]
          %v9252 = vld [vmem:[#allocation13 + $0x480] sm:$0xff]
          %v9253 = vld [vmem:[#allocation13 + $0x488] sm:$0xff]
          %v9254 = vld [vmem:[#allocation13 + $0x490] sm:$0xff]
          %v9255 = vld [vmem:[#allocation13 + $0x498] sm:$0xff]
          %v9256 = vld [vmem:[#allocation13 + $0x4a0] sm:$0xff]
          %v9257 = vld [vmem:[#allocation13 + $0x4a8] sm:$0xff]
          %v9258 = vld [vmem:[#allocation13 + $0x4b0] sm:$0xff]
          %v9259 = vld [vmem:[#allocation13 + $0x4b8] sm:$0xff]
          %v9260 = vld [vmem:[#allocation13 + $0x4c0] sm:$0xff]
          %v9261 = vld [vmem:[#allocation13 + $0x4c8] sm:$0xff]
          %v9262 = vld [vmem:[#allocation13 + $0x4d0] sm:$0xff]
          %v9263 = vld [vmem:[#allocation13 + $0x4d8] sm:$0xff]
          %v9264 = vld [vmem:[#allocation13 + $0x4e0] sm:$0xff]
          %v9265 = vld [vmem:[#allocation13 + $0x4e8] sm:$0xff]
          %v9266 = vld [vmem:[#allocation13 + $0x4f0] sm:$0xff]
          %v9267 = vld [vmem:[#allocation13 + $0x4f8] sm:$0xff]
          %v9268 = vld [vmem:[#allocation13 + $0x500] sm:$0xff]
          %v9269 = vld [vmem:[#allocation13 + $0x508] sm:$0xff]
          %v9270 = vld [vmem:[#allocation13 + $0x510] sm:$0xff]
          %v9271 = vld [vmem:[#allocation13 + $0x518] sm:$0xff]
          %v9272 = vld [vmem:[#allocation13 + $0x520] sm:$0xff]
          %v9273 = vld [vmem:[#allocation13 + $0x528] sm:$0xff]
          %v9274 = vld [vmem:[#allocation13 + $0x530] sm:$0xff]
          %v9275 = vld [vmem:[#allocation13 + $0x538] sm:$0xff]
          %v9276 = vld [vmem:[#allocation13 + $0x540] sm:$0xff]
          %v9277 = vld [vmem:[#allocation13 + $0x548] sm:$0xff]
          %v9278 = vld [vmem:[#allocation13 + $0x550] sm:$0xff]
          %v9279 = vld [vmem:[#allocation13 + $0x558] sm:$0xff]
          %v9280 = vld [vmem:[#allocation13 + $0x560] sm:$0xff]
          %v9281 = vld [vmem:[#allocation13 + $0x568] sm:$0xff]
          %v9282 = vld [vmem:[#allocation13 + $0x570] sm:$0xff]
          %v9283 = vld [vmem:[#allocation13 + $0x578] sm:$0xff]
          %v9284 = vld [vmem:[#allocation13 + $0x580] sm:$0xff]
          %v9285 = vld [vmem:[#allocation13 + $0x588] sm:$0xff]
          %v9286 = vld [vmem:[#allocation13 + $0x590] sm:$0xff]
          %v9287 = vld [vmem:[#allocation13 + $0x598] sm:$0xff]
          %v9288 = vld [vmem:[#allocation13 + $0x5a0] sm:$0xff]
          %v9289 = vld [vmem:[#allocation13 + $0x5a8] sm:$0xff]
          %v9290 = vld [vmem:[#allocation13 + $0x5b0] sm:$0xff]
          %v9291 = vld [vmem:[#allocation13 + $0x5b8] sm:$0xff]
          %v9292 = vld [vmem:[#allocation13 + $0x5c0] sm:$0xff]
          %v9293 = vld [vmem:[#allocation13 + $0x5c8] sm:$0xff]
          %v9294 = vld [vmem:[#allocation13 + $0x5d0] sm:$0xff]
          %v9295 = vld [vmem:[#allocation13 + $0x5d8] sm:$0xff]
          %v9296 = vld [vmem:[#allocation13 + $0x5e0] sm:$0xff]
          %v9297 = vld [vmem:[#allocation13 + $0x5e8] sm:$0xff]
          %v9298 = vld [vmem:[#allocation13 + $0x5f0] sm:$0xff]
          %v9299 = vld [vmem:[#allocation13 + $0x5f8] sm:$0xff]
          %v9300 = vld [vmem:[#allocation13 + $0x600] sm:$0xff]
          %v9301 = vld [vmem:[#allocation13 + $0x608] sm:$0xff]
          %v9302 = vld [vmem:[#allocation13 + $0x610] sm:$0xff]
          %v9303 = vld [vmem:[#allocation13 + $0x618] sm:$0xff]
          %v9304 = vld [vmem:[#allocation13 + $0x620] sm:$0xff]
          %v9305 = vld [vmem:[#allocation13 + $0x628] sm:$0xff]
          %v9306 = vld [vmem:[#allocation13 + $0x630] sm:$0xff]
          %v9307 = vld [vmem:[#allocation13 + $0x638] sm:$0xff]
          %v9308 = vld [vmem:[#allocation13 + $0x640] sm:$0xff]
          %v9309 = vld [vmem:[#allocation13 + $0x648] sm:$0xff]
          %v9310 = vld [vmem:[#allocation13 + $0x650] sm:$0xff]
          %v9311 = vld [vmem:[#allocation13 + $0x658] sm:$0xff]
          %v9312 = vld [vmem:[#allocation13 + $0x660] sm:$0xff]
          %v9313 = vld [vmem:[#allocation13 + $0x668] sm:$0xff]
          %v9314 = vld [vmem:[#allocation13 + $0x670] sm:$0xff]
          %v9315 = vld [vmem:[#allocation13 + $0x678] sm:$0xff]
          %v9316 = vld [vmem:[#allocation13 + $0x680] sm:$0xff]
          %v9317 = vld [vmem:[#allocation13 + $0x688] sm:$0xff]
          %v9318 = vld [vmem:[#allocation13 + $0x690] sm:$0xff]
          %v9319 = vld [vmem:[#allocation13 + $0x698] sm:$0xff]
          %v9320 = vld [vmem:[#allocation13 + $0x6a0] sm:$0xff]
          %v9321 = vld [vmem:[#allocation13 + $0x6a8] sm:$0xff]
          %v9322 = vld [vmem:[#allocation13 + $0x6b0] sm:$0xff]
          %v9323 = vld [vmem:[#allocation13 + $0x6b8] sm:$0xff]
          %v9324 = vld [vmem:[#allocation13 + $0x6c0] sm:$0xff]
          %v9325 = vld [vmem:[#allocation13 + $0x6c8] sm:$0xff]
          %v9326 = vld [vmem:[#allocation13 + $0x6d0] sm:$0xff]
          %v9327 = vld [vmem:[#allocation13 + $0x6d8] sm:$0xff]
          %v9328 = vld [vmem:[#allocation13 + $0x6e0] sm:$0xff]
          %v9329 = vld [vmem:[#allocation13 + $0x6e8] sm:$0xff]
          %v9330 = vld [vmem:[#allocation13 + $0x6f0] sm:$0xff]
          %v9331 = vld [vmem:[#allocation13 + $0x6f8] sm:$0xff]
          %v9332 = vld [vmem:[#allocation13 + $0x700] sm:$0xff]
          %v9333 = vld [vmem:[#allocation13 + $0x708] sm:$0xff]
          %v9334 = vld [vmem:[#allocation13 + $0x710] sm:$0xff]
          %v9335 = vld [vmem:[#allocation13 + $0x718] sm:$0xff]
          %v9336 = vld [vmem:[#allocation13 + $0x720] sm:$0xff]
          %v9337 = vld [vmem:[#allocation13 + $0x728] sm:$0xff]
          %v9338 = vld [vmem:[#allocation13 + $0x730] sm:$0xff]
          %v9339 = vld [vmem:[#allocation13 + $0x738] sm:$0xff]
          %v9340 = vld [vmem:[#allocation13 + $0x740] sm:$0xff]
          %v9341 = vld [vmem:[#allocation13 + $0x748] sm:$0xff]
          %v9342 = vld [vmem:[#allocation13 + $0x750] sm:$0xff]
          %v9343 = vld [vmem:[#allocation13 + $0x758] sm:$0xff]
          %v9344 = vld [vmem:[#allocation13 + $0x760] sm:$0xff]
          %v9345 = vld [vmem:[#allocation13 + $0x768] sm:$0xff]
          %v9346 = vld [vmem:[#allocation13 + $0x770] sm:$0xff]
          %v9347 = vld [vmem:[#allocation13 + $0x778] sm:$0xff]
          %v9348 = vld [vmem:[#allocation13 + $0x780] sm:$0xff]
          %v9349 = vld [vmem:[#allocation13 + $0x788] sm:$0xff]
          %v9350 = vld [vmem:[#allocation13 + $0x790] sm:$0xff]
          %v9351 = vld [vmem:[#allocation13 + $0x798] sm:$0xff]
          %v9352 = vld [vmem:[#allocation13 + $0x7a0] sm:$0xff]
          %v9353 = vld [vmem:[#allocation13 + $0x7a8] sm:$0xff]
          %v9354 = vld [vmem:[#allocation13 + $0x7b0] sm:$0xff]
          %v9355 = vld [vmem:[#allocation13 + $0x7b8] sm:$0xff]
          %v9356 = vld [vmem:[#allocation13 + $0x7c0] sm:$0xff]
          %v9357 = vld [vmem:[#allocation13 + $0x7c8] sm:$0xff]
          %v9358 = vld [vmem:[#allocation13 + $0x7d0] sm:$0xff]
          %v9359 = vld [vmem:[#allocation13 + $0x7d8] sm:$0xff]
          %v9360 = vld [vmem:[#allocation13 + $0x7e0] sm:$0xff]
          %v9361 = vld [vmem:[#allocation13 + $0x7e8] sm:$0xff]
          %v9362 = vld [vmem:[#allocation13 + $0x7f0] sm:$0xff]
          %v9363 = vld [vmem:[#allocation13 + $0x7f8] sm:$0xff]
          %v9364 = vld [vmem:[#allocation15] sm:$0x3]
          %v9366 = vperm.slane %v9364, 0
          %v9367 = vperm.slane %v9364, 1
          %v9626 = vunpack.c.l.b16 %v9108
          %v9627 = vunpack.c.h.b16 %v9108
          %v9628 = vunpack.c.l.b16 %v9109
          %v9629 = vunpack.c.h.b16 %v9109
          %v9630 = vunpack.c.l.b16 %v9110
          %v9631 = vunpack.c.h.b16 %v9110
          %v9632 = vunpack.c.l.b16 %v9111
          %v9633 = vunpack.c.h.b16 %v9111
          %v9634 = vunpack.c.l.b16 %v9112
          %v9635 = vunpack.c.h.b16 %v9112
          %v9636 = vunpack.c.l.b16 %v9113
          %v9637 = vunpack.c.h.b16 %v9113
          %v9638 = vunpack.c.l.b16 %v9114
          %v9639 = vunpack.c.h.b16 %v9114
          %v9640 = vunpack.c.l.b16 %v9115
          %v9641 = vunpack.c.h.b16 %v9115
          %v9642 = vunpack.c.l.b16 %v9116
          %v9643 = vunpack.c.h.b16 %v9116
          %v9644 = vunpack.c.l.b16 %v9117
          %v9645 = vunpack.c.h.b16 %v9117
          %v9646 = vunpack.c.l.b16 %v9118
          %v9647 = vunpack.c.h.b16 %v9118
          %v9648 = vunpack.c.l.b16 %v9119
          %v9649 = vunpack.c.h.b16 %v9119
          %v9650 = vunpack.c.l.b16 %v9120
          %v9651 = vunpack.c.h.b16 %v9120
          %v9652 = vunpack.c.l.b16 %v9121
          %v9653 = vunpack.c.h.b16 %v9121
          %v9654 = vunpack.c.l.b16 %v9122
          %v9655 = vunpack.c.h.b16 %v9122
          %v9656 = vunpack.c.l.b16 %v9123
          %v9657 = vunpack.c.h.b16 %v9123
          %v9658 = vunpack.c.l.b16 %v9124
          %v9659 = vunpack.c.h.b16 %v9124
          %v9660 = vunpack.c.l.b16 %v9125
          %v9661 = vunpack.c.h.b16 %v9125
          %v9662 = vunpack.c.l.b16 %v9126
          %v9663 = vunpack.c.h.b16 %v9126
          %v9664 = vunpack.c.l.b16 %v9127
          %v9665 = vunpack.c.h.b16 %v9127
          %v9666 = vunpack.c.l.b16 %v9128
          %v9667 = vunpack.c.h.b16 %v9128
          %v9668 = vunpack.c.l.b16 %v9129
          %v9669 = vunpack.c.h.b16 %v9129
          %v9670 = vunpack.c.l.b16 %v9130
          %v9671 = vunpack.c.h.b16 %v9130
          %v9672 = vunpack.c.l.b16 %v9131
          %v9673 = vunpack.c.h.b16 %v9131
          %v9674 = vunpack.c.l.b16 %v9132
          %v9675 = vunpack.c.h.b16 %v9132
          %v9676 = vunpack.c.l.b16 %v9133
          %v9677 = vunpack.c.h.b16 %v9133
          %v9678 = vunpack.c.l.b16 %v9134
          %v9679 = vunpack.c.h.b16 %v9134
          %v9680 = vunpack.c.l.b16 %v9135
          %v9681 = vunpack.c.h.b16 %v9135
          %v9682 = vunpack.c.l.b16 %v9136
          %v9683 = vunpack.c.h.b16 %v9136
          %v9684 = vunpack.c.l.b16 %v9137
          %v9685 = vunpack.c.h.b16 %v9137
          %v9686 = vunpack.c.l.b16 %v9138
          %v9687 = vunpack.c.h.b16 %v9138
          %v9688 = vunpack.c.l.b16 %v9139
          %v9689 = vunpack.c.h.b16 %v9139
          %v9690 = vunpack.c.l.b16 %v9140
          %v9691 = vunpack.c.h.b16 %v9140
          %v9692 = vunpack.c.l.b16 %v9141
          %v9693 = vunpack.c.h.b16 %v9141
          %v9694 = vunpack.c.l.b16 %v9142
          %v9695 = vunpack.c.h.b16 %v9142
          %v9696 = vunpack.c.l.b16 %v9143
          %v9697 = vunpack.c.h.b16 %v9143
          %v9698 = vunpack.c.l.b16 %v9144
          %v9699 = vunpack.c.h.b16 %v9144
          %v9700 = vunpack.c.l.b16 %v9145
          %v9701 = vunpack.c.h.b16 %v9145
          %v9702 = vunpack.c.l.b16 %v9146
          %v9703 = vunpack.c.h.b16 %v9146
          %v9704 = vunpack.c.l.b16 %v9147
          %v9705 = vunpack.c.h.b16 %v9147
          %v9706 = vunpack.c.l.b16 %v9148
          %v9707 = vunpack.c.h.b16 %v9148
          %v9708 = vunpack.c.l.b16 %v9149
          %v9709 = vunpack.c.h.b16 %v9149
          %v9710 = vunpack.c.l.b16 %v9150
          %v9711 = vunpack.c.h.b16 %v9150
          %v9712 = vunpack.c.l.b16 %v9151
          %v9713 = vunpack.c.h.b16 %v9151
          %v9714 = vunpack.c.l.b16 %v9152
          %v9715 = vunpack.c.h.b16 %v9152
          %v9716 = vunpack.c.l.b16 %v9153
          %v9717 = vunpack.c.h.b16 %v9153
          %v9718 = vunpack.c.l.b16 %v9154
          %v9719 = vunpack.c.h.b16 %v9154
          %v9720 = vunpack.c.l.b16 %v9155
          %v9721 = vunpack.c.h.b16 %v9155
          %v9722 = vunpack.c.l.b16 %v9156
          %v9723 = vunpack.c.h.b16 %v9156
          %v9724 = vunpack.c.l.b16 %v9157
          %v9725 = vunpack.c.h.b16 %v9157
          %v9726 = vunpack.c.l.b16 %v9158
          %v9727 = vunpack.c.h.b16 %v9158
          %v9728 = vunpack.c.l.b16 %v9159
          %v9729 = vunpack.c.h.b16 %v9159
          %v9730 = vunpack.c.l.b16 %v9160
          %v9731 = vunpack.c.h.b16 %v9160
          %v9732 = vunpack.c.l.b16 %v9161
          %v9733 = vunpack.c.h.b16 %v9161
          %v9734 = vunpack.c.l.b16 %v9162
          %v9735 = vunpack.c.h.b16 %v9162
          %v9736 = vunpack.c.l.b16 %v9163
          %v9737 = vunpack.c.h.b16 %v9163
          %v9738 = vunpack.c.l.b16 %v9164
          %v9739 = vunpack.c.h.b16 %v9164
          %v9740 = vunpack.c.l.b16 %v9165
          %v9741 = vunpack.c.h.b16 %v9165
          %v9742 = vunpack.c.l.b16 %v9166
          %v9743 = vunpack.c.h.b16 %v9166
          %v9744 = vunpack.c.l.b16 %v9167
          %v9745 = vunpack.c.h.b16 %v9167
          %v9746 = vunpack.c.l.b16 %v9168
          %v9747 = vunpack.c.h.b16 %v9168
          %v9748 = vunpack.c.l.b16 %v9169
          %v9749 = vunpack.c.h.b16 %v9169
          %v9750 = vunpack.c.l.b16 %v9170
          %v9751 = vunpack.c.h.b16 %v9170
          %v9752 = vunpack.c.l.b16 %v9171
          %v9753 = vunpack.c.h.b16 %v9171
          %v9754 = vunpack.c.l.b16 %v9172
          %v9755 = vunpack.c.h.b16 %v9172
          %v9756 = vunpack.c.l.b16 %v9173
          %v9757 = vunpack.c.h.b16 %v9173
          %v9758 = vunpack.c.l.b16 %v9174
          %v9759 = vunpack.c.h.b16 %v9174
          %v9760 = vunpack.c.l.b16 %v9175
          %v9761 = vunpack.c.h.b16 %v9175
          %v9762 = vunpack.c.l.b16 %v9176
          %v9763 = vunpack.c.h.b16 %v9176
          %v9764 = vunpack.c.l.b16 %v9177
          %v9765 = vunpack.c.h.b16 %v9177
          %v9766 = vunpack.c.l.b16 %v9178
          %v9767 = vunpack.c.h.b16 %v9178
          %v9768 = vunpack.c.l.b16 %v9179
          %v9769 = vunpack.c.h.b16 %v9179
          %v9770 = vunpack.c.l.b16 %v9180
          %v9771 = vunpack.c.h.b16 %v9180
          %v9772 = vunpack.c.l.b16 %v9181
          %v9773 = vunpack.c.h.b16 %v9181
          %v9774 = vunpack.c.l.b16 %v9182
          %v9775 = vunpack.c.h.b16 %v9182
          %v9776 = vunpack.c.l.b16 %v9183
          %v9777 = vunpack.c.h.b16 %v9183
          %v9778 = vunpack.c.l.b16 %v9184
          %v9779 = vunpack.c.h.b16 %v9184
          %v9780 = vunpack.c.l.b16 %v9185
          %v9781 = vunpack.c.h.b16 %v9185
          %v9782 = vunpack.c.l.b16 %v9186
          %v9783 = vunpack.c.h.b16 %v9186
          %v9784 = vunpack.c.l.b16 %v9187
          %v9785 = vunpack.c.h.b16 %v9187
          %v9786 = vunpack.c.l.b16 %v9188
          %v9787 = vunpack.c.h.b16 %v9188
          %v9788 = vunpack.c.l.b16 %v9189
          %v9789 = vunpack.c.h.b16 %v9189
          %v9790 = vunpack.c.l.b16 %v9190
          %v9791 = vunpack.c.h.b16 %v9190
          %v9792 = vunpack.c.l.b16 %v9191
          %v9793 = vunpack.c.h.b16 %v9191
          %v9794 = vunpack.c.l.b16 %v9192
          %v9795 = vunpack.c.h.b16 %v9192
          %v9796 = vunpack.c.l.b16 %v9193
          %v9797 = vunpack.c.h.b16 %v9193
          %v9798 = vunpack.c.l.b16 %v9194
          %v9799 = vunpack.c.h.b16 %v9194
          %v9800 = vunpack.c.l.b16 %v9195
          %v9801 = vunpack.c.h.b16 %v9195
          %v9802 = vunpack.c.l.b16 %v9196
          %v9803 = vunpack.c.h.b16 %v9196
          %v9804 = vunpack.c.l.b16 %v9197
          %v9805 = vunpack.c.h.b16 %v9197
          %v9806 = vunpack.c.l.b16 %v9198
          %v9807 = vunpack.c.h.b16 %v9198
          %v9808 = vunpack.c.l.b16 %v9199
          %v9809 = vunpack.c.h.b16 %v9199
          %v9810 = vunpack.c.l.b16 %v9200
          %v9811 = vunpack.c.h.b16 %v9200
          %v9812 = vunpack.c.l.b16 %v9201
          %v9813 = vunpack.c.h.b16 %v9201
          %v9814 = vunpack.c.l.b16 %v9202
          %v9815 = vunpack.c.h.b16 %v9202
          %v9816 = vunpack.c.l.b16 %v9203
          %v9817 = vunpack.c.h.b16 %v9203
          %v9818 = vunpack.c.l.b16 %v9204
          %v9819 = vunpack.c.h.b16 %v9204
          %v9820 = vunpack.c.l.b16 %v9205
          %v9821 = vunpack.c.h.b16 %v9205
          %v9822 = vunpack.c.l.b16 %v9206
          %v9823 = vunpack.c.h.b16 %v9206
          %v9824 = vunpack.c.l.b16 %v9207
          %v9825 = vunpack.c.h.b16 %v9207
          %v9826 = vunpack.c.l.b16 %v9208
          %v9827 = vunpack.c.h.b16 %v9208
          %v9828 = vunpack.c.l.b16 %v9209
          %v9829 = vunpack.c.h.b16 %v9209
          %v9830 = vunpack.c.l.b16 %v9210
          %v9831 = vunpack.c.h.b16 %v9210
          %v9832 = vunpack.c.l.b16 %v9211
          %v9833 = vunpack.c.h.b16 %v9211
          %v9834 = vunpack.c.l.b16 %v9212
          %v9835 = vunpack.c.h.b16 %v9212
          %v9836 = vunpack.c.l.b16 %v9213
          %v9837 = vunpack.c.h.b16 %v9213
          %v9838 = vunpack.c.l.b16 %v9214
          %v9839 = vunpack.c.h.b16 %v9214
          %v9840 = vunpack.c.l.b16 %v9215
          %v9841 = vunpack.c.h.b16 %v9215
          %v9842 = vunpack.c.l.b16 %v9216
          %v9843 = vunpack.c.h.b16 %v9216
          %v9844 = vunpack.c.l.b16 %v9217
          %v9845 = vunpack.c.h.b16 %v9217
          %v9846 = vunpack.c.l.b16 %v9218
          %v9847 = vunpack.c.h.b16 %v9218
          %v9848 = vunpack.c.l.b16 %v9219
          %v9849 = vunpack.c.h.b16 %v9219
          %v9850 = vunpack.c.l.b16 %v9220
          %v9851 = vunpack.c.h.b16 %v9220
          %v9852 = vunpack.c.l.b16 %v9221
          %v9853 = vunpack.c.h.b16 %v9221
          %v9854 = vunpack.c.l.b16 %v9222
          %v9855 = vunpack.c.h.b16 %v9222
          %v9856 = vunpack.c.l.b16 %v9223
          %v9857 = vunpack.c.h.b16 %v9223
          %v9858 = vunpack.c.l.b16 %v9224
          %v9859 = vunpack.c.h.b16 %v9224
          %v9860 = vunpack.c.l.b16 %v9225
          %v9861 = vunpack.c.h.b16 %v9225
          %v9862 = vunpack.c.l.b16 %v9226
          %v9863 = vunpack.c.h.b16 %v9226
          %v9864 = vunpack.c.l.b16 %v9227
          %v9865 = vunpack.c.h.b16 %v9227
          %v9866 = vunpack.c.l.b16 %v9228
          %v9867 = vunpack.c.h.b16 %v9228
          %v9868 = vunpack.c.l.b16 %v9229
          %v9869 = vunpack.c.h.b16 %v9229
          %v9870 = vunpack.c.l.b16 %v9230
          %v9871 = vunpack.c.h.b16 %v9230
          %v9872 = vunpack.c.l.b16 %v9231
          %v9873 = vunpack.c.h.b16 %v9231
          %v9874 = vunpack.c.l.b16 %v9232
          %v9875 = vunpack.c.h.b16 %v9232
          %v9876 = vunpack.c.l.b16 %v9233
          %v9877 = vunpack.c.h.b16 %v9233
          %v9878 = vunpack.c.l.b16 %v9234
          %v9879 = vunpack.c.h.b16 %v9234
          %v9880 = vunpack.c.l.b16 %v9235
          %v9881 = vunpack.c.h.b16 %v9235
          %v9882 = vunpack.c.l.b16 %v9236
          %v9883 = vunpack.c.h.b16 %v9236
          %v9884 = vunpack.c.l.b16 %v9237
          %v9885 = vunpack.c.h.b16 %v9237
          %v9886 = vunpack.c.l.b16 %v9238
          %v9887 = vunpack.c.h.b16 %v9238
          %v9888 = vunpack.c.l.b16 %v9239
          %v9889 = vunpack.c.h.b16 %v9239
          %v9890 = vunpack.c.l.b16 %v9240
          %v9891 = vunpack.c.h.b16 %v9240
          %v9892 = vunpack.c.l.b16 %v9241
          %v9893 = vunpack.c.h.b16 %v9241
          %v9894 = vunpack.c.l.b16 %v9242
          %v9895 = vunpack.c.h.b16 %v9242
          %v9896 = vunpack.c.l.b16 %v9243
          %v9897 = vunpack.c.h.b16 %v9243
          %v9898 = vunpack.c.l.b16 %v9244
          %v9899 = vunpack.c.h.b16 %v9244
          %v9900 = vunpack.c.l.b16 %v9245
          %v9901 = vunpack.c.h.b16 %v9245
          %v9902 = vunpack.c.l.b16 %v9246
          %v9903 = vunpack.c.h.b16 %v9246
          %v9904 = vunpack.c.l.b16 %v9247
          %v9905 = vunpack.c.h.b16 %v9247
          %v9906 = vunpack.c.l.b16 %v9248
          %v9907 = vunpack.c.h.b16 %v9248
          %v9908 = vunpack.c.l.b16 %v9249
          %v9909 = vunpack.c.h.b16 %v9249
          %v9910 = vunpack.c.l.b16 %v9250
          %v9911 = vunpack.c.h.b16 %v9250
          %v9912 = vunpack.c.l.b16 %v9251
          %v9913 = vunpack.c.h.b16 %v9251
          %v9914 = vunpack.c.l.b16 %v9252
          %v9915 = vunpack.c.h.b16 %v9252
          %v9916 = vunpack.c.l.b16 %v9253
          %v9917 = vunpack.c.h.b16 %v9253
          %v9918 = vunpack.c.l.b16 %v9254
          %v9919 = vunpack.c.h.b16 %v9254
          %v9920 = vunpack.c.l.b16 %v9255
          %v9921 = vunpack.c.h.b16 %v9255
          %v9922 = vunpack.c.l.b16 %v9256
          %v9923 = vunpack.c.h.b16 %v9256
          %v9924 = vunpack.c.l.b16 %v9257
          %v9925 = vunpack.c.h.b16 %v9257
          %v9926 = vunpack.c.l.b16 %v9258
          %v9927 = vunpack.c.h.b16 %v9258
          %v9928 = vunpack.c.l.b16 %v9259
          %v9929 = vunpack.c.h.b16 %v9259
          %v9930 = vunpack.c.l.b16 %v9260
          %v9931 = vunpack.c.h.b16 %v9260
          %v9932 = vunpack.c.l.b16 %v9261
          %v9933 = vunpack.c.h.b16 %v9261
          %v9934 = vunpack.c.l.b16 %v9262
          %v9935 = vunpack.c.h.b16 %v9262
          %v9936 = vunpack.c.l.b16 %v9263
          %v9937 = vunpack.c.h.b16 %v9263
          %v9938 = vunpack.c.l.b16 %v9264
          %v9939 = vunpack.c.h.b16 %v9264
          %v9940 = vunpack.c.l.b16 %v9265
          %v9941 = vunpack.c.h.b16 %v9265
          %v9942 = vunpack.c.l.b16 %v9266
          %v9943 = vunpack.c.h.b16 %v9266
          %v9944 = vunpack.c.l.b16 %v9267
          %v9945 = vunpack.c.h.b16 %v9267
          %v9946 = vunpack.c.l.b16 %v9268
          %v9947 = vunpack.c.h.b16 %v9268
          %v9948 = vunpack.c.l.b16 %v9269
          %v9949 = vunpack.c.h.b16 %v9269
          %v9950 = vunpack.c.l.b16 %v9270
          %v9951 = vunpack.c.h.b16 %v9270
          %v9952 = vunpack.c.l.b16 %v9271
          %v9953 = vunpack.c.h.b16 %v9271
          %v9954 = vunpack.c.l.b16 %v9272
          %v9955 = vunpack.c.h.b16 %v9272
          %v9956 = vunpack.c.l.b16 %v9273
          %v9957 = vunpack.c.h.b16 %v9273
          %v9958 = vunpack.c.l.b16 %v9274
          %v9959 = vunpack.c.h.b16 %v9274
          %v9960 = vunpack.c.l.b16 %v9275
          %v9961 = vunpack.c.h.b16 %v9275
          %v9962 = vunpack.c.l.b16 %v9276
          %v9963 = vunpack.c.h.b16 %v9276
          %v9964 = vunpack.c.l.b16 %v9277
          %v9965 = vunpack.c.h.b16 %v9277
          %v9966 = vunpack.c.l.b16 %v9278
          %v9967 = vunpack.c.h.b16 %v9278
          %v9968 = vunpack.c.l.b16 %v9279
          %v9969 = vunpack.c.h.b16 %v9279
          %v9970 = vunpack.c.l.b16 %v9280
          %v9971 = vunpack.c.h.b16 %v9280
          %v9972 = vunpack.c.l.b16 %v9281
          %v9973 = vunpack.c.h.b16 %v9281
          %v9974 = vunpack.c.l.b16 %v9282
          %v9975 = vunpack.c.h.b16 %v9282
          %v9976 = vunpack.c.l.b16 %v9283
          %v9977 = vunpack.c.h.b16 %v9283
          %v9978 = vunpack.c.l.b16 %v9284
          %v9979 = vunpack.c.h.b16 %v9284
          %v9980 = vunpack.c.l.b16 %v9285
          %v9981 = vunpack.c.h.b16 %v9285
          %v9982 = vunpack.c.l.b16 %v9286
          %v9983 = vunpack.c.h.b16 %v9286
          %v9984 = vunpack.c.l.b16 %v9287
          %v9985 = vunpack.c.h.b16 %v9287
          %v9986 = vunpack.c.l.b16 %v9288
          %v9987 = vunpack.c.h.b16 %v9288
          %v9988 = vunpack.c.l.b16 %v9289
          %v9989 = vunpack.c.h.b16 %v9289
          %v9990 = vunpack.c.l.b16 %v9290
          %v9991 = vunpack.c.h.b16 %v9290
          %v9992 = vunpack.c.l.b16 %v9291
          %v9993 = vunpack.c.h.b16 %v9291
          %v9994 = vunpack.c.l.b16 %v9292
          %v9995 = vunpack.c.h.b16 %v9292
          %v9996 = vunpack.c.l.b16 %v9293
          %v9997 = vunpack.c.h.b16 %v9293
          %v9998 = vunpack.c.l.b16 %v9294
          %v9999 = vunpack.c.h.b16 %v9294
          %v10000 = vunpack.c.l.b16 %v9295
          %v10001 = vunpack.c.h.b16 %v9295
          %v10002 = vunpack.c.l.b16 %v9296
          %v10003 = vunpack.c.h.b16 %v9296
          %v10004 = vunpack.c.l.b16 %v9297
          %v10005 = vunpack.c.h.b16 %v9297
          %v10006 = vunpack.c.l.b16 %v9298
          %v10007 = vunpack.c.h.b16 %v9298
          %v10008 = vunpack.c.l.b16 %v9299
          %v10009 = vunpack.c.h.b16 %v9299
          %v10010 = vunpack.c.l.b16 %v9300
          %v10011 = vunpack.c.h.b16 %v9300
          %v10012 = vunpack.c.l.b16 %v9301
          %v10013 = vunpack.c.h.b16 %v9301
          %v10014 = vunpack.c.l.b16 %v9302
          %v10015 = vunpack.c.h.b16 %v9302
          %v10016 = vunpack.c.l.b16 %v9303
          %v10017 = vunpack.c.h.b16 %v9303
          %v10018 = vunpack.c.l.b16 %v9304
          %v10019 = vunpack.c.h.b16 %v9304
          %v10020 = vunpack.c.l.b16 %v9305
          %v10021 = vunpack.c.h.b16 %v9305
          %v10022 = vunpack.c.l.b16 %v9306
          %v10023 = vunpack.c.h.b16 %v9306
          %v10024 = vunpack.c.l.b16 %v9307
          %v10025 = vunpack.c.h.b16 %v9307
          %v10026 = vunpack.c.l.b16 %v9308
          %v10027 = vunpack.c.h.b16 %v9308
          %v10028 = vunpack.c.l.b16 %v9309
          %v10029 = vunpack.c.h.b16 %v9309
          %v10030 = vunpack.c.l.b16 %v9310
          %v10031 = vunpack.c.h.b16 %v9310
          %v10032 = vunpack.c.l.b16 %v9311
          %v10033 = vunpack.c.h.b16 %v9311
          %v10034 = vunpack.c.l.b16 %v9312
          %v10035 = vunpack.c.h.b16 %v9312
          %v10036 = vunpack.c.l.b16 %v9313
          %v10037 = vunpack.c.h.b16 %v9313
          %v10038 = vunpack.c.l.b16 %v9314
          %v10039 = vunpack.c.h.b16 %v9314
          %v10040 = vunpack.c.l.b16 %v9315
          %v10041 = vunpack.c.h.b16 %v9315
          %v10042 = vunpack.c.l.b16 %v9316
          %v10043 = vunpack.c.h.b16 %v9316
          %v10044 = vunpack.c.l.b16 %v9317
          %v10045 = vunpack.c.h.b16 %v9317
          %v10046 = vunpack.c.l.b16 %v9318
          %v10047 = vunpack.c.h.b16 %v9318
          %v10048 = vunpack.c.l.b16 %v9319
          %v10049 = vunpack.c.h.b16 %v9319
          %v10050 = vunpack.c.l.b16 %v9320
          %v10051 = vunpack.c.h.b16 %v9320
          %v10052 = vunpack.c.l.b16 %v9321
          %v10053 = vunpack.c.h.b16 %v9321
          %v10054 = vunpack.c.l.b16 %v9322
          %v10055 = vunpack.c.h.b16 %v9322
          %v10056 = vunpack.c.l.b16 %v9323
          %v10057 = vunpack.c.h.b16 %v9323
          %v10058 = vunpack.c.l.b16 %v9324
          %v10059 = vunpack.c.h.b16 %v9324
          %v10060 = vunpack.c.l.b16 %v9325
          %v10061 = vunpack.c.h.b16 %v9325
          %v10062 = vunpack.c.l.b16 %v9326
          %v10063 = vunpack.c.h.b16 %v9326
          %v10064 = vunpack.c.l.b16 %v9327
          %v10065 = vunpack.c.h.b16 %v9327
          %v10066 = vunpack.c.l.b16 %v9328
          %v10067 = vunpack.c.h.b16 %v9328
          %v10068 = vunpack.c.l.b16 %v9329
          %v10069 = vunpack.c.h.b16 %v9329
          %v10070 = vunpack.c.l.b16 %v9330
          %v10071 = vunpack.c.h.b16 %v9330
          %v10072 = vunpack.c.l.b16 %v9331
          %v10073 = vunpack.c.h.b16 %v9331
          %v10074 = vunpack.c.l.b16 %v9332
          %v10075 = vunpack.c.h.b16 %v9332
          %v10076 = vunpack.c.l.b16 %v9333
          %v10077 = vunpack.c.h.b16 %v9333
          %v10078 = vunpack.c.l.b16 %v9334
          %v10079 = vunpack.c.h.b16 %v9334
          %v10080 = vunpack.c.l.b16 %v9335
          %v10081 = vunpack.c.h.b16 %v9335
          %v10082 = vunpack.c.l.b16 %v9336
          %v10083 = vunpack.c.h.b16 %v9336
          %v10084 = vunpack.c.l.b16 %v9337
          %v10085 = vunpack.c.h.b16 %v9337
          %v10086 = vunpack.c.l.b16 %v9338
          %v10087 = vunpack.c.h.b16 %v9338
          %v10088 = vunpack.c.l.b16 %v9339
          %v10089 = vunpack.c.h.b16 %v9339
          %v10090 = vunpack.c.l.b16 %v9340
          %v10091 = vunpack.c.h.b16 %v9340
          %v10092 = vunpack.c.l.b16 %v9341
          %v10093 = vunpack.c.h.b16 %v9341
          %v10094 = vunpack.c.l.b16 %v9342
          %v10095 = vunpack.c.h.b16 %v9342
          %v10096 = vunpack.c.l.b16 %v9343
          %v10097 = vunpack.c.h.b16 %v9343
          %v10098 = vunpack.c.l.b16 %v9344
          %v10099 = vunpack.c.h.b16 %v9344
          %v10100 = vunpack.c.l.b16 %v9345
          %v10101 = vunpack.c.h.b16 %v9345
          %v10102 = vunpack.c.l.b16 %v9346
          %v10103 = vunpack.c.h.b16 %v9346
          %v10104 = vunpack.c.l.b16 %v9347
          %v10105 = vunpack.c.h.b16 %v9347
          %v10106 = vunpack.c.l.b16 %v9348
          %v10107 = vunpack.c.h.b16 %v9348
          %v10108 = vunpack.c.l.b16 %v9349
          %v10109 = vunpack.c.h.b16 %v9349
          %v10110 = vunpack.c.l.b16 %v9350
          %v10111 = vunpack.c.h.b16 %v9350
          %v10112 = vunpack.c.l.b16 %v9351
          %v10113 = vunpack.c.h.b16 %v9351
          %v10114 = vunpack.c.l.b16 %v9352
          %v10115 = vunpack.c.h.b16 %v9352
          %v10116 = vunpack.c.l.b16 %v9353
          %v10117 = vunpack.c.h.b16 %v9353
          %v10118 = vunpack.c.l.b16 %v9354
          %v10119 = vunpack.c.h.b16 %v9354
          %v10120 = vunpack.c.l.b16 %v9355
          %v10121 = vunpack.c.h.b16 %v9355
          %v10122 = vunpack.c.l.b16 %v9356
          %v10123 = vunpack.c.h.b16 %v9356
          %v10124 = vunpack.c.l.b16 %v9357
          %v10125 = vunpack.c.h.b16 %v9357
          %v10126 = vunpack.c.l.b16 %v9358
          %v10127 = vunpack.c.h.b16 %v9358
          %v10128 = vunpack.c.l.b16 %v9359
          %v10129 = vunpack.c.h.b16 %v9359
          %v10130 = vunpack.c.l.b16 %v9360
          %v10131 = vunpack.c.h.b16 %v9360
          %v10132 = vunpack.c.l.b16 %v9361
          %v10133 = vunpack.c.h.b16 %v9361
          %v10134 = vunpack.c.l.b16 %v9362
          %v10135 = vunpack.c.h.b16 %v9362
          %v10136 = vunpack.c.l.b16 %v9363
          %v10137 = vunpack.c.h.b16 %v9363
          %v10138 = vpack.c.b16 %v9628, %v9626
          %v10139 = vpack.c.b16 %v9629, %v9627
          %v10140 = vpack.c.b16 %v9632, %v9630
          %v10141 = vpack.c.b16 %v9633, %v9631
          %v10142 = vpack.c.b16 %v9636, %v9634
          %v10143 = vpack.c.b16 %v9637, %v9635
          %v10144 = vpack.c.b16 %v9640, %v9638
          %v10145 = vpack.c.b16 %v9641, %v9639
          %v10146 = vpack.c.b16 %v9644, %v9642
          %v10147 = vpack.c.b16 %v9645, %v9643
          %v10148 = vpack.c.b16 %v9648, %v9646
          %v10149 = vpack.c.b16 %v9649, %v9647
          %v10150 = vpack.c.b16 %v9652, %v9650
          %v10151 = vpack.c.b16 %v9653, %v9651
          %v10152 = vpack.c.b16 %v9656, %v9654
          %v10153 = vpack.c.b16 %v9657, %v9655
          %v10154 = vpack.c.b16 %v9660, %v9658
          %v10155 = vpack.c.b16 %v9661, %v9659
          %v10156 = vpack.c.b16 %v9664, %v9662
          %v10157 = vpack.c.b16 %v9665, %v9663
          %v10158 = vpack.c.b16 %v9668, %v9666
          %v10159 = vpack.c.b16 %v9669, %v9667
          %v10160 = vpack.c.b16 %v9672, %v9670
          %v10161 = vpack.c.b16 %v9673, %v9671
          %v10162 = vpack.c.b16 %v9676, %v9674
          %v10163 = vpack.c.b16 %v9677, %v9675
          %v10164 = vpack.c.b16 %v9680, %v9678
          %v10165 = vpack.c.b16 %v9681, %v9679
          %v10166 = vpack.c.b16 %v9684, %v9682
          %v10167 = vpack.c.b16 %v9685, %v9683
          %v10168 = vpack.c.b16 %v9688, %v9686
          %v10169 = vpack.c.b16 %v9689, %v9687
          %v10170 = vpack.c.b16 %v9692, %v9690
          %v10171 = vpack.c.b16 %v9693, %v9691
          %v10172 = vpack.c.b16 %v9696, %v9694
          %v10173 = vpack.c.b16 %v9697, %v9695
          %v10174 = vpack.c.b16 %v9700, %v9698
          %v10175 = vpack.c.b16 %v9701, %v9699
          %v10176 = vpack.c.b16 %v9704, %v9702
          %v10177 = vpack.c.b16 %v9705, %v9703
          %v10178 = vpack.c.b16 %v9708, %v9706
          %v10179 = vpack.c.b16 %v9709, %v9707
          %v10180 = vpack.c.b16 %v9712, %v9710
          %v10181 = vpack.c.b16 %v9713, %v9711
          %v10182 = vpack.c.b16 %v9716, %v9714
          %v10183 = vpack.c.b16 %v9717, %v9715
          %v10184 = vpack.c.b16 %v9720, %v9718
          %v10185 = vpack.c.b16 %v9721, %v9719
          %v10186 = vpack.c.b16 %v9724, %v9722
          %v10187 = vpack.c.b16 %v9725, %v9723
          %v10188 = vpack.c.b16 %v9728, %v9726
          %v10189 = vpack.c.b16 %v9729, %v9727
          %v10190 = vpack.c.b16 %v9732, %v9730
          %v10191 = vpack.c.b16 %v9733, %v9731
          %v10192 = vpack.c.b16 %v9736, %v9734
          %v10193 = vpack.c.b16 %v9737, %v9735
          %v10194 = vpack.c.b16 %v9740, %v9738
          %v10195 = vpack.c.b16 %v9741, %v9739
          %v10196 = vpack.c.b16 %v9744, %v9742
          %v10197 = vpack.c.b16 %v9745, %v9743
          %v10198 = vpack.c.b16 %v9748, %v9746
          %v10199 = vpack.c.b16 %v9749, %v9747
          %v10200 = vpack.c.b16 %v9752, %v9750
          %v10201 = vpack.c.b16 %v9753, %v9751
          %v10202 = vpack.c.b16 %v9756, %v9754
          %v10203 = vpack.c.b16 %v9757, %v9755
          %v10204 = vpack.c.b16 %v9760, %v9758
          %v10205 = vpack.c.b16 %v9761, %v9759
          %v10206 = vpack.c.b16 %v9764, %v9762
          %v10207 = vpack.c.b16 %v9765, %v9763
          %v10208 = vpack.c.b16 %v9768, %v9766
          %v10209 = vpack.c.b16 %v9769, %v9767
          %v10210 = vpack.c.b16 %v9772, %v9770
          %v10211 = vpack.c.b16 %v9773, %v9771
          %v10212 = vpack.c.b16 %v9776, %v9774
          %v10213 = vpack.c.b16 %v9777, %v9775
          %v10214 = vpack.c.b16 %v9780, %v9778
          %v10215 = vpack.c.b16 %v9781, %v9779
          %v10216 = vpack.c.b16 %v9784, %v9782
          %v10217 = vpack.c.b16 %v9785, %v9783
          %v10218 = vpack.c.b16 %v9788, %v9786
          %v10219 = vpack.c.b16 %v9789, %v9787
          %v10220 = vpack.c.b16 %v9792, %v9790
          %v10221 = vpack.c.b16 %v9793, %v9791
          %v10222 = vpack.c.b16 %v9796, %v9794
          %v10223 = vpack.c.b16 %v9797, %v9795
          %v10224 = vpack.c.b16 %v9800, %v9798
          %v10225 = vpack.c.b16 %v9801, %v9799
          %v10226 = vpack.c.b16 %v9804, %v9802
          %v10227 = vpack.c.b16 %v9805, %v9803
          %v10228 = vpack.c.b16 %v9808, %v9806
          %v10229 = vpack.c.b16 %v9809, %v9807
          %v10230 = vpack.c.b16 %v9812, %v9810
          %v10231 = vpack.c.b16 %v9813, %v9811
          %v10232 = vpack.c.b16 %v9816, %v9814
          %v10233 = vpack.c.b16 %v9817, %v9815
          %v10234 = vpack.c.b16 %v9820, %v9818
          %v10235 = vpack.c.b16 %v9821, %v9819
          %v10236 = vpack.c.b16 %v9824, %v9822
          %v10237 = vpack.c.b16 %v9825, %v9823
          %v10238 = vpack.c.b16 %v9828, %v9826
          %v10239 = vpack.c.b16 %v9829, %v9827
          %v10240 = vpack.c.b16 %v9832, %v9830
          %v10241 = vpack.c.b16 %v9833, %v9831
          %v10242 = vpack.c.b16 %v9836, %v9834
          %v10243 = vpack.c.b16 %v9837, %v9835
          %v10244 = vpack.c.b16 %v9840, %v9838
          %v10245 = vpack.c.b16 %v9841, %v9839
          %v10246 = vpack.c.b16 %v9844, %v9842
          %v10247 = vpack.c.b16 %v9845, %v9843
          %v10248 = vpack.c.b16 %v9848, %v9846
          %v10249 = vpack.c.b16 %v9849, %v9847
          %v10250 = vpack.c.b16 %v9852, %v9850
          %v10251 = vpack.c.b16 %v9853, %v9851
          %v10252 = vpack.c.b16 %v9856, %v9854
          %v10253 = vpack.c.b16 %v9857, %v9855
          %v10254 = vpack.c.b16 %v9860, %v9858
          %v10255 = vpack.c.b16 %v9861, %v9859
          %v10256 = vpack.c.b16 %v9864, %v9862
          %v10257 = vpack.c.b16 %v9865, %v9863
          %v10258 = vpack.c.b16 %v9868, %v9866
          %v10259 = vpack.c.b16 %v9869, %v9867
          %v10260 = vpack.c.b16 %v9872, %v9870
          %v10261 = vpack.c.b16 %v9873, %v9871
          %v10262 = vpack.c.b16 %v9876, %v9874
          %v10263 = vpack.c.b16 %v9877, %v9875
          %v10264 = vpack.c.b16 %v9880, %v9878
          %v10265 = vpack.c.b16 %v9881, %v9879
          %v10266 = vpack.c.b16 %v9884, %v9882
          %v10267 = vpack.c.b16 %v9885, %v9883
          %v10268 = vpack.c.b16 %v9888, %v9886
          %v10269 = vpack.c.b16 %v9889, %v9887
          %v10270 = vpack.c.b16 %v9892, %v9890
          %v10271 = vpack.c.b16 %v9893, %v9891
          %v10272 = vpack.c.b16 %v9896, %v9894
          %v10273 = vpack.c.b16 %v9897, %v9895
          %v10274 = vpack.c.b16 %v9900, %v9898
          %v10275 = vpack.c.b16 %v9901, %v9899
          %v10276 = vpack.c.b16 %v9904, %v9902
          %v10277 = vpack.c.b16 %v9905, %v9903
          %v10278 = vpack.c.b16 %v9908, %v9906
          %v10279 = vpack.c.b16 %v9909, %v9907
          %v10280 = vpack.c.b16 %v9912, %v9910
          %v10281 = vpack.c.b16 %v9913, %v9911
          %v10282 = vpack.c.b16 %v9916, %v9914
          %v10283 = vpack.c.b16 %v9917, %v9915
          %v10284 = vpack.c.b16 %v9920, %v9918
          %v10285 = vpack.c.b16 %v9921, %v9919
          %v10286 = vpack.c.b16 %v9924, %v9922
          %v10287 = vpack.c.b16 %v9925, %v9923
          %v10288 = vpack.c.b16 %v9928, %v9926
          %v10289 = vpack.c.b16 %v9929, %v9927
          %v10290 = vpack.c.b16 %v9932, %v9930
          %v10291 = vpack.c.b16 %v9933, %v9931
          %v10292 = vpack.c.b16 %v9936, %v9934
          %v10293 = vpack.c.b16 %v9937, %v9935
          %v10294 = vpack.c.b16 %v9940, %v9938
          %v10295 = vpack.c.b16 %v9941, %v9939
          %v10296 = vpack.c.b16 %v9944, %v9942
          %v10297 = vpack.c.b16 %v9945, %v9943
          %v10298 = vpack.c.b16 %v9948, %v9946
          %v10299 = vpack.c.b16 %v9949, %v9947
          %v10300 = vpack.c.b16 %v9952, %v9950
          %v10301 = vpack.c.b16 %v9953, %v9951
          %v10302 = vpack.c.b16 %v9956, %v9954
          %v10303 = vpack.c.b16 %v9957, %v9955
          %v10304 = vpack.c.b16 %v9960, %v9958
          %v10305 = vpack.c.b16 %v9961, %v9959
          %v10306 = vpack.c.b16 %v9964, %v9962
          %v10307 = vpack.c.b16 %v9965, %v9963
          %v10308 = vpack.c.b16 %v9968, %v9966
          %v10309 = vpack.c.b16 %v9969, %v9967
          %v10310 = vpack.c.b16 %v9972, %v9970
          %v10311 = vpack.c.b16 %v9973, %v9971
          %v10312 = vpack.c.b16 %v9976, %v9974
          %v10313 = vpack.c.b16 %v9977, %v9975
          %v10314 = vpack.c.b16 %v9980, %v9978
          %v10315 = vpack.c.b16 %v9981, %v9979
          %v10316 = vpack.c.b16 %v9984, %v9982
          %v10317 = vpack.c.b16 %v9985, %v9983
          %v10318 = vpack.c.b16 %v9988, %v9986
          %v10319 = vpack.c.b16 %v9989, %v9987
          %v10320 = vpack.c.b16 %v9992, %v9990
          %v10321 = vpack.c.b16 %v9993, %v9991
          %v10322 = vpack.c.b16 %v9996, %v9994
          %v10323 = vpack.c.b16 %v9997, %v9995
          %v10324 = vpack.c.b16 %v10000, %v9998
          %v10325 = vpack.c.b16 %v10001, %v9999
          %v10326 = vpack.c.b16 %v10004, %v10002
          %v10327 = vpack.c.b16 %v10005, %v10003
          %v10328 = vpack.c.b16 %v10008, %v10006
          %v10329 = vpack.c.b16 %v10009, %v10007
          %v10330 = vpack.c.b16 %v10012, %v10010
          %v10331 = vpack.c.b16 %v10013, %v10011
          %v10332 = vpack.c.b16 %v10016, %v10014
          %v10333 = vpack.c.b16 %v10017, %v10015
          %v10334 = vpack.c.b16 %v10020, %v10018
          %v10335 = vpack.c.b16 %v10021, %v10019
          %v10336 = vpack.c.b16 %v10024, %v10022
          %v10337 = vpack.c.b16 %v10025, %v10023
          %v10338 = vpack.c.b16 %v10028, %v10026
          %v10339 = vpack.c.b16 %v10029, %v10027
          %v10340 = vpack.c.b16 %v10032, %v10030
          %v10341 = vpack.c.b16 %v10033, %v10031
          %v10342 = vpack.c.b16 %v10036, %v10034
          %v10343 = vpack.c.b16 %v10037, %v10035
          %v10344 = vpack.c.b16 %v10040, %v10038
          %v10345 = vpack.c.b16 %v10041, %v10039
          %v10346 = vpack.c.b16 %v10044, %v10042
          %v10347 = vpack.c.b16 %v10045, %v10043
          %v10348 = vpack.c.b16 %v10048, %v10046
          %v10349 = vpack.c.b16 %v10049, %v10047
          %v10350 = vpack.c.b16 %v10052, %v10050
          %v10351 = vpack.c.b16 %v10053, %v10051
          %v10352 = vpack.c.b16 %v10056, %v10054
          %v10353 = vpack.c.b16 %v10057, %v10055
          %v10354 = vpack.c.b16 %v10060, %v10058
          %v10355 = vpack.c.b16 %v10061, %v10059
          %v10356 = vpack.c.b16 %v10064, %v10062
          %v10357 = vpack.c.b16 %v10065, %v10063
          %v10358 = vpack.c.b16 %v10068, %v10066
          %v10359 = vpack.c.b16 %v10069, %v10067
          %v10360 = vpack.c.b16 %v10072, %v10070
          %v10361 = vpack.c.b16 %v10073, %v10071
          %v10362 = vpack.c.b16 %v10076, %v10074
          %v10363 = vpack.c.b16 %v10077, %v10075
          %v10364 = vpack.c.b16 %v10080, %v10078
          %v10365 = vpack.c.b16 %v10081, %v10079
          %v10366 = vpack.c.b16 %v10084, %v10082
          %v10367 = vpack.c.b16 %v10085, %v10083
          %v10368 = vpack.c.b16 %v10088, %v10086
          %v10369 = vpack.c.b16 %v10089, %v10087
          %v10370 = vpack.c.b16 %v10092, %v10090
          %v10371 = vpack.c.b16 %v10093, %v10091
          %v10372 = vpack.c.b16 %v10096, %v10094
          %v10373 = vpack.c.b16 %v10097, %v10095
          %v10374 = vpack.c.b16 %v10100, %v10098
          %v10375 = vpack.c.b16 %v10101, %v10099
          %v10376 = vpack.c.b16 %v10104, %v10102
          %v10377 = vpack.c.b16 %v10105, %v10103
          %v10378 = vpack.c.b16 %v10108, %v10106
          %v10379 = vpack.c.b16 %v10109, %v10107
          %v10380 = vpack.c.b16 %v10112, %v10110
          %v10381 = vpack.c.b16 %v10113, %v10111
          %v10382 = vpack.c.b16 %v10116, %v10114
          %v10383 = vpack.c.b16 %v10117, %v10115
          %v10384 = vpack.c.b16 %v10120, %v10118
          %v10385 = vpack.c.b16 %v10121, %v10119
          %v10386 = vpack.c.b16 %v10124, %v10122
          %v10387 = vpack.c.b16 %v10125, %v10123
          %v10388 = vpack.c.b16 %v10128, %v10126
          %v10389 = vpack.c.b16 %v10129, %v10127
          %v10390 = vpack.c.b16 %v10132, %v10130
          %v10391 = vpack.c.b16 %v10133, %v10131
          %v10392 = vpack.c.b16 %v10136, %v10134
          %v10393 = vpack.c.b16 %v10137, %v10135
          %10650 = vmatpush.bf16.msra.mxu0 %v10152
          %10651 = vmatpush.bf16.msra.mxu0 %v10150
          %10652 = vmatpush.bf16.msra.mxu0 %v10148
          %10653 = vmatpush.bf16.msra.mxu0 %v10146
          %10654 = vmatpush.bf16.msra.mxu0 %v10144
          %10655 = vmatpush.bf16.msra.mxu0 %v10142
          %10656 = vmatpush.bf16.msra.mxu0 %v10140
          %10657 = vmatpush.bf16.msra.mxu0 %v10138
          %10658 = vmatmul.bf16.gmra.mxu0 %v9092
          %v10659 = vpop.f32.mrf.mxu0
          %v10660 = vadd.f32 %v9366, %v10659
          %v10661 = vpop.f32.mrf.mxu0
          %10662 = vdwg.mxu0
          %10663 = vmatpush.bf16.msra.mxu0 %v10168
          %10664 = vmatpush.bf16.msra.mxu0 %v10166
          %10665 = vmatpush.bf16.msra.mxu0 %v10164
          %10666 = vmatpush.bf16.msra.mxu0 %v10162
          %10667 = vmatpush.bf16.msra.mxu0 %v10160
          %10668 = vmatpush.bf16.msra.mxu0 %v10158
          %10669 = vmatpush.bf16.msra.mxu0 %v10156
          %10670 = vmatpush.bf16.msra.mxu0 %v10154
          %10671 = vmatmul.bf16.gmra.mxu0 %v9093
          %v10672 = vpop.f32.mrf.mxu0
          %v10673 = vadd.f32 %v10660, %v10672
          %v10674 = vpop.f32.mrf.mxu0
          %10675 = vdwg.mxu0
          %10676 = vmatpush.bf16.msra.mxu0 %v10184
          %10677 = vmatpush.bf16.msra.mxu0 %v10182
          %10678 = vmatpush.bf16.msra.mxu0 %v10180
          %10679 = vmatpush.bf16.msra.mxu0 %v10178
          %10680 = vmatpush.bf16.msra.mxu0 %v10176
          %10681 = vmatpush.bf16.msra.mxu0 %v10174
          %10682 = vmatpush.bf16.msra.mxu0 %v10172
          %10683 = vmatpush.bf16.msra.mxu0 %v10170
          %10684 = vmatmul.bf16.gmra.mxu0 %v9094
          %v10685 = vpop.f32.mrf.mxu0
          %v10686 = vadd.f32 %v10673, %v10685
          %v10687 = vpop.f32.mrf.mxu0
          %10688 = vdwg.mxu0
          %10689 = vmatpush.bf16.msra.mxu0 %v10200
          %10690 = vmatpush.bf16.msra.mxu0 %v10198
          %10691 = vmatpush.bf16.msra.mxu0 %v10196
          %10692 = vmatpush.bf16.msra.mxu0 %v10194
          %10693 = vmatpush.bf16.msra.mxu0 %v10192
          %10694 = vmatpush.bf16.msra.mxu0 %v10190
          %10695 = vmatpush.bf16.msra.mxu0 %v10188
          %10696 = vmatpush.bf16.msra.mxu0 %v10186
          %10697 = vmatmul.bf16.gmra.mxu0 %v9095
          %v10698 = vpop.f32.mrf.mxu0
          %v10699 = vadd.f32 %v10686, %v10698
          %v10700 = vpop.f32.mrf.mxu0
          %10701 = vdwg.mxu0
          %10702 = vmatpush.bf16.msra.mxu0 %v10216
          %10703 = vmatpush.bf16.msra.mxu0 %v10214
          %10704 = vmatpush.bf16.msra.mxu0 %v10212
          %10705 = vmatpush.bf16.msra.mxu0 %v10210
          %10706 = vmatpush.bf16.msra.mxu0 %v10208
          %10707 = vmatpush.bf16.msra.mxu0 %v10206
          %10708 = vmatpush.bf16.msra.mxu0 %v10204
          %10709 = vmatpush.bf16.msra.mxu0 %v10202
          %10710 = vmatmul.bf16.gmra.mxu0 %v9096
          %v10711 = vpop.f32.mrf.mxu0
          %v10712 = vadd.f32 %v10699, %v10711
          %v10713 = vpop.f32.mrf.mxu0
          %10714 = vdwg.mxu0
          %10715 = vmatpush.bf16.msra.mxu0 %v10232
          %10716 = vmatpush.bf16.msra.mxu0 %v10230
          %10717 = vmatpush.bf16.msra.mxu0 %v10228
          %10718 = vmatpush.bf16.msra.mxu0 %v10226
          %10719 = vmatpush.bf16.msra.mxu0 %v10224
          %10720 = vmatpush.bf16.msra.mxu0 %v10222
          %10721 = vmatpush.bf16.msra.mxu0 %v10220
          %10722 = vmatpush.bf16.msra.mxu0 %v10218
          %10723 = vmatmul.bf16.gmra.mxu0 %v9097
          %v10724 = vpop.f32.mrf.mxu0
          %v10725 = vadd.f32 %v10712, %v10724
          %v10726 = vpop.f32.mrf.mxu0
          %10727 = vdwg.mxu0
          %10728 = vmatpush.bf16.msra.mxu0 %v10248
          %10729 = vmatpush.bf16.msra.mxu0 %v10246
          %10730 = vmatpush.bf16.msra.mxu0 %v10244
          %10731 = vmatpush.bf16.msra.mxu0 %v10242
          %10732 = vmatpush.bf16.msra.mxu0 %v10240
          %10733 = vmatpush.bf16.msra.mxu0 %v10238
          %10734 = vmatpush.bf16.msra.mxu0 %v10236
          %10735 = vmatpush.bf16.msra.mxu0 %v10234
          %10736 = vmatmul.bf16.gmra.mxu0 %v9098
          %v10737 = vpop.f32.mrf.mxu0
          %v10738 = vadd.f32 %v10725, %v10737
          %v10739 = vpop.f32.mrf.mxu0
          %10740 = vdwg.mxu0
          %10741 = vmatpush.bf16.msra.mxu0 %v10264
          %10742 = vmatpush.bf16.msra.mxu0 %v10262
          %10743 = vmatpush.bf16.msra.mxu0 %v10260
          %10744 = vmatpush.bf16.msra.mxu0 %v10258
          %10745 = vmatpush.bf16.msra.mxu0 %v10256
          %10746 = vmatpush.bf16.msra.mxu0 %v10254
          %10747 = vmatpush.bf16.msra.mxu0 %v10252
          %10748 = vmatpush.bf16.msra.mxu0 %v10250
          %10749 = vmatmul.bf16.gmra.mxu0 %v9099
          %v10750 = vpop.f32.mrf.mxu0
          %v10751 = vadd.f32 %v10738, %v10750
          %v10752 = vpop.f32.mrf.mxu0
          %10753 = vdwg.mxu0
          %10754 = vmatpush.bf16.msra.mxu0 %v10280
          %10755 = vmatpush.bf16.msra.mxu0 %v10278
          %10756 = vmatpush.bf16.msra.mxu0 %v10276
          %10757 = vmatpush.bf16.msra.mxu0 %v10274
          %10758 = vmatpush.bf16.msra.mxu0 %v10272
          %10759 = vmatpush.bf16.msra.mxu0 %v10270
          %10760 = vmatpush.bf16.msra.mxu0 %v10268
          %10761 = vmatpush.bf16.msra.mxu0 %v10266
          %10762 = vmatmul.bf16.gmra.mxu0 %v9100
          %v10763 = vpop.f32.mrf.mxu0
          %v10764 = vadd.f32 %v10751, %v10763
          %v10765 = vpop.f32.mrf.mxu0
          %10766 = vdwg.mxu0
          %10767 = vmatpush.bf16.msra.mxu0 %v10296
          %10768 = vmatpush.bf16.msra.mxu0 %v10294
          %10769 = vmatpush.bf16.msra.mxu0 %v10292
          %10770 = vmatpush.bf16.msra.mxu0 %v10290
          %10771 = vmatpush.bf16.msra.mxu0 %v10288
          %10772 = vmatpush.bf16.msra.mxu0 %v10286
          %10773 = vmatpush.bf16.msra.mxu0 %v10284
          %10774 = vmatpush.bf16.msra.mxu0 %v10282
          %10775 = vmatmul.bf16.gmra.mxu0 %v9101
          %v10776 = vpop.f32.mrf.mxu0
          %v10777 = vadd.f32 %v10764, %v10776
          %v10778 = vpop.f32.mrf.mxu0
          %10779 = vdwg.mxu0
          %10780 = vmatpush.bf16.msra.mxu0 %v10312
          %10781 = vmatpush.bf16.msra.mxu0 %v10310
          %10782 = vmatpush.bf16.msra.mxu0 %v10308
          %10783 = vmatpush.bf16.msra.mxu0 %v10306
          %10784 = vmatpush.bf16.msra.mxu0 %v10304
          %10785 = vmatpush.bf16.msra.mxu0 %v10302
          %10786 = vmatpush.bf16.msra.mxu0 %v10300
          %10787 = vmatpush.bf16.msra.mxu0 %v10298
          %10788 = vmatmul.bf16.gmra.mxu0 %v9102
          %v10789 = vpop.f32.mrf.mxu0
          %v10790 = vadd.f32 %v10777, %v10789
          %v10791 = vpop.f32.mrf.mxu0
          %10792 = vdwg.mxu0
          %10793 = vmatpush.bf16.msra.mxu0 %v10328
          %10794 = vmatpush.bf16.msra.mxu0 %v10326
          %10795 = vmatpush.bf16.msra.mxu0 %v10324
          %10796 = vmatpush.bf16.msra.mxu0 %v10322
          %10797 = vmatpush.bf16.msra.mxu0 %v10320
          %10798 = vmatpush.bf16.msra.mxu0 %v10318
          %10799 = vmatpush.bf16.msra.mxu0 %v10316
          %10800 = vmatpush.bf16.msra.mxu0 %v10314
          %10801 = vmatmul.bf16.gmra.mxu0 %v9103
          %v10802 = vpop.f32.mrf.mxu0
          %v10803 = vadd.f32 %v10790, %v10802
          %v10804 = vpop.f32.mrf.mxu0
          %10805 = vdwg.mxu0
          %10806 = vmatpush.bf16.msra.mxu0 %v10344
          %10807 = vmatpush.bf16.msra.mxu0 %v10342
          %10808 = vmatpush.bf16.msra.mxu0 %v10340
          %10809 = vmatpush.bf16.msra.mxu0 %v10338
          %10810 = vmatpush.bf16.msra.mxu0 %v10336
          %10811 = vmatpush.bf16.msra.mxu0 %v10334
          %10812 = vmatpush.bf16.msra.mxu0 %v10332
          %10813 = vmatpush.bf16.msra.mxu0 %v10330
          %10814 = vmatmul.bf16.gmra.mxu0 %v9104
          %v10815 = vpop.f32.mrf.mxu0
          %v10816 = vadd.f32 %v10803, %v10815
          %v10817 = vpop.f32.mrf.mxu0
          %10818 = vdwg.mxu0
          %10819 = vmatpush.bf16.msra.mxu0 %v10360
          %10820 = vmatpush.bf16.msra.mxu0 %v10358
          %10821 = vmatpush.bf16.msra.mxu0 %v10356
          %10822 = vmatpush.bf16.msra.mxu0 %v10354
          %10823 = vmatpush.bf16.msra.mxu0 %v10352
          %10824 = vmatpush.bf16.msra.mxu0 %v10350
          %10825 = vmatpush.bf16.msra.mxu0 %v10348
          %10826 = vmatpush.bf16.msra.mxu0 %v10346
          %10827 = vmatmul.bf16.gmra.mxu0 %v9105
          %v10828 = vpop.f32.mrf.mxu0
          %v10829 = vadd.f32 %v10816, %v10828
          %v10830 = vpop.f32.mrf.mxu0
          %10831 = vdwg.mxu0
          %10832 = vmatpush.bf16.msra.mxu0 %v10376
          %10833 = vmatpush.bf16.msra.mxu0 %v10374
          %10834 = vmatpush.bf16.msra.mxu0 %v10372
          %10835 = vmatpush.bf16.msra.mxu0 %v10370
          %10836 = vmatpush.bf16.msra.mxu0 %v10368
          %10837 = vmatpush.bf16.msra.mxu0 %v10366
          %10838 = vmatpush.bf16.msra.mxu0 %v10364
          %10839 = vmatpush.bf16.msra.mxu0 %v10362
          %10840 = vmatmul.bf16.gmra.mxu0 %v9106
          %v10841 = vpop.f32.mrf.mxu0
          %v10842 = vadd.f32 %v10829, %v10841
          %v10843 = vpop.f32.mrf.mxu0
          %10844 = vdwg.mxu0
          %10845 = vmatpush.bf16.msra.mxu0 %v10392
          %10846 = vmatpush.bf16.msra.mxu0 %v10390
          %10847 = vmatpush.bf16.msra.mxu0 %v10388
          %10848 = vmatpush.bf16.msra.mxu0 %v10386
          %10849 = vmatpush.bf16.msra.mxu0 %v10384
          %10850 = vmatpush.bf16.msra.mxu0 %v10382
          %10851 = vmatpush.bf16.msra.mxu0 %v10380
          %10852 = vmatpush.bf16.msra.mxu0 %v10378
          %10853 = vmatmul.bf16.gmra.mxu0 %v9107
          %v10854 = vpop.f32.mrf.mxu0
          %v10855 = vadd.f32 %v10842, %v10854
          %v10856 = vpop.f32.mrf.mxu0
          %10857 = vdwg.mxu0
          %10858 = vmatpush.bf16.msra.mxu0 %v10153
          %10859 = vmatpush.bf16.msra.mxu0 %v10151
          %10860 = vmatpush.bf16.msra.mxu0 %v10149
          %10861 = vmatpush.bf16.msra.mxu0 %v10147
          %10862 = vmatpush.bf16.msra.mxu0 %v10145
          %10863 = vmatpush.bf16.msra.mxu0 %v10143
          %10864 = vmatpush.bf16.msra.mxu0 %v10141
          %10865 = vmatpush.bf16.msra.mxu0 %v10139
          %10866 = vmatmul.bf16.gmra.mxu0 %v9092
          %v10867 = vpop.f32.mrf.mxu0
          %v10868 = vadd.f32 %v9367, %v10867
          %v10869 = vpop.f32.mrf.mxu0
          %10870 = vdwg.mxu0
          %10871 = vmatpush.bf16.msra.mxu0 %v10169
          %10872 = vmatpush.bf16.msra.mxu0 %v10167
          %10873 = vmatpush.bf16.msra.mxu0 %v10165
          %10874 = vmatpush.bf16.msra.mxu0 %v10163
          %10875 = vmatpush.bf16.msra.mxu0 %v10161
          %10876 = vmatpush.bf16.msra.mxu0 %v10159
          %10877 = vmatpush.bf16.msra.mxu0 %v10157
          %10878 = vmatpush.bf16.msra.mxu0 %v10155
          %10879 = vmatmul.bf16.gmra.mxu0 %v9093
          %v10880 = vpop.f32.mrf.mxu0
          %v10881 = vadd.f32 %v10868, %v10880
          %v10882 = vpop.f32.mrf.mxu0
          %10883 = vdwg.mxu0
          %10884 = vmatpush.bf16.msra.mxu0 %v10185
          %10885 = vmatpush.bf16.msra.mxu0 %v10183
          %10886 = vmatpush.bf16.msra.mxu0 %v10181
          %10887 = vmatpush.bf16.msra.mxu0 %v10179
          %10888 = vmatpush.bf16.msra.mxu0 %v10177
          %10889 = vmatpush.bf16.msra.mxu0 %v10175
          %10890 = vmatpush.bf16.msra.mxu0 %v10173
          %10891 = vmatpush.bf16.msra.mxu0 %v10171
          %10892 = vmatmul.bf16.gmra.mxu0 %v9094
          %v10893 = vpop.f32.mrf.mxu0
          %v10894 = vadd.f32 %v10881, %v10893
          %v10895 = vpop.f32.mrf.mxu0
          %10896 = vdwg.mxu0
          %10897 = vmatpush.bf16.msra.mxu0 %v10201
          %10898 = vmatpush.bf16.msra.mxu0 %v10199
          %10899 = vmatpush.bf16.msra.mxu0 %v10197
          %10900 = vmatpush.bf16.msra.mxu0 %v10195
          %10901 = vmatpush.bf16.msra.mxu0 %v10193
          %10902 = vmatpush.bf16.msra.mxu0 %v10191
          %10903 = vmatpush.bf16.msra.mxu0 %v10189
          %10904 = vmatpush.bf16.msra.mxu0 %v10187
          %10905 = vmatmul.bf16.gmra.mxu0 %v9095
          %v10906 = vpop.f32.mrf.mxu0
          %v10907 = vadd.f32 %v10894, %v10906
          %v10908 = vpop.f32.mrf.mxu0
          %10909 = vdwg.mxu0
          %10910 = vmatpush.bf16.msra.mxu0 %v10217
          %10911 = vmatpush.bf16.msra.mxu0 %v10215
          %10912 = vmatpush.bf16.msra.mxu0 %v10213
          %10913 = vmatpush.bf16.msra.mxu0 %v10211
          %10914 = vmatpush.bf16.msra.mxu0 %v10209
          %10915 = vmatpush.bf16.msra.mxu0 %v10207
          %10916 = vmatpush.bf16.msra.mxu0 %v10205
          %10917 = vmatpush.bf16.msra.mxu0 %v10203
          %10918 = vmatmul.bf16.gmra.mxu0 %v9096
          %v10919 = vpop.f32.mrf.mxu0
          %v10920 = vadd.f32 %v10907, %v10919
          %v10921 = vpop.f32.mrf.mxu0
          %10922 = vdwg.mxu0
          %10923 = vmatpush.bf16.msra.mxu0 %v10233
          %10924 = vmatpush.bf16.msra.mxu0 %v10231
          %10925 = vmatpush.bf16.msra.mxu0 %v10229
          %10926 = vmatpush.bf16.msra.mxu0 %v10227
          %10927 = vmatpush.bf16.msra.mxu0 %v10225
          %10928 = vmatpush.bf16.msra.mxu0 %v10223
          %10929 = vmatpush.bf16.msra.mxu0 %v10221
          %10930 = vmatpush.bf16.msra.mxu0 %v10219
          %10931 = vmatmul.bf16.gmra.mxu0 %v9097
          %v10932 = vpop.f32.mrf.mxu0
          %v10933 = vadd.f32 %v10920, %v10932
          %v10934 = vpop.f32.mrf.mxu0
          %10935 = vdwg.mxu0
          %10936 = vmatpush.bf16.msra.mxu0 %v10249
          %10937 = vmatpush.bf16.msra.mxu0 %v10247
          %10938 = vmatpush.bf16.msra.mxu0 %v10245
          %10939 = vmatpush.bf16.msra.mxu0 %v10243
          %10940 = vmatpush.bf16.msra.mxu0 %v10241
          %10941 = vmatpush.bf16.msra.mxu0 %v10239
          %10942 = vmatpush.bf16.msra.mxu0 %v10237
          %10943 = vmatpush.bf16.msra.mxu0 %v10235
          %10944 = vmatmul.bf16.gmra.mxu0 %v9098
          %v10945 = vpop.f32.mrf.mxu0
          %v10946 = vadd.f32 %v10933, %v10945
          %v10947 = vpop.f32.mrf.mxu0
          %10948 = vdwg.mxu0
          %10949 = vmatpush.bf16.msra.mxu0 %v10265
          %10950 = vmatpush.bf16.msra.mxu0 %v10263
          %10951 = vmatpush.bf16.msra.mxu0 %v10261
          %10952 = vmatpush.bf16.msra.mxu0 %v10259
          %10953 = vmatpush.bf16.msra.mxu0 %v10257
          %10954 = vmatpush.bf16.msra.mxu0 %v10255
          %10955 = vmatpush.bf16.msra.mxu0 %v10253
          %10956 = vmatpush.bf16.msra.mxu0 %v10251
          %10957 = vmatmul.bf16.gmra.mxu0 %v9099
          %v10958 = vpop.f32.mrf.mxu0
          %v10959 = vadd.f32 %v10946, %v10958
          %v10960 = vpop.f32.mrf.mxu0
          %10961 = vdwg.mxu0
          %10962 = vmatpush.bf16.msra.mxu0 %v10281
          %10963 = vmatpush.bf16.msra.mxu0 %v10279
          %10964 = vmatpush.bf16.msra.mxu0 %v10277
          %10965 = vmatpush.bf16.msra.mxu0 %v10275
          %10966 = vmatpush.bf16.msra.mxu0 %v10273
          %10967 = vmatpush.bf16.msra.mxu0 %v10271
          %10968 = vmatpush.bf16.msra.mxu0 %v10269
          %10969 = vmatpush.bf16.msra.mxu0 %v10267
          %10970 = vmatmul.bf16.gmra.mxu0 %v9100
          %v10971 = vpop.f32.mrf.mxu0
          %v10972 = vadd.f32 %v10959, %v10971
          %v10973 = vpop.f32.mrf.mxu0
          %10974 = vdwg.mxu0
          %10975 = vmatpush.bf16.msra.mxu0 %v10297
          %10976 = vmatpush.bf16.msra.mxu0 %v10295
          %10977 = vmatpush.bf16.msra.mxu0 %v10293
          %10978 = vmatpush.bf16.msra.mxu0 %v10291
          %10979 = vmatpush.bf16.msra.mxu0 %v10289
          %10980 = vmatpush.bf16.msra.mxu0 %v10287
          %10981 = vmatpush.bf16.msra.mxu0 %v10285
          %10982 = vmatpush.bf16.msra.mxu0 %v10283
          %10983 = vmatmul.bf16.gmra.mxu0 %v9101
          %v10984 = vpop.f32.mrf.mxu0
          %v10985 = vadd.f32 %v10972, %v10984
          %v10986 = vpop.f32.mrf.mxu0
          %10987 = vdwg.mxu0
          %10988 = vmatpush.bf16.msra.mxu0 %v10313
          %10989 = vmatpush.bf16.msra.mxu0 %v10311
          %10990 = vmatpush.bf16.msra.mxu0 %v10309
          %10991 = vmatpush.bf16.msra.mxu0 %v10307
          %10992 = vmatpush.bf16.msra.mxu0 %v10305
          %10993 = vmatpush.bf16.msra.mxu0 %v10303
          %10994 = vmatpush.bf16.msra.mxu0 %v10301
          %10995 = vmatpush.bf16.msra.mxu0 %v10299
          %10996 = vmatmul.bf16.gmra.mxu0 %v9102
          %v10997 = vpop.f32.mrf.mxu0
          %v10998 = vadd.f32 %v10985, %v10997
          %v10999 = vpop.f32.mrf.mxu0
          %11000 = vdwg.mxu0
          %11001 = vmatpush.bf16.msra.mxu0 %v10329
          %11002 = vmatpush.bf16.msra.mxu0 %v10327
          %11003 = vmatpush.bf16.msra.mxu0 %v10325
          %11004 = vmatpush.bf16.msra.mxu0 %v10323
          %11005 = vmatpush.bf16.msra.mxu0 %v10321
          %11006 = vmatpush.bf16.msra.mxu0 %v10319
          %11007 = vmatpush.bf16.msra.mxu0 %v10317
          %11008 = vmatpush.bf16.msra.mxu0 %v10315
          %11009 = vmatmul.bf16.gmra.mxu0 %v9103
          %v11010 = vpop.f32.mrf.mxu0
          %v11011 = vadd.f32 %v10998, %v11010
          %v11012 = vpop.f32.mrf.mxu0
          %11013 = vdwg.mxu0
          %11014 = vmatpush.bf16.msra.mxu0 %v10345
          %11015 = vmatpush.bf16.msra.mxu0 %v10343
          %11016 = vmatpush.bf16.msra.mxu0 %v10341
          %11017 = vmatpush.bf16.msra.mxu0 %v10339
          %11018 = vmatpush.bf16.msra.mxu0 %v10337
          %11019 = vmatpush.bf16.msra.mxu0 %v10335
          %11020 = vmatpush.bf16.msra.mxu0 %v10333
          %11021 = vmatpush.bf16.msra.mxu0 %v10331
          %11022 = vmatmul.bf16.gmra.mxu0 %v9104
          %v11023 = vpop.f32.mrf.mxu0
          %v11024 = vadd.f32 %v11011, %v11023
          %v11025 = vpop.f32.mrf.mxu0
          %11026 = vdwg.mxu0
          %11027 = vmatpush.bf16.msra.mxu0 %v10361
          %11028 = vmatpush.bf16.msra.mxu0 %v10359
          %11029 = vmatpush.bf16.msra.mxu0 %v10357
          %11030 = vmatpush.bf16.msra.mxu0 %v10355
          %11031 = vmatpush.bf16.msra.mxu0 %v10353
          %11032 = vmatpush.bf16.msra.mxu0 %v10351
          %11033 = vmatpush.bf16.msra.mxu0 %v10349
          %11034 = vmatpush.bf16.msra.mxu0 %v10347
          %11035 = vmatmul.bf16.gmra.mxu0 %v9105
          %v11036 = vpop.f32.mrf.mxu0
          %v11037 = vadd.f32 %v11024, %v11036
          %v11038 = vpop.f32.mrf.mxu0
          %11039 = vdwg.mxu0
          %11040 = vmatpush.bf16.msra.mxu0 %v10377
          %11041 = vmatpush.bf16.msra.mxu0 %v10375
          %11042 = vmatpush.bf16.msra.mxu0 %v10373
          %11043 = vmatpush.bf16.msra.mxu0 %v10371
          %11044 = vmatpush.bf16.msra.mxu0 %v10369
          %11045 = vmatpush.bf16.msra.mxu0 %v10367
          %11046 = vmatpush.bf16.msra.mxu0 %v10365
          %11047 = vmatpush.bf16.msra.mxu0 %v10363
          %11048 = vmatmul.bf16.gmra.mxu0 %v9106
          %v11049 = vpop.f32.mrf.mxu0
          %v11050 = vadd.f32 %v11037, %v11049
          %v11051 = vpop.f32.mrf.mxu0
          %11052 = vdwg.mxu0
          %11053 = vmatpush.bf16.msra.mxu0 %v10393
          %11054 = vmatpush.bf16.msra.mxu0 %v10391
          %11055 = vmatpush.bf16.msra.mxu0 %v10389
          %11056 = vmatpush.bf16.msra.mxu0 %v10387
          %11057 = vmatpush.bf16.msra.mxu0 %v10385
          %11058 = vmatpush.bf16.msra.mxu0 %v10383
          %11059 = vmatpush.bf16.msra.mxu0 %v10381
          %11060 = vmatpush.bf16.msra.mxu0 %v10379
          %11061 = vmatmul.bf16.gmra.mxu0 %v9107
          %v11062 = vpop.f32.mrf.mxu0
          %v11063 = vadd.f32 %v11050, %v11062
          %v11064 = vpop.f32.mrf.mxu0
          %11065 = vdwg.mxu0
          %v11066 = vpack.c.bf16 %v10855, %v10855
          %v11067 = vpack.c.bf16 %v11063, %v11063
          %v11068 = vld [vmem:[#allocation16] sm:$0xff]
          %v11069 = vld [vmem:[#allocation16 + $0x8] sm:$0xff]
          %v11070 = vld [vmem:[#allocation16 + $0x10] sm:$0xff]
          %v11071 = vld [vmem:[#allocation16 + $0x18] sm:$0xff]
          %v11072 = vld [vmem:[#allocation16 + $0x20] sm:$0xff]
          %v11073 = vld [vmem:[#allocation16 + $0x28] sm:$0xff]
          %v11074 = vld [vmem:[#allocation16 + $0x30] sm:$0xff]
          %v11075 = vld [vmem:[#allocation16 + $0x38] sm:$0xff]
          %v11076 = vld [vmem:[#allocation16 + $0x40] sm:$0xff]
          %v11077 = vld [vmem:[#allocation16 + $0x48] sm:$0xff]
          %v11078 = vld [vmem:[#allocation16 + $0x50] sm:$0xff]
          %v11079 = vld [vmem:[#allocation16 + $0x58] sm:$0xff]
          %v11080 = vld [vmem:[#allocation16 + $0x60] sm:$0xff]
          %v11081 = vld [vmem:[#allocation16 + $0x68] sm:$0xff]
          %v11082 = vld [vmem:[#allocation16 + $0x70] sm:$0xff]
          %v11083 = vld [vmem:[#allocation16 + $0x78] sm:$0xff]
          %v11084 = vld [vmem:[#allocation16 + $0x80] sm:$0xff]
          %v11085 = vld [vmem:[#allocation16 + $0x88] sm:$0xff]
          %v11086 = vld [vmem:[#allocation16 + $0x90] sm:$0xff]
          %v11087 = vld [vmem:[#allocation16 + $0x98] sm:$0xff]
          %v11088 = vld [vmem:[#allocation16 + $0xa0] sm:$0xff]
          %v11089 = vld [vmem:[#allocation16 + $0xa8] sm:$0xff]
          %v11090 = vld [vmem:[#allocation16 + $0xb0] sm:$0xff]
          %v11091 = vld [vmem:[#allocation16 + $0xb8] sm:$0xff]
          %v11092 = vld [vmem:[#allocation16 + $0xc0] sm:$0xff]
          %v11093 = vld [vmem:[#allocation16 + $0xc8] sm:$0xff]
          %v11094 = vld [vmem:[#allocation16 + $0xd0] sm:$0xff]
          %v11095 = vld [vmem:[#allocation16 + $0xd8] sm:$0xff]
          %v11096 = vld [vmem:[#allocation16 + $0xe0] sm:$0xff]
          %v11097 = vld [vmem:[#allocation16 + $0xe8] sm:$0xff]
          %v11098 = vld [vmem:[#allocation16 + $0xf0] sm:$0xff]
          %v11099 = vld [vmem:[#allocation16 + $0xf8] sm:$0xff]
          %v11100 = vld [vmem:[#allocation16 + $0x100] sm:$0xff]
          %v11101 = vld [vmem:[#allocation16 + $0x108] sm:$0xff]
          %v11102 = vld [vmem:[#allocation16 + $0x110] sm:$0xff]
          %v11103 = vld [vmem:[#allocation16 + $0x118] sm:$0xff]
          %v11104 = vld [vmem:[#allocation16 + $0x120] sm:$0xff]
          %v11105 = vld [vmem:[#allocation16 + $0x128] sm:$0xff]
          %v11106 = vld [vmem:[#allocation16 + $0x130] sm:$0xff]
          %v11107 = vld [vmem:[#allocation16 + $0x138] sm:$0xff]
          %v11108 = vld [vmem:[#allocation16 + $0x140] sm:$0xff]
          %v11109 = vld [vmem:[#allocation16 + $0x148] sm:$0xff]
          %v11110 = vld [vmem:[#allocation16 + $0x150] sm:$0xff]
          %v11111 = vld [vmem:[#allocation16 + $0x158] sm:$0xff]
          %v11112 = vld [vmem:[#allocation16 + $0x160] sm:$0xff]
          %v11113 = vld [vmem:[#allocation16 + $0x168] sm:$0xff]
          %v11114 = vld [vmem:[#allocation16 + $0x170] sm:$0xff]
          %v11115 = vld [vmem:[#allocation16 + $0x178] sm:$0xff]
          %v11116 = vld [vmem:[#allocation16 + $0x180] sm:$0xff]
          %v11117 = vld [vmem:[#allocation16 + $0x188] sm:$0xff]
          %v11118 = vld [vmem:[#allocation16 + $0x190] sm:$0xff]
          %v11119 = vld [vmem:[#allocation16 + $0x198] sm:$0xff]
          %v11120 = vld [vmem:[#allocation16 + $0x1a0] sm:$0xff]
          %v11121 = vld [vmem:[#allocation16 + $0x1a8] sm:$0xff]
          %v11122 = vld [vmem:[#allocation16 + $0x1b0] sm:$0xff]
          %v11123 = vld [vmem:[#allocation16 + $0x1b8] sm:$0xff]
          %v11124 = vld [vmem:[#allocation16 + $0x1c0] sm:$0xff]
          %v11125 = vld [vmem:[#allocation16 + $0x1c8] sm:$0xff]
          %v11126 = vld [vmem:[#allocation16 + $0x1d0] sm:$0xff]
          %v11127 = vld [vmem:[#allocation16 + $0x1d8] sm:$0xff]
          %v11128 = vld [vmem:[#allocation16 + $0x1e0] sm:$0xff]
          %v11129 = vld [vmem:[#allocation16 + $0x1e8] sm:$0xff]
          %v11130 = vld [vmem:[#allocation16 + $0x1f0] sm:$0xff]
          %v11131 = vld [vmem:[#allocation16 + $0x1f8] sm:$0xff]
          %v11132 = vld [vmem:[#allocation16 + $0x200] sm:$0xff]
          %v11133 = vld [vmem:[#allocation16 + $0x208] sm:$0xff]
          %v11134 = vld [vmem:[#allocation16 + $0x210] sm:$0xff]
          %v11135 = vld [vmem:[#allocation16 + $0x218] sm:$0xff]
          %v11136 = vld [vmem:[#allocation16 + $0x220] sm:$0xff]
          %v11137 = vld [vmem:[#allocation16 + $0x228] sm:$0xff]
          %v11138 = vld [vmem:[#allocation16 + $0x230] sm:$0xff]
          %v11139 = vld [vmem:[#allocation16 + $0x238] sm:$0xff]
          %v11140 = vld [vmem:[#allocation16 + $0x240] sm:$0xff]
          %v11141 = vld [vmem:[#allocation16 + $0x248] sm:$0xff]
          %v11142 = vld [vmem:[#allocation16 + $0x250] sm:$0xff]
          %v11143 = vld [vmem:[#allocation16 + $0x258] sm:$0xff]
          %v11144 = vld [vmem:[#allocation16 + $0x260] sm:$0xff]
          %v11145 = vld [vmem:[#allocation16 + $0x268] sm:$0xff]
          %v11146 = vld [vmem:[#allocation16 + $0x270] sm:$0xff]
          %v11147 = vld [vmem:[#allocation16 + $0x278] sm:$0xff]
          %v11148 = vld [vmem:[#allocation16 + $0x280] sm:$0xff]
          %v11149 = vld [vmem:[#allocation16 + $0x288] sm:$0xff]
          %v11150 = vld [vmem:[#allocation16 + $0x290] sm:$0xff]
          %v11151 = vld [vmem:[#allocation16 + $0x298] sm:$0xff]
          %v11152 = vld [vmem:[#allocation16 + $0x2a0] sm:$0xff]
          %v11153 = vld [vmem:[#allocation16 + $0x2a8] sm:$0xff]
          %v11154 = vld [vmem:[#allocation16 + $0x2b0] sm:$0xff]
          %v11155 = vld [vmem:[#allocation16 + $0x2b8] sm:$0xff]
          %v11156 = vld [vmem:[#allocation16 + $0x2c0] sm:$0xff]
          %v11157 = vld [vmem:[#allocation16 + $0x2c8] sm:$0xff]
          %v11158 = vld [vmem:[#allocation16 + $0x2d0] sm:$0xff]
          %v11159 = vld [vmem:[#allocation16 + $0x2d8] sm:$0xff]
          %v11160 = vld [vmem:[#allocation16 + $0x2e0] sm:$0xff]
          %v11161 = vld [vmem:[#allocation16 + $0x2e8] sm:$0xff]
          %v11162 = vld [vmem:[#allocation16 + $0x2f0] sm:$0xff]
          %v11163 = vld [vmem:[#allocation16 + $0x2f8] sm:$0xff]
          %v11164 = vld [vmem:[#allocation19] sm:$0x3f]
          %v11166 = vperm.slane %v11164, 0
          %v11167 = vperm.slane %v11164, 1
          %v11168 = vperm.slane %v11164, 2
          %v11169 = vperm.slane %v11164, 3
          %v11170 = vperm.slane %v11164, 4
          %v11171 = vperm.slane %v11164, 5
          %v11274 = vunpack.c.l.b16 %v11068
          %v11275 = vunpack.c.h.b16 %v11068
          %v11276 = vunpack.c.l.b16 %v11069
          %v11277 = vunpack.c.h.b16 %v11069
          %v11278 = vunpack.c.l.b16 %v11070
          %v11279 = vunpack.c.h.b16 %v11070
          %v11280 = vunpack.c.l.b16 %v11071
          %v11281 = vunpack.c.h.b16 %v11071
          %v11282 = vunpack.c.l.b16 %v11072
          %v11283 = vunpack.c.h.b16 %v11072
          %v11284 = vunpack.c.l.b16 %v11073
          %v11285 = vunpack.c.h.b16 %v11073
          %v11286 = vunpack.c.l.b16 %v11074
          %v11287 = vunpack.c.h.b16 %v11074
          %v11288 = vunpack.c.l.b16 %v11075
          %v11289 = vunpack.c.h.b16 %v11075
          %v11290 = vunpack.c.l.b16 %v11076
          %v11291 = vunpack.c.h.b16 %v11076
          %v11292 = vunpack.c.l.b16 %v11077
          %v11293 = vunpack.c.h.b16 %v11077
          %v11294 = vunpack.c.l.b16 %v11078
          %v11295 = vunpack.c.h.b16 %v11078
          %v11296 = vunpack.c.l.b16 %v11079
          %v11297 = vunpack.c.h.b16 %v11079
          %v11298 = vunpack.c.l.b16 %v11080
          %v11299 = vunpack.c.h.b16 %v11080
          %v11300 = vunpack.c.l.b16 %v11081
          %v11301 = vunpack.c.h.b16 %v11081
          %v11302 = vunpack.c.l.b16 %v11082
          %v11303 = vunpack.c.h.b16 %v11082
          %v11304 = vunpack.c.l.b16 %v11083
          %v11305 = vunpack.c.h.b16 %v11083
          %v11306 = vunpack.c.l.b16 %v11084
          %v11307 = vunpack.c.h.b16 %v11084
          %v11308 = vunpack.c.l.b16 %v11085
          %v11309 = vunpack.c.h.b16 %v11085
          %v11310 = vunpack.c.l.b16 %v11086
          %v11311 = vunpack.c.h.b16 %v11086
          %v11312 = vunpack.c.l.b16 %v11087
          %v11313 = vunpack.c.h.b16 %v11087
          %v11314 = vunpack.c.l.b16 %v11088
          %v11315 = vunpack.c.h.b16 %v11088
          %v11316 = vunpack.c.l.b16 %v11089
          %v11317 = vunpack.c.h.b16 %v11089
          %v11318 = vunpack.c.l.b16 %v11090
          %v11319 = vunpack.c.h.b16 %v11090
          %v11320 = vunpack.c.l.b16 %v11091
          %v11321 = vunpack.c.h.b16 %v11091
          %v11322 = vunpack.c.l.b16 %v11092
          %v11323 = vunpack.c.h.b16 %v11092
          %v11324 = vunpack.c.l.b16 %v11093
          %v11325 = vunpack.c.h.b16 %v11093
          %v11326 = vunpack.c.l.b16 %v11094
          %v11327 = vunpack.c.h.b16 %v11094
          %v11328 = vunpack.c.l.b16 %v11095
          %v11329 = vunpack.c.h.b16 %v11095
          %v11330 = vunpack.c.l.b16 %v11096
          %v11331 = vunpack.c.h.b16 %v11096
          %v11332 = vunpack.c.l.b16 %v11097
          %v11333 = vunpack.c.h.b16 %v11097
          %v11334 = vunpack.c.l.b16 %v11098
          %v11335 = vunpack.c.h.b16 %v11098
          %v11336 = vunpack.c.l.b16 %v11099
          %v11337 = vunpack.c.h.b16 %v11099
          %v11338 = vunpack.c.l.b16 %v11100
          %v11339 = vunpack.c.h.b16 %v11100
          %v11340 = vunpack.c.l.b16 %v11101
          %v11341 = vunpack.c.h.b16 %v11101
          %v11342 = vunpack.c.l.b16 %v11102
          %v11343 = vunpack.c.h.b16 %v11102
          %v11344 = vunpack.c.l.b16 %v11103
          %v11345 = vunpack.c.h.b16 %v11103
          %v11346 = vunpack.c.l.b16 %v11104
          %v11347 = vunpack.c.h.b16 %v11104
          %v11348 = vunpack.c.l.b16 %v11105
          %v11349 = vunpack.c.h.b16 %v11105
          %v11350 = vunpack.c.l.b16 %v11106
          %v11351 = vunpack.c.h.b16 %v11106
          %v11352 = vunpack.c.l.b16 %v11107
          %v11353 = vunpack.c.h.b16 %v11107
          %v11354 = vunpack.c.l.b16 %v11108
          %v11355 = vunpack.c.h.b16 %v11108
          %v11356 = vunpack.c.l.b16 %v11109
          %v11357 = vunpack.c.h.b16 %v11109
          %v11358 = vunpack.c.l.b16 %v11110
          %v11359 = vunpack.c.h.b16 %v11110
          %v11360 = vunpack.c.l.b16 %v11111
          %v11361 = vunpack.c.h.b16 %v11111
          %v11362 = vunpack.c.l.b16 %v11112
          %v11363 = vunpack.c.h.b16 %v11112
          %v11364 = vunpack.c.l.b16 %v11113
          %v11365 = vunpack.c.h.b16 %v11113
          %v11366 = vunpack.c.l.b16 %v11114
          %v11367 = vunpack.c.h.b16 %v11114
          %v11368 = vunpack.c.l.b16 %v11115
          %v11369 = vunpack.c.h.b16 %v11115
          %v11370 = vunpack.c.l.b16 %v11116
          %v11371 = vunpack.c.h.b16 %v11116
          %v11372 = vunpack.c.l.b16 %v11117
          %v11373 = vunpack.c.h.b16 %v11117
          %v11374 = vunpack.c.l.b16 %v11118
          %v11375 = vunpack.c.h.b16 %v11118
          %v11376 = vunpack.c.l.b16 %v11119
          %v11377 = vunpack.c.h.b16 %v11119
          %v11378 = vunpack.c.l.b16 %v11120
          %v11379 = vunpack.c.h.b16 %v11120
          %v11380 = vunpack.c.l.b16 %v11121
          %v11381 = vunpack.c.h.b16 %v11121
          %v11382 = vunpack.c.l.b16 %v11122
          %v11383 = vunpack.c.h.b16 %v11122
          %v11384 = vunpack.c.l.b16 %v11123
          %v11385 = vunpack.c.h.b16 %v11123
          %v11386 = vunpack.c.l.b16 %v11124
          %v11387 = vunpack.c.h.b16 %v11124
          %v11388 = vunpack.c.l.b16 %v11125
          %v11389 = vunpack.c.h.b16 %v11125
          %v11390 = vunpack.c.l.b16 %v11126
          %v11391 = vunpack.c.h.b16 %v11126
          %v11392 = vunpack.c.l.b16 %v11127
          %v11393 = vunpack.c.h.b16 %v11127
          %v11394 = vunpack.c.l.b16 %v11128
          %v11395 = vunpack.c.h.b16 %v11128
          %v11396 = vunpack.c.l.b16 %v11129
          %v11397 = vunpack.c.h.b16 %v11129
          %v11398 = vunpack.c.l.b16 %v11130
          %v11399 = vunpack.c.h.b16 %v11130
          %v11400 = vunpack.c.l.b16 %v11131
          %v11401 = vunpack.c.h.b16 %v11131
          %v11402 = vunpack.c.l.b16 %v11132
          %v11403 = vunpack.c.h.b16 %v11132
          %v11404 = vunpack.c.l.b16 %v11133
          %v11405 = vunpack.c.h.b16 %v11133
          %v11406 = vunpack.c.l.b16 %v11134
          %v11407 = vunpack.c.h.b16 %v11134
          %v11408 = vunpack.c.l.b16 %v11135
          %v11409 = vunpack.c.h.b16 %v11135
          %v11410 = vunpack.c.l.b16 %v11136
          %v11411 = vunpack.c.h.b16 %v11136
          %v11412 = vunpack.c.l.b16 %v11137
          %v11413 = vunpack.c.h.b16 %v11137
          %v11414 = vunpack.c.l.b16 %v11138
          %v11415 = vunpack.c.h.b16 %v11138
          %v11416 = vunpack.c.l.b16 %v11139
          %v11417 = vunpack.c.h.b16 %v11139
          %v11418 = vunpack.c.l.b16 %v11140
          %v11419 = vunpack.c.h.b16 %v11140
          %v11420 = vunpack.c.l.b16 %v11141
          %v11421 = vunpack.c.h.b16 %v11141
          %v11422 = vunpack.c.l.b16 %v11142
          %v11423 = vunpack.c.h.b16 %v11142
          %v11424 = vunpack.c.l.b16 %v11143
          %v11425 = vunpack.c.h.b16 %v11143
          %v11426 = vunpack.c.l.b16 %v11144
          %v11427 = vunpack.c.h.b16 %v11144
          %v11428 = vunpack.c.l.b16 %v11145
          %v11429 = vunpack.c.h.b16 %v11145
          %v11430 = vunpack.c.l.b16 %v11146
          %v11431 = vunpack.c.h.b16 %v11146
          %v11432 = vunpack.c.l.b16 %v11147
          %v11433 = vunpack.c.h.b16 %v11147
          %v11434 = vunpack.c.l.b16 %v11148
          %v11435 = vunpack.c.h.b16 %v11148
          %v11436 = vunpack.c.l.b16 %v11149
          %v11437 = vunpack.c.h.b16 %v11149
          %v11438 = vunpack.c.l.b16 %v11150
          %v11439 = vunpack.c.h.b16 %v11150
          %v11440 = vunpack.c.l.b16 %v11151
          %v11441 = vunpack.c.h.b16 %v11151
          %v11442 = vunpack.c.l.b16 %v11152
          %v11443 = vunpack.c.h.b16 %v11152
          %v11444 = vunpack.c.l.b16 %v11153
          %v11445 = vunpack.c.h.b16 %v11153
          %v11446 = vunpack.c.l.b16 %v11154
          %v11447 = vunpack.c.h.b16 %v11154
          %v11448 = vunpack.c.l.b16 %v11155
          %v11449 = vunpack.c.h.b16 %v11155
          %v11450 = vunpack.c.l.b16 %v11156
          %v11451 = vunpack.c.h.b16 %v11156
          %v11452 = vunpack.c.l.b16 %v11157
          %v11453 = vunpack.c.h.b16 %v11157
          %v11454 = vunpack.c.l.b16 %v11158
          %v11455 = vunpack.c.h.b16 %v11158
          %v11456 = vunpack.c.l.b16 %v11159
          %v11457 = vunpack.c.h.b16 %v11159
          %v11458 = vunpack.c.l.b16 %v11160
          %v11459 = vunpack.c.h.b16 %v11160
          %v11460 = vunpack.c.l.b16 %v11161
          %v11461 = vunpack.c.h.b16 %v11161
          %v11462 = vunpack.c.l.b16 %v11162
          %v11463 = vunpack.c.h.b16 %v11162
          %v11464 = vunpack.c.l.b16 %v11163
          %v11465 = vunpack.c.h.b16 %v11163
          %v11466 = vpack.c.b16 %v11280, %v11274
          %v11467 = vpack.c.b16 %v11281, %v11275
          %v11468 = vpack.c.b16 %v11282, %v11276
          %v11469 = vpack.c.b16 %v11283, %v11277
          %v11470 = vpack.c.b16 %v11284, %v11278
          %v11471 = vpack.c.b16 %v11285, %v11279
          %v11472 = vpack.c.b16 %v11292, %v11286
          %v11473 = vpack.c.b16 %v11293, %v11287
          %v11474 = vpack.c.b16 %v11294, %v11288
          %v11475 = vpack.c.b16 %v11295, %v11289
          %v11476 = vpack.c.b16 %v11296, %v11290
          %v11477 = vpack.c.b16 %v11297, %v11291
          %v11478 = vpack.c.b16 %v11304, %v11298
          %v11479 = vpack.c.b16 %v11305, %v11299
          %v11480 = vpack.c.b16 %v11306, %v11300
          %v11481 = vpack.c.b16 %v11307, %v11301
          %v11482 = vpack.c.b16 %v11308, %v11302
          %v11483 = vpack.c.b16 %v11309, %v11303
          %v11484 = vpack.c.b16 %v11316, %v11310
          %v11485 = vpack.c.b16 %v11317, %v11311
          %v11486 = vpack.c.b16 %v11318, %v11312
          %v11487 = vpack.c.b16 %v11319, %v11313
          %v11488 = vpack.c.b16 %v11320, %v11314
          %v11489 = vpack.c.b16 %v11321, %v11315
          %v11490 = vpack.c.b16 %v11328, %v11322
          %v11491 = vpack.c.b16 %v11329, %v11323
          %v11492 = vpack.c.b16 %v11330, %v11324
          %v11493 = vpack.c.b16 %v11331, %v11325
          %v11494 = vpack.c.b16 %v11332, %v11326
          %v11495 = vpack.c.b16 %v11333, %v11327
          %v11496 = vpack.c.b16 %v11340, %v11334
          %v11497 = vpack.c.b16 %v11341, %v11335
          %v11498 = vpack.c.b16 %v11342, %v11336
          %v11499 = vpack.c.b16 %v11343, %v11337
          %v11500 = vpack.c.b16 %v11344, %v11338
          %v11501 = vpack.c.b16 %v11345, %v11339
          %v11502 = vpack.c.b16 %v11352, %v11346
          %v11503 = vpack.c.b16 %v11353, %v11347
          %v11504 = vpack.c.b16 %v11354, %v11348
          %v11505 = vpack.c.b16 %v11355, %v11349
          %v11506 = vpack.c.b16 %v11356, %v11350
          %v11507 = vpack.c.b16 %v11357, %v11351
          %v11508 = vpack.c.b16 %v11364, %v11358
          %v11509 = vpack.c.b16 %v11365, %v11359
          %v11510 = vpack.c.b16 %v11366, %v11360
          %v11511 = vpack.c.b16 %v11367, %v11361
          %v11512 = vpack.c.b16 %v11368, %v11362
          %v11513 = vpack.c.b16 %v11369, %v11363
          %v11514 = vpack.c.b16 %v11376, %v11370
          %v11515 = vpack.c.b16 %v11377, %v11371
          %v11516 = vpack.c.b16 %v11378, %v11372
          %v11517 = vpack.c.b16 %v11379, %v11373
          %v11518 = vpack.c.b16 %v11380, %v11374
          %v11519 = vpack.c.b16 %v11381, %v11375
          %v11520 = vpack.c.b16 %v11388, %v11382
          %v11521 = vpack.c.b16 %v11389, %v11383
          %v11522 = vpack.c.b16 %v11390, %v11384
          %v11523 = vpack.c.b16 %v11391, %v11385
          %v11524 = vpack.c.b16 %v11392, %v11386
          %v11525 = vpack.c.b16 %v11393, %v11387
          %v11526 = vpack.c.b16 %v11400, %v11394
          %v11527 = vpack.c.b16 %v11401, %v11395
          %v11528 = vpack.c.b16 %v11402, %v11396
          %v11529 = vpack.c.b16 %v11403, %v11397
          %v11530 = vpack.c.b16 %v11404, %v11398
          %v11531 = vpack.c.b16 %v11405, %v11399
          %v11532 = vpack.c.b16 %v11412, %v11406
          %v11533 = vpack.c.b16 %v11413, %v11407
          %v11534 = vpack.c.b16 %v11414, %v11408
          %v11535 = vpack.c.b16 %v11415, %v11409
          %v11536 = vpack.c.b16 %v11416, %v11410
          %v11537 = vpack.c.b16 %v11417, %v11411
          %v11538 = vpack.c.b16 %v11424, %v11418
          %v11539 = vpack.c.b16 %v11425, %v11419
          %v11540 = vpack.c.b16 %v11426, %v11420
          %v11541 = vpack.c.b16 %v11427, %v11421
          %v11542 = vpack.c.b16 %v11428, %v11422
          %v11543 = vpack.c.b16 %v11429, %v11423
          %v11544 = vpack.c.b16 %v11436, %v11430
          %v11545 = vpack.c.b16 %v11437, %v11431
          %v11546 = vpack.c.b16 %v11438, %v11432
          %v11547 = vpack.c.b16 %v11439, %v11433
          %v11548 = vpack.c.b16 %v11440, %v11434
          %v11549 = vpack.c.b16 %v11441, %v11435
          %v11550 = vpack.c.b16 %v11448, %v11442
          %v11551 = vpack.c.b16 %v11449, %v11443
          %v11552 = vpack.c.b16 %v11450, %v11444
          %v11553 = vpack.c.b16 %v11451, %v11445
          %v11554 = vpack.c.b16 %v11452, %v11446
          %v11555 = vpack.c.b16 %v11453, %v11447
          %v11556 = vpack.c.b16 %v11460, %v11454
          %v11557 = vpack.c.b16 %v11461, %v11455
          %v11558 = vpack.c.b16 %v11462, %v11456
          %v11559 = vpack.c.b16 %v11463, %v11457
          %v11560 = vpack.c.b16 %v11464, %v11458
          %v11561 = vpack.c.b16 %v11465, %v11459
          %11658 = vmatpush.bf16.msra.mxu0 %v11508
          %11659 = vmatpush.bf16.msra.mxu0 %v11502
          %11660 = vmatpush.bf16.msra.mxu0 %v11496
          %11661 = vmatpush.bf16.msra.mxu0 %v11490
          %11662 = vmatpush.bf16.msra.mxu0 %v11484
          %11663 = vmatpush.bf16.msra.mxu0 %v11478
          %11664 = vmatpush.bf16.msra.mxu0 %v11472
          %11665 = vmatpush.bf16.msra.mxu0 %v11466
          %11666 = vmatmul.bf16.gmra.mxu0 %v11066
          %v11667 = vpop.f32.mrf.mxu0
          %v11668 = vadd.f32 %v11166, %v11667
          %v11669 = vpop.f32.mrf.mxu0
          %11670 = vdwg.mxu0
          %11671 = vmatpush.bf16.msra.mxu0 %v11556
          %11672 = vmatpush.bf16.msra.mxu0 %v11550
          %11673 = vmatpush.bf16.msra.mxu0 %v11544
          %11674 = vmatpush.bf16.msra.mxu0 %v11538
          %11675 = vmatpush.bf16.msra.mxu0 %v11532
          %11676 = vmatpush.bf16.msra.mxu0 %v11526
          %11677 = vmatpush.bf16.msra.mxu0 %v11520
          %11678 = vmatpush.bf16.msra.mxu0 %v11514
          %11679 = vmatmul.bf16.gmra.mxu0 %v11067
          %v11680 = vpop.f32.mrf.mxu0
          %v11681 = vadd.f32 %v11668, %v11680
          %v11682 = vpop.f32.mrf.mxu0
          %11683 = vdwg.mxu0
          %11684 = vmatpush.bf16.msra.mxu0 %v11509
          %11685 = vmatpush.bf16.msra.mxu0 %v11503
          %11686 = vmatpush.bf16.msra.mxu0 %v11497
          %11687 = vmatpush.bf16.msra.mxu0 %v11491
          %11688 = vmatpush.bf16.msra.mxu0 %v11485
          %11689 = vmatpush.bf16.msra.mxu0 %v11479
          %11690 = vmatpush.bf16.msra.mxu0 %v11473
          %11691 = vmatpush.bf16.msra.mxu0 %v11467
          %11692 = vmatmul.bf16.gmra.mxu0 %v11066
          %v11693 = vpop.f32.mrf.mxu0
          %v11694 = vadd.f32 %v11167, %v11693
          %v11695 = vpop.f32.mrf.mxu0
          %11696 = vdwg.mxu0
          %11697 = vmatpush.bf16.msra.mxu0 %v11557
          %11698 = vmatpush.bf16.msra.mxu0 %v11551
          %11699 = vmatpush.bf16.msra.mxu0 %v11545
          %11700 = vmatpush.bf16.msra.mxu0 %v11539
          %11701 = vmatpush.bf16.msra.mxu0 %v11533
          %11702 = vmatpush.bf16.msra.mxu0 %v11527
          %11703 = vmatpush.bf16.msra.mxu0 %v11521
          %11704 = vmatpush.bf16.msra.mxu0 %v11515
          %11705 = vmatmul.bf16.gmra.mxu0 %v11067
          %v11706 = vpop.f32.mrf.mxu0
          %v11707 = vadd.f32 %v11694, %v11706
          %v11708 = vpop.f32.mrf.mxu0
          %11709 = vdwg.mxu0
          %11710 = vmatpush.bf16.msra.mxu0 %v11510
          %11711 = vmatpush.bf16.msra.mxu0 %v11504
          %11712 = vmatpush.bf16.msra.mxu0 %v11498
          %11713 = vmatpush.bf16.msra.mxu0 %v11492
          %11714 = vmatpush.bf16.msra.mxu0 %v11486
          %11715 = vmatpush.bf16.msra.mxu0 %v11480
          %11716 = vmatpush.bf16.msra.mxu0 %v11474
          %11717 = vmatpush.bf16.msra.mxu0 %v11468
          %11718 = vmatmul.bf16.gmra.mxu0 %v11066
          %v11719 = vpop.f32.mrf.mxu0
          %v11720 = vadd.f32 %v11168, %v11719
          %v11721 = vpop.f32.mrf.mxu0
          %11722 = vdwg.mxu0
          %11723 = vmatpush.bf16.msra.mxu0 %v11558
          %11724 = vmatpush.bf16.msra.mxu0 %v11552
          %11725 = vmatpush.bf16.msra.mxu0 %v11546
          %11726 = vmatpush.bf16.msra.mxu0 %v11540
          %11727 = vmatpush.bf16.msra.mxu0 %v11534
          %11728 = vmatpush.bf16.msra.mxu0 %v11528
          %11729 = vmatpush.bf16.msra.mxu0 %v11522
          %11730 = vmatpush.bf16.msra.mxu0 %v11516
          %11731 = vmatmul.bf16.gmra.mxu0 %v11067
          %v11732 = vpop.f32.mrf.mxu0
          %v11733 = vadd.f32 %v11720, %v11732
          %v11734 = vpop.f32.mrf.mxu0
          %11735 = vdwg.mxu0
          %11736 = vmatpush.bf16.msra.mxu0 %v11511
          %11737 = vmatpush.bf16.msra.mxu0 %v11505
          %11738 = vmatpush.bf16.msra.mxu0 %v11499
          %11739 = vmatpush.bf16.msra.mxu0 %v11493
          %11740 = vmatpush.bf16.msra.mxu0 %v11487
          %11741 = vmatpush.bf16.msra.mxu0 %v11481
          %11742 = vmatpush.bf16.msra.mxu0 %v11475
          %11743 = vmatpush.bf16.msra.mxu0 %v11469
          %11744 = vmatmul.bf16.gmra.mxu0 %v11066
          %v11745 = vpop.f32.mrf.mxu0
          %v11746 = vadd.f32 %v11169, %v11745
          %v11747 = vpop.f32.mrf.mxu0
          %11748 = vdwg.mxu0
          %11749 = vmatpush.bf16.msra.mxu0 %v11559
          %11750 = vmatpush.bf16.msra.mxu0 %v11553
          %11751 = vmatpush.bf16.msra.mxu0 %v11547
          %11752 = vmatpush.bf16.msra.mxu0 %v11541
          %11753 = vmatpush.bf16.msra.mxu0 %v11535
          %11754 = vmatpush.bf16.msra.mxu0 %v11529
          %11755 = vmatpush.bf16.msra.mxu0 %v11523
          %11756 = vmatpush.bf16.msra.mxu0 %v11517
          %11757 = vmatmul.bf16.gmra.mxu0 %v11067
          %v11758 = vpop.f32.mrf.mxu0
          %v11759 = vadd.f32 %v11746, %v11758
          %v11760 = vpop.f32.mrf.mxu0
          %11761 = vdwg.mxu0
          %11762 = vmatpush.bf16.msra.mxu0 %v11512
          %11763 = vmatpush.bf16.msra.mxu0 %v11506
          %11764 = vmatpush.bf16.msra.mxu0 %v11500
          %11765 = vmatpush.bf16.msra.mxu0 %v11494
          %11766 = vmatpush.bf16.msra.mxu0 %v11488
          %11767 = vmatpush.bf16.msra.mxu0 %v11482
          %11768 = vmatpush.bf16.msra.mxu0 %v11476
          %11769 = vmatpush.bf16.msra.mxu0 %v11470
          %11770 = vmatmul.bf16.gmra.mxu0 %v11066
          %v11771 = vpop.f32.mrf.mxu0
          %v11772 = vadd.f32 %v11170, %v11771
          %v11773 = vpop.f32.mrf.mxu0
          %11774 = vdwg.mxu0
          %11775 = vmatpush.bf16.msra.mxu0 %v11560
          %11776 = vmatpush.bf16.msra.mxu0 %v11554
          %11777 = vmatpush.bf16.msra.mxu0 %v11548
          %11778 = vmatpush.bf16.msra.mxu0 %v11542
          %11779 = vmatpush.bf16.msra.mxu0 %v11536
          %11780 = vmatpush.bf16.msra.mxu0 %v11530
          %11781 = vmatpush.bf16.msra.mxu0 %v11524
          %11782 = vmatpush.bf16.msra.mxu0 %v11518
          %11783 = vmatmul.bf16.gmra.mxu0 %v11067
          %v11784 = vpop.f32.mrf.mxu0
          %v11785 = vadd.f32 %v11772, %v11784
          %v11786 = vpop.f32.mrf.mxu0
          %11787 = vdwg.mxu0
          %11788 = vmatpush.bf16.msra.mxu0 %v11513
          %11789 = vmatpush.bf16.msra.mxu0 %v11507
          %11790 = vmatpush.bf16.msra.mxu0 %v11501
          %11791 = vmatpush.bf16.msra.mxu0 %v11495
          %11792 = vmatpush.bf16.msra.mxu0 %v11489
          %11793 = vmatpush.bf16.msra.mxu0 %v11483
          %11794 = vmatpush.bf16.msra.mxu0 %v11477
          %11795 = vmatpush.bf16.msra.mxu0 %v11471
          %11796 = vmatmul.bf16.gmra.mxu0 %v11066
          %v11797 = vpop.f32.mrf.mxu0
          %v11798 = vadd.f32 %v11171, %v11797
          %v11799 = vpop.f32.mrf.mxu0
          %11800 = vdwg.mxu0
          %11801 = vmatpush.bf16.msra.mxu0 %v11561
          %11802 = vmatpush.bf16.msra.mxu0 %v11555
          %11803 = vmatpush.bf16.msra.mxu0 %v11549
          %11804 = vmatpush.bf16.msra.mxu0 %v11543
          %11805 = vmatpush.bf16.msra.mxu0 %v11537
          %11806 = vmatpush.bf16.msra.mxu0 %v11531
          %11807 = vmatpush.bf16.msra.mxu0 %v11525
          %11808 = vmatpush.bf16.msra.mxu0 %v11519
          %11809 = vmatmul.bf16.gmra.mxu0 %v11067
          %v11810 = vpop.f32.mrf.mxu0
          %v11811 = vadd.f32 %v11798, %v11810
          %v11812 = vpop.f32.mrf.mxu0
          %11813 = vdwg.mxu0
          %v11814 = vld [vmem:[#allocation18] sm:$0xff]
          %v11815 = vld [vmem:[#allocation18 + $0x8] sm:$0xff]
          %v11816 = vld [vmem:[#allocation18 + $0x10] sm:$0xff]
          %v11817 = vld [vmem:[#allocation18 + $0x18] sm:$0xff]
          %v11818 = vld [vmem:[#allocation18 + $0x20] sm:$0xff]
          %v11819 = vld [vmem:[#allocation18 + $0x28] sm:$0xff]
          %v11820 = vld [vmem:[#allocation18 + $0x30] sm:$0xff]
          %v11821 = vld [vmem:[#allocation18 + $0x38] sm:$0xff]
          %v11822 = vld [vmem:[#allocation18 + $0x40] sm:$0xff]
          %v11823 = vld [vmem:[#allocation18 + $0x48] sm:$0xff]
          %v11824 = vld [vmem:[#allocation18 + $0x50] sm:$0xff]
          %v11825 = vld [vmem:[#allocation18 + $0x58] sm:$0xff]
          %v11826 = vld [vmem:[#allocation18 + $0x60] sm:$0xff]
          %v11827 = vld [vmem:[#allocation18 + $0x68] sm:$0xff]
          %v11828 = vld [vmem:[#allocation18 + $0x70] sm:$0xff]
          %v11829 = vld [vmem:[#allocation18 + $0x78] sm:$0xff]
          %v11830 = vld [vmem:[#allocation18 + $0x80] sm:$0xff]
          %v11831 = vld [vmem:[#allocation18 + $0x88] sm:$0xff]
          %v11832 = vld [vmem:[#allocation18 + $0x90] sm:$0xff]
          %v11833 = vld [vmem:[#allocation18 + $0x98] sm:$0xff]
          %v11834 = vld [vmem:[#allocation18 + $0xa0] sm:$0xff]
          %v11835 = vld [vmem:[#allocation18 + $0xa8] sm:$0xff]
          %v11836 = vld [vmem:[#allocation18 + $0xb0] sm:$0xff]
          %v11837 = vld [vmem:[#allocation18 + $0xb8] sm:$0xff]
          %v11838 = vld [vmem:[#allocation18 + $0xc0] sm:$0xff]
          %v11839 = vld [vmem:[#allocation18 + $0xc8] sm:$0xff]
          %v11840 = vld [vmem:[#allocation18 + $0xd0] sm:$0xff]
          %v11841 = vld [vmem:[#allocation18 + $0xd8] sm:$0xff]
          %v11842 = vld [vmem:[#allocation18 + $0xe0] sm:$0xff]
          %v11843 = vld [vmem:[#allocation18 + $0xe8] sm:$0xff]
          %v11844 = vld [vmem:[#allocation18 + $0xf0] sm:$0xff]
          %v11845 = vld [vmem:[#allocation18 + $0xf8] sm:$0xff]
          %v11846 = vld [vmem:[#allocation18 + $0x100] sm:$0xff]
          %v11847 = vld [vmem:[#allocation18 + $0x108] sm:$0xff]
          %v11848 = vld [vmem:[#allocation18 + $0x110] sm:$0xff]
          %v11849 = vld [vmem:[#allocation18 + $0x118] sm:$0xff]
          %v11850 = vld [vmem:[#allocation18 + $0x120] sm:$0xff]
          %v11851 = vld [vmem:[#allocation18 + $0x128] sm:$0xff]
          %v11852 = vld [vmem:[#allocation18 + $0x130] sm:$0xff]
          %v11853 = vld [vmem:[#allocation18 + $0x138] sm:$0xff]
          %v11854 = vld [vmem:[#allocation18 + $0x140] sm:$0xff]
          %v11855 = vld [vmem:[#allocation18 + $0x148] sm:$0xff]
          %v11856 = vld [vmem:[#allocation18 + $0x150] sm:$0xff]
          %v11857 = vld [vmem:[#allocation18 + $0x158] sm:$0xff]
          %v11858 = vld [vmem:[#allocation18 + $0x160] sm:$0xff]
          %v11859 = vld [vmem:[#allocation18 + $0x168] sm:$0xff]
          %v11860 = vld [vmem:[#allocation18 + $0x170] sm:$0xff]
          %v11861 = vld [vmem:[#allocation18 + $0x178] sm:$0xff]
          %v11862 = vld [vmem:[#allocation18 + $0x180] sm:$0xff]
          %v11863 = vld [vmem:[#allocation18 + $0x188] sm:$0xff]
          %v11864 = vld [vmem:[#allocation18 + $0x190] sm:$0xff]
          %v11865 = vld [vmem:[#allocation18 + $0x198] sm:$0xff]
          %v11866 = vld [vmem:[#allocation18 + $0x1a0] sm:$0xff]
          %v11867 = vld [vmem:[#allocation18 + $0x1a8] sm:$0xff]
          %v11868 = vld [vmem:[#allocation18 + $0x1b0] sm:$0xff]
          %v11869 = vld [vmem:[#allocation18 + $0x1b8] sm:$0xff]
          %v11870 = vld [vmem:[#allocation18 + $0x1c0] sm:$0xff]
          %v11871 = vld [vmem:[#allocation18 + $0x1c8] sm:$0xff]
          %v11872 = vld [vmem:[#allocation18 + $0x1d0] sm:$0xff]
          %v11873 = vld [vmem:[#allocation18 + $0x1d8] sm:$0xff]
          %v11874 = vld [vmem:[#allocation18 + $0x1e0] sm:$0xff]
          %v11875 = vld [vmem:[#allocation18 + $0x1e8] sm:$0xff]
          %v11876 = vld [vmem:[#allocation18 + $0x1f0] sm:$0xff]
          %v11877 = vld [vmem:[#allocation18 + $0x1f8] sm:$0xff]
          %v11878 = vld [vmem:[#allocation18 + $0x200] sm:$0xff]
          %v11879 = vld [vmem:[#allocation18 + $0x208] sm:$0xff]
          %v11880 = vld [vmem:[#allocation18 + $0x210] sm:$0xff]
          %v11881 = vld [vmem:[#allocation18 + $0x218] sm:$0xff]
          %v11882 = vld [vmem:[#allocation18 + $0x220] sm:$0xff]
          %v11883 = vld [vmem:[#allocation18 + $0x228] sm:$0xff]
          %v11884 = vld [vmem:[#allocation18 + $0x230] sm:$0xff]
          %v11885 = vld [vmem:[#allocation18 + $0x238] sm:$0xff]
          %v11886 = vld [vmem:[#allocation18 + $0x240] sm:$0xff]
          %v11887 = vld [vmem:[#allocation18 + $0x248] sm:$0xff]
          %v11888 = vld [vmem:[#allocation18 + $0x250] sm:$0xff]
          %v11889 = vld [vmem:[#allocation18 + $0x258] sm:$0xff]
          %v11890 = vld [vmem:[#allocation18 + $0x260] sm:$0xff]
          %v11891 = vld [vmem:[#allocation18 + $0x268] sm:$0xff]
          %v11892 = vld [vmem:[#allocation18 + $0x270] sm:$0xff]
          %v11893 = vld [vmem:[#allocation18 + $0x278] sm:$0xff]
          %v11894 = vld [vmem:[#allocation18 + $0x280] sm:$0xff]
          %v11895 = vld [vmem:[#allocation18 + $0x288] sm:$0xff]
          %v11896 = vld [vmem:[#allocation18 + $0x290] sm:$0xff]
          %v11897 = vld [vmem:[#allocation18 + $0x298] sm:$0xff]
          %v11898 = vld [vmem:[#allocation18 + $0x2a0] sm:$0xff]
          %v11899 = vld [vmem:[#allocation18 + $0x2a8] sm:$0xff]
          %v11900 = vld [vmem:[#allocation18 + $0x2b0] sm:$0xff]
          %v11901 = vld [vmem:[#allocation18 + $0x2b8] sm:$0xff]
          %v11902 = vld [vmem:[#allocation18 + $0x2c0] sm:$0xff]
          %v11903 = vld [vmem:[#allocation18 + $0x2c8] sm:$0xff]
          %v11904 = vld [vmem:[#allocation18 + $0x2d0] sm:$0xff]
          %v11905 = vld [vmem:[#allocation18 + $0x2d8] sm:$0xff]
          %v11906 = vld [vmem:[#allocation18 + $0x2e0] sm:$0xff]
          %v11907 = vld [vmem:[#allocation18 + $0x2e8] sm:$0xff]
          %v11908 = vld [vmem:[#allocation18 + $0x2f0] sm:$0xff]
          %v11909 = vld [vmem:[#allocation18 + $0x2f8] sm:$0xff]
          %v11910 = vld [vmem:[#allocation18 + $0x300] sm:$0xff]
          %v11911 = vld [vmem:[#allocation18 + $0x308] sm:$0xff]
          %v11912 = vld [vmem:[#allocation18 + $0x310] sm:$0xff]
          %v11913 = vld [vmem:[#allocation18 + $0x318] sm:$0xff]
          %v11914 = vld [vmem:[#allocation18 + $0x320] sm:$0xff]
          %v11915 = vld [vmem:[#allocation18 + $0x328] sm:$0xff]
          %v11916 = vld [vmem:[#allocation18 + $0x330] sm:$0xff]
          %v11917 = vld [vmem:[#allocation18 + $0x338] sm:$0xff]
          %v11918 = vld [vmem:[#allocation18 + $0x340] sm:$0xff]
          %v11919 = vld [vmem:[#allocation18 + $0x348] sm:$0xff]
          %v11920 = vld [vmem:[#allocation18 + $0x350] sm:$0xff]
          %v11921 = vld [vmem:[#allocation18 + $0x358] sm:$0xff]
          %v11922 = vld [vmem:[#allocation18 + $0x360] sm:$0xff]
          %v11923 = vld [vmem:[#allocation18 + $0x368] sm:$0xff]
          %v11924 = vld [vmem:[#allocation18 + $0x370] sm:$0xff]
          %v11925 = vld [vmem:[#allocation18 + $0x378] sm:$0xff]
          %v11926 = vld [vmem:[#allocation18 + $0x380] sm:$0xff]
          %v11927 = vld [vmem:[#allocation18 + $0x388] sm:$0xff]
          %v11928 = vld [vmem:[#allocation18 + $0x390] sm:$0xff]
          %v11929 = vld [vmem:[#allocation18 + $0x398] sm:$0xff]
          %v11930 = vld [vmem:[#allocation18 + $0x3a0] sm:$0xff]
          %v11931 = vld [vmem:[#allocation18 + $0x3a8] sm:$0xff]
          %v11932 = vld [vmem:[#allocation18 + $0x3b0] sm:$0xff]
          %v11933 = vld [vmem:[#allocation18 + $0x3b8] sm:$0xff]
          %v11934 = vld [vmem:[#allocation18 + $0x3c0] sm:$0xff]
          %v11935 = vld [vmem:[#allocation18 + $0x3c8] sm:$0xff]
          %v11936 = vld [vmem:[#allocation18 + $0x3d0] sm:$0xff]
          %v11937 = vld [vmem:[#allocation18 + $0x3d8] sm:$0xff]
          %v11938 = vld [vmem:[#allocation18 + $0x3e0] sm:$0xff]
          %v11939 = vld [vmem:[#allocation18 + $0x3e8] sm:$0xff]
          %v11940 = vld [vmem:[#allocation18 + $0x3f0] sm:$0xff]
          %v11941 = vld [vmem:[#allocation18 + $0x3f8] sm:$0xff]
          %v11942 = vld [vmem:[#allocation18 + $0x400] sm:$0xff]
          %v11943 = vld [vmem:[#allocation18 + $0x408] sm:$0xff]
          %v11944 = vld [vmem:[#allocation18 + $0x410] sm:$0xff]
          %v11945 = vld [vmem:[#allocation18 + $0x418] sm:$0xff]
          %v11946 = vld [vmem:[#allocation18 + $0x420] sm:$0xff]
          %v11947 = vld [vmem:[#allocation18 + $0x428] sm:$0xff]
          %v11948 = vld [vmem:[#allocation18 + $0x430] sm:$0xff]
          %v11949 = vld [vmem:[#allocation18 + $0x438] sm:$0xff]
          %v11950 = vld [vmem:[#allocation18 + $0x440] sm:$0xff]
          %v11951 = vld [vmem:[#allocation18 + $0x448] sm:$0xff]
          %v11952 = vld [vmem:[#allocation18 + $0x450] sm:$0xff]
          %v11953 = vld [vmem:[#allocation18 + $0x458] sm:$0xff]
          %v11954 = vld [vmem:[#allocation18 + $0x460] sm:$0xff]
          %v11955 = vld [vmem:[#allocation18 + $0x468] sm:$0xff]
          %v11956 = vld [vmem:[#allocation18 + $0x470] sm:$0xff]
          %v11957 = vld [vmem:[#allocation18 + $0x478] sm:$0xff]
          %v11958 = vld [vmem:[#allocation18 + $0x480] sm:$0xff]
          %v11959 = vld [vmem:[#allocation18 + $0x488] sm:$0xff]
          %v11960 = vld [vmem:[#allocation18 + $0x490] sm:$0xff]
          %v11961 = vld [vmem:[#allocation18 + $0x498] sm:$0xff]
          %v11962 = vld [vmem:[#allocation18 + $0x4a0] sm:$0xff]
          %v11963 = vld [vmem:[#allocation18 + $0x4a8] sm:$0xff]
          %v11964 = vld [vmem:[#allocation18 + $0x4b0] sm:$0xff]
          %v11965 = vld [vmem:[#allocation18 + $0x4b8] sm:$0xff]
          %v11966 = vld [vmem:[#allocation18 + $0x4c0] sm:$0xff]
          %v11967 = vld [vmem:[#allocation18 + $0x4c8] sm:$0xff]
          %v11968 = vld [vmem:[#allocation18 + $0x4d0] sm:$0xff]
          %v11969 = vld [vmem:[#allocation18 + $0x4d8] sm:$0xff]
          %v11970 = vld [vmem:[#allocation18 + $0x4e0] sm:$0xff]
          %v11971 = vld [vmem:[#allocation18 + $0x4e8] sm:$0xff]
          %v11972 = vld [vmem:[#allocation18 + $0x4f0] sm:$0xff]
          %v11973 = vld [vmem:[#allocation18 + $0x4f8] sm:$0xff]
          %v11974 = vld [vmem:[#allocation18 + $0x500] sm:$0xff]
          %v11975 = vld [vmem:[#allocation18 + $0x508] sm:$0xff]
          %v11976 = vld [vmem:[#allocation18 + $0x510] sm:$0xff]
          %v11977 = vld [vmem:[#allocation18 + $0x518] sm:$0xff]
          %v11978 = vld [vmem:[#allocation18 + $0x520] sm:$0xff]
          %v11979 = vld [vmem:[#allocation18 + $0x528] sm:$0xff]
          %v11980 = vld [vmem:[#allocation18 + $0x530] sm:$0xff]
          %v11981 = vld [vmem:[#allocation18 + $0x538] sm:$0xff]
          %v11982 = vld [vmem:[#allocation18 + $0x540] sm:$0xff]
          %v11983 = vld [vmem:[#allocation18 + $0x548] sm:$0xff]
          %v11984 = vld [vmem:[#allocation18 + $0x550] sm:$0xff]
          %v11985 = vld [vmem:[#allocation18 + $0x558] sm:$0xff]
          %v11986 = vld [vmem:[#allocation18 + $0x560] sm:$0xff]
          %v11987 = vld [vmem:[#allocation18 + $0x568] sm:$0xff]
          %v11988 = vld [vmem:[#allocation18 + $0x570] sm:$0xff]
          %v11989 = vld [vmem:[#allocation18 + $0x578] sm:$0xff]
          %v11990 = vld [vmem:[#allocation18 + $0x580] sm:$0xff]
          %v11991 = vld [vmem:[#allocation18 + $0x588] sm:$0xff]
          %v11992 = vld [vmem:[#allocation18 + $0x590] sm:$0xff]
          %v11993 = vld [vmem:[#allocation18 + $0x598] sm:$0xff]
          %v11994 = vld [vmem:[#allocation18 + $0x5a0] sm:$0xff]
          %v11995 = vld [vmem:[#allocation18 + $0x5a8] sm:$0xff]
          %v11996 = vld [vmem:[#allocation18 + $0x5b0] sm:$0xff]
          %v11997 = vld [vmem:[#allocation18 + $0x5b8] sm:$0xff]
          %v11998 = vld [vmem:[#allocation18 + $0x5c0] sm:$0xff]
          %v11999 = vld [vmem:[#allocation18 + $0x5c8] sm:$0xff]
          %v12000 = vld [vmem:[#allocation18 + $0x5d0] sm:$0xff]
          %v12001 = vld [vmem:[#allocation18 + $0x5d8] sm:$0xff]
          %v12002 = vld [vmem:[#allocation18 + $0x5e0] sm:$0xff]
          %v12003 = vld [vmem:[#allocation18 + $0x5e8] sm:$0xff]
          %v12004 = vld [vmem:[#allocation18 + $0x5f0] sm:$0xff]
          %v12005 = vld [vmem:[#allocation18 + $0x5f8] sm:$0xff]
          %v12006 = vld [vmem:[#allocation21] sm:$0x3f]
          %v12008 = vperm.slane %v12006, 0
          %v12009 = vperm.slane %v12006, 1
          %v12010 = vperm.slane %v12006, 2
          %v12011 = vperm.slane %v12006, 3
          %v12012 = vperm.slane %v12006, 4
          %v12013 = vperm.slane %v12006, 5
          %12021 = vst [vmem:[#allocation1] ss:$4 sm:$0xff] %v8990
          %v12022 = vld.sshfl [vmem:[#allocation1] sm:$0xff pattern:$0x73625140]
          %v12023 = vld.sshfl [vmem:[#allocation1 + $0x8] sm:$0xff pattern:$0x73625140]
          %12026 = vmatpush.msra.mxu0 %v11904
          %12027 = vmatpush.msra.mxu0 %v11898
          %12028 = vmatpush.msra.mxu0 %v11892
          %12029 = vmatpush.msra.mxu0 %v11886
          %12030 = vmatpush.msra.mxu0 %v11880
          %12031 = vmatpush.msra.mxu0 %v11874
          %12032 = vmatpush.msra.mxu0 %v11868
          %12033 = vmatpush.msra.mxu0 %v11862
          %12034 = vmatpush.msra.mxu0 %v11856
          %12035 = vmatpush.msra.mxu0 %v11850
          %12036 = vmatpush.msra.mxu0 %v11844
          %12037 = vmatpush.msra.mxu0 %v11838
          %12038 = vmatpush.msra.mxu0 %v11832
          %12039 = vmatpush.msra.mxu0 %v11826
          %12040 = vmatpush.msra.mxu0 %v11820
          %12041 = vmatpush.msra.mxu0 %v11814
          %12042 = vmatmul.f32.gmra.mxu0 %v12022
          %v12043 = vpop.f32.mrf.mxu0
          %v12044 = vadd.f32 %v12008, %v12043
          %12045 = vdwg.mxu0
          %12046 = vmatpush.msra.mxu0 %v12000
          %12047 = vmatpush.msra.mxu0 %v11994
          %12048 = vmatpush.msra.mxu0 %v11988
          %12049 = vmatpush.msra.mxu0 %v11982
          %12050 = vmatpush.msra.mxu0 %v11976
          %12051 = vmatpush.msra.mxu0 %v11970
          %12052 = vmatpush.msra.mxu0 %v11964
          %12053 = vmatpush.msra.mxu0 %v11958
          %12054 = vmatpush.msra.mxu0 %v11952
          %12055 = vmatpush.msra.mxu0 %v11946
          %12056 = vmatpush.msra.mxu0 %v11940
          %12057 = vmatpush.msra.mxu0 %v11934
          %12058 = vmatpush.msra.mxu0 %v11928
          %12059 = vmatpush.msra.mxu0 %v11922
          %12060 = vmatpush.msra.mxu0 %v11916
          %12061 = vmatpush.msra.mxu0 %v11910
          %12062 = vmatmul.f32.gmra.mxu0 %v12023
          %v12063 = vpop.f32.mrf.mxu0
          %v12064 = vadd.f32 %v12044, %v12063
          %12065 = vdwg.mxu0
          %12066 = vmatpush.msra.mxu0 %v11905
          %12067 = vmatpush.msra.mxu0 %v11899
          %12068 = vmatpush.msra.mxu0 %v11893
          %12069 = vmatpush.msra.mxu0 %v11887
          %12070 = vmatpush.msra.mxu0 %v11881
          %12071 = vmatpush.msra.mxu0 %v11875
          %12072 = vmatpush.msra.mxu0 %v11869
          %12073 = vmatpush.msra.mxu0 %v11863
          %12074 = vmatpush.msra.mxu0 %v11857
          %12075 = vmatpush.msra.mxu0 %v11851
          %12076 = vmatpush.msra.mxu0 %v11845
          %12077 = vmatpush.msra.mxu0 %v11839
          %12078 = vmatpush.msra.mxu0 %v11833
          %12079 = vmatpush.msra.mxu0 %v11827
          %12080 = vmatpush.msra.mxu0 %v11821
          %12081 = vmatpush.msra.mxu0 %v11815
          %12082 = vmatmul.f32.gmra.mxu0 %v12022
          %v12083 = vpop.f32.mrf.mxu0
          %v12084 = vadd.f32 %v12009, %v12083
          %12085 = vdwg.mxu0
          %12086 = vmatpush.msra.mxu0 %v12001
          %12087 = vmatpush.msra.mxu0 %v11995
          %12088 = vmatpush.msra.mxu0 %v11989
          %12089 = vmatpush.msra.mxu0 %v11983
          %12090 = vmatpush.msra.mxu0 %v11977
          %12091 = vmatpush.msra.mxu0 %v11971
          %12092 = vmatpush.msra.mxu0 %v11965
          %12093 = vmatpush.msra.mxu0 %v11959
          %12094 = vmatpush.msra.mxu0 %v11953
          %12095 = vmatpush.msra.mxu0 %v11947
          %12096 = vmatpush.msra.mxu0 %v11941
          %12097 = vmatpush.msra.mxu0 %v11935
          %12098 = vmatpush.msra.mxu0 %v11929
          %12099 = vmatpush.msra.mxu0 %v11923
          %12100 = vmatpush.msra.mxu0 %v11917
          %12101 = vmatpush.msra.mxu0 %v11911
          %12102 = vmatmul.f32.gmra.mxu0 %v12023
          %v12103 = vpop.f32.mrf.mxu0
          %v12104 = vadd.f32 %v12084, %v12103
          %12105 = vdwg.mxu0
          %12106 = vmatpush.msra.mxu0 %v11906
          %12107 = vmatpush.msra.mxu0 %v11900
          %12108 = vmatpush.msra.mxu0 %v11894
          %12109 = vmatpush.msra.mxu0 %v11888
          %12110 = vmatpush.msra.mxu0 %v11882
          %12111 = vmatpush.msra.mxu0 %v11876
          %12112 = vmatpush.msra.mxu0 %v11870
          %12113 = vmatpush.msra.mxu0 %v11864
          %12114 = vmatpush.msra.mxu0 %v11858
          %12115 = vmatpush.msra.mxu0 %v11852
          %12116 = vmatpush.msra.mxu0 %v11846
          %12117 = vmatpush.msra.mxu0 %v11840
          %12118 = vmatpush.msra.mxu0 %v11834
          %12119 = vmatpush.msra.mxu0 %v11828
          %12120 = vmatpush.msra.mxu0 %v11822
          %12121 = vmatpush.msra.mxu0 %v11816
          %12122 = vmatmul.f32.gmra.mxu0 %v12022
          %v12123 = vpop.f32.mrf.mxu0
          %v12124 = vadd.f32 %v12010, %v12123
          %12125 = vdwg.mxu0
          %12126 = vmatpush.msra.mxu0 %v12002
          %12127 = vmatpush.msra.mxu0 %v11996
          %12128 = vmatpush.msra.mxu0 %v11990
          %12129 = vmatpush.msra.mxu0 %v11984
          %12130 = vmatpush.msra.mxu0 %v11978
          %12131 = vmatpush.msra.mxu0 %v11972
          %12132 = vmatpush.msra.mxu0 %v11966
          %12133 = vmatpush.msra.mxu0 %v11960
          %12134 = vmatpush.msra.mxu0 %v11954
          %12135 = vmatpush.msra.mxu0 %v11948
          %12136 = vmatpush.msra.mxu0 %v11942
          %12137 = vmatpush.msra.mxu0 %v11936
          %12138 = vmatpush.msra.mxu0 %v11930
          %12139 = vmatpush.msra.mxu0 %v11924
          %12140 = vmatpush.msra.mxu0 %v11918
          %12141 = vmatpush.msra.mxu0 %v11912
          %12142 = vmatmul.f32.gmra.mxu0 %v12023
          %v12143 = vpop.f32.mrf.mxu0
          %v12144 = vadd.f32 %v12124, %v12143
          %12145 = vdwg.mxu0
          %12146 = vmatpush.msra.mxu0 %v11907
          %12147 = vmatpush.msra.mxu0 %v11901
          %12148 = vmatpush.msra.mxu0 %v11895
          %12149 = vmatpush.msra.mxu0 %v11889
          %12150 = vmatpush.msra.mxu0 %v11883
          %12151 = vmatpush.msra.mxu0 %v11877
          %12152 = vmatpush.msra.mxu0 %v11871
          %12153 = vmatpush.msra.mxu0 %v11865
          %12154 = vmatpush.msra.mxu0 %v11859
          %12155 = vmatpush.msra.mxu0 %v11853
          %12156 = vmatpush.msra.mxu0 %v11847
          %12157 = vmatpush.msra.mxu0 %v11841
          %12158 = vmatpush.msra.mxu0 %v11835
          %12159 = vmatpush.msra.mxu0 %v11829
          %12160 = vmatpush.msra.mxu0 %v11823
          %12161 = vmatpush.msra.mxu0 %v11817
          %12162 = vmatmul.f32.gmra.mxu0 %v12022
          %v12163 = vpop.f32.mrf.mxu0
          %v12164 = vadd.f32 %v12011, %v12163
          %12165 = vdwg.mxu0
          %12166 = vmatpush.msra.mxu0 %v12003
          %12167 = vmatpush.msra.mxu0 %v11997
          %12168 = vmatpush.msra.mxu0 %v11991
          %12169 = vmatpush.msra.mxu0 %v11985
          %12170 = vmatpush.msra.mxu0 %v11979
          %12171 = vmatpush.msra.mxu0 %v11973
          %12172 = vmatpush.msra.mxu0 %v11967
          %12173 = vmatpush.msra.mxu0 %v11961
          %12174 = vmatpush.msra.mxu0 %v11955
          %12175 = vmatpush.msra.mxu0 %v11949
          %12176 = vmatpush.msra.mxu0 %v11943
          %12177 = vmatpush.msra.mxu0 %v11937
          %12178 = vmatpush.msra.mxu0 %v11931
          %12179 = vmatpush.msra.mxu0 %v11925
          %12180 = vmatpush.msra.mxu0 %v11919
          %12181 = vmatpush.msra.mxu0 %v11913
          %12182 = vmatmul.f32.gmra.mxu0 %v12023
          %v12183 = vpop.f32.mrf.mxu0
          %v12184 = vadd.f32 %v12164, %v12183
          %12185 = vdwg.mxu0
          %12186 = vmatpush.msra.mxu0 %v11908
          %12187 = vmatpush.msra.mxu0 %v11902
          %12188 = vmatpush.msra.mxu0 %v11896
          %12189 = vmatpush.msra.mxu0 %v11890
          %12190 = vmatpush.msra.mxu0 %v11884
          %12191 = vmatpush.msra.mxu0 %v11878
          %12192 = vmatpush.msra.mxu0 %v11872
          %12193 = vmatpush.msra.mxu0 %v11866
          %12194 = vmatpush.msra.mxu0 %v11860
          %12195 = vmatpush.msra.mxu0 %v11854
          %12196 = vmatpush.msra.mxu0 %v11848
          %12197 = vmatpush.msra.mxu0 %v11842
          %12198 = vmatpush.msra.mxu0 %v11836
          %12199 = vmatpush.msra.mxu0 %v11830
          %12200 = vmatpush.msra.mxu0 %v11824
          %12201 = vmatpush.msra.mxu0 %v11818
          %12202 = vmatmul.f32.gmra.mxu0 %v12022
          %v12203 = vpop.f32.mrf.mxu0
          %v12204 = vadd.f32 %v12012, %v12203
          %12205 = vdwg.mxu0
          %12206 = vmatpush.msra.mxu0 %v12004
          %12207 = vmatpush.msra.mxu0 %v11998
          %12208 = vmatpush.msra.mxu0 %v11992
          %12209 = vmatpush.msra.mxu0 %v11986
          %12210 = vmatpush.msra.mxu0 %v11980
          %12211 = vmatpush.msra.mxu0 %v11974
          %12212 = vmatpush.msra.mxu0 %v11968
          %12213 = vmatpush.msra.mxu0 %v11962
          %12214 = vmatpush.msra.mxu0 %v11956
          %12215 = vmatpush.msra.mxu0 %v11950
          %12216 = vmatpush.msra.mxu0 %v11944
          %12217 = vmatpush.msra.mxu0 %v11938
          %12218 = vmatpush.msra.mxu0 %v11932
          %12219 = vmatpush.msra.mxu0 %v11926
          %12220 = vmatpush.msra.mxu0 %v11920
          %12221 = vmatpush.msra.mxu0 %v11914
          %12222 = vmatmul.f32.gmra.mxu0 %v12023
          %v12223 = vpop.f32.mrf.mxu0
          %v12224 = vadd.f32 %v12204, %v12223
          %12225 = vdwg.mxu0
          %12226 = vmatpush.msra.mxu0 %v11909
          %12227 = vmatpush.msra.mxu0 %v11903
          %12228 = vmatpush.msra.mxu0 %v11897
          %12229 = vmatpush.msra.mxu0 %v11891
          %12230 = vmatpush.msra.mxu0 %v11885
          %12231 = vmatpush.msra.mxu0 %v11879
          %12232 = vmatpush.msra.mxu0 %v11873
          %12233 = vmatpush.msra.mxu0 %v11867
          %12234 = vmatpush.msra.mxu0 %v11861
          %12235 = vmatpush.msra.mxu0 %v11855
          %12236 = vmatpush.msra.mxu0 %v11849
          %12237 = vmatpush.msra.mxu0 %v11843
          %12238 = vmatpush.msra.mxu0 %v11837
          %12239 = vmatpush.msra.mxu0 %v11831
          %12240 = vmatpush.msra.mxu0 %v11825
          %12241 = vmatpush.msra.mxu0 %v11819
          %12242 = vmatmul.f32.gmra.mxu0 %v12022
          %v12243 = vpop.f32.mrf.mxu0
          %v12244 = vadd.f32 %v12013, %v12243
          %12245 = vdwg.mxu0
          %12246 = vmatpush.msra.mxu0 %v12005
          %12247 = vmatpush.msra.mxu0 %v11999
          %12248 = vmatpush.msra.mxu0 %v11993
          %12249 = vmatpush.msra.mxu0 %v11987
          %12250 = vmatpush.msra.mxu0 %v11981
          %12251 = vmatpush.msra.mxu0 %v11975
          %12252 = vmatpush.msra.mxu0 %v11969
          %12253 = vmatpush.msra.mxu0 %v11963
          %12254 = vmatpush.msra.mxu0 %v11957
          %12255 = vmatpush.msra.mxu0 %v11951
          %12256 = vmatpush.msra.mxu0 %v11945
          %12257 = vmatpush.msra.mxu0 %v11939
          %12258 = vmatpush.msra.mxu0 %v11933
          %12259 = vmatpush.msra.mxu0 %v11927
          %12260 = vmatpush.msra.mxu0 %v11921
          %12261 = vmatpush.msra.mxu0 %v11915
          %12262 = vmatmul.f32.gmra.mxu0 %v12023
          %v12263 = vpop.f32.mrf.mxu0
          %v12264 = vadd.f32 %v12244, %v12263
          %12265 = vdwg.mxu0
          %v12266 = vadd.f32 %v11681, %v12064
          %v12267 = vadd.f32 %v11707, %v12104
          %v12268 = vxor.u32 %v12266, 2147483648
          %v12269 = vxor.u32 %v12267, 2147483648
          %v12270 = vmul.f32 %v12268, 1.442695
          %v12271 = vpow.pop %v12270
          %v12272 = vmul.f32 %v12269, 1.442695
          %v12273 = vpow.pop %v12272
          %v12274 = vadd.f32 %v12271, 1.0
          %v12275 = vadd.f32 %v12273, 1.0
          %v12276 = vrcp.pop %v12274
          %v12277 = vmul.f32 %v12274, %v12276
          %v12278 = vsub.f32 1.0, %v12277
          %v12279 = vmul.f32 %v12276, %v12278
          %v12280 = vadd.f32 %v12276, %v12279
          %vm12281 = vweird.f32 %v12274
          %vm12282 = vweird.f32 %v12276
          %vm12283 = vmor %vm12281, %vm12282
          %v12284 = vsel %vm12283, %v12276, %v12280
          %v12285 = vand.u32 2147483647, %v12274
          %vm12286 = vcmp.eq.f32.partialorder %v12285, 8.507059e+37
          %v12287 = vand.u32 %v12274, 2147483648
          %v12288 = vor.u32 1.1754944e-38, %v12287
          %v12289 = vsel %vm12286, %v12288, %v12284
          %v12290 = vmul.f32 1.0, %v12289
          %v12291 = vrcp.pop %v12275
          %v12292 = vmul.f32 %v12275, %v12291
          %v12293 = vsub.f32 1.0, %v12292
          %v12294 = vmul.f32 %v12291, %v12293
          %v12295 = vadd.f32 %v12291, %v12294
          %vm12296 = vweird.f32 %v12275
          %vm12297 = vweird.f32 %v12291
          %vm12298 = vmor %vm12296, %vm12297
          %v12299 = vsel %vm12298, %v12291, %v12295
          %v12300 = vand.u32 2147483647, %v12275
          %vm12301 = vcmp.eq.f32.partialorder %v12300, 8.507059e+37
          %v12302 = vand.u32 %v12275, 2147483648
          %v12303 = vor.u32 1.1754944e-38, %v12302
          %v12304 = vsel %vm12301, %v12303, %v12299
          %v12305 = vmul.f32 1.0, %v12304
          %v12306 = vadd.f32 %v11733, %v12144
          %v12307 = vadd.f32 %v11759, %v12184
          %v12308 = vxor.u32 %v12306, 2147483648
          %v12309 = vxor.u32 %v12307, 2147483648
          %v12310 = vmul.f32 %v12308, 1.442695
          %v12311 = vpow.pop %v12310
          %v12312 = vmul.f32 %v12309, 1.442695
          %v12313 = vpow.pop %v12312
          %v12314 = vadd.f32 %v12311, 1.0
          %v12315 = vadd.f32 %v12313, 1.0
          %v12316 = vrcp.pop %v12314
          %v12317 = vmul.f32 %v12314, %v12316
          %v12318 = vsub.f32 1.0, %v12317
          %v12319 = vmul.f32 %v12316, %v12318
          %v12320 = vadd.f32 %v12316, %v12319
          %vm12321 = vweird.f32 %v12314
          %vm12322 = vweird.f32 %v12316
          %vm12323 = vmor %vm12321, %vm12322
          %v12324 = vsel %vm12323, %v12316, %v12320
          %v12325 = vand.u32 2147483647, %v12314
          %vm12326 = vcmp.eq.f32.partialorder %v12325, 8.507059e+37
          %v12327 = vand.u32 %v12314, 2147483648
          %v12328 = vor.u32 1.1754944e-38, %v12327
          %v12329 = vsel %vm12326, %v12328, %v12324
          %v12330 = vmul.f32 1.0, %v12329
          %v12331 = vrcp.pop %v12315
          %v12332 = vmul.f32 %v12315, %v12331
          %v12333 = vsub.f32 1.0, %v12332
          %v12334 = vmul.f32 %v12331, %v12333
          %v12335 = vadd.f32 %v12331, %v12334
          %vm12336 = vweird.f32 %v12315
          %vm12337 = vweird.f32 %v12331
          %vm12338 = vmor %vm12336, %vm12337
          %v12339 = vsel %vm12338, %v12331, %v12335
          %v12340 = vand.u32 2147483647, %v12315
          %vm12341 = vcmp.eq.f32.partialorder %v12340, 8.507059e+37
          %v12342 = vand.u32 %v12315, 2147483648
          %v12343 = vor.u32 1.1754944e-38, %v12342
          %v12344 = vsel %vm12341, %v12343, %v12339
          %v12345 = vmul.f32 1.0, %v12344
          %v12346 = vmul.f32 %v12290, %v12224
          %v12347 = vmul.f32 %v12305, %v12264
          %v12348 = vadd.f32 %v11785, %v12346
          %v12349 = vadd.f32 %v11811, %v12347
          %v12350 = vtanh.pop %v12348
          %v12351 = vtanh.pop %v12349
          %v12352 = vsub.f32 1.0, %v12330
          %v12353 = vsub.f32 1.0, %v12345
          %v12354 = vmul.f32 %v12352, %v12350
          %v12355 = vmul.f32 %v12353, %v12351
          %12356 = vst [vmem:[#allocation1] ss:$4 sm:$0xff] %v8990
          %v12357 = vld.sshfl [vmem:[#allocation1] sm:$0xff pattern:$0x73625140]
          %v12358 = vld.sshfl [vmem:[#allocation1 + $0x8] sm:$0xff pattern:$0x73625140]
          %v12361 = vmul.f32 %v12330, %v12357
          %v12362 = vmul.f32 %v12345, %v12358
          %v12363 = vadd.f32 %v12354, %v12361
          %v12364 = vadd.f32 %v12355, %v12362
          %v12367 = vrot.slane %v12364, 6
          %v12368 = vsel %vm8959, %v12363, %v12367
          %12370 = vst [vmem:[#allocation27] sm:$0xf] %v12368
          %v12371 = vpack.c.bf16 %v12363, %v12363
          %v12372 = vpack.c.bf16 %v12364, %v12364
          %v12373 = vld [vmem:[#allocation22] sm:$0xff]
          %v12374 = vld [vmem:[#allocation22 + $0x8] sm:$0xff]
          %v12375 = vld [vmem:[#allocation22 + $0x10] sm:$0xff]
          %v12376 = vld [vmem:[#allocation22 + $0x18] sm:$0xff]
          %v12377 = vld [vmem:[#allocation22 + $0x20] sm:$0xff]
          %v12378 = vld [vmem:[#allocation22 + $0x28] sm:$0xff]
          %v12379 = vld [vmem:[#allocation22 + $0x30] sm:$0xff]
          %v12380 = vld [vmem:[#allocation22 + $0x38] sm:$0xff]
          %v12381 = vld [vmem:[#allocation22 + $0x40] sm:$0xff]
          %v12382 = vld [vmem:[#allocation22 + $0x48] sm:$0xff]
          %v12383 = vld [vmem:[#allocation22 + $0x50] sm:$0xff]
          %v12384 = vld [vmem:[#allocation22 + $0x58] sm:$0xff]
          %v12385 = vld [vmem:[#allocation22 + $0x60] sm:$0xff]
          %v12386 = vld [vmem:[#allocation22 + $0x68] sm:$0xff]
          %v12387 = vld [vmem:[#allocation22 + $0x70] sm:$0xff]
          %v12388 = vld [vmem:[#allocation22 + $0x78] sm:$0xff]
          %v12389 = vld [vmem:[#allocation22 + $0x80] sm:$0xff]
          %v12390 = vld [vmem:[#allocation22 + $0x88] sm:$0xff]
          %v12391 = vld [vmem:[#allocation22 + $0x90] sm:$0xff]
          %v12392 = vld [vmem:[#allocation22 + $0x98] sm:$0xff]
          %v12393 = vld [vmem:[#allocation22 + $0xa0] sm:$0xff]
          %v12394 = vld [vmem:[#allocation22 + $0xa8] sm:$0xff]
          %v12395 = vld [vmem:[#allocation22 + $0xb0] sm:$0xff]
          %v12396 = vld [vmem:[#allocation22 + $0xb8] sm:$0xff]
          %v12397 = vld [vmem:[#allocation22 + $0xc0] sm:$0xff]
          %v12398 = vld [vmem:[#allocation22 + $0xc8] sm:$0xff]
          %v12399 = vld [vmem:[#allocation22 + $0xd0] sm:$0xff]
          %v12400 = vld [vmem:[#allocation22 + $0xd8] sm:$0xff]
          %v12401 = vld [vmem:[#allocation22 + $0xe0] sm:$0xff]
          %v12402 = vld [vmem:[#allocation22 + $0xe8] sm:$0xff]
          %v12403 = vld [vmem:[#allocation22 + $0xf0] sm:$0xff]
          %v12404 = vld [vmem:[#allocation22 + $0xf8] sm:$0xff]
          %v12405 = vld [vmem:[#allocation24] sm:$0x3]
          %v12407 = vperm.slane %v12405, 0
          %v12408 = vperm.slane %v12405, 1
          %v12443 = vunpack.c.l.b16 %v12373
          %v12444 = vunpack.c.h.b16 %v12373
          %v12445 = vunpack.c.l.b16 %v12374
          %v12446 = vunpack.c.h.b16 %v12374
          %v12447 = vunpack.c.l.b16 %v12375
          %v12448 = vunpack.c.h.b16 %v12375
          %v12449 = vunpack.c.l.b16 %v12376
          %v12450 = vunpack.c.h.b16 %v12376
          %v12451 = vunpack.c.l.b16 %v12377
          %v12452 = vunpack.c.h.b16 %v12377
          %v12453 = vunpack.c.l.b16 %v12378
          %v12454 = vunpack.c.h.b16 %v12378
          %v12455 = vunpack.c.l.b16 %v12379
          %v12456 = vunpack.c.h.b16 %v12379
          %v12457 = vunpack.c.l.b16 %v12380
          %v12458 = vunpack.c.h.b16 %v12380
          %v12459 = vunpack.c.l.b16 %v12381
          %v12460 = vunpack.c.h.b16 %v12381
          %v12461 = vunpack.c.l.b16 %v12382
          %v12462 = vunpack.c.h.b16 %v12382
          %v12463 = vunpack.c.l.b16 %v12383
          %v12464 = vunpack.c.h.b16 %v12383
          %v12465 = vunpack.c.l.b16 %v12384
          %v12466 = vunpack.c.h.b16 %v12384
          %v12467 = vunpack.c.l.b16 %v12385
          %v12468 = vunpack.c.h.b16 %v12385
          %v12469 = vunpack.c.l.b16 %v12386
          %v12470 = vunpack.c.h.b16 %v12386
          %v12471 = vunpack.c.l.b16 %v12387
          %v12472 = vunpack.c.h.b16 %v12387
          %v12473 = vunpack.c.l.b16 %v12388
          %v12474 = vunpack.c.h.b16 %v12388
          %v12475 = vunpack.c.l.b16 %v12389
          %v12476 = vunpack.c.h.b16 %v12389
          %v12477 = vunpack.c.l.b16 %v12390
          %v12478 = vunpack.c.h.b16 %v12390
          %v12479 = vunpack.c.l.b16 %v12391
          %v12480 = vunpack.c.h.b16 %v12391
          %v12481 = vunpack.c.l.b16 %v12392
          %v12482 = vunpack.c.h.b16 %v12392
          %v12483 = vunpack.c.l.b16 %v12393
          %v12484 = vunpack.c.h.b16 %v12393
          %v12485 = vunpack.c.l.b16 %v12394
          %v12486 = vunpack.c.h.b16 %v12394
          %v12487 = vunpack.c.l.b16 %v12395
          %v12488 = vunpack.c.h.b16 %v12395
          %v12489 = vunpack.c.l.b16 %v12396
          %v12490 = vunpack.c.h.b16 %v12396
          %v12491 = vunpack.c.l.b16 %v12397
          %v12492 = vunpack.c.h.b16 %v12397
          %v12493 = vunpack.c.l.b16 %v12398
          %v12494 = vunpack.c.h.b16 %v12398
          %v12495 = vunpack.c.l.b16 %v12399
          %v12496 = vunpack.c.h.b16 %v12399
          %v12497 = vunpack.c.l.b16 %v12400
          %v12498 = vunpack.c.h.b16 %v12400
          %v12499 = vunpack.c.l.b16 %v12401
          %v12500 = vunpack.c.h.b16 %v12401
          %v12501 = vunpack.c.l.b16 %v12402
          %v12502 = vunpack.c.h.b16 %v12402
          %v12503 = vunpack.c.l.b16 %v12403
          %v12504 = vunpack.c.h.b16 %v12403
          %v12505 = vunpack.c.l.b16 %v12404
          %v12506 = vunpack.c.h.b16 %v12404
          %v12507 = vpack.c.b16 %v12445, %v12443
          %v12508 = vpack.c.b16 %v12446, %v12444
          %v12509 = vpack.c.b16 %v12449, %v12447
          %v12510 = vpack.c.b16 %v12450, %v12448
          %v12511 = vpack.c.b16 %v12453, %v12451
          %v12512 = vpack.c.b16 %v12454, %v12452
          %v12513 = vpack.c.b16 %v12457, %v12455
          %v12514 = vpack.c.b16 %v12458, %v12456
          %v12515 = vpack.c.b16 %v12461, %v12459
          %v12516 = vpack.c.b16 %v12462, %v12460
          %v12517 = vpack.c.b16 %v12465, %v12463
          %v12518 = vpack.c.b16 %v12466, %v12464
          %v12519 = vpack.c.b16 %v12469, %v12467
          %v12520 = vpack.c.b16 %v12470, %v12468
          %v12521 = vpack.c.b16 %v12473, %v12471
          %v12522 = vpack.c.b16 %v12474, %v12472
          %v12523 = vpack.c.b16 %v12477, %v12475
          %v12524 = vpack.c.b16 %v12478, %v12476
          %v12525 = vpack.c.b16 %v12481, %v12479
          %v12526 = vpack.c.b16 %v12482, %v12480
          %v12527 = vpack.c.b16 %v12485, %v12483
          %v12528 = vpack.c.b16 %v12486, %v12484
          %v12529 = vpack.c.b16 %v12489, %v12487
          %v12530 = vpack.c.b16 %v12490, %v12488
          %v12531 = vpack.c.b16 %v12493, %v12491
          %v12532 = vpack.c.b16 %v12494, %v12492
          %v12533 = vpack.c.b16 %v12497, %v12495
          %v12534 = vpack.c.b16 %v12498, %v12496
          %v12535 = vpack.c.b16 %v12501, %v12499
          %v12536 = vpack.c.b16 %v12502, %v12500
          %v12537 = vpack.c.b16 %v12505, %v12503
          %v12538 = vpack.c.b16 %v12506, %v12504
          %12571 = vmatpush.bf16.msra.mxu0 %v12521
          %12572 = vmatpush.bf16.msra.mxu0 %v12519
          %12573 = vmatpush.bf16.msra.mxu0 %v12517
          %12574 = vmatpush.bf16.msra.mxu0 %v12515
          %12575 = vmatpush.bf16.msra.mxu0 %v12513
          %12576 = vmatpush.bf16.msra.mxu0 %v12511
          %12577 = vmatpush.bf16.msra.mxu0 %v12509
          %12578 = vmatpush.bf16.msra.mxu0 %v12507
          %12579 = vmatmul.bf16.gmra.mxu0 %v12371
          %v12580 = vpop.f32.mrf.mxu0
          %v12581 = vadd.f32 %v12407, %v12580
          %v12582 = vpop.f32.mrf.mxu0
          %12583 = vdwg.mxu0
          %12584 = vmatpush.bf16.msra.mxu0 %v12537
          %12585 = vmatpush.bf16.msra.mxu0 %v12535
          %12586 = vmatpush.bf16.msra.mxu0 %v12533
          %12587 = vmatpush.bf16.msra.mxu0 %v12531
          %12588 = vmatpush.bf16.msra.mxu0 %v12529
          %12589 = vmatpush.bf16.msra.mxu0 %v12527
          %12590 = vmatpush.bf16.msra.mxu0 %v12525
          %12591 = vmatpush.bf16.msra.mxu0 %v12523
          %12592 = vmatmul.bf16.gmra.mxu0 %v12372
          %v12593 = vpop.f32.mrf.mxu0
          %v12594 = vadd.f32 %v12581, %v12593
          %v12595 = vpop.f32.mrf.mxu0
          %12596 = vdwg.mxu0
          %12597 = vmatpush.bf16.msra.mxu0 %v12522
          %12598 = vmatpush.bf16.msra.mxu0 %v12520
          %12599 = vmatpush.bf16.msra.mxu0 %v12518
          %12600 = vmatpush.bf16.msra.mxu0 %v12516
          %12601 = vmatpush.bf16.msra.mxu0 %v12514
          %12602 = vmatpush.bf16.msra.mxu0 %v12512
          %12603 = vmatpush.bf16.msra.mxu0 %v12510
          %12604 = vmatpush.bf16.msra.mxu0 %v12508
          %12605 = vmatmul.bf16.gmra.mxu0 %v12371
          %v12606 = vpop.f32.mrf.mxu0
          %v12607 = vadd.f32 %v12408, %v12606
          %v12608 = vpop.f32.mrf.mxu0
          %12609 = vdwg.mxu0
          %12610 = vmatpush.bf16.msra.mxu0 %v12538
          %12611 = vmatpush.bf16.msra.mxu0 %v12536
          %12612 = vmatpush.bf16.msra.mxu0 %v12534
          %12613 = vmatpush.bf16.msra.mxu0 %v12532
          %12614 = vmatpush.bf16.msra.mxu0 %v12530
          %12615 = vmatpush.bf16.msra.mxu0 %v12528
          %12616 = vmatpush.bf16.msra.mxu0 %v12526
          %12617 = vmatpush.bf16.msra.mxu0 %v12524
          %12618 = vmatmul.bf16.gmra.mxu0 %v12372
          %v12619 = vpop.f32.mrf.mxu0
          %v12620 = vadd.f32 %v12607, %v12619
          %v12621 = vpop.f32.mrf.mxu0
          %12622 = vdwg.mxu0
          %v12623 = vmax.f32 %v12594, 0.0
          %v12624 = vmax.f32 %v12620, 0.0
          %v12625 = vpack.c.bf16 %v12623, %v12623
          %v12626 = vpack.c.bf16 %v12624, %v12624
          %v12627 = vld [vmem:[%s14] sm:$0xf]
          %v12628 = vld [vmem:[%s14 + $0x4] sm:$0xf]
          %v12629 = vld [vmem:[%s14 + $0x8] sm:$0xf]
          %v12630 = vld [vmem:[%s14 + $0xc] sm:$0xf]
          %v12631 = vld [vmem:[%s14 + $0x10] sm:$0xf]
          %v12632 = vld [vmem:[%s14 + $0x14] sm:$0xf]
          %v12633 = vld [vmem:[%s14 + $0x18] sm:$0xf]
          %v12634 = vld [vmem:[%s14 + $0x1c] sm:$0xf]
          %v12635 = vld [vmem:[%s14 + $0x20] sm:$0xf]
          %v12636 = vld [vmem:[%s14 + $0x24] sm:$0xf]
          %v12637 = vld [vmem:[%s14 + $0x28] sm:$0xf]
          %v12638 = vld [vmem:[%s14 + $0x2c] sm:$0xf]
          %v12639 = vld [vmem:[%s14 + $0x30] sm:$0xf]
          %v12640 = vld [vmem:[%s14 + $0x34] sm:$0xf]
          %v12641 = vld [vmem:[%s14 + $0x38] sm:$0xf]
          %v12642 = vld [vmem:[%s14 + $0x3c] sm:$0xf]
          %v12643 = vld [vmem:[%s14 + $0x40] sm:$0xf]
          %v12644 = vld [vmem:[%s14 + $0x44] sm:$0xf]
          %v12645 = vld [vmem:[%s14 + $0x48] sm:$0xf]
          %v12646 = vld [vmem:[%s14 + $0x4c] sm:$0xf]
          %v12647 = vld [vmem:[%s14 + $0x50] sm:$0xf]
          %v12648 = vld [vmem:[%s14 + $0x54] sm:$0xf]
          %v12649 = vld [vmem:[%s14 + $0x58] sm:$0xf]
          %v12650 = vld [vmem:[%s14 + $0x5c] sm:$0xf]
          %v12651 = vld [vmem:[%s14 + $0x60] sm:$0xf]
          %v12652 = vld [vmem:[%s14 + $0x64] sm:$0xf]
          %v12653 = vld [vmem:[%s14 + $0x68] sm:$0xf]
          %v12654 = vld [vmem:[%s14 + $0x6c] sm:$0xf]
          %v12655 = vld [vmem:[%s14 + $0x70] sm:$0xf]
          %v12656 = vld [vmem:[%s14 + $0x74] sm:$0xf]
          %v12657 = vld [vmem:[%s14 + $0x78] sm:$0xf]
          %v12658 = vld [vmem:[%s14 + $0x7c] sm:$0xf]
          %v12659 = vld [vmem:[#allocation25] sm:$0x1]
          %v12661 = vperm.slane %v12659, 0
          %v12695 = vunpack.c.l.b16 %v12627
          %v12696 = vunpack.c.l.b16 %v12628
          %v12697 = vunpack.c.l.b16 %v12629
          %v12698 = vunpack.c.l.b16 %v12630
          %v12699 = vunpack.c.l.b16 %v12631
          %v12700 = vunpack.c.l.b16 %v12632
          %v12701 = vunpack.c.l.b16 %v12633
          %v12702 = vunpack.c.l.b16 %v12634
          %v12703 = vunpack.c.l.b16 %v12635
          %v12704 = vunpack.c.l.b16 %v12636
          %v12705 = vunpack.c.l.b16 %v12637
          %v12706 = vunpack.c.l.b16 %v12638
          %v12707 = vunpack.c.l.b16 %v12639
          %v12708 = vunpack.c.l.b16 %v12640
          %v12709 = vunpack.c.l.b16 %v12641
          %v12710 = vunpack.c.l.b16 %v12642
          %v12711 = vunpack.c.l.b16 %v12643
          %v12712 = vunpack.c.l.b16 %v12644
          %v12713 = vunpack.c.l.b16 %v12645
          %v12714 = vunpack.c.l.b16 %v12646
          %v12715 = vunpack.c.l.b16 %v12647
          %v12716 = vunpack.c.l.b16 %v12648
          %v12717 = vunpack.c.l.b16 %v12649
          %v12718 = vunpack.c.l.b16 %v12650
          %v12719 = vunpack.c.l.b16 %v12651
          %v12720 = vunpack.c.l.b16 %v12652
          %v12721 = vunpack.c.l.b16 %v12653
          %v12722 = vunpack.c.l.b16 %v12654
          %v12723 = vunpack.c.l.b16 %v12655
          %v12724 = vunpack.c.l.b16 %v12656
          %v12725 = vunpack.c.l.b16 %v12657
          %v12726 = vunpack.c.l.b16 %v12658
          %v12727 = vpack.c.b16 %v12696, %v12695
          %v12728 = vpack.c.b16 %v12698, %v12697
          %v12729 = vpack.c.b16 %v12700, %v12699
          %v12730 = vpack.c.b16 %v12702, %v12701
          %v12731 = vpack.c.b16 %v12704, %v12703
          %v12732 = vpack.c.b16 %v12706, %v12705
          %v12733 = vpack.c.b16 %v12708, %v12707
          %v12734 = vpack.c.b16 %v12710, %v12709
          %v12735 = vpack.c.b16 %v12712, %v12711
          %v12736 = vpack.c.b16 %v12714, %v12713
          %v12737 = vpack.c.b16 %v12716, %v12715
          %v12738 = vpack.c.b16 %v12718, %v12717
          %v12739 = vpack.c.b16 %v12720, %v12719
          %v12740 = vpack.c.b16 %v12722, %v12721
          %v12741 = vpack.c.b16 %v12724, %v12723
          %v12742 = vpack.c.b16 %v12726, %v12725
          %12759 = vmatpush.bf16.msra.mxu0 %v12734
          %12760 = vmatpush.bf16.msra.mxu0 %v12733
          %12761 = vmatpush.bf16.msra.mxu0 %v12732
          %12762 = vmatpush.bf16.msra.mxu0 %v12731
          %12763 = vmatpush.bf16.msra.mxu0 %v12730
          %12764 = vmatpush.bf16.msra.mxu0 %v12729
          %12765 = vmatpush.bf16.msra.mxu0 %v12728
          %12766 = vmatpush.bf16.msra.mxu0 %v12727
          %12767 = vmatmul.bf16.gmra.mxu0 %v12625
          %v12768 = vpop.f32.mrf.mxu0
          %v12769 = vadd.f32 %v12661, %v12768
          %v12770 = vpop.f32.mrf.mxu0
          %12771 = vdwg.mxu0
          %12772 = vmatpush.bf16.msra.mxu0 %v12742
          %12773 = vmatpush.bf16.msra.mxu0 %v12741
          %12774 = vmatpush.bf16.msra.mxu0 %v12740
          %12775 = vmatpush.bf16.msra.mxu0 %v12739
          %12776 = vmatpush.bf16.msra.mxu0 %v12738
          %12777 = vmatpush.bf16.msra.mxu0 %v12737
          %12778 = vmatpush.bf16.msra.mxu0 %v12736
          %12779 = vmatpush.bf16.msra.mxu0 %v12735
          %12780 = vmatmul.bf16.gmra.mxu0 %v12626
          %v12781 = vpop.f32.mrf.mxu0
          %v12782 = vadd.f32 %v12769, %v12781
          %v12783 = vpop.f32.mrf.mxu0
          %12784 = vdwg.mxu0
          %v12785 = vmax.f32 %v12782, 0.0
          %v12786 = vld [vmem:[%s16] sm:$0xf]
          %v12787 = vld [vmem:[%s16 + $0x4] sm:$0xf]
          %v12788 = vld [vmem:[%s16 + $0x8] sm:$0xf]
          %v12789 = vld [vmem:[%s16 + $0xc] sm:$0xf]
          %v12790 = vunpack.c.l.bf16 %v12786
          %v12791 = vunpack.c.l.bf16 %v12787
          %v12792 = vunpack.c.l.bf16 %v12788
          %v12793 = vunpack.c.l.bf16 %v12789
          %v12794 = vld [vmem:[#allocation3] sm:$0x1]
          %v12796 = vperm.slane %v12794, 0
          %v12799 = vsel %vm995, %v12785, 0
          %12801 = vmatpush.msra.mxu0 0.0
          %12802 = vmatpush.msra.mxu0 0.0
          %12803 = vmatpush.msra.mxu0 0.0
          %12804 = vmatpush.msra.mxu0 0.0
          %12805 = vmatpush.msra.mxu0 0.0
          %12806 = vmatpush.msra.mxu0 0.0
          %12807 = vmatpush.msra.mxu0 0.0
          %12808 = vmatpush.msra.mxu0 0.0
          %12809 = vmatpush.msra.mxu0 0.0
          %12810 = vmatpush.msra.mxu0 0.0
          %12811 = vmatpush.msra.mxu0 0.0
          %12812 = vmatpush.msra.mxu0 0.0
          %12813 = vmatpush.msra.mxu0 %v12793
          %12814 = vmatpush.msra.mxu0 %v12792
          %12815 = vmatpush.msra.mxu0 %v12791
          %12816 = vmatpush.msra.mxu0 %v12790
          %12817 = vmatmul.f32.gmra.mxu0 %v12799
          %v12818 = vpop.f32.mrf.mxu0
          %v12819 = vadd.f32 %v12796, %v12818
          %12820 = vdwg.mxu0
          %vm12821 = vcmask 1024
          %12822 = vst.msk [vmem:[%s18] sm:$0x3] %vm12821, %v12819
        $region160: #{critic_net_forward.1} parent=91 // pred_fallthru
          _
        // Predicated region
        $region161: #{critic_net_forward.1} parent=91 // pred_check
          %p12823 = pneg %p447
        $region162: #{critic_net_forward.1} parent=91 // pred_check_branch
          %12825 = sbr.rel (%p12823) target = $region164
        $region163: #{critic_net_forward.1} parent=91 // pred_region
          _
        $region164: #{critic_net_forward.1} parent=91 // pred_fallthru
          _
        // Predicated region
        $region165: #{critic_net_forward.1} parent=91 // pred_check
          %p12826 = pneg %p468
        $region166: #{critic_net_forward.1} parent=91 // pred_check_branch
          %12828 = sbr.rel (%p12826) target = $region168
        $region167: #{critic_net_forward.1} parent=91 // pred_region
          %12830 = vsyncadd [#allocation6], 0
          %s12832 = sshll.u32 [#allocation27], 4
          %s12833 = int_to_ptr.vmem [resolvable:$true] %s12832
          %s12834 = sshll.u32 %s19, 4
          %s12835 = int_to_ptr.hbm [resolvable:$true] %s12834
          %12837 = dma.vmem_to_hbm [thread:$0]  %s12833, 64, %s12835, [#allocation6]
        $region168: #{critic_net_forward.1} parent=91 // pred_fallthru
          _
        // Predicated region
        $region169: #{critic_net_forward.1} parent=91 // pred_check
          %p12838 = pneg %p447
        $region170: #{critic_net_forward.1} parent=91 // pred_check_branch
          %12840 = sbr.rel (%p12838) target = $region172
        $region171: #{critic_net_forward.1} parent=91 // pred_region
          _
        $region172: #{critic_net_forward.1} parent=91 // pred_fallthru
          _
        // Predicated region
        $region173: #{critic_net_forward.1} parent=91 // pred_check
          %p12841 = pneg %p468
        $region174: #{critic_net_forward.1} parent=91 // pred_check_branch
          %12843 = sbr.rel (%p12841) target = $region176
        $region175: #{critic_net_forward.1} parent=91 // pred_region
          %12845 = dma.done [#allocation6], 64
        $region176: #{critic_net_forward.1} parent=91 // pred_fallthru
          _
      $region92: #{critic_net_forward.1} parent=5 // pred_fallthru
        _
      %p12846 = scmp.le.s32.totalorder 2, %s36
      // Predicated region
      $region177: #{critic_net_forward.1} parent=5 // pred_check
        %p12847 = pneg %p12846
      $region178: #{critic_net_forward.1} parent=5 // pred_check_branch
        %12849 = sbr.rel (%p12847) target = $region180
      $region179: #{critic_net_forward.1} parent=5 // pred_region
        %s12850 = ssub.s32 %s36, 2
      $region180: #{critic_net_forward.1} parent=5 // pred_fallthru
        _
    $region6: #{critic_net_forward.1} parent=1 // loop_footer
      %s40 = sadd.s32 1, %s36
    $region7: #{critic_net_forward.1} parent=1 // loop_footer_branch
      %35 = sbr.rel target = $region3
    $region8: #{critic_net_forward.1} parent=1 // loop_exit
      _
    %12851 = vsyncpa [#allocation5], 1
    %s12852 = scalar_lea.sflag [#allocation5], 1
    %12853 = vsyncpa %s12852, 1
    %12854 = vsyncpa [#allocation8], 1
    %12855 = vsyncpa [#allocation14], 1
    %12856 = vsyncpa [#allocation17], 1
    %12857 = vsyncpa [#allocation20], 1
    %12858 = vsyncpa [#allocation23], 1
    %12859 = vsyncpa [#allocation26], 1
    %12860 = vsyncpa [#allocation6], 1
    %s12861 = scalar_lea.sflag [#allocation6], 1
    %12862 = vsyncpa %s12861, 1

</llo_original>
